<compile_context>
chip_gen: v7x
topology: tpu7x:2x2x1
jax: 0.10.0
libtpu: 0.0.40
codegen_flags: <defaults>
</compile_context>

<pallas_src>
from functools import partial

import jax
import jax.numpy as jnp
from jax.experimental import pallas as pl
from jax.experimental.pallas import tpu as pltpu

EPS = 1e-5
EXPANSION = 4
LANES = 128


def _round_up(n, m):
    return ((n + m - 1) // m) * m


def _full_spec(shape):
    n = len(shape)
    return pl.BlockSpec(shape, lambda i, n=n: (0,) * n)


def _vmem_limit_bytes():
    cap = 128 * 1024 * 1024
    try:
        cap = int(pltpu.get_tpu_info().vmem_capacity_bytes)
    except Exception:
        pass
    # ~45% of physical VMEM, clamped; plenty for this kernel's ~4-7 MiB working
    # set and leaves double-buffer headroom even on v7x's 64 MiB.
    return max(16 * 1024 * 1024, min(int(cap * 0.45), 48 * 1024 * 1024))


# ----------------------------------------------------------------------------
# Fused bottleneck kernel (single pallas_call, grid=(1,))
# ----------------------------------------------------------------------------
def _make_kernel(B, H, W, H2, W2, stride, has_sc, Cp, Pp, Op):
    M, M2 = B * H * W, B * H2 * W2
    fuse_sc = has_sc and stride == 1          # conv1 + shortcut share one N=256 dot
    K2 = 9 * Pp
    inv_m = 1.0 / float(M)
    inv_m2 = 1.0 / float(M2)

    def _bn(y, g, b, inv_n):
        # Single-pass batch-stats BN: one sweep for sum & sum-of-squares (f32),
        # rsqrt goes to the EUP slot, fused per-channel scale/shift on the VPU.
        s = jnp.sum(y, axis=0, keepdims=True)
        ss = jnp.sum(y * y, axis=0, keepdims=True)
        mean = s * inv_n
        var = jnp.maximum(ss * inv_n - mean * mean, 0.0)
        scale = g * jax.lax.rsqrt(var + EPS)
        shift = b - mean * scale
        return y * scale + shift

    def kernel(*refs):
        it = iter(refs)
        x_ref = next(it)
        xs_ref = next(it) if (has_sc and stride > 1) else None
        w1_ref = next(it)
        wsc_ref = next(it) if (has_sc and stride > 1) else None
        w2_ref = next(it)
        w3_ref = next(it)
        g1, b1 = next(it), next(it)
        g2, b2 = next(it), next(it)
        g3, b3 = next(it), next(it)
        if has_sc:
            gsc, bsc = next(it), next(it)
        o_ref = next(it)
        pad_ref = next(it)

        # ---- conv1 (1x1) [+ fused shortcut conv] + bn1 + relu ----------------
        xb = x_ref[...].astype(jnp.bfloat16)
        y0 = jnp.dot(xb, w1_ref[...], preferred_element_type=jnp.float32)
        if fuse_sc:
            y1 = y0[:, :Pp]
            sc = _bn(y0[:, Pp:], gsc[...], bsc[...], inv_m)
        else:
            y1 = y0
            if has_sc:        # stride > 1: separate (strided) shortcut input
                sc = jnp.dot(xs_ref[...].astype(jnp.bfloat16), wsc_ref[...],
                             preferred_element_type=jnp.float32)
                sc = _bn(sc, gsc[...], bsc[...], inv_m2)
            else:             # identity shortcut (Cp == Op by construction)
                sc = x_ref[...].astype(jnp.float32)
        y1 = jnp.maximum(_bn(y1, g1[...], b1[...], inv_m), 0.0)

        # ---- stage y1 in an f32 halo buffer; zero ONLY the 1-px border -------
        zr = jnp.zeros((B, 1, W + 2, Pp), jnp.float32)
        zc = jnp.zeros((B, H, 1, Pp), jnp.float32)
        pad_ref[:, 0:1, :, :] = zr
        pad_ref[:, H + 1:H + 2, :, :] = zr
        pad_ref[:, 1:H + 1, 0:1, :] = zc
        pad_ref[:, 1:H + 1, W + 1:W + 2, :] = zc
        pad_ref[:, 1:H + 1, 1:W + 1, :] = y1.reshape(B, H, W, Pp)

        # ---- conv2 (3x3, pad=1) as ONE dot over a tap-packed contraction -----
        wins = []
        for dy in range(3):
            for dx in range(3):
                if stride == 1:
                    win = pad_ref[:, dy:dy + H2, dx:dx + W2, :]
                else:
                    # TODO(synk): strided sublane reads — untested stride>1 path
                    win = pad_ref[:, pl.ds(dy, H2, stride),
                                  pl.ds(dx, W2, stride), :]
                wins.append(win.astype(jnp.bfloat16))
        # lane-tile-aligned concat (each block is 128 lanes); leading-dim reshape
        # is free (W2 is a multiple of the bf16 sublane tile).
        patches = jnp.concatenate(wins, axis=-1).reshape(M2, K2)
        y2 = jnp.dot(patches, w2_ref[...], preferred_element_type=jnp.float32)
        y2 = jnp.maximum(_bn(y2, g2[...], b2[...], inv_m2), 0.0)

        # ---- conv3 (1x1) + bn3 ------------------------------------------------
        y3 = jnp.dot(y2.astype(jnp.bfloat16), w3_ref[...],
                     preferred_element_type=jnp.float32)
        y3 = _bn(y3, g3[...], b3[...], inv_m2)

        # ---- residual add + relu, lane-dense 128-wide bf16 store --------------
        o_ref[...] = jnp.maximum(y3 + sc, 0.0).astype(o_ref.dtype)

    return kernel


# ----------------------------------------------------------------------------
# Wrapper: layout plumbing, channel padding, weight packing (all fused under jit)
# ----------------------------------------------------------------------------
@partial(jax.jit, static_argnums=(2, 3))
def bottleneck_forward(x_nchw, params, planes, stride):
    """Pallas-backed forward pass. Input/output are NCHW (PyTorch convention)."""
    x = jnp.transpose(x_nchw, (0, 2, 3, 1)).astype(jnp.float32)      # NHWC
    B, H, W, Cin = x.shape
    cout = EXPANSION * planes
    assert H % stride == 0 and W % stride == 0
    H2, W2 = H // stride, W // stride
    M, M2 = B * H * W, B * H2 * W2

    Cp = _round_up(Cin, LANES)
    Pp = _round_up(planes, LANES)
    Op = _round_up(cout, LANES)
    has_sc = "wsc" in params
    fuse_sc = has_sc and stride == 1

    def padw(w, r, c):  # zero-pad a 2-D weight to (r, c), cast to bf16 (MXU operand)
        return jnp.pad(w, ((0, r - w.shape[0]), (0, c - w.shape[1]))).astype(jnp.bfloat16)

    def padv(v, n):     # zero-pad gamma/beta; padded channels stay exactly zero
        return jnp.pad(v, (0, n - v.shape[0])).reshape(1, n).astype(jnp.float32)

    xp = jnp.pad(x, ((0, 0), (0, 0), (0, 0), (0, Cp - Cin)))
    # Identity shortcut adds x directly -> keep f32; otherwise ship bf16 once.
    x_flat = xp.reshape(M, Cp).astype(jnp.bfloat16 if has_sc else jnp.float32)

    w1 = padw(params["w1"][:, :, 0, 0].T, Cp, Pp)                    # (Cp, Pp)
    w2 = jnp.transpose(params["w2"], (2, 3, 1, 0)).reshape(9, planes, planes)
    w2 = jnp.pad(w2, ((0, 0), (0, Pp - planes), (0, Pp - planes)))
    w2 = w2.reshape(9 * Pp, Pp).astype(jnp.bfloat16)                 # tap-packed K
    w3 = padw(params["w3"][:, :, 0, 0].T, Pp, Op)                    # (Pp, Op)

    args, specs = [], []

    def add(a):
        args.append(a)
        specs.append(_full_spec(a.shape))

    add(x_flat)
    if has_sc and stride > 1:
        add(xp[:, ::stride, ::stride, :].reshape(M2, Cp).astype(jnp.bfloat16))
    if fuse_sc:
        wsc = padw(params["wsc"][:, :, 0, 0].T, Cp, Op)
        add(jnp.concatenate([w1, wsc], axis=1))        # one (Cp, Pp+Op) N=256 dot
    else:
        add(w1)
        if has_sc:
            add(padw(params["wsc"][:, :, 0, 0].T, Cp, Op))
    add(w2)
    add(w3)
    for a in (padv(params["g1"], Pp), padv(params["b1"], Pp),
              padv(params["g2"], Pp), padv(params["b2"], Pp),
              padv(params["g3"], Op), padv(params["b3"], Op)):
        add(a)
    if has_sc:
        add(padv(params["gsc"], Op))
        add(padv(params["bsc"], Op))

    kernel = _make_kernel(B, H, W, H2, W2, stride, has_sc, Cp, Pp, Op)

    out = pl.pallas_call(
        kernel,
        out_shape=jax.ShapeDtypeStruct((M2, Op), jnp.bfloat16),
        grid=(1,),
        in_specs=specs,
        out_specs=_full_spec((M2, Op)),
        scratch_shapes=[pltpu.VMEM((B, H + 2, W + 2, Pp), jnp.float32)],
        compiler_params=pltpu.CompilerParams(
            dimension_semantics=("arbitrary",),
            vmem_limit_bytes=_vmem_limit_bytes(),
        ),
    )(*args)

    out = out.reshape(B, H2, W2, Op)[..., :cout].astype(jnp.float32)
    return jnp.transpose(out, (0, 3, 1, 2))                          # back to NCHW


# ----------------------------------------------------------------------------
# Parameter init (matches PyTorch defaults closely enough for testing)
# ----------------------------------------------------------------------------
def init_bottleneck_params(key, in_planes, planes, stride):
    ks = jax.random.split(key, 8)

    def conv_w(k, cout, cin, kh, kw):
        fan_in = cin * kh * kw
        bound = 1.0 / (fan_in ** 0.5)
        return jax.random.uniform(k, (cout, cin, kh, kw), jnp.float32, -bound, bound)

    p = {
        "w1": conv_w(ks[0], planes, in_planes, 1, 1),
        "g1": 1.0 + 0.1 * jax.random.normal(ks[1], (planes,), jnp.float32),
        "b1": 0.1 * jax.random.normal(ks[2], (planes,), jnp.float32),
        "w2": conv_w(ks[3], planes, planes, 3, 3),
        "g2": jnp.ones((planes,), jnp.float32),
        "b2": jnp.zeros((planes,), jnp.float32),
        "w3": conv_w(ks[4], EXPANSION * planes, planes, 1, 1),
        "g3": jnp.ones((EXPANSION * planes,), jnp.float32),
        "b3": jnp.zeros((EXPANSION * planes,), jnp.float32),
    }
    if stride != 1 or in_planes != EXPANSION * planes:
        p["wsc"] = conv_w(ks[5], EXPANSION * planes, in_planes, 1, 1)
        p["gsc"] = jnp.ones((EXPANSION * planes,), jnp.float32)
        p["bsc"] = jnp.zeros((EXPANSION * planes,), jnp.float32)
    return p


# ----------------------------------------------------------------------------
# Pure-JAX reference (correctness check only)
# ----------------------------------------------------------------------------
def bottleneck_ref(x_nchw, params, planes, stride):
    x = jnp.transpose(x_nchw, (0, 2, 3, 1)).astype(jnp.float32)

    def conv(a, w_oihw, s, pad):
        return jax.lax.conv_general_dilated(
            a, jnp.transpose(w_oihw, (2, 3, 1, 0)),
            window_strides=(s, s), padding=[(pad, pad), (pad, pad)],
            dimension_numbers=("NHWC", "HWIO", "NHWC"))

    def bn(a, g, b):
        m = a.mean(axis=(0, 1, 2), keepdims=True)
        v = ((a - m) ** 2).mean(axis=(0, 1, 2), keepdims=True)
        return (a - m) * jax.lax.rsqrt(v + EPS) * g + b

    out = jax.nn.relu(bn(conv(x, params["w1"], 1, 0), params["g1"], params["b1"]))
    out = jax.nn.relu(bn(conv(out, params["w2"], stride, 1), params["g2"], params["b2"]))
    out = bn(conv(out, params["w3"], 1, 0), params["g3"], params["b3"])
    if "wsc" in params:
        sc = bn(conv(x, params["wsc"], stride, 0), params["gsc"], params["bsc"])
    else:
        sc = x
    return jnp.transpose(jax.nn.relu(out + sc), (0, 3, 1, 2))


# ----------------------------------------------------------------------------
if __name__ == "__main__":
    key = jax.random.PRNGKey(0)
    kx, kp = jax.random.split(key)

    B, in_planes, H, W = 2, 4, 16, 16
    planes, stride = 4, 1                     # Bottleneck(in_planes=4, planes=4, stride=1)

    x = jax.random.normal(kx, (B, in_planes, H, W), jnp.float32)
    params = init_bottleneck_params(kp, in_planes, planes, stride)

    out = jax.block_until_ready(bottleneck_forward(x, params, planes, stride))
    ref = bottleneck_ref(x, params, planes, stride)

    assert out.shape == (B, EXPANSION * planes, H // stride, W // stride), out.shape
    # bf16 MXU operands + bf16 output (f32 accumulation / BN stats) -> loosened tol
    max_err = float(jnp.max(jnp.abs(out - ref)))
    assert jnp.allclose(out, ref, rtol=1e-1, atol=1e-1), max_err

    print("KERNEL_OK")
</pallas_src>

<mosaic_0001>
module attributes {stable_mosaic.version = 11 : i64} {
  func.func @kernel(%arg0: i32, %arg1: memref<512x128xbf16, #tpu.memory_space<vmem>>, %arg2: memref<128x256xbf16, #tpu.memory_space<vmem>>, %arg3: memref<1152x128xbf16, #tpu.memory_space<vmem>>, %arg4: memref<128x128xbf16, #tpu.memory_space<vmem>>, %arg5: memref<1x128xf32, #tpu.memory_space<vmem>>, %arg6: memref<1x128xf32, #tpu.memory_space<vmem>>, %arg7: memref<1x128xf32, #tpu.memory_space<vmem>>, %arg8: memref<1x128xf32, #tpu.memory_space<vmem>>, %arg9: memref<1x128xf32, #tpu.memory_space<vmem>>, %arg10: memref<1x128xf32, #tpu.memory_space<vmem>>, %arg11: memref<1x128xf32, #tpu.memory_space<vmem>>, %arg12: memref<1x128xf32, #tpu.memory_space<vmem>>, %arg13: memref<512x128xbf16, #tpu.memory_space<vmem>>, %arg14: memref<2x18x18x128xf32, #tpu.memory_space<vmem>>) attributes {dimension_semantics = [#tpu.dimension_semantics<arbitrary>], iteration_bounds = array<i64: 1>, scalar_prefetch = 0 : i64, scratch_operands = 1 : i64, tpu.core_type = #tpu.core_type<tc>, window_params = [{pipeline_mode = #tpu.pipeline_mode<synchronous>, transform_indices = @transform_0, window_bounds = array<i64: 512, 128>}, {pipeline_mode = #tpu.pipeline_mode<synchronous>, transform_indices = @transform_1, window_bounds = array<i64: 128, 256>}, {pipeline_mode = #tpu.pipeline_mode<synchronous>, transform_indices = @transform_2, window_bounds = array<i64: 1152, 128>}, {pipeline_mode = #tpu.pipeline_mode<synchronous>, transform_indices = @transform_3, window_bounds = array<i64: 128, 128>}, {pipeline_mode = #tpu.pipeline_mode<synchronous>, transform_indices = @transform_4, window_bounds = array<i64: 1, 128>}, {pipeline_mode = #tpu.pipeline_mode<synchronous>, transform_indices = @transform_5, window_bounds = array<i64: 1, 128>}, {pipeline_mode = #tpu.pipeline_mode<synchronous>, transform_indices = @transform_6, window_bounds = array<i64: 1, 128>}, {pipeline_mode = #tpu.pipeline_mode<synchronous>, transform_indices = @transform_7, window_bounds = array<i64: 1, 128>}, {pipeline_mode = #tpu.pipeline_mode<synchronous>, transform_indices = @transform_8, window_bounds = array<i64: 1, 128>}, {pipeline_mode = #tpu.pipeline_mode<synchronous>, transform_indices = @transform_9, window_bounds = array<i64: 1, 128>}, {pipeline_mode = #tpu.pipeline_mode<synchronous>, transform_indices = @transform_10, window_bounds = array<i64: 1, 128>}, {pipeline_mode = #tpu.pipeline_mode<synchronous>, transform_indices = @transform_11, window_bounds = array<i64: 1, 128>}, {pipeline_mode = #tpu.pipeline_mode<synchronous>, transform_indices = @transform_12, window_bounds = array<i64: 512, 128>}]} {
    %c0 = arith.constant 0 : index
    %c0_0 = arith.constant 0 : index
    %0 = vector.load %arg1[%c0, %c0_0] : memref<512x128xbf16, #tpu.memory_space<vmem>>, vector<512x128xbf16>
    %c0_1 = arith.constant 0 : index
    %c0_2 = arith.constant 0 : index
    %1 = vector.load %arg2[%c0_1, %c0_2] : memref<128x256xbf16, #tpu.memory_space<vmem>>, vector<128x256xbf16>
    %cst = arith.constant dense<0.000000e+00> : vector<512x256xf32>
    %2 = tpu.matmul %0, %1, %cst {dimension_numbers = #tpu.dot_dimension_numbers<[1], [0], [0], [1], [0, 0, 1, 1], [], []>} : vector<512x128xbf16>, vector<128x256xbf16>, vector<512x256xf32> -> vector<512x256xf32>
    %3 = vector.extract_strided_slice %2 {offsets = [0, 0], sizes = [512, 128], strides = [1, 1]} : vector<512x256xf32> to vector<512x128xf32>
    %4 = vector.extract_strided_slice %2 {offsets = [0, 128], sizes = [512, 128], strides = [1, 1]} : vector<512x256xf32> to vector<512x128xf32>
    %c0_3 = arith.constant 0 : index
    %c0_4 = arith.constant 0 : index
    %5 = vector.load %arg11[%c0_3, %c0_4] : memref<1x128xf32, #tpu.memory_space<vmem>>, vector<1x128xf32>
    %c0_5 = arith.constant 0 : index
    %c0_6 = arith.constant 0 : index
    %6 = vector.load %arg12[%c0_5, %c0_6] : memref<1x128xf32, #tpu.memory_space<vmem>>, vector<1x128xf32>
    %cst_7 = arith.constant dense<0.000000e+00> : vector<128xf32>
    %7 = vector.multi_reduction <add>, %4, %cst_7 [0] : vector<512x128xf32> to vector<128xf32>
    %8 = vector.shape_cast %7 : vector<128xf32> to vector<1x128xf32>
    %9 = arith.mulf %4, %4 : vector<512x128xf32>
    %cst_8 = arith.constant dense<0.000000e+00> : vector<128xf32>
    %10 = vector.multi_reduction <add>, %9, %cst_8 [0] : vector<512x128xf32> to vector<128xf32>
    %11 = vector.shape_cast %10 : vector<128xf32> to vector<1x128xf32>
    %cst_9 = arith.constant 0.001953125 : f32
    %12 = vector.broadcast %cst_9 : f32 to vector<1x128xf32>
    %13 = arith.mulf %8, %12 : vector<1x128xf32>
    %cst_10 = arith.constant 0.001953125 : f32
    %14 = vector.broadcast %cst_10 : f32 to vector<1x128xf32>
    %15 = arith.mulf %11, %14 : vector<1x128xf32>
    %16 = arith.mulf %13, %13 : vector<1x128xf32>
    %17 = arith.subf %15, %16 : vector<1x128xf32>
    %cst_11 = arith.constant 0.000000e+00 : f32
    %18 = vector.broadcast %cst_11 : f32 to vector<1x128xf32>
    %19 = arith.maximumf %17, %18 : vector<1x128xf32>
    %cst_12 = arith.constant 9.99999974E-6 : f32
    %20 = vector.broadcast %cst_12 : f32 to vector<1x128xf32>
    %21 = arith.addf %19, %20 : vector<1x128xf32>
    %22 = math.rsqrt %21 : vector<1x128xf32>
    %23 = arith.mulf %5, %22 : vector<1x128xf32>
    %24 = arith.mulf %13, %23 : vector<1x128xf32>
    %25 = arith.subf %6, %24 : vector<1x128xf32>
    %26 = vector.broadcast %23 : vector<1x128xf32> to vector<512x128xf32>
    %27 = arith.mulf %4, %26 : vector<512x128xf32>
    %28 = vector.broadcast %25 : vector<1x128xf32> to vector<512x128xf32>
    %29 = arith.addf %27, %28 : vector<512x128xf32>
    %c0_13 = arith.constant 0 : index
    %c0_14 = arith.constant 0 : index
    %30 = vector.load %arg5[%c0_13, %c0_14] : memref<1x128xf32, #tpu.memory_space<vmem>>, vector<1x128xf32>
    %c0_15 = arith.constant 0 : index
    %c0_16 = arith.constant 0 : index
    %31 = vector.load %arg6[%c0_15, %c0_16] : memref<1x128xf32, #tpu.memory_space<vmem>>, vector<1x128xf32>
    %cst_17 = arith.constant dense<0.000000e+00> : vector<128xf32>
    %32 = vector.multi_reduction <add>, %3, %cst_17 [0] : vector<512x128xf32> to vector<128xf32>
    %33 = vector.shape_cast %32 : vector<128xf32> to vector<1x128xf32>
    %34 = arith.mulf %3, %3 : vector<512x128xf32>
    %cst_18 = arith.constant dense<0.000000e+00> : vector<128xf32>
    %35 = vector.multi_reduction <add>, %34, %cst_18 [0] : vector<512x128xf32> to vector<128xf32>
    %36 = vector.shape_cast %35 : vector<128xf32> to vector<1x128xf32>
    %cst_19 = arith.constant 0.001953125 : f32
    %37 = vector.broadcast %cst_19 : f32 to vector<1x128xf32>
    %38 = arith.mulf %33, %37 : vector<1x128xf32>
    %cst_20 = arith.constant 0.001953125 : f32
    %39 = vector.broadcast %cst_20 : f32 to vector<1x128xf32>
    %40 = arith.mulf %36, %39 : vector<1x128xf32>
    %41 = arith.mulf %38, %38 : vector<1x128xf32>
    %42 = arith.subf %40, %41 : vector<1x128xf32>
    %cst_21 = arith.constant 0.000000e+00 : f32
    %43 = vector.broadcast %cst_21 : f32 to vector<1x128xf32>
    %44 = arith.maximumf %42, %43 : vector<1x128xf32>
    %cst_22 = arith.constant 9.99999974E-6 : f32
    %45 = vector.broadcast %cst_22 : f32 to vector<1x128xf32>
    %46 = arith.addf %44, %45 : vector<1x128xf32>
    %47 = math.rsqrt %46 : vector<1x128xf32>
    %48 = arith.mulf %30, %47 : vector<1x128xf32>
    %49 = arith.mulf %38, %48 : vector<1x128xf32>
    %50 = arith.subf %31, %49 : vector<1x128xf32>
    %51 = vector.broadcast %48 : vector<1x128xf32> to vector<512x128xf32>
    %52 = arith.mulf %3, %51 : vector<512x128xf32>
    %53 = vector.broadcast %50 : vector<1x128xf32> to vector<512x128xf32>
    %54 = arith.addf %52, %53 : vector<512x128xf32>
    %cst_23 = arith.constant 0.000000e+00 : f32
    %55 = vector.broadcast %cst_23 : f32 to vector<512x128xf32>
    %56 = arith.maximumf %54, %55 : vector<512x128xf32>
    %cst_24 = arith.constant 0.000000e+00 : f32
    %57 = vector.broadcast %cst_24 : f32 to vector<2x1x18x128xf32>
    %cst_25 = arith.constant 0.000000e+00 : f32
    %58 = vector.broadcast %cst_25 : f32 to vector<2x16x1x128xf32>
    %c0_26 = arith.constant 0 : index
    %c0_27 = arith.constant 0 : index
    %c0_28 = arith.constant 0 : index
    %c0_29 = arith.constant 0 : index
    %59 = vector.load %arg14[%c0_26, %c0_27, %c0_28, %c0_29] : memref<2x18x18x128xf32, #tpu.memory_space<vmem>>, vector<2x1x18x128xf32>
    tpu.vector_store %arg14[%c0_26, %c0_27, %c0_28, %c0_29], %57 {strides = array<i32>} : memref<2x18x18x128xf32, #tpu.memory_space<vmem>>, vector<2x1x18x128xf32>,
    %c0_30 = arith.constant 0 : index
    %c17 = arith.constant 17 : index
    %c0_31 = arith.constant 0 : index
    %c0_32 = arith.constant 0 : index
    %60 = vector.load %arg14[%c0_30, %c17, %c0_31, %c0_32] : memref<2x18x18x128xf32, #tpu.memory_space<vmem>>, vector<2x1x18x128xf32>
    tpu.vector_store %arg14[%c0_30, %c17, %c0_31, %c0_32], %57 {strides = array<i32>} : memref<2x18x18x128xf32, #tpu.memory_space<vmem>>, vector<2x1x18x128xf32>,
    %c0_33 = arith.constant 0 : index
    %c1 = arith.constant 1 : index
    %c0_34 = arith.constant 0 : index
    %c0_35 = arith.constant 0 : index
    %61 = vector.load %arg14[%c0_33, %c1, %c0_34, %c0_35] : memref<2x18x18x128xf32, #tpu.memory_space<vmem>>, vector<2x16x1x128xf32>
    tpu.vector_store %arg14[%c0_33, %c1, %c0_34, %c0_35], %58 {strides = array<i32>} : memref<2x18x18x128xf32, #tpu.memory_space<vmem>>, vector<2x16x1x128xf32>,
    %c0_36 = arith.constant 0 : index
    %c1_37 = arith.constant 1 : index
    %c17_38 = arith.constant 17 : index
    %c0_39 = arith.constant 0 : index
    %62 = vector.load %arg14[%c0_36, %c1_37, %c17_38, %c0_39] : memref<2x18x18x128xf32, #tpu.memory_space<vmem>>, vector<2x16x1x128xf32>
    tpu.vector_store %arg14[%c0_36, %c1_37, %c17_38, %c0_39], %58 {strides = array<i32>} : memref<2x18x18x128xf32, #tpu.memory_space<vmem>>, vector<2x16x1x128xf32>,
    %63 = vector.shape_cast %56 : vector<512x128xf32> to vector<2x16x16x128xf32>
    %c0_40 = arith.constant 0 : index
    %c1_41 = arith.constant 1 : index
    %c1_42 = arith.constant 1 : index
    %c0_43 = arith.constant 0 : index
    %64 = vector.load %arg14[%c0_40, %c1_41, %c1_42, %c0_43] : memref<2x18x18x128xf32, #tpu.memory_space<vmem>>, vector<2x16x16x128xf32>
    tpu.vector_store %arg14[%c0_40, %c1_41, %c1_42, %c0_43], %63 {strides = array<i32>} : memref<2x18x18x128xf32, #tpu.memory_space<vmem>>, vector<2x16x16x128xf32>,
    %c0_44 = arith.constant 0 : index
    %c0_45 = arith.constant 0 : index
    %c0_46 = arith.constant 0 : index
    %c0_47 = arith.constant 0 : index
    %65 = vector.load %arg14[%c0_44, %c0_45, %c0_46, %c0_47] : memref<2x18x18x128xf32, #tpu.memory_space<vmem>>, vector<2x16x16x128xf32>
    %66 = arith.truncf %65 : vector<2x16x16x128xf32> to vector<2x16x16x128xbf16>
    %c0_48 = arith.constant 0 : index
    %c0_49 = arith.constant 0 : index
    %c1_50 = arith.constant 1 : index
    %c0_51 = arith.constant 0 : index
    %67 = vector.load %arg14[%c0_48, %c0_49, %c1_50, %c0_51] : memref<2x18x18x128xf32, #tpu.memory_space<vmem>>, vector<2x16x16x128xf32>
    %68 = arith.truncf %67 : vector<2x16x16x128xf32> to vector<2x16x16x128xbf16>
    %c0_52 = arith.constant 0 : index
    %c0_53 = arith.constant 0 : index
    %c2 = arith.constant 2 : index
    %c0_54 = arith.constant 0 : index
    %69 = vector.load %arg14[%c0_52, %c0_53, %c2, %c0_54] : memref<2x18x18x128xf32, #tpu.memory_space<vmem>>, vector<2x16x16x128xf32>
    %70 = arith.truncf %69 : vector<2x16x16x128xf32> to vector<2x16x16x128xbf16>
    %c0_55 = arith.constant 0 : index
    %c1_56 = arith.constant 1 : index
    %c0_57 = arith.constant 0 : index
    %c0_58 = arith.constant 0 : index
    %71 = vector.load %arg14[%c0_55, %c1_56, %c0_57, %c0_58] : memref<2x18x18x128xf32, #tpu.memory_space<vmem>>, vector<2x16x16x128xf32>
    %72 = arith.truncf %71 : vector<2x16x16x128xf32> to vector<2x16x16x128xbf16>
    %c0_59 = arith.constant 0 : index
    %c1_60 = arith.constant 1 : index
    %c1_61 = arith.constant 1 : index
    %c0_62 = arith.constant 0 : index
    %73 = vector.load %arg14[%c0_59, %c1_60, %c1_61, %c0_62] : memref<2x18x18x128xf32, #tpu.memory_space<vmem>>, vector<2x16x16x128xf32>
    %74 = arith.truncf %73 : vector<2x16x16x128xf32> to vector<2x16x16x128xbf16>
    %c0_63 = arith.constant 0 : index
    %c1_64 = arith.constant 1 : index
    %c2_65 = arith.constant 2 : index
    %c0_66 = arith.constant 0 : index
    %75 = vector.load %arg14[%c0_63, %c1_64, %c2_65, %c0_66] : memref<2x18x18x128xf32, #tpu.memory_space<vmem>>, vector<2x16x16x128xf32>
    %76 = arith.truncf %75 : vector<2x16x16x128xf32> to vector<2x16x16x128xbf16>
    %c0_67 = arith.constant 0 : index
    %c2_68 = arith.constant 2 : index
    %c0_69 = arith.constant 0 : index
    %c0_70 = arith.constant 0 : index
    %77 = vector.load %arg14[%c0_67, %c2_68, %c0_69, %c0_70] : memref<2x18x18x128xf32, #tpu.memory_space<vmem>>, vector<2x16x16x128xf32>
    %78 = arith.truncf %77 : vector<2x16x16x128xf32> to vector<2x16x16x128xbf16>
    %c0_71 = arith.constant 0 : index
    %c2_72 = arith.constant 2 : index
    %c1_73 = arith.constant 1 : index
    %c0_74 = arith.constant 0 : index
    %79 = vector.load %arg14[%c0_71, %c2_72, %c1_73, %c0_74] : memref<2x18x18x128xf32, #tpu.memory_space<vmem>>, vector<2x16x16x128xf32>
    %80 = arith.truncf %79 : vector<2x16x16x128xf32> to vector<2x16x16x128xbf16>
    %c0_75 = arith.constant 0 : index
    %c2_76 = arith.constant 2 : index
    %c2_77 = arith.constant 2 : index
    %c0_78 = arith.constant 0 : index
    %81 = vector.load %arg14[%c0_75, %c2_76, %c2_77, %c0_78] : memref<2x18x18x128xf32, #tpu.memory_space<vmem>>, vector<2x16x16x128xf32>
    %82 = arith.truncf %81 : vector<2x16x16x128xf32> to vector<2x16x16x128xbf16>
    %83 = tpu.concatenate %66, %68, %70, %72, %74, %76, %78, %80, %82 in 3 : vector<2x16x16x128xbf16>, vector<2x16x16x128xbf16>, vector<2x16x16x128xbf16>, vector<2x16x16x128xbf16>, vector<2x16x16x128xbf16>, vector<2x16x16x128xbf16>, vector<2x16x16x128xbf16>, vector<2x16x16x128xbf16>, vector<2x16x16x128xbf16> -> vector<2x16x16x1152xbf16>
    %84 = vector.shape_cast %83 : vector<2x16x16x1152xbf16> to vector<512x1152xbf16>
    %c0_79 = arith.constant 0 : index
    %c0_80 = arith.constant 0 : index
    %85 = vector.load %arg3[%c0_79, %c0_80] : memref<1152x128xbf16, #tpu.memory_space<vmem>>, vector<1152x128xbf16>
    %cst_81 = arith.constant dense<0.000000e+00> : vector<512x128xf32>
    %86 = tpu.matmul %84, %85, %cst_81 {dimension_numbers = #tpu.dot_dimension_numbers<[1], [0], [0], [1], [0, 0, 1, 1], [], []>} : vector<512x1152xbf16>, vector<1152x128xbf16>, vector<512x128xf32> -> vector<512x128xf32>
    %c0_82 = arith.constant 0 : index
    %c0_83 = arith.constant 0 : index
    %87 = vector.load %arg7[%c0_82, %c0_83] : memref<1x128xf32, #tpu.memory_space<vmem>>, vector<1x128xf32>
    %c0_84 = arith.constant 0 : index
    %c0_85 = arith.constant 0 : index
    %88 = vector.load %arg8[%c0_84, %c0_85] : memref<1x128xf32, #tpu.memory_space<vmem>>, vector<1x128xf32>
    %cst_86 = arith.constant dense<0.000000e+00> : vector<128xf32>
    %89 = vector.multi_reduction <add>, %86, %cst_86 [0] : vector<512x128xf32> to vector<128xf32>
    %90 = vector.shape_cast %89 : vector<128xf32> to vector<1x128xf32>
    %91 = arith.mulf %86, %86 : vector<512x128xf32>
    %cst_87 = arith.constant dense<0.000000e+00> : vector<128xf32>
    %92 = vector.multi_reduction <add>, %91, %cst_87 [0] : vector<512x128xf32> to vector<128xf32>
    %93 = vector.shape_cast %92 : vector<128xf32> to vector<1x128xf32>
    %cst_88 = arith.constant 0.001953125 : f32
    %94 = vector.broadcast %cst_88 : f32 to vector<1x128xf32>
    %95 = arith.mulf %90, %94 : vector<1x128xf32>
    %cst_89 = arith.constant 0.001953125 : f32
    %96 = vector.broadcast %cst_89 : f32 to vector<1x128xf32>
    %97 = arith.mulf %93, %96 : vector<1x128xf32>
    %98 = arith.mulf %95, %95 : vector<1x128xf32>
    %99 = arith.subf %97, %98 : vector<1x128xf32>
    %cst_90 = arith.constant 0.000000e+00 : f32
    %100 = vector.broadcast %cst_90 : f32 to vector<1x128xf32>
    %101 = arith.maximumf %99, %100 : vector<1x128xf32>
    %cst_91 = arith.constant 9.99999974E-6 : f32
    %102 = vector.broadcast %cst_91 : f32 to vector<1x128xf32>
    %103 = arith.addf %101, %102 : vector<1x128xf32>
    %104 = math.rsqrt %103 : vector<1x128xf32>
    %105 = arith.mulf %87, %104 : vector<1x128xf32>
    %106 = arith.mulf %95, %105 : vector<1x128xf32>
    %107 = arith.subf %88, %106 : vector<1x128xf32>
    %108 = vector.broadcast %105 : vector<1x128xf32> to vector<512x128xf32>
    %109 = arith.mulf %86, %108 : vector<512x128xf32>
    %110 = vector.broadcast %107 : vector<1x128xf32> to vector<512x128xf32>
    %111 = arith.addf %109, %110 : vector<512x128xf32>
    %cst_92 = arith.constant 0.000000e+00 : f32
    %112 = vector.broadcast %cst_92 : f32 to vector<512x128xf32>
    %113 = arith.maximumf %111, %112 : vector<512x128xf32>
    %114 = arith.truncf %113 : vector<512x128xf32> to vector<512x128xbf16>
    %c0_93 = arith.constant 0 : index
    %c0_94 = arith.constant 0 : index
    %115 = vector.load %arg4[%c0_93, %c0_94] : memref<128x128xbf16, #tpu.memory_space<vmem>>, vector<128x128xbf16>
    %cst_95 = arith.constant dense<0.000000e+00> : vector<512x128xf32>
    %116 = tpu.matmul %114, %115, %cst_95 {dimension_numbers = #tpu.dot_dimension_numbers<[1], [0], [0], [1], [0, 0, 1, 1], [], []>} : vector<512x128xbf16>, vector<128x128xbf16>, vector<512x128xf32> -> vector<512x128xf32>
    %c0_96 = arith.constant 0 : index
    %c0_97 = arith.constant 0 : index
    %117 = vector.load %arg9[%c0_96, %c0_97] : memref<1x128xf32, #tpu.memory_space<vmem>>, vector<1x128xf32>
    %c0_98 = arith.constant 0 : index
    %c0_99 = arith.constant 0 : index
    %118 = vector.load %arg10[%c0_98, %c0_99] : memref<1x128xf32, #tpu.memory_space<vmem>>, vector<1x128xf32>
    %cst_100 = arith.constant dense<0.000000e+00> : vector<128xf32>
    %119 = vector.multi_reduction <add>, %116, %cst_100 [0] : vector<512x128xf32> to vector<128xf32>
    %120 = vector.shape_cast %119 : vector<128xf32> to vector<1x128xf32>
    %121 = arith.mulf %116, %116 : vector<512x128xf32>
    %cst_101 = arith.constant dense<0.000000e+00> : vector<128xf32>
    %122 = vector.multi_reduction <add>, %121, %cst_101 [0] : vector<512x128xf32> to vector<128xf32>
    %123 = vector.shape_cast %122 : vector<128xf32> to vector<1x128xf32>
    %cst_102 = arith.constant 0.001953125 : f32
    %124 = vector.broadcast %cst_102 : f32 to vector<1x128xf32>
    %125 = arith.mulf %120, %124 : vector<1x128xf32>
    %cst_103 = arith.constant 0.001953125 : f32
    %126 = vector.broadcast %cst_103 : f32 to vector<1x128xf32>
    %127 = arith.mulf %123, %126 : vector<1x128xf32>
    %128 = arith.mulf %125, %125 : vector<1x128xf32>
    %129 = arith.subf %127, %128 : vector<1x128xf32>
    %cst_104 = arith.constant 0.000000e+00 : f32
    %130 = vector.broadcast %cst_104 : f32 to vector<1x128xf32>
    %131 = arith.maximumf %129, %130 : vector<1x128xf32>
    %cst_105 = arith.constant 9.99999974E-6 : f32
    %132 = vector.broadcast %cst_105 : f32 to vector<1x128xf32>
    %133 = arith.addf %131, %132 : vector<1x128xf32>
    %134 = math.rsqrt %133 : vector<1x128xf32>
    %135 = arith.mulf %117, %134 : vector<1x128xf32>
    %136 = arith.mulf %125, %135 : vector<1x128xf32>
    %137 = arith.subf %118, %136 : vector<1x128xf32>
    %138 = vector.broadcast %135 : vector<1x128xf32> to vector<512x128xf32>
    %139 = arith.mulf %116, %138 : vector<512x128xf32>
    %140 = vector.broadcast %137 : vector<1x128xf32> to vector<512x128xf32>
    %141 = arith.addf %139, %140 : vector<512x128xf32>
    %142 = arith.addf %141, %29 : vector<512x128xf32>
    %cst_106 = arith.constant 0.000000e+00 : f32
    %143 = vector.broadcast %cst_106 : f32 to vector<512x128xf32>
    %144 = arith.maximumf %142, %143 : vector<512x128xf32>
    %145 = arith.truncf %144 : vector<512x128xf32> to vector<512x128xbf16>
    %c0_107 = arith.constant 0 : index
    %c0_108 = arith.constant 0 : index
    %146 = vector.load %arg13[%c0_107, %c0_108] : memref<512x128xbf16, #tpu.memory_space<vmem>>, vector<512x128xbf16>
    tpu.vector_store %arg13[%c0_107, %c0_108], %145 {strides = array<i32>} : memref<512x128xbf16, #tpu.memory_space<vmem>>, vector<512x128xbf16>,
    return
  }
  func.func @transform_0(%arg0: i32) -> (i32, i32) {
    %c0_i32 = arith.constant 0 : i32
    %c0_i32_0 = arith.constant 0 : i32
    %c0_i32_1 = arith.constant 0 : i32
    return %c0_i32, %c0_i32_0 : i32, i32
  }
  func.func @transform_1(%arg0: i32) -> (i32, i32) {
    %c0_i32 = arith.constant 0 : i32
    %c0_i32_0 = arith.constant 0 : i32
    %c0_i32_1 = arith.constant 0 : i32
    return %c0_i32, %c0_i32_0 : i32, i32
  }
  func.func @transform_2(%arg0: i32) -> (i32, i32) {
    %c0_i32 = arith.constant 0 : i32
    %c0_i32_0 = arith.constant 0 : i32
    %c0_i32_1 = arith.constant 0 : i32
    return %c0_i32, %c0_i32_0 : i32, i32
  }
  func.func @transform_3(%arg0: i32) -> (i32, i32) {
    %c0_i32 = arith.constant 0 : i32
    %c0_i32_0 = arith.constant 0 : i32
    %c0_i32_1 = arith.constant 0 : i32
    return %c0_i32, %c0_i32_0 : i32, i32
  }
  func.func @transform_4(%arg0: i32) -> (i32, i32) {
    %c0_i32 = arith.constant 0 : i32
    %c0_i32_0 = arith.constant 0 : i32
    %c0_i32_1 = arith.constant 0 : i32
    return %c0_i32, %c0_i32_0 : i32, i32
  }
  func.func @transform_5(%arg0: i32) -> (i32, i32) {
    %c0_i32 = arith.constant 0 : i32
    %c0_i32_0 = arith.constant 0 : i32
    %c0_i32_1 = arith.constant 0 : i32
    return %c0_i32, %c0_i32_0 : i32, i32
  }
  func.func @transform_6(%arg0: i32) -> (i32, i32) {
    %c0_i32 = arith.constant 0 : i32
    %c0_i32_0 = arith.constant 0 : i32
    %c0_i32_1 = arith.constant 0 : i32
    return %c0_i32, %c0_i32_0 : i32, i32
  }
  func.func @transform_7(%arg0: i32) -> (i32, i32) {
    %c0_i32 = arith.constant 0 : i32
    %c0_i32_0 = arith.constant 0 : i32
    %c0_i32_1 = arith.constant 0 : i32
    return %c0_i32, %c0_i32_0 : i32, i32
  }
  func.func @transform_8(%arg0: i32) -> (i32, i32) {
    %c0_i32 = arith.constant 0 : i32
    %c0_i32_0 = arith.constant 0 : i32
    %c0_i32_1 = arith.constant 0 : i32
    return %c0_i32, %c0_i32_0 : i32, i32
  }
  func.func @transform_9(%arg0: i32) -> (i32, i32) {
    %c0_i32 = arith.constant 0 : i32
    %c0_i32_0 = arith.constant 0 : i32
    %c0_i32_1 = arith.constant 0 : i32
    return %c0_i32, %c0_i32_0 : i32, i32
  }
  func.func @transform_10(%arg0: i32) -> (i32, i32) {
    %c0_i32 = arith.constant 0 : i32
    %c0_i32_0 = arith.constant 0 : i32
    %c0_i32_1 = arith.constant 0 : i32
    return %c0_i32, %c0_i32_0 : i32, i32
  }
  func.func @transform_11(%arg0: i32) -> (i32, i32) {
    %c0_i32 = arith.constant 0 : i32
    %c0_i32_0 = arith.constant 0 : i32
    %c0_i32_1 = arith.constant 0 : i32
    return %c0_i32, %c0_i32_0 : i32, i32
  }
  func.func @transform_12(%arg0: i32) -> (i32, i32) {
    %c0_i32 = arith.constant 0 : i32
    %c0_i32_0 = arith.constant 0 : i32
    %c0_i32_1 = arith.constant 0 : i32
    return %c0_i32, %c0_i32_0 : i32, i32
  }
}

</mosaic_0001>

<llo_original>
// kernel: bottleneck_forward.1
$region0: #{bottleneck_forward.1}
  #allocation0 [shape = 'u32[]', space=smem, size = 0x4, offset = 0x4, fixed_abs, tag = 'smem constant byte address 0x4 - core index']
  #allocation1 [shape = 'u32[144,128]{1,0:T(1,128)}', space=vmem, size = 0x12000, scoped, tag = 'internal scratch']
  #allocation2 [shape = 'f32[2,18,18,128]{3,2,1,0:T(8,128)}', space=vmem, size = 0x6c000, scoped, tag = 'scratch operand']
  %s0 = inlined_call_operand.vmem [shape: bf16[512,128], index: 0, kind: input, shape index: {}]
  %s1 = inlined_call_operand.vmem [shape: bf16[128,256], index: 1, kind: input, shape index: {}]
  %s2 = inlined_call_operand.vmem [shape: bf16[1152,128], index: 2, kind: input, shape index: {}]
  %s3 = inlined_call_operand.vmem [shape: bf16[128,128], index: 3, kind: input, shape index: {}]
  %s4 = inlined_call_operand.vmem [shape: f32[1,128], index: 4, kind: input, shape index: {}]
  %s5 = inlined_call_operand.vmem [shape: f32[1,128], index: 5, kind: input, shape index: {}]
  %s6 = inlined_call_operand.vmem [shape: f32[1,128], index: 6, kind: input, shape index: {}]
  %s7 = inlined_call_operand.vmem [shape: f32[1,128], index: 7, kind: input, shape index: {}]
  %s8 = inlined_call_operand.vmem [shape: f32[1,128], index: 8, kind: input, shape index: {}]
  %s9 = inlined_call_operand.vmem [shape: f32[1,128], index: 9, kind: input, shape index: {}]
  %s10 = inlined_call_operand.vmem [shape: f32[1,128], index: 10, kind: input, shape index: {}]
  %s11 = inlined_call_operand.vmem [shape: f32[1,128], index: 11, kind: input, shape index: {}]
  %s12 = inlined_call_operand.vmem [shape: bf16[512,128], index: 12, kind: output, shape index: {}]
  %s13 = sld [smem:[#allocation0]]
  $region58: #{bottleneck_forward.1} parent=0
    _
  %s15 = ssub.s32 1, %s13
  %s16 = scalar_select 0, %s15, %s13
  // Predicated region
  $region2: #{bottleneck_forward.1} parent=0 // pred_check
    _
  $region3: #{bottleneck_forward.1} parent=0 // pred_check_branch
    %18 = sbr.rel (0) target = $region5
  $region4: #{bottleneck_forward.1} parent=0 // pred_region
    _
  $region5: #{bottleneck_forward.1} parent=0 // pred_fallthru
    _
  // Predicated region
  $region6: #{bottleneck_forward.1} parent=0 // pred_check
    _
  $region7: #{bottleneck_forward.1} parent=0 // pred_check_branch
    %20 = sbr.rel (0) target = $region9
  $region8: #{bottleneck_forward.1} parent=0 // pred_region
    _
  $region9: #{bottleneck_forward.1} parent=0 // pred_fallthru
    _
  // Predicated region
  $region10: #{bottleneck_forward.1} parent=0 // pred_check
    _
  $region11: #{bottleneck_forward.1} parent=0 // pred_check_branch
    %22 = sbr.rel (0) target = $region13
  $region12: #{bottleneck_forward.1} parent=0 // pred_region
    _
  $region13: #{bottleneck_forward.1} parent=0 // pred_fallthru
    _
  // Predicated region
  $region14: #{bottleneck_forward.1} parent=0 // pred_check
    _
  $region15: #{bottleneck_forward.1} parent=0 // pred_check_branch
    %24 = sbr.rel (0) target = $region17
  $region16: #{bottleneck_forward.1} parent=0 // pred_region
    _
  $region17: #{bottleneck_forward.1} parent=0 // pred_fallthru
    _
  // Predicated region
  $region18: #{bottleneck_forward.1} parent=0 // pred_check
    _
  $region19: #{bottleneck_forward.1} parent=0 // pred_check_branch
    %26 = sbr.rel (0) target = $region21
  $region20: #{bottleneck_forward.1} parent=0 // pred_region
    _
  $region21: #{bottleneck_forward.1} parent=0 // pred_fallthru
    _
  // Predicated region
  $region22: #{bottleneck_forward.1} parent=0 // pred_check
    _
  $region23: #{bottleneck_forward.1} parent=0 // pred_check_branch
    %28 = sbr.rel (0) target = $region25
  $region24: #{bottleneck_forward.1} parent=0 // pred_region
    _
  $region25: #{bottleneck_forward.1} parent=0 // pred_fallthru
    _
  // Predicated region
  $region26: #{bottleneck_forward.1} parent=0 // pred_check
    _
  $region27: #{bottleneck_forward.1} parent=0 // pred_check_branch
    %30 = sbr.rel (0) target = $region29
  $region28: #{bottleneck_forward.1} parent=0 // pred_region
    _
  $region29: #{bottleneck_forward.1} parent=0 // pred_fallthru
    _
  // Predicated region
  $region30: #{bottleneck_forward.1} parent=0 // pred_check
    _
  $region31: #{bottleneck_forward.1} parent=0 // pred_check_branch
    %32 = sbr.rel (0) target = $region33
  $region32: #{bottleneck_forward.1} parent=0 // pred_region
    _
  $region33: #{bottleneck_forward.1} parent=0 // pred_fallthru
    _
  // Predicated region
  $region34: #{bottleneck_forward.1} parent=0 // pred_check
    _
  $region35: #{bottleneck_forward.1} parent=0 // pred_check_branch
    %34 = sbr.rel (0) target = $region37
  $region36: #{bottleneck_forward.1} parent=0 // pred_region
    _
  $region37: #{bottleneck_forward.1} parent=0 // pred_fallthru
    _
  // Predicated region
  $region38: #{bottleneck_forward.1} parent=0 // pred_check
    _
  $region39: #{bottleneck_forward.1} parent=0 // pred_check_branch
    %36 = sbr.rel (0) target = $region41
  $region40: #{bottleneck_forward.1} parent=0 // pred_region
    _
  $region41: #{bottleneck_forward.1} parent=0 // pred_fallthru
    _
  // Predicated region
  $region42: #{bottleneck_forward.1} parent=0 // pred_check
    _
  $region43: #{bottleneck_forward.1} parent=0 // pred_check_branch
    %38 = sbr.rel (0) target = $region45
  $region44: #{bottleneck_forward.1} parent=0 // pred_region
    _
  $region45: #{bottleneck_forward.1} parent=0 // pred_fallthru
    _
  // Predicated region
  $region46: #{bottleneck_forward.1} parent=0 // pred_check
    _
  $region47: #{bottleneck_forward.1} parent=0 // pred_check_branch
    %40 = sbr.rel (0) target = $region49
  $region48: #{bottleneck_forward.1} parent=0 // pred_region
    _
  $region49: #{bottleneck_forward.1} parent=0 // pred_fallthru
    _
  %v42 = vld [vmem:[%s0] sm:$0xf]
  %v43 = vld [vmem:[%s0 + $0x4] sm:$0xf]
  %v44 = vld [vmem:[%s0 + $0x8] sm:$0xf]
  %v45 = vld [vmem:[%s0 + $0xc] sm:$0xf]
  %v46 = vld [vmem:[%s0 + $0x10] sm:$0xf]
  %v47 = vld [vmem:[%s0 + $0x14] sm:$0xf]
  %v48 = vld [vmem:[%s0 + $0x18] sm:$0xf]
  %v49 = vld [vmem:[%s0 + $0x1c] sm:$0xf]
  %v50 = vld [vmem:[%s0 + $0x20] sm:$0xf]
  %v51 = vld [vmem:[%s0 + $0x24] sm:$0xf]
  %v52 = vld [vmem:[%s0 + $0x28] sm:$0xf]
  %v53 = vld [vmem:[%s0 + $0x2c] sm:$0xf]
  %v54 = vld [vmem:[%s0 + $0x30] sm:$0xf]
  %v55 = vld [vmem:[%s0 + $0x34] sm:$0xf]
  %v56 = vld [vmem:[%s0 + $0x38] sm:$0xf]
  %v57 = vld [vmem:[%s0 + $0x3c] sm:$0xf]
  %v58 = vld [vmem:[%s0 + $0x40] sm:$0xf]
  %v59 = vld [vmem:[%s0 + $0x44] sm:$0xf]
  %v60 = vld [vmem:[%s0 + $0x48] sm:$0xf]
  %v61 = vld [vmem:[%s0 + $0x4c] sm:$0xf]
  %v62 = vld [vmem:[%s0 + $0x50] sm:$0xf]
  %v63 = vld [vmem:[%s0 + $0x54] sm:$0xf]
  %v64 = vld [vmem:[%s0 + $0x58] sm:$0xf]
  %v65 = vld [vmem:[%s0 + $0x5c] sm:$0xf]
  %v66 = vld [vmem:[%s0 + $0x60] sm:$0xf]
  %v67 = vld [vmem:[%s0 + $0x64] sm:$0xf]
  %v68 = vld [vmem:[%s0 + $0x68] sm:$0xf]
  %v69 = vld [vmem:[%s0 + $0x6c] sm:$0xf]
  %v70 = vld [vmem:[%s0 + $0x70] sm:$0xf]
  %v71 = vld [vmem:[%s0 + $0x74] sm:$0xf]
  %v72 = vld [vmem:[%s0 + $0x78] sm:$0xf]
  %v73 = vld [vmem:[%s0 + $0x7c] sm:$0xf]
  %v74 = vld [vmem:[%s0 + $0x80] sm:$0xf]
  %v75 = vld [vmem:[%s0 + $0x84] sm:$0xf]
  %v76 = vld [vmem:[%s0 + $0x88] sm:$0xf]
  %v77 = vld [vmem:[%s0 + $0x8c] sm:$0xf]
  %v78 = vld [vmem:[%s0 + $0x90] sm:$0xf]
  %v79 = vld [vmem:[%s0 + $0x94] sm:$0xf]
  %v80 = vld [vmem:[%s0 + $0x98] sm:$0xf]
  %v81 = vld [vmem:[%s0 + $0x9c] sm:$0xf]
  %v82 = vld [vmem:[%s0 + $0xa0] sm:$0xf]
  %v83 = vld [vmem:[%s0 + $0xa4] sm:$0xf]
  %v84 = vld [vmem:[%s0 + $0xa8] sm:$0xf]
  %v85 = vld [vmem:[%s0 + $0xac] sm:$0xf]
  %v86 = vld [vmem:[%s0 + $0xb0] sm:$0xf]
  %v87 = vld [vmem:[%s0 + $0xb4] sm:$0xf]
  %v88 = vld [vmem:[%s0 + $0xb8] sm:$0xf]
  %v89 = vld [vmem:[%s0 + $0xbc] sm:$0xf]
  %v90 = vld [vmem:[%s0 + $0xc0] sm:$0xf]
  %v91 = vld [vmem:[%s0 + $0xc4] sm:$0xf]
  %v92 = vld [vmem:[%s0 + $0xc8] sm:$0xf]
  %v93 = vld [vmem:[%s0 + $0xcc] sm:$0xf]
  %v94 = vld [vmem:[%s0 + $0xd0] sm:$0xf]
  %v95 = vld [vmem:[%s0 + $0xd4] sm:$0xf]
  %v96 = vld [vmem:[%s0 + $0xd8] sm:$0xf]
  %v97 = vld [vmem:[%s0 + $0xdc] sm:$0xf]
  %v98 = vld [vmem:[%s0 + $0xe0] sm:$0xf]
  %v99 = vld [vmem:[%s0 + $0xe4] sm:$0xf]
  %v100 = vld [vmem:[%s0 + $0xe8] sm:$0xf]
  %v101 = vld [vmem:[%s0 + $0xec] sm:$0xf]
  %v102 = vld [vmem:[%s0 + $0xf0] sm:$0xf]
  %v103 = vld [vmem:[%s0 + $0xf4] sm:$0xf]
  %v104 = vld [vmem:[%s0 + $0xf8] sm:$0xf]
  %v105 = vld [vmem:[%s0 + $0xfc] sm:$0xf]
  %v106 = vld [vmem:[%s1] sm:$0xff]
  %v107 = vld [vmem:[%s1 + $0x8] sm:$0xff]
  %v108 = vld [vmem:[%s1 + $0x10] sm:$0xff]
  %v109 = vld [vmem:[%s1 + $0x18] sm:$0xff]
  %v110 = vld [vmem:[%s1 + $0x20] sm:$0xff]
  %v111 = vld [vmem:[%s1 + $0x28] sm:$0xff]
  %v112 = vld [vmem:[%s1 + $0x30] sm:$0xff]
  %v113 = vld [vmem:[%s1 + $0x38] sm:$0xff]
  %v114 = vld [vmem:[%s1 + $0x40] sm:$0xff]
  %v115 = vld [vmem:[%s1 + $0x48] sm:$0xff]
  %v116 = vld [vmem:[%s1 + $0x50] sm:$0xff]
  %v117 = vld [vmem:[%s1 + $0x58] sm:$0xff]
  %v118 = vld [vmem:[%s1 + $0x60] sm:$0xff]
  %v119 = vld [vmem:[%s1 + $0x68] sm:$0xff]
  %v120 = vld [vmem:[%s1 + $0x70] sm:$0xff]
  %v121 = vld [vmem:[%s1 + $0x78] sm:$0xff]
  %v186 = vunpack.c.l.b16 %v42
  %v187 = vunpack.c.l.b16 %v43
  %v188 = vunpack.c.l.b16 %v44
  %v189 = vunpack.c.l.b16 %v45
  %v190 = vunpack.c.l.b16 %v46
  %v191 = vunpack.c.l.b16 %v47
  %v192 = vunpack.c.l.b16 %v48
  %v193 = vunpack.c.l.b16 %v49
  %v194 = vunpack.c.l.b16 %v50
  %v195 = vunpack.c.l.b16 %v51
  %v196 = vunpack.c.l.b16 %v52
  %v197 = vunpack.c.l.b16 %v53
  %v198 = vunpack.c.l.b16 %v54
  %v199 = vunpack.c.l.b16 %v55
  %v200 = vunpack.c.l.b16 %v56
  %v201 = vunpack.c.l.b16 %v57
  %v202 = vunpack.c.l.b16 %v58
  %v203 = vunpack.c.l.b16 %v59
  %v204 = vunpack.c.l.b16 %v60
  %v205 = vunpack.c.l.b16 %v61
  %v206 = vunpack.c.l.b16 %v62
  %v207 = vunpack.c.l.b16 %v63
  %v208 = vunpack.c.l.b16 %v64
  %v209 = vunpack.c.l.b16 %v65
  %v210 = vunpack.c.l.b16 %v66
  %v211 = vunpack.c.l.b16 %v67
  %v212 = vunpack.c.l.b16 %v68
  %v213 = vunpack.c.l.b16 %v69
  %v214 = vunpack.c.l.b16 %v70
  %v215 = vunpack.c.l.b16 %v71
  %v216 = vunpack.c.l.b16 %v72
  %v217 = vunpack.c.l.b16 %v73
  %v218 = vunpack.c.l.b16 %v74
  %v219 = vunpack.c.l.b16 %v75
  %v220 = vunpack.c.l.b16 %v76
  %v221 = vunpack.c.l.b16 %v77
  %v222 = vunpack.c.l.b16 %v78
  %v223 = vunpack.c.l.b16 %v79
  %v224 = vunpack.c.l.b16 %v80
  %v225 = vunpack.c.l.b16 %v81
  %v226 = vunpack.c.l.b16 %v82
  %v227 = vunpack.c.l.b16 %v83
  %v228 = vunpack.c.l.b16 %v84
  %v229 = vunpack.c.l.b16 %v85
  %v230 = vunpack.c.l.b16 %v86
  %v231 = vunpack.c.l.b16 %v87
  %v232 = vunpack.c.l.b16 %v88
  %v233 = vunpack.c.l.b16 %v89
  %v234 = vunpack.c.l.b16 %v90
  %v235 = vunpack.c.l.b16 %v91
  %v236 = vunpack.c.l.b16 %v92
  %v237 = vunpack.c.l.b16 %v93
  %v238 = vunpack.c.l.b16 %v94
  %v239 = vunpack.c.l.b16 %v95
  %v240 = vunpack.c.l.b16 %v96
  %v241 = vunpack.c.l.b16 %v97
  %v242 = vunpack.c.l.b16 %v98
  %v243 = vunpack.c.l.b16 %v99
  %v244 = vunpack.c.l.b16 %v100
  %v245 = vunpack.c.l.b16 %v101
  %v246 = vunpack.c.l.b16 %v102
  %v247 = vunpack.c.l.b16 %v103
  %v248 = vunpack.c.l.b16 %v104
  %v249 = vunpack.c.l.b16 %v105
  %v250 = vpack.c.b16 %v187, %v186
  %v251 = vpack.c.b16 %v189, %v188
  %v252 = vpack.c.b16 %v191, %v190
  %v253 = vpack.c.b16 %v193, %v192
  %v254 = vpack.c.b16 %v195, %v194
  %v255 = vpack.c.b16 %v197, %v196
  %v256 = vpack.c.b16 %v199, %v198
  %v257 = vpack.c.b16 %v201, %v200
  %v258 = vpack.c.b16 %v203, %v202
  %v259 = vpack.c.b16 %v205, %v204
  %v260 = vpack.c.b16 %v207, %v206
  %v261 = vpack.c.b16 %v209, %v208
  %v262 = vpack.c.b16 %v211, %v210
  %v263 = vpack.c.b16 %v213, %v212
  %v264 = vpack.c.b16 %v215, %v214
  %v265 = vpack.c.b16 %v217, %v216
  %v266 = vpack.c.b16 %v219, %v218
  %v267 = vpack.c.b16 %v221, %v220
  %v268 = vpack.c.b16 %v223, %v222
  %v269 = vpack.c.b16 %v225, %v224
  %v270 = vpack.c.b16 %v227, %v226
  %v271 = vpack.c.b16 %v229, %v228
  %v272 = vpack.c.b16 %v231, %v230
  %v273 = vpack.c.b16 %v233, %v232
  %v274 = vpack.c.b16 %v235, %v234
  %v275 = vpack.c.b16 %v237, %v236
  %v276 = vpack.c.b16 %v239, %v238
  %v277 = vpack.c.b16 %v241, %v240
  %v278 = vpack.c.b16 %v243, %v242
  %v279 = vpack.c.b16 %v245, %v244
  %v280 = vpack.c.b16 %v247, %v246
  %v281 = vpack.c.b16 %v249, %v248
  %v330 = vunpack.c.l.b16 %v106
  %v331 = vunpack.c.h.b16 %v106
  %v332 = vunpack.c.l.b16 %v107
  %v333 = vunpack.c.h.b16 %v107
  %v334 = vunpack.c.l.b16 %v108
  %v335 = vunpack.c.h.b16 %v108
  %v336 = vunpack.c.l.b16 %v109
  %v337 = vunpack.c.h.b16 %v109
  %v338 = vunpack.c.l.b16 %v110
  %v339 = vunpack.c.h.b16 %v110
  %v340 = vunpack.c.l.b16 %v111
  %v341 = vunpack.c.h.b16 %v111
  %v342 = vunpack.c.l.b16 %v112
  %v343 = vunpack.c.h.b16 %v112
  %v344 = vunpack.c.l.b16 %v113
  %v345 = vunpack.c.h.b16 %v113
  %v346 = vunpack.c.l.b16 %v114
  %v347 = vunpack.c.h.b16 %v114
  %v348 = vunpack.c.l.b16 %v115
  %v349 = vunpack.c.h.b16 %v115
  %v350 = vunpack.c.l.b16 %v116
  %v351 = vunpack.c.h.b16 %v116
  %v352 = vunpack.c.l.b16 %v117
  %v353 = vunpack.c.h.b16 %v117
  %v354 = vunpack.c.l.b16 %v118
  %v355 = vunpack.c.h.b16 %v118
  %v356 = vunpack.c.l.b16 %v119
  %v357 = vunpack.c.h.b16 %v119
  %v358 = vunpack.c.l.b16 %v120
  %v359 = vunpack.c.h.b16 %v120
  %v360 = vunpack.c.l.b16 %v121
  %v361 = vunpack.c.h.b16 %v121
  %v362 = vpack.c.b16 %v332, %v330
  %v363 = vpack.c.b16 %v333, %v331
  %v364 = vpack.c.b16 %v336, %v334
  %v365 = vpack.c.b16 %v337, %v335
  %v366 = vpack.c.b16 %v340, %v338
  %v367 = vpack.c.b16 %v341, %v339
  %v368 = vpack.c.b16 %v344, %v342
  %v369 = vpack.c.b16 %v345, %v343
  %v370 = vpack.c.b16 %v348, %v346
  %v371 = vpack.c.b16 %v349, %v347
  %v372 = vpack.c.b16 %v352, %v350
  %v373 = vpack.c.b16 %v353, %v351
  %v374 = vpack.c.b16 %v356, %v354
  %v375 = vpack.c.b16 %v357, %v355
  %v376 = vpack.c.b16 %v360, %v358
  %v377 = vpack.c.b16 %v361, %v359
  %394 = vmatprep.subr.bf16.mxu0 %v363
  %395 = vmatpush1.bf16.msra.mxu0 %v362
  %396 = vmatprep.subr.bf16.mxu0 %v365
  %397 = vmatpush1.bf16.msra.mxu0 %v364
  %398 = vmatprep.subr.bf16.mxu0 %v367
  %399 = vmatpush1.bf16.msra.mxu0 %v366
  %400 = vmatprep.subr.bf16.mxu0 %v369
  %401 = vmatpush1.bf16.msra.mxu0 %v368
  %402 = vmatprep.subr.bf16.mxu0 %v371
  %403 = vmatpush1.bf16.msra.mxu0 %v370
  %404 = vmatprep.subr.bf16.mxu0 %v373
  %405 = vmatpush1.bf16.msra.mxu0 %v372
  %406 = vmatprep.subr.bf16.mxu0 %v375
  %407 = vmatpush1.bf16.msra.mxu0 %v374
  %408 = vmatprep.subr.bf16.mxu0 %v377
  %409 = vmatpush1.bf16.msra.mxu0 %v376
  %410 = vmatprep.subr.bf16.mxu0 0
  %411 = vmatpush1.bf16.msra.mxu0 0
  %412 = vmatprep.subr.bf16.mxu0 0
  %413 = vmatpush1.bf16.msra.mxu0 0
  %414 = vmatprep.subr.bf16.mxu0 0
  %415 = vmatpush1.bf16.msra.mxu0 0
  %416 = vmatprep.subr.bf16.mxu0 0
  %417 = vmatpush1.bf16.msra.mxu0 0
  %418 = vmatprep.subr.bf16.mxu0 0
  %419 = vmatpush1.bf16.msra.mxu0 0
  %420 = vmatprep.subr.bf16.mxu0 0
  %421 = vmatpush1.bf16.msra.mxu0 0
  %422 = vmatprep.subr.bf16.mxu0 0
  %423 = vmatpush1.bf16.msra.mxu0 0
  %424 = vmatprep.subr.bf16.mxu0 0
  %425 = vmatpush1.bf16.msra.mxu0 0
  %426 = vmatprep.mubr.bf16.mxu0 0
  %427 = vmatmul.mubr.bf16.gmra.mrb[0].mxu0 %v250
  %v428 = vpop.f32.mrb[0].mxu0
  %v429 = vadd.f32 0.0, %v428
  %v430 = vpop.f32.mrb[0].mxu0
  %v431 = vadd.f32 0.0, %v430
  %v432 = vpop.f32.mrb[0].mxu0
  %v433 = vadd.f32 0.0, %v432
  %v434 = vpop.f32.mrb[0].mxu0
  %v435 = vadd.f32 0.0, %v434
  %436 = vmatprep.mubr.bf16.mxu0 0
  %437 = vmatmul.mubr.bf16.gmra.mrb[0].mxu0 %v251
  %v438 = vpop.f32.mrb[0].mxu0
  %v439 = vadd.f32 0.0, %v438
  %v440 = vpop.f32.mrb[0].mxu0
  %v441 = vadd.f32 0.0, %v440
  %v442 = vpop.f32.mrb[0].mxu0
  %v443 = vadd.f32 0.0, %v442
  %v444 = vpop.f32.mrb[0].mxu0
  %v445 = vadd.f32 0.0, %v444
  %446 = vmatprep.mubr.bf16.mxu0 0
  %447 = vmatmul.mubr.bf16.gmra.mrb[0].mxu0 %v252
  %v448 = vpop.f32.mrb[0].mxu0
  %v449 = vadd.f32 0.0, %v448
  %v450 = vpop.f32.mrb[0].mxu0
  %v451 = vadd.f32 0.0, %v450
  %v452 = vpop.f32.mrb[0].mxu0
  %v453 = vadd.f32 0.0, %v452
  %v454 = vpop.f32.mrb[0].mxu0
  %v455 = vadd.f32 0.0, %v454
  %456 = vmatprep.mubr.bf16.mxu0 0
  %457 = vmatmul.mubr.bf16.gmra.mrb[0].mxu0 %v253
  %v458 = vpop.f32.mrb[0].mxu0
  %v459 = vadd.f32 0.0, %v458
  %v460 = vpop.f32.mrb[0].mxu0
  %v461 = vadd.f32 0.0, %v460
  %v462 = vpop.f32.mrb[0].mxu0
  %v463 = vadd.f32 0.0, %v462
  %v464 = vpop.f32.mrb[0].mxu0
  %v465 = vadd.f32 0.0, %v464
  %466 = vmatprep.mubr.bf16.mxu0 0
  %467 = vmatmul.mubr.bf16.gmra.mrb[0].mxu0 %v254
  %v468 = vpop.f32.mrb[0].mxu0
  %v469 = vadd.f32 0.0, %v468
  %v470 = vpop.f32.mrb[0].mxu0
  %v471 = vadd.f32 0.0, %v470
  %v472 = vpop.f32.mrb[0].mxu0
  %v473 = vadd.f32 0.0, %v472
  %v474 = vpop.f32.mrb[0].mxu0
  %v475 = vadd.f32 0.0, %v474
  %476 = vmatprep.mubr.bf16.mxu0 0
  %477 = vmatmul.mubr.bf16.gmra.mrb[0].mxu0 %v255
  %v478 = vpop.f32.mrb[0].mxu0
  %v479 = vadd.f32 0.0, %v478
  %v480 = vpop.f32.mrb[0].mxu0
  %v481 = vadd.f32 0.0, %v480
  %v482 = vpop.f32.mrb[0].mxu0
  %v483 = vadd.f32 0.0, %v482
  %v484 = vpop.f32.mrb[0].mxu0
  %v485 = vadd.f32 0.0, %v484
  %486 = vmatprep.mubr.bf16.mxu0 0
  %487 = vmatmul.mubr.bf16.gmra.mrb[0].mxu0 %v256
  %v488 = vpop.f32.mrb[0].mxu0
  %v489 = vadd.f32 0.0, %v488
  %v490 = vpop.f32.mrb[0].mxu0
  %v491 = vadd.f32 0.0, %v490
  %v492 = vpop.f32.mrb[0].mxu0
  %v493 = vadd.f32 0.0, %v492
  %v494 = vpop.f32.mrb[0].mxu0
  %v495 = vadd.f32 0.0, %v494
  %496 = vmatprep.mubr.bf16.mxu0 0
  %497 = vmatmul.mubr.bf16.gmra.mrb[0].mxu0 %v257
  %v498 = vpop.f32.mrb[0].mxu0
  %v499 = vadd.f32 0.0, %v498
  %v500 = vpop.f32.mrb[0].mxu0
  %v501 = vadd.f32 0.0, %v500
  %v502 = vpop.f32.mrb[0].mxu0
  %v503 = vadd.f32 0.0, %v502
  %v504 = vpop.f32.mrb[0].mxu0
  %v505 = vadd.f32 0.0, %v504
  %506 = vmatprep.mubr.bf16.mxu0 0
  %507 = vmatmul.mubr.bf16.gmra.mrb[0].mxu0 %v258
  %v508 = vpop.f32.mrb[0].mxu0
  %v509 = vadd.f32 0.0, %v508
  %v510 = vpop.f32.mrb[0].mxu0
  %v511 = vadd.f32 0.0, %v510
  %v512 = vpop.f32.mrb[0].mxu0
  %v513 = vadd.f32 0.0, %v512
  %v514 = vpop.f32.mrb[0].mxu0
  %v515 = vadd.f32 0.0, %v514
  %516 = vmatprep.mubr.bf16.mxu0 0
  %517 = vmatmul.mubr.bf16.gmra.mrb[0].mxu0 %v259
  %v518 = vpop.f32.mrb[0].mxu0
  %v519 = vadd.f32 0.0, %v518
  %v520 = vpop.f32.mrb[0].mxu0
  %v521 = vadd.f32 0.0, %v520
  %v522 = vpop.f32.mrb[0].mxu0
  %v523 = vadd.f32 0.0, %v522
  %v524 = vpop.f32.mrb[0].mxu0
  %v525 = vadd.f32 0.0, %v524
  %526 = vmatprep.mubr.bf16.mxu0 0
  %527 = vmatmul.mubr.bf16.gmra.mrb[0].mxu0 %v260
  %v528 = vpop.f32.mrb[0].mxu0
  %v529 = vadd.f32 0.0, %v528
  %v530 = vpop.f32.mrb[0].mxu0
  %v531 = vadd.f32 0.0, %v530
  %v532 = vpop.f32.mrb[0].mxu0
  %v533 = vadd.f32 0.0, %v532
  %v534 = vpop.f32.mrb[0].mxu0
  %v535 = vadd.f32 0.0, %v534
  %536 = vmatprep.mubr.bf16.mxu0 0
  %537 = vmatmul.mubr.bf16.gmra.mrb[0].mxu0 %v261
  %v538 = vpop.f32.mrb[0].mxu0
  %v539 = vadd.f32 0.0, %v538
  %v540 = vpop.f32.mrb[0].mxu0
  %v541 = vadd.f32 0.0, %v540
  %v542 = vpop.f32.mrb[0].mxu0
  %v543 = vadd.f32 0.0, %v542
  %v544 = vpop.f32.mrb[0].mxu0
  %v545 = vadd.f32 0.0, %v544
  %546 = vmatprep.mubr.bf16.mxu0 0
  %547 = vmatmul.mubr.bf16.gmra.mrb[0].mxu0 %v262
  %v548 = vpop.f32.mrb[0].mxu0
  %v549 = vadd.f32 0.0, %v548
  %v550 = vpop.f32.mrb[0].mxu0
  %v551 = vadd.f32 0.0, %v550
  %v552 = vpop.f32.mrb[0].mxu0
  %v553 = vadd.f32 0.0, %v552
  %v554 = vpop.f32.mrb[0].mxu0
  %v555 = vadd.f32 0.0, %v554
  %556 = vmatprep.mubr.bf16.mxu0 0
  %557 = vmatmul.mubr.bf16.gmra.mrb[0].mxu0 %v263
  %v558 = vpop.f32.mrb[0].mxu0
  %v559 = vadd.f32 0.0, %v558
  %v560 = vpop.f32.mrb[0].mxu0
  %v561 = vadd.f32 0.0, %v560
  %v562 = vpop.f32.mrb[0].mxu0
  %v563 = vadd.f32 0.0, %v562
  %v564 = vpop.f32.mrb[0].mxu0
  %v565 = vadd.f32 0.0, %v564
  %566 = vmatprep.mubr.bf16.mxu0 0
  %567 = vmatmul.mubr.bf16.gmra.mrb[0].mxu0 %v264
  %v568 = vpop.f32.mrb[0].mxu0
  %v569 = vadd.f32 0.0, %v568
  %v570 = vpop.f32.mrb[0].mxu0
  %v571 = vadd.f32 0.0, %v570
  %v572 = vpop.f32.mrb[0].mxu0
  %v573 = vadd.f32 0.0, %v572
  %v574 = vpop.f32.mrb[0].mxu0
  %v575 = vadd.f32 0.0, %v574
  %576 = vmatprep.mubr.bf16.mxu0 0
  %577 = vmatmul.mubr.bf16.gmra.mrb[0].mxu0 %v265
  %v578 = vpop.f32.mrb[0].mxu0
  %v579 = vadd.f32 0.0, %v578
  %v580 = vpop.f32.mrb[0].mxu0
  %v581 = vadd.f32 0.0, %v580
  %v582 = vpop.f32.mrb[0].mxu0
  %v583 = vadd.f32 0.0, %v582
  %v584 = vpop.f32.mrb[0].mxu0
  %v585 = vadd.f32 0.0, %v584
  %586 = vmatprep.mubr.bf16.mxu0 0
  %587 = vmatmul.mubr.bf16.gmra.mrb[0].mxu0 %v266
  %v588 = vpop.f32.mrb[0].mxu0
  %v589 = vadd.f32 0.0, %v588
  %v590 = vpop.f32.mrb[0].mxu0
  %v591 = vadd.f32 0.0, %v590
  %v592 = vpop.f32.mrb[0].mxu0
  %v593 = vadd.f32 0.0, %v592
  %v594 = vpop.f32.mrb[0].mxu0
  %v595 = vadd.f32 0.0, %v594
  %596 = vmatprep.mubr.bf16.mxu0 0
  %597 = vmatmul.mubr.bf16.gmra.mrb[0].mxu0 %v267
  %v598 = vpop.f32.mrb[0].mxu0
  %v599 = vadd.f32 0.0, %v598
  %v600 = vpop.f32.mrb[0].mxu0
  %v601 = vadd.f32 0.0, %v600
  %v602 = vpop.f32.mrb[0].mxu0
  %v603 = vadd.f32 0.0, %v602
  %v604 = vpop.f32.mrb[0].mxu0
  %v605 = vadd.f32 0.0, %v604
  %606 = vmatprep.mubr.bf16.mxu0 0
  %607 = vmatmul.mubr.bf16.gmra.mrb[0].mxu0 %v268
  %v608 = vpop.f32.mrb[0].mxu0
  %v609 = vadd.f32 0.0, %v608
  %v610 = vpop.f32.mrb[0].mxu0
  %v611 = vadd.f32 0.0, %v610
  %v612 = vpop.f32.mrb[0].mxu0
  %v613 = vadd.f32 0.0, %v612
  %v614 = vpop.f32.mrb[0].mxu0
  %v615 = vadd.f32 0.0, %v614
  %616 = vmatprep.mubr.bf16.mxu0 0
  %617 = vmatmul.mubr.bf16.gmra.mrb[0].mxu0 %v269
  %v618 = vpop.f32.mrb[0].mxu0
  %v619 = vadd.f32 0.0, %v618
  %v620 = vpop.f32.mrb[0].mxu0
  %v621 = vadd.f32 0.0, %v620
  %v622 = vpop.f32.mrb[0].mxu0
  %v623 = vadd.f32 0.0, %v622
  %v624 = vpop.f32.mrb[0].mxu0
  %v625 = vadd.f32 0.0, %v624
  %626 = vmatprep.mubr.bf16.mxu0 0
  %627 = vmatmul.mubr.bf16.gmra.mrb[0].mxu0 %v270
  %v628 = vpop.f32.mrb[0].mxu0
  %v629 = vadd.f32 0.0, %v628
  %v630 = vpop.f32.mrb[0].mxu0
  %v631 = vadd.f32 0.0, %v630
  %v632 = vpop.f32.mrb[0].mxu0
  %v633 = vadd.f32 0.0, %v632
  %v634 = vpop.f32.mrb[0].mxu0
  %v635 = vadd.f32 0.0, %v634
  %636 = vmatprep.mubr.bf16.mxu0 0
  %637 = vmatmul.mubr.bf16.gmra.mrb[0].mxu0 %v271
  %v638 = vpop.f32.mrb[0].mxu0
  %v639 = vadd.f32 0.0, %v638
  %v640 = vpop.f32.mrb[0].mxu0
  %v641 = vadd.f32 0.0, %v640
  %v642 = vpop.f32.mrb[0].mxu0
  %v643 = vadd.f32 0.0, %v642
  %v644 = vpop.f32.mrb[0].mxu0
  %v645 = vadd.f32 0.0, %v644
  %646 = vmatprep.mubr.bf16.mxu0 0
  %647 = vmatmul.mubr.bf16.gmra.mrb[0].mxu0 %v272
  %v648 = vpop.f32.mrb[0].mxu0
  %v649 = vadd.f32 0.0, %v648
  %v650 = vpop.f32.mrb[0].mxu0
  %v651 = vadd.f32 0.0, %v650
  %v652 = vpop.f32.mrb[0].mxu0
  %v653 = vadd.f32 0.0, %v652
  %v654 = vpop.f32.mrb[0].mxu0
  %v655 = vadd.f32 0.0, %v654
  %656 = vmatprep.mubr.bf16.mxu0 0
  %657 = vmatmul.mubr.bf16.gmra.mrb[0].mxu0 %v273
  %v658 = vpop.f32.mrb[0].mxu0
  %v659 = vadd.f32 0.0, %v658
  %v660 = vpop.f32.mrb[0].mxu0
  %v661 = vadd.f32 0.0, %v660
  %v662 = vpop.f32.mrb[0].mxu0
  %v663 = vadd.f32 0.0, %v662
  %v664 = vpop.f32.mrb[0].mxu0
  %v665 = vadd.f32 0.0, %v664
  %666 = vmatprep.mubr.bf16.mxu0 0
  %667 = vmatmul.mubr.bf16.gmra.mrb[0].mxu0 %v274
  %v668 = vpop.f32.mrb[0].mxu0
  %v669 = vadd.f32 0.0, %v668
  %v670 = vpop.f32.mrb[0].mxu0
  %v671 = vadd.f32 0.0, %v670
  %v672 = vpop.f32.mrb[0].mxu0
  %v673 = vadd.f32 0.0, %v672
  %v674 = vpop.f32.mrb[0].mxu0
  %v675 = vadd.f32 0.0, %v674
  %676 = vmatprep.mubr.bf16.mxu0 0
  %677 = vmatmul.mubr.bf16.gmra.mrb[0].mxu0 %v275
  %v678 = vpop.f32.mrb[0].mxu0
  %v679 = vadd.f32 0.0, %v678
  %v680 = vpop.f32.mrb[0].mxu0
  %v681 = vadd.f32 0.0, %v680
  %v682 = vpop.f32.mrb[0].mxu0
  %v683 = vadd.f32 0.0, %v682
  %v684 = vpop.f32.mrb[0].mxu0
  %v685 = vadd.f32 0.0, %v684
  %686 = vmatprep.mubr.bf16.mxu0 0
  %687 = vmatmul.mubr.bf16.gmra.mrb[0].mxu0 %v276
  %v688 = vpop.f32.mrb[0].mxu0
  %v689 = vadd.f32 0.0, %v688
  %v690 = vpop.f32.mrb[0].mxu0
  %v691 = vadd.f32 0.0, %v690
  %v692 = vpop.f32.mrb[0].mxu0
  %v693 = vadd.f32 0.0, %v692
  %v694 = vpop.f32.mrb[0].mxu0
  %v695 = vadd.f32 0.0, %v694
  %696 = vmatprep.mubr.bf16.mxu0 0
  %697 = vmatmul.mubr.bf16.gmra.mrb[0].mxu0 %v277
  %v698 = vpop.f32.mrb[0].mxu0
  %v699 = vadd.f32 0.0, %v698
  %v700 = vpop.f32.mrb[0].mxu0
  %v701 = vadd.f32 0.0, %v700
  %v702 = vpop.f32.mrb[0].mxu0
  %v703 = vadd.f32 0.0, %v702
  %v704 = vpop.f32.mrb[0].mxu0
  %v705 = vadd.f32 0.0, %v704
  %706 = vmatprep.mubr.bf16.mxu0 0
  %707 = vmatmul.mubr.bf16.gmra.mrb[0].mxu0 %v278
  %v708 = vpop.f32.mrb[0].mxu0
  %v709 = vadd.f32 0.0, %v708
  %v710 = vpop.f32.mrb[0].mxu0
  %v711 = vadd.f32 0.0, %v710
  %v712 = vpop.f32.mrb[0].mxu0
  %v713 = vadd.f32 0.0, %v712
  %v714 = vpop.f32.mrb[0].mxu0
  %v715 = vadd.f32 0.0, %v714
  %716 = vmatprep.mubr.bf16.mxu0 0
  %717 = vmatmul.mubr.bf16.gmra.mrb[0].mxu0 %v279
  %v718 = vpop.f32.mrb[0].mxu0
  %v719 = vadd.f32 0.0, %v718
  %v720 = vpop.f32.mrb[0].mxu0
  %v721 = vadd.f32 0.0, %v720
  %v722 = vpop.f32.mrb[0].mxu0
  %v723 = vadd.f32 0.0, %v722
  %v724 = vpop.f32.mrb[0].mxu0
  %v725 = vadd.f32 0.0, %v724
  %726 = vmatprep.mubr.bf16.mxu0 0
  %727 = vmatmul.mubr.bf16.gmra.mrb[0].mxu0 %v280
  %v728 = vpop.f32.mrb[0].mxu0
  %v729 = vadd.f32 0.0, %v728
  %v730 = vpop.f32.mrb[0].mxu0
  %v731 = vadd.f32 0.0, %v730
  %v732 = vpop.f32.mrb[0].mxu0
  %v733 = vadd.f32 0.0, %v732
  %v734 = vpop.f32.mrb[0].mxu0
  %v735 = vadd.f32 0.0, %v734
  %736 = vmatprep.mubr.bf16.mxu0 0
  %737 = vmatmul.mubr.bf16.gmra.mrb[0].mxu0 %v281
  %v738 = vpop.f32.mrb[0].mxu0
  %v739 = vadd.f32 0.0, %v738
  %v740 = vpop.f32.mrb[0].mxu0
  %v741 = vadd.f32 0.0, %v740
  %v742 = vpop.f32.mrb[0].mxu0
  %v743 = vadd.f32 0.0, %v742
  %v744 = vpop.f32.mrb[0].mxu0
  %v745 = vadd.f32 0.0, %v744
  %746 = vdwg.mxu0
  %v747 = vld [vmem:[%s10] sm:$0x1]
  %v748 = vld [vmem:[%s11] sm:$0x1]
  %v749 = vadd.f32 %v431, %v435
  %v750 = vadd.f32 %v749, %v441
  %v751 = vadd.f32 %v750, %v445
  %v752 = vadd.f32 %v751, %v451
  %v753 = vadd.f32 %v752, %v455
  %v754 = vadd.f32 %v753, %v461
  %v755 = vadd.f32 %v754, %v465
  %v756 = vadd.f32 %v755, %v471
  %v757 = vadd.f32 %v756, %v475
  %v758 = vadd.f32 %v757, %v481
  %v759 = vadd.f32 %v758, %v485
  %v760 = vadd.f32 %v759, %v491
  %v761 = vadd.f32 %v760, %v495
  %v762 = vadd.f32 %v761, %v501
  %v763 = vadd.f32 %v762, %v505
  %v764 = vadd.f32 %v763, %v511
  %v765 = vadd.f32 %v764, %v515
  %v766 = vadd.f32 %v765, %v521
  %v767 = vadd.f32 %v766, %v525
  %v768 = vadd.f32 %v767, %v531
  %v769 = vadd.f32 %v768, %v535
  %v770 = vadd.f32 %v769, %v541
  %v771 = vadd.f32 %v770, %v545
  %v772 = vadd.f32 %v771, %v551
  %v773 = vadd.f32 %v772, %v555
  %v774 = vadd.f32 %v773, %v561
  %v775 = vadd.f32 %v774, %v565
  %v776 = vadd.f32 %v775, %v571
  %v777 = vadd.f32 %v776, %v575
  %v778 = vadd.f32 %v777, %v581
  %v779 = vadd.f32 %v778, %v585
  %v780 = vadd.f32 %v779, %v591
  %v781 = vadd.f32 %v780, %v595
  %v782 = vadd.f32 %v781, %v601
  %v783 = vadd.f32 %v782, %v605
  %v784 = vadd.f32 %v783, %v611
  %v785 = vadd.f32 %v784, %v615
  %v786 = vadd.f32 %v785, %v621
  %v787 = vadd.f32 %v786, %v625
  %v788 = vadd.f32 %v787, %v631
  %v789 = vadd.f32 %v788, %v635
  %v790 = vadd.f32 %v789, %v641
  %v791 = vadd.f32 %v790, %v645
  %v792 = vadd.f32 %v791, %v651
  %v793 = vadd.f32 %v792, %v655
  %v794 = vadd.f32 %v793, %v661
  %v795 = vadd.f32 %v794, %v665
  %v796 = vadd.f32 %v795, %v671
  %v797 = vadd.f32 %v796, %v675
  %v798 = vadd.f32 %v797, %v681
  %v799 = vadd.f32 %v798, %v685
  %v800 = vadd.f32 %v799, %v691
  %v801 = vadd.f32 %v800, %v695
  %v802 = vadd.f32 %v801, %v701
  %v803 = vadd.f32 %v802, %v705
  %v804 = vadd.f32 %v803, %v711
  %v805 = vadd.f32 %v804, %v715
  %v806 = vadd.f32 %v805, %v721
  %v807 = vadd.f32 %v806, %v725
  %v808 = vadd.f32 %v807, %v731
  %v809 = vadd.f32 %v808, %v735
  %v810 = vadd.f32 %v809, %v741
  %v811 = vadd.f32 %v810, %v745
  %v812 = vrot.slane %v811, 4
  %v813 = vadd.f32 %v811, %v812
  %v814 = vrot.slane %v813, 2
  %v815 = vadd.f32 %v813, %v814
  %v816 = vrot.slane %v815, 1
  %v817 = vadd.f32 %v815, %v816
  %v818 = vmul.f32 %v431, %v431
  %v819 = vmul.f32 %v435, %v435
  %v820 = vmul.f32 %v441, %v441
  %v821 = vmul.f32 %v445, %v445
  %v822 = vmul.f32 %v451, %v451
  %v823 = vmul.f32 %v455, %v455
  %v824 = vmul.f32 %v461, %v461
  %v825 = vmul.f32 %v465, %v465
  %v826 = vmul.f32 %v471, %v471
  %v827 = vmul.f32 %v475, %v475
  %v828 = vmul.f32 %v481, %v481
  %v829 = vmul.f32 %v485, %v485
  %v830 = vmul.f32 %v491, %v491
  %v831 = vmul.f32 %v495, %v495
  %v832 = vmul.f32 %v501, %v501
  %v833 = vmul.f32 %v505, %v505
  %v834 = vmul.f32 %v511, %v511
  %v835 = vmul.f32 %v515, %v515
  %v836 = vmul.f32 %v521, %v521
  %v837 = vmul.f32 %v525, %v525
  %v838 = vmul.f32 %v531, %v531
  %v839 = vmul.f32 %v535, %v535
  %v840 = vmul.f32 %v541, %v541
  %v841 = vmul.f32 %v545, %v545
  %v842 = vmul.f32 %v551, %v551
  %v843 = vmul.f32 %v555, %v555
  %v844 = vmul.f32 %v561, %v561
  %v845 = vmul.f32 %v565, %v565
  %v846 = vmul.f32 %v571, %v571
  %v847 = vmul.f32 %v575, %v575
  %v848 = vmul.f32 %v581, %v581
  %v849 = vmul.f32 %v585, %v585
  %v850 = vmul.f32 %v591, %v591
  %v851 = vmul.f32 %v595, %v595
  %v852 = vmul.f32 %v601, %v601
  %v853 = vmul.f32 %v605, %v605
  %v854 = vmul.f32 %v611, %v611
  %v855 = vmul.f32 %v615, %v615
  %v856 = vmul.f32 %v621, %v621
  %v857 = vmul.f32 %v625, %v625
  %v858 = vmul.f32 %v631, %v631
  %v859 = vmul.f32 %v635, %v635
  %v860 = vmul.f32 %v641, %v641
  %v861 = vmul.f32 %v645, %v645
  %v862 = vmul.f32 %v651, %v651
  %v863 = vmul.f32 %v655, %v655
  %v864 = vmul.f32 %v661, %v661
  %v865 = vmul.f32 %v665, %v665
  %v866 = vmul.f32 %v671, %v671
  %v867 = vmul.f32 %v675, %v675
  %v868 = vmul.f32 %v681, %v681
  %v869 = vmul.f32 %v685, %v685
  %v870 = vmul.f32 %v691, %v691
  %v871 = vmul.f32 %v695, %v695
  %v872 = vmul.f32 %v701, %v701
  %v873 = vmul.f32 %v705, %v705
  %v874 = vmul.f32 %v711, %v711
  %v875 = vmul.f32 %v715, %v715
  %v876 = vmul.f32 %v721, %v721
  %v877 = vmul.f32 %v725, %v725
  %v878 = vmul.f32 %v731, %v731
  %v879 = vmul.f32 %v735, %v735
  %v880 = vmul.f32 %v741, %v741
  %v881 = vmul.f32 %v745, %v745
  %v882 = vadd.f32 %v818, %v819
  %v883 = vadd.f32 %v882, %v820
  %v884 = vadd.f32 %v883, %v821
  %v885 = vadd.f32 %v884, %v822
  %v886 = vadd.f32 %v885, %v823
  %v887 = vadd.f32 %v886, %v824
  %v888 = vadd.f32 %v887, %v825
  %v889 = vadd.f32 %v888, %v826
  %v890 = vadd.f32 %v889, %v827
  %v891 = vadd.f32 %v890, %v828
  %v892 = vadd.f32 %v891, %v829
  %v893 = vadd.f32 %v892, %v830
  %v894 = vadd.f32 %v893, %v831
  %v895 = vadd.f32 %v894, %v832
  %v896 = vadd.f32 %v895, %v833
  %v897 = vadd.f32 %v896, %v834
  %v898 = vadd.f32 %v897, %v835
  %v899 = vadd.f32 %v898, %v836
  %v900 = vadd.f32 %v899, %v837
  %v901 = vadd.f32 %v900, %v838
  %v902 = vadd.f32 %v901, %v839
  %v903 = vadd.f32 %v902, %v840
  %v904 = vadd.f32 %v903, %v841
  %v905 = vadd.f32 %v904, %v842
  %v906 = vadd.f32 %v905, %v843
  %v907 = vadd.f32 %v906, %v844
  %v908 = vadd.f32 %v907, %v845
  %v909 = vadd.f32 %v908, %v846
  %v910 = vadd.f32 %v909, %v847
  %v911 = vadd.f32 %v910, %v848
  %v912 = vadd.f32 %v911, %v849
  %v913 = vadd.f32 %v912, %v850
  %v914 = vadd.f32 %v913, %v851
  %v915 = vadd.f32 %v914, %v852
  %v916 = vadd.f32 %v915, %v853
  %v917 = vadd.f32 %v916, %v854
  %v918 = vadd.f32 %v917, %v855
  %v919 = vadd.f32 %v918, %v856
  %v920 = vadd.f32 %v919, %v857
  %v921 = vadd.f32 %v920, %v858
  %v922 = vadd.f32 %v921, %v859
  %v923 = vadd.f32 %v922, %v860
  %v924 = vadd.f32 %v923, %v861
  %v925 = vadd.f32 %v924, %v862
  %v926 = vadd.f32 %v925, %v863
  %v927 = vadd.f32 %v926, %v864
  %v928 = vadd.f32 %v927, %v865
  %v929 = vadd.f32 %v928, %v866
  %v930 = vadd.f32 %v929, %v867
  %v931 = vadd.f32 %v930, %v868
  %v932 = vadd.f32 %v931, %v869
  %v933 = vadd.f32 %v932, %v870
  %v934 = vadd.f32 %v933, %v871
  %v935 = vadd.f32 %v934, %v872
  %v936 = vadd.f32 %v935, %v873
  %v937 = vadd.f32 %v936, %v874
  %v938 = vadd.f32 %v937, %v875
  %v939 = vadd.f32 %v938, %v876
  %v940 = vadd.f32 %v939, %v877
  %v941 = vadd.f32 %v940, %v878
  %v942 = vadd.f32 %v941, %v879
  %v943 = vadd.f32 %v942, %v880
  %v944 = vadd.f32 %v943, %v881
  %v945 = vrot.slane %v944, 4
  %v946 = vadd.f32 %v944, %v945
  %v947 = vrot.slane %v946, 2
  %v948 = vadd.f32 %v946, %v947
  %v949 = vrot.slane %v948, 1
  %v950 = vadd.f32 %v948, %v949
  %v951 = vmul.f32 %v817, 0.001953125
  %v952 = vmul.f32 %v950, 0.001953125
  %v953 = vmul.f32 %v951, %v951
  %v954 = vsub.f32 %v952, %v953
  %v955 = vmax.f32 %v954, 0.0
  %v956 = vadd.f32 %v955, 1e-05
  %v957 = vrsqrt.pop %v956
  %v958 = vmul.f32 %v747, %v957
  %v959 = vmul.f32 %v951, %v958
  %v960 = vsub.f32 %v748, %v959
  %v962 = vlaneseq
  %v963 = vshrl.u32 %v962, 7
  %v964 = vsub.s32 0, %v963
  %v965 = vrot.slane %v958, %v964
  %v967 = vmul.f32 %v431, %v965
  %v968 = vmul.f32 %v435, %v965
  %v969 = vmul.f32 %v441, %v965
  %v970 = vmul.f32 %v445, %v965
  %v971 = vmul.f32 %v451, %v965
  %v972 = vmul.f32 %v455, %v965
  %v973 = vmul.f32 %v461, %v965
  %v974 = vmul.f32 %v465, %v965
  %v975 = vmul.f32 %v471, %v965
  %v976 = vmul.f32 %v475, %v965
  %v977 = vmul.f32 %v481, %v965
  %v978 = vmul.f32 %v485, %v965
  %v979 = vmul.f32 %v491, %v965
  %v980 = vmul.f32 %v495, %v965
  %v981 = vmul.f32 %v501, %v965
  %v982 = vmul.f32 %v505, %v965
  %v983 = vmul.f32 %v511, %v965
  %v984 = vmul.f32 %v515, %v965
  %v985 = vmul.f32 %v521, %v965
  %v986 = vmul.f32 %v525, %v965
  %v987 = vmul.f32 %v531, %v965
  %v988 = vmul.f32 %v535, %v965
  %v989 = vmul.f32 %v541, %v965
  %v990 = vmul.f32 %v545, %v965
  %v991 = vmul.f32 %v551, %v965
  %v992 = vmul.f32 %v555, %v965
  %v993 = vmul.f32 %v561, %v965
  %v994 = vmul.f32 %v565, %v965
  %v995 = vmul.f32 %v571, %v965
  %v996 = vmul.f32 %v575, %v965
  %v997 = vmul.f32 %v581, %v965
  %v998 = vmul.f32 %v585, %v965
  %v999 = vmul.f32 %v591, %v965
  %v1000 = vmul.f32 %v595, %v965
  %v1001 = vmul.f32 %v601, %v965
  %v1002 = vmul.f32 %v605, %v965
  %v1003 = vmul.f32 %v611, %v965
  %v1004 = vmul.f32 %v615, %v965
  %v1005 = vmul.f32 %v621, %v965
  %v1006 = vmul.f32 %v625, %v965
  %v1007 = vmul.f32 %v631, %v965
  %v1008 = vmul.f32 %v635, %v965
  %v1009 = vmul.f32 %v641, %v965
  %v1010 = vmul.f32 %v645, %v965
  %v1011 = vmul.f32 %v651, %v965
  %v1012 = vmul.f32 %v655, %v965
  %v1013 = vmul.f32 %v661, %v965
  %v1014 = vmul.f32 %v665, %v965
  %v1015 = vmul.f32 %v671, %v965
  %v1016 = vmul.f32 %v675, %v965
  %v1017 = vmul.f32 %v681, %v965
  %v1018 = vmul.f32 %v685, %v965
  %v1019 = vmul.f32 %v691, %v965
  %v1020 = vmul.f32 %v695, %v965
  %v1021 = vmul.f32 %v701, %v965
  %v1022 = vmul.f32 %v705, %v965
  %v1023 = vmul.f32 %v711, %v965
  %v1024 = vmul.f32 %v715, %v965
  %v1025 = vmul.f32 %v721, %v965
  %v1026 = vmul.f32 %v725, %v965
  %v1027 = vmul.f32 %v731, %v965
  %v1028 = vmul.f32 %v735, %v965
  %v1029 = vmul.f32 %v741, %v965
  %v1030 = vmul.f32 %v745, %v965
  %v1032 = vlaneseq
  %v1033 = vshrl.u32 %v1032, 7
  %v1034 = vsub.s32 0, %v1033
  %v1035 = vrot.slane %v960, %v1034
  %v1037 = vadd.f32 %v967, %v1035
  %v1038 = vadd.f32 %v968, %v1035
  %v1039 = vadd.f32 %v969, %v1035
  %v1040 = vadd.f32 %v970, %v1035
  %v1041 = vadd.f32 %v971, %v1035
  %v1042 = vadd.f32 %v972, %v1035
  %v1043 = vadd.f32 %v973, %v1035
  %v1044 = vadd.f32 %v974, %v1035
  %v1045 = vadd.f32 %v975, %v1035
  %v1046 = vadd.f32 %v976, %v1035
  %v1047 = vadd.f32 %v977, %v1035
  %v1048 = vadd.f32 %v978, %v1035
  %v1049 = vadd.f32 %v979, %v1035
  %v1050 = vadd.f32 %v980, %v1035
  %v1051 = vadd.f32 %v981, %v1035
  %v1052 = vadd.f32 %v982, %v1035
  %v1053 = vadd.f32 %v983, %v1035
  %v1054 = vadd.f32 %v984, %v1035
  %v1055 = vadd.f32 %v985, %v1035
  %v1056 = vadd.f32 %v986, %v1035
  %v1057 = vadd.f32 %v987, %v1035
  %v1058 = vadd.f32 %v988, %v1035
  %v1059 = vadd.f32 %v989, %v1035
  %v1060 = vadd.f32 %v990, %v1035
  %v1061 = vadd.f32 %v991, %v1035
  %v1062 = vadd.f32 %v992, %v1035
  %v1063 = vadd.f32 %v993, %v1035
  %v1064 = vadd.f32 %v994, %v1035
  %v1065 = vadd.f32 %v995, %v1035
  %v1066 = vadd.f32 %v996, %v1035
  %v1067 = vadd.f32 %v997, %v1035
  %v1068 = vadd.f32 %v998, %v1035
  %v1069 = vadd.f32 %v999, %v1035
  %v1070 = vadd.f32 %v1000, %v1035
  %v1071 = vadd.f32 %v1001, %v1035
  %v1072 = vadd.f32 %v1002, %v1035
  %v1073 = vadd.f32 %v1003, %v1035
  %v1074 = vadd.f32 %v1004, %v1035
  %v1075 = vadd.f32 %v1005, %v1035
  %v1076 = vadd.f32 %v1006, %v1035
  %v1077 = vadd.f32 %v1007, %v1035
  %v1078 = vadd.f32 %v1008, %v1035
  %v1079 = vadd.f32 %v1009, %v1035
  %v1080 = vadd.f32 %v1010, %v1035
  %v1081 = vadd.f32 %v1011, %v1035
  %v1082 = vadd.f32 %v1012, %v1035
  %v1083 = vadd.f32 %v1013, %v1035
  %v1084 = vadd.f32 %v1014, %v1035
  %v1085 = vadd.f32 %v1015, %v1035
  %v1086 = vadd.f32 %v1016, %v1035
  %v1087 = vadd.f32 %v1017, %v1035
  %v1088 = vadd.f32 %v1018, %v1035
  %v1089 = vadd.f32 %v1019, %v1035
  %v1090 = vadd.f32 %v1020, %v1035
  %v1091 = vadd.f32 %v1021, %v1035
  %v1092 = vadd.f32 %v1022, %v1035
  %v1093 = vadd.f32 %v1023, %v1035
  %v1094 = vadd.f32 %v1024, %v1035
  %v1095 = vadd.f32 %v1025, %v1035
  %v1096 = vadd.f32 %v1026, %v1035
  %v1097 = vadd.f32 %v1027, %v1035
  %v1098 = vadd.f32 %v1028, %v1035
  %v1099 = vadd.f32 %v1029, %v1035
  %v1100 = vadd.f32 %v1030, %v1035
  %v1101 = vld [vmem:[%s4] sm:$0x1]
  %v1102 = vld [vmem:[%s5] sm:$0x1]
  %v1103 = vadd.f32 %v429, %v433
  %v1104 = vadd.f32 %v1103, %v439
  %v1105 = vadd.f32 %v1104, %v443
  %v1106 = vadd.f32 %v1105, %v449
  %v1107 = vadd.f32 %v1106, %v453
  %v1108 = vadd.f32 %v1107, %v459
  %v1109 = vadd.f32 %v1108, %v463
  %v1110 = vadd.f32 %v1109, %v469
  %v1111 = vadd.f32 %v1110, %v473
  %v1112 = vadd.f32 %v1111, %v479
  %v1113 = vadd.f32 %v1112, %v483
  %v1114 = vadd.f32 %v1113, %v489
  %v1115 = vadd.f32 %v1114, %v493
  %v1116 = vadd.f32 %v1115, %v499
  %v1117 = vadd.f32 %v1116, %v503
  %v1118 = vadd.f32 %v1117, %v509
  %v1119 = vadd.f32 %v1118, %v513
  %v1120 = vadd.f32 %v1119, %v519
  %v1121 = vadd.f32 %v1120, %v523
  %v1122 = vadd.f32 %v1121, %v529
  %v1123 = vadd.f32 %v1122, %v533
  %v1124 = vadd.f32 %v1123, %v539
  %v1125 = vadd.f32 %v1124, %v543
  %v1126 = vadd.f32 %v1125, %v549
  %v1127 = vadd.f32 %v1126, %v553
  %v1128 = vadd.f32 %v1127, %v559
  %v1129 = vadd.f32 %v1128, %v563
  %v1130 = vadd.f32 %v1129, %v569
  %v1131 = vadd.f32 %v1130, %v573
  %v1132 = vadd.f32 %v1131, %v579
  %v1133 = vadd.f32 %v1132, %v583
  %v1134 = vadd.f32 %v1133, %v589
  %v1135 = vadd.f32 %v1134, %v593
  %v1136 = vadd.f32 %v1135, %v599
  %v1137 = vadd.f32 %v1136, %v603
  %v1138 = vadd.f32 %v1137, %v609
  %v1139 = vadd.f32 %v1138, %v613
  %v1140 = vadd.f32 %v1139, %v619
  %v1141 = vadd.f32 %v1140, %v623
  %v1142 = vadd.f32 %v1141, %v629
  %v1143 = vadd.f32 %v1142, %v633
  %v1144 = vadd.f32 %v1143, %v639
  %v1145 = vadd.f32 %v1144, %v643
  %v1146 = vadd.f32 %v1145, %v649
  %v1147 = vadd.f32 %v1146, %v653
  %v1148 = vadd.f32 %v1147, %v659
  %v1149 = vadd.f32 %v1148, %v663
  %v1150 = vadd.f32 %v1149, %v669
  %v1151 = vadd.f32 %v1150, %v673
  %v1152 = vadd.f32 %v1151, %v679
  %v1153 = vadd.f32 %v1152, %v683
  %v1154 = vadd.f32 %v1153, %v689
  %v1155 = vadd.f32 %v1154, %v693
  %v1156 = vadd.f32 %v1155, %v699
  %v1157 = vadd.f32 %v1156, %v703
  %v1158 = vadd.f32 %v1157, %v709
  %v1159 = vadd.f32 %v1158, %v713
  %v1160 = vadd.f32 %v1159, %v719
  %v1161 = vadd.f32 %v1160, %v723
  %v1162 = vadd.f32 %v1161, %v729
  %v1163 = vadd.f32 %v1162, %v733
  %v1164 = vadd.f32 %v1163, %v739
  %v1165 = vadd.f32 %v1164, %v743
  %v1166 = vrot.slane %v1165, 4
  %v1167 = vadd.f32 %v1165, %v1166
  %v1168 = vrot.slane %v1167, 2
  %v1169 = vadd.f32 %v1167, %v1168
  %v1170 = vrot.slane %v1169, 1
  %v1171 = vadd.f32 %v1169, %v1170
  %v1172 = vmul.f32 %v429, %v429
  %v1173 = vmul.f32 %v433, %v433
  %v1174 = vmul.f32 %v439, %v439
  %v1175 = vmul.f32 %v443, %v443
  %v1176 = vmul.f32 %v449, %v449
  %v1177 = vmul.f32 %v453, %v453
  %v1178 = vmul.f32 %v459, %v459
  %v1179 = vmul.f32 %v463, %v463
  %v1180 = vmul.f32 %v469, %v469
  %v1181 = vmul.f32 %v473, %v473
  %v1182 = vmul.f32 %v479, %v479
  %v1183 = vmul.f32 %v483, %v483
  %v1184 = vmul.f32 %v489, %v489
  %v1185 = vmul.f32 %v493, %v493
  %v1186 = vmul.f32 %v499, %v499
  %v1187 = vmul.f32 %v503, %v503
  %v1188 = vmul.f32 %v509, %v509
  %v1189 = vmul.f32 %v513, %v513
  %v1190 = vmul.f32 %v519, %v519
  %v1191 = vmul.f32 %v523, %v523
  %v1192 = vmul.f32 %v529, %v529
  %v1193 = vmul.f32 %v533, %v533
  %v1194 = vmul.f32 %v539, %v539
  %v1195 = vmul.f32 %v543, %v543
  %v1196 = vmul.f32 %v549, %v549
  %v1197 = vmul.f32 %v553, %v553
  %v1198 = vmul.f32 %v559, %v559
  %v1199 = vmul.f32 %v563, %v563
  %v1200 = vmul.f32 %v569, %v569
  %v1201 = vmul.f32 %v573, %v573
  %v1202 = vmul.f32 %v579, %v579
  %v1203 = vmul.f32 %v583, %v583
  %v1204 = vmul.f32 %v589, %v589
  %v1205 = vmul.f32 %v593, %v593
  %v1206 = vmul.f32 %v599, %v599
  %v1207 = vmul.f32 %v603, %v603
  %v1208 = vmul.f32 %v609, %v609
  %v1209 = vmul.f32 %v613, %v613
  %v1210 = vmul.f32 %v619, %v619
  %v1211 = vmul.f32 %v623, %v623
  %v1212 = vmul.f32 %v629, %v629
  %v1213 = vmul.f32 %v633, %v633
  %v1214 = vmul.f32 %v639, %v639
  %v1215 = vmul.f32 %v643, %v643
  %v1216 = vmul.f32 %v649, %v649
  %v1217 = vmul.f32 %v653, %v653
  %v1218 = vmul.f32 %v659, %v659
  %v1219 = vmul.f32 %v663, %v663
  %v1220 = vmul.f32 %v669, %v669
  %v1221 = vmul.f32 %v673, %v673
  %v1222 = vmul.f32 %v679, %v679
  %v1223 = vmul.f32 %v683, %v683
  %v1224 = vmul.f32 %v689, %v689
  %v1225 = vmul.f32 %v693, %v693
  %v1226 = vmul.f32 %v699, %v699
  %v1227 = vmul.f32 %v703, %v703
  %v1228 = vmul.f32 %v709, %v709
  %v1229 = vmul.f32 %v713, %v713
  %v1230 = vmul.f32 %v719, %v719
  %v1231 = vmul.f32 %v723, %v723
  %v1232 = vmul.f32 %v729, %v729
  %v1233 = vmul.f32 %v733, %v733
  %v1234 = vmul.f32 %v739, %v739
  %v1235 = vmul.f32 %v743, %v743
  %v1236 = vadd.f32 %v1172, %v1173
  %v1237 = vadd.f32 %v1236, %v1174
  %v1238 = vadd.f32 %v1237, %v1175
  %v1239 = vadd.f32 %v1238, %v1176
  %v1240 = vadd.f32 %v1239, %v1177
  %v1241 = vadd.f32 %v1240, %v1178
  %v1242 = vadd.f32 %v1241, %v1179
  %v1243 = vadd.f32 %v1242, %v1180
  %v1244 = vadd.f32 %v1243, %v1181
  %v1245 = vadd.f32 %v1244, %v1182
  %v1246 = vadd.f32 %v1245, %v1183
  %v1247 = vadd.f32 %v1246, %v1184
  %v1248 = vadd.f32 %v1247, %v1185
  %v1249 = vadd.f32 %v1248, %v1186
  %v1250 = vadd.f32 %v1249, %v1187
  %v1251 = vadd.f32 %v1250, %v1188
  %v1252 = vadd.f32 %v1251, %v1189
  %v1253 = vadd.f32 %v1252, %v1190
  %v1254 = vadd.f32 %v1253, %v1191
  %v1255 = vadd.f32 %v1254, %v1192
  %v1256 = vadd.f32 %v1255, %v1193
  %v1257 = vadd.f32 %v1256, %v1194
  %v1258 = vadd.f32 %v1257, %v1195
  %v1259 = vadd.f32 %v1258, %v1196
  %v1260 = vadd.f32 %v1259, %v1197
  %v1261 = vadd.f32 %v1260, %v1198
  %v1262 = vadd.f32 %v1261, %v1199
  %v1263 = vadd.f32 %v1262, %v1200
  %v1264 = vadd.f32 %v1263, %v1201
  %v1265 = vadd.f32 %v1264, %v1202
  %v1266 = vadd.f32 %v1265, %v1203
  %v1267 = vadd.f32 %v1266, %v1204
  %v1268 = vadd.f32 %v1267, %v1205
  %v1269 = vadd.f32 %v1268, %v1206
  %v1270 = vadd.f32 %v1269, %v1207
  %v1271 = vadd.f32 %v1270, %v1208
  %v1272 = vadd.f32 %v1271, %v1209
  %v1273 = vadd.f32 %v1272, %v1210
  %v1274 = vadd.f32 %v1273, %v1211
  %v1275 = vadd.f32 %v1274, %v1212
  %v1276 = vadd.f32 %v1275, %v1213
  %v1277 = vadd.f32 %v1276, %v1214
  %v1278 = vadd.f32 %v1277, %v1215
  %v1279 = vadd.f32 %v1278, %v1216
  %v1280 = vadd.f32 %v1279, %v1217
  %v1281 = vadd.f32 %v1280, %v1218
  %v1282 = vadd.f32 %v1281, %v1219
  %v1283 = vadd.f32 %v1282, %v1220
  %v1284 = vadd.f32 %v1283, %v1221
  %v1285 = vadd.f32 %v1284, %v1222
  %v1286 = vadd.f32 %v1285, %v1223
  %v1287 = vadd.f32 %v1286, %v1224
  %v1288 = vadd.f32 %v1287, %v1225
  %v1289 = vadd.f32 %v1288, %v1226
  %v1290 = vadd.f32 %v1289, %v1227
  %v1291 = vadd.f32 %v1290, %v1228
  %v1292 = vadd.f32 %v1291, %v1229
  %v1293 = vadd.f32 %v1292, %v1230
  %v1294 = vadd.f32 %v1293, %v1231
  %v1295 = vadd.f32 %v1294, %v1232
  %v1296 = vadd.f32 %v1295, %v1233
  %v1297 = vadd.f32 %v1296, %v1234
  %v1298 = vadd.f32 %v1297, %v1235
  %v1299 = vrot.slane %v1298, 4
  %v1300 = vadd.f32 %v1298, %v1299
  %v1301 = vrot.slane %v1300, 2
  %v1302 = vadd.f32 %v1300, %v1301
  %v1303 = vrot.slane %v1302, 1
  %v1304 = vadd.f32 %v1302, %v1303
  %v1305 = vmul.f32 %v1171, 0.001953125
  %v1306 = vmul.f32 %v1304, 0.001953125
  %v1307 = vmul.f32 %v1305, %v1305
  %v1308 = vsub.f32 %v1306, %v1307
  %v1309 = vmax.f32 %v1308, 0.0
  %v1310 = vadd.f32 %v1309, 1e-05
  %v1311 = vrsqrt.pop %v1310
  %v1312 = vmul.f32 %v1101, %v1311
  %v1313 = vmul.f32 %v1305, %v1312
  %v1314 = vsub.f32 %v1102, %v1313
  %v1316 = vlaneseq
  %v1317 = vshrl.u32 %v1316, 7
  %v1318 = vsub.s32 0, %v1317
  %v1319 = vrot.slane %v1312, %v1318
  %v1321 = vmul.f32 %v429, %v1319
  %v1322 = vmul.f32 %v433, %v1319
  %v1323 = vmul.f32 %v439, %v1319
  %v1324 = vmul.f32 %v443, %v1319
  %v1325 = vmul.f32 %v449, %v1319
  %v1326 = vmul.f32 %v453, %v1319
  %v1327 = vmul.f32 %v459, %v1319
  %v1328 = vmul.f32 %v463, %v1319
  %v1329 = vmul.f32 %v469, %v1319
  %v1330 = vmul.f32 %v473, %v1319
  %v1331 = vmul.f32 %v479, %v1319
  %v1332 = vmul.f32 %v483, %v1319
  %v1333 = vmul.f32 %v489, %v1319
  %v1334 = vmul.f32 %v493, %v1319
  %v1335 = vmul.f32 %v499, %v1319
  %v1336 = vmul.f32 %v503, %v1319
  %v1337 = vmul.f32 %v509, %v1319
  %v1338 = vmul.f32 %v513, %v1319
  %v1339 = vmul.f32 %v519, %v1319
  %v1340 = vmul.f32 %v523, %v1319
  %v1341 = vmul.f32 %v529, %v1319
  %v1342 = vmul.f32 %v533, %v1319
  %v1343 = vmul.f32 %v539, %v1319
  %v1344 = vmul.f32 %v543, %v1319
  %v1345 = vmul.f32 %v549, %v1319
  %v1346 = vmul.f32 %v553, %v1319
  %v1347 = vmul.f32 %v559, %v1319
  %v1348 = vmul.f32 %v563, %v1319
  %v1349 = vmul.f32 %v569, %v1319
  %v1350 = vmul.f32 %v573, %v1319
  %v1351 = vmul.f32 %v579, %v1319
  %v1352 = vmul.f32 %v583, %v1319
  %v1353 = vmul.f32 %v589, %v1319
  %v1354 = vmul.f32 %v593, %v1319
  %v1355 = vmul.f32 %v599, %v1319
  %v1356 = vmul.f32 %v603, %v1319
  %v1357 = vmul.f32 %v609, %v1319
  %v1358 = vmul.f32 %v613, %v1319
  %v1359 = vmul.f32 %v619, %v1319
  %v1360 = vmul.f32 %v623, %v1319
  %v1361 = vmul.f32 %v629, %v1319
  %v1362 = vmul.f32 %v633, %v1319
  %v1363 = vmul.f32 %v639, %v1319
  %v1364 = vmul.f32 %v643, %v1319
  %v1365 = vmul.f32 %v649, %v1319
  %v1366 = vmul.f32 %v653, %v1319
  %v1367 = vmul.f32 %v659, %v1319
  %v1368 = vmul.f32 %v663, %v1319
  %v1369 = vmul.f32 %v669, %v1319
  %v1370 = vmul.f32 %v673, %v1319
  %v1371 = vmul.f32 %v679, %v1319
  %v1372 = vmul.f32 %v683, %v1319
  %v1373 = vmul.f32 %v689, %v1319
  %v1374 = vmul.f32 %v693, %v1319
  %v1375 = vmul.f32 %v699, %v1319
  %v1376 = vmul.f32 %v703, %v1319
  %v1377 = vmul.f32 %v709, %v1319
  %v1378 = vmul.f32 %v713, %v1319
  %v1379 = vmul.f32 %v719, %v1319
  %v1380 = vmul.f32 %v723, %v1319
  %v1381 = vmul.f32 %v729, %v1319
  %v1382 = vmul.f32 %v733, %v1319
  %v1383 = vmul.f32 %v739, %v1319
  %v1384 = vmul.f32 %v743, %v1319
  %v1386 = vlaneseq
  %v1387 = vshrl.u32 %v1386, 7
  %v1388 = vsub.s32 0, %v1387
  %v1389 = vrot.slane %v1314, %v1388
  %v1391 = vadd.f32 %v1321, %v1389
  %v1392 = vadd.f32 %v1322, %v1389
  %v1393 = vadd.f32 %v1323, %v1389
  %v1394 = vadd.f32 %v1324, %v1389
  %v1395 = vadd.f32 %v1325, %v1389
  %v1396 = vadd.f32 %v1326, %v1389
  %v1397 = vadd.f32 %v1327, %v1389
  %v1398 = vadd.f32 %v1328, %v1389
  %v1399 = vadd.f32 %v1329, %v1389
  %v1400 = vadd.f32 %v1330, %v1389
  %v1401 = vadd.f32 %v1331, %v1389
  %v1402 = vadd.f32 %v1332, %v1389
  %v1403 = vadd.f32 %v1333, %v1389
  %v1404 = vadd.f32 %v1334, %v1389
  %v1405 = vadd.f32 %v1335, %v1389
  %v1406 = vadd.f32 %v1336, %v1389
  %v1407 = vadd.f32 %v1337, %v1389
  %v1408 = vadd.f32 %v1338, %v1389
  %v1409 = vadd.f32 %v1339, %v1389
  %v1410 = vadd.f32 %v1340, %v1389
  %v1411 = vadd.f32 %v1341, %v1389
  %v1412 = vadd.f32 %v1342, %v1389
  %v1413 = vadd.f32 %v1343, %v1389
  %v1414 = vadd.f32 %v1344, %v1389
  %v1415 = vadd.f32 %v1345, %v1389
  %v1416 = vadd.f32 %v1346, %v1389
  %v1417 = vadd.f32 %v1347, %v1389
  %v1418 = vadd.f32 %v1348, %v1389
  %v1419 = vadd.f32 %v1349, %v1389
  %v1420 = vadd.f32 %v1350, %v1389
  %v1421 = vadd.f32 %v1351, %v1389
  %v1422 = vadd.f32 %v1352, %v1389
  %v1423 = vadd.f32 %v1353, %v1389
  %v1424 = vadd.f32 %v1354, %v1389
  %v1425 = vadd.f32 %v1355, %v1389
  %v1426 = vadd.f32 %v1356, %v1389
  %v1427 = vadd.f32 %v1357, %v1389
  %v1428 = vadd.f32 %v1358, %v1389
  %v1429 = vadd.f32 %v1359, %v1389
  %v1430 = vadd.f32 %v1360, %v1389
  %v1431 = vadd.f32 %v1361, %v1389
  %v1432 = vadd.f32 %v1362, %v1389
  %v1433 = vadd.f32 %v1363, %v1389
  %v1434 = vadd.f32 %v1364, %v1389
  %v1435 = vadd.f32 %v1365, %v1389
  %v1436 = vadd.f32 %v1366, %v1389
  %v1437 = vadd.f32 %v1367, %v1389
  %v1438 = vadd.f32 %v1368, %v1389
  %v1439 = vadd.f32 %v1369, %v1389
  %v1440 = vadd.f32 %v1370, %v1389
  %v1441 = vadd.f32 %v1371, %v1389
  %v1442 = vadd.f32 %v1372, %v1389
  %v1443 = vadd.f32 %v1373, %v1389
  %v1444 = vadd.f32 %v1374, %v1389
  %v1445 = vadd.f32 %v1375, %v1389
  %v1446 = vadd.f32 %v1376, %v1389
  %v1447 = vadd.f32 %v1377, %v1389
  %v1448 = vadd.f32 %v1378, %v1389
  %v1449 = vadd.f32 %v1379, %v1389
  %v1450 = vadd.f32 %v1380, %v1389
  %v1451 = vadd.f32 %v1381, %v1389
  %v1452 = vadd.f32 %v1382, %v1389
  %v1453 = vadd.f32 %v1383, %v1389
  %v1454 = vadd.f32 %v1384, %v1389
  %v1455 = vmax.f32 %v1391, 0.0
  %v1456 = vmax.f32 %v1392, 0.0
  %v1457 = vmax.f32 %v1393, 0.0
  %v1458 = vmax.f32 %v1394, 0.0
  %v1459 = vmax.f32 %v1395, 0.0
  %v1460 = vmax.f32 %v1396, 0.0
  %v1461 = vmax.f32 %v1397, 0.0
  %v1462 = vmax.f32 %v1398, 0.0
  %v1463 = vmax.f32 %v1399, 0.0
  %v1464 = vmax.f32 %v1400, 0.0
  %v1465 = vmax.f32 %v1401, 0.0
  %v1466 = vmax.f32 %v1402, 0.0
  %v1467 = vmax.f32 %v1403, 0.0
  %v1468 = vmax.f32 %v1404, 0.0
  %v1469 = vmax.f32 %v1405, 0.0
  %v1470 = vmax.f32 %v1406, 0.0
  %v1471 = vmax.f32 %v1407, 0.0
  %v1472 = vmax.f32 %v1408, 0.0
  %v1473 = vmax.f32 %v1409, 0.0
  %v1474 = vmax.f32 %v1410, 0.0
  %v1475 = vmax.f32 %v1411, 0.0
  %v1476 = vmax.f32 %v1412, 0.0
  %v1477 = vmax.f32 %v1413, 0.0
  %v1478 = vmax.f32 %v1414, 0.0
  %v1479 = vmax.f32 %v1415, 0.0
  %v1480 = vmax.f32 %v1416, 0.0
  %v1481 = vmax.f32 %v1417, 0.0
  %v1482 = vmax.f32 %v1418, 0.0
  %v1483 = vmax.f32 %v1419, 0.0
  %v1484 = vmax.f32 %v1420, 0.0
  %v1485 = vmax.f32 %v1421, 0.0
  %v1486 = vmax.f32 %v1422, 0.0
  %v1487 = vmax.f32 %v1423, 0.0
  %v1488 = vmax.f32 %v1424, 0.0
  %v1489 = vmax.f32 %v1425, 0.0
  %v1490 = vmax.f32 %v1426, 0.0
  %v1491 = vmax.f32 %v1427, 0.0
  %v1492 = vmax.f32 %v1428, 0.0
  %v1493 = vmax.f32 %v1429, 0.0
  %v1494 = vmax.f32 %v1430, 0.0
  %v1495 = vmax.f32 %v1431, 0.0
  %v1496 = vmax.f32 %v1432, 0.0
  %v1497 = vmax.f32 %v1433, 0.0
  %v1498 = vmax.f32 %v1434, 0.0
  %v1499 = vmax.f32 %v1435, 0.0
  %v1500 = vmax.f32 %v1436, 0.0
  %v1501 = vmax.f32 %v1437, 0.0
  %v1502 = vmax.f32 %v1438, 0.0
  %v1503 = vmax.f32 %v1439, 0.0
  %v1504 = vmax.f32 %v1440, 0.0
  %v1505 = vmax.f32 %v1441, 0.0
  %v1506 = vmax.f32 %v1442, 0.0
  %v1507 = vmax.f32 %v1443, 0.0
  %v1508 = vmax.f32 %v1444, 0.0
  %v1509 = vmax.f32 %v1445, 0.0
  %v1510 = vmax.f32 %v1446, 0.0
  %v1511 = vmax.f32 %v1447, 0.0
  %v1512 = vmax.f32 %v1448, 0.0
  %v1513 = vmax.f32 %v1449, 0.0
  %v1514 = vmax.f32 %v1450, 0.0
  %v1515 = vmax.f32 %v1451, 0.0
  %v1516 = vmax.f32 %v1452, 0.0
  %v1517 = vmax.f32 %v1453, 0.0
  %v1518 = vmax.f32 %v1454, 0.0
  %1519 = vst [vmem:[#allocation2] sm:$0xff] 0.0
  %1520 = vst [vmem:[#allocation2 + $0x8] sm:$0xff] 0.0
  %1521 = vst [vmem:[#allocation2 + $0x10] sm:$0x3] 0.0
  %1522 = vst [vmem:[#allocation2 + $0x1b0] sm:$0xff] 0.0
  %1523 = vst [vmem:[#allocation2 + $0x1b8] sm:$0xff] 0.0
  %1524 = vst [vmem:[#allocation2 + $0x1c0] sm:$0x3] 0.0
  %s1525 = scalar_lea.vmem [#allocation2], 408
  %1526 = vst [vmem:[%s1525] sm:$0xff] 0.0
  %1527 = vst [vmem:[%s1525 + $0x8] sm:$0xff] 0.0
  %1528 = vst [vmem:[%s1525 + $0x10] sm:$0x3] 0.0
  %1529 = vst [vmem:[%s1525 + $0x1b0] sm:$0xff] 0.0
  %1530 = vst [vmem:[%s1525 + $0x1b8] sm:$0xff] 0.0
  %1531 = vst [vmem:[%s1525 + $0x1c0] sm:$0x3] 0.0
  %s1532 = scalar_lea.vmem [#allocation2], 24
  %1533 = vst [vmem:[%s1532] sm:$0x1] 0.0
  %1534 = vst [vmem:[%s1532 + $0x18] sm:$0x1] 0.0
  %1535 = vst [vmem:[%s1532 + $0x30] sm:$0x1] 0.0
  %1536 = vst [vmem:[%s1532 + $0x48] sm:$0x1] 0.0
  %1537 = vst [vmem:[%s1532 + $0x60] sm:$0x1] 0.0
  %1538 = vst [vmem:[%s1532 + $0x78] sm:$0x1] 0.0
  %1539 = vst [vmem:[%s1532 + $0x90] sm:$0x1] 0.0
  %1540 = vst [vmem:[%s1532 + $0xa8] sm:$0x1] 0.0
  %1541 = vst [vmem:[%s1532 + $0xc0] sm:$0x1] 0.0
  %1542 = vst [vmem:[%s1532 + $0xd8] sm:$0x1] 0.0
  %1543 = vst [vmem:[%s1532 + $0xf0] sm:$0x1] 0.0
  %1544 = vst [vmem:[%s1532 + $0x108] sm:$0x1] 0.0
  %1545 = vst [vmem:[%s1532 + $0x120] sm:$0x1] 0.0
  %1546 = vst [vmem:[%s1532 + $0x138] sm:$0x1] 0.0
  %1547 = vst [vmem:[%s1532 + $0x150] sm:$0x1] 0.0
  %1548 = vst [vmem:[%s1532 + $0x168] sm:$0x1] 0.0
  %1549 = vst [vmem:[%s1532 + $0x1b0] sm:$0x1] 0.0
  %1550 = vst [vmem:[%s1532 + $0x1c8] sm:$0x1] 0.0
  %1551 = vst [vmem:[%s1532 + $0x1e0] sm:$0x1] 0.0
  %1552 = vst [vmem:[%s1532 + $0x1f8] sm:$0x1] 0.0
  %1553 = vst [vmem:[%s1532 + $0x210] sm:$0x1] 0.0
  %1554 = vst [vmem:[%s1532 + $0x228] sm:$0x1] 0.0
  %1555 = vst [vmem:[%s1532 + $0x240] sm:$0x1] 0.0
  %1556 = vst [vmem:[%s1532 + $0x258] sm:$0x1] 0.0
  %1557 = vst [vmem:[%s1532 + $0x270] sm:$0x1] 0.0
  %1558 = vst [vmem:[%s1532 + $0x288] sm:$0x1] 0.0
  %1559 = vst [vmem:[%s1532 + $0x2a0] sm:$0x1] 0.0
  %1560 = vst [vmem:[%s1532 + $0x2b8] sm:$0x1] 0.0
  %1561 = vst [vmem:[%s1532 + $0x2d0] sm:$0x1] 0.0
  %1562 = vst [vmem:[%s1532 + $0x2e8] sm:$0x1] 0.0
  %1563 = vst [vmem:[%s1532 + $0x300] sm:$0x1] 0.0
  %1564 = vst [vmem:[%s1532 + $0x318] sm:$0x1] 0.0
  %1565 = vst [vmem:[%s1532 + $0x11] sm:$0x1] 0.0
  %1566 = vst [vmem:[%s1532 + $0x29] sm:$0x1] 0.0
  %1567 = vst [vmem:[%s1532 + $0x41] sm:$0x1] 0.0
  %1568 = vst [vmem:[%s1532 + $0x59] sm:$0x1] 0.0
  %1569 = vst [vmem:[%s1532 + $0x71] sm:$0x1] 0.0
  %1570 = vst [vmem:[%s1532 + $0x89] sm:$0x1] 0.0
  %1571 = vst [vmem:[%s1532 + $0xa1] sm:$0x1] 0.0
  %1572 = vst [vmem:[%s1532 + $0xb9] sm:$0x1] 0.0
  %1573 = vst [vmem:[%s1532 + $0xd1] sm:$0x1] 0.0
  %1574 = vst [vmem:[%s1532 + $0xe9] sm:$0x1] 0.0
  %1575 = vst [vmem:[%s1532 + $0x101] sm:$0x1] 0.0
  %1576 = vst [vmem:[%s1532 + $0x119] sm:$0x1] 0.0
  %1577 = vst [vmem:[%s1532 + $0x131] sm:$0x1] 0.0
  %1578 = vst [vmem:[%s1532 + $0x149] sm:$0x1] 0.0
  %1579 = vst [vmem:[%s1532 + $0x161] sm:$0x1] 0.0
  %1580 = vst [vmem:[%s1532 + $0x179] sm:$0x1] 0.0
  %1581 = vst [vmem:[%s1532 + $0x1c1] sm:$0x1] 0.0
  %1582 = vst [vmem:[%s1532 + $0x1d9] sm:$0x1] 0.0
  %1583 = vst [vmem:[%s1532 + $0x1f1] sm:$0x1] 0.0
  %1584 = vst [vmem:[%s1532 + $0x209] sm:$0x1] 0.0
  %1585 = vst [vmem:[%s1532 + $0x221] sm:$0x1] 0.0
  %1586 = vst [vmem:[%s1532 + $0x239] sm:$0x1] 0.0
  %1587 = vst [vmem:[%s1532 + $0x251] sm:$0x1] 0.0
  %1588 = vst [vmem:[%s1532 + $0x269] sm:$0x1] 0.0
  %1589 = vst [vmem:[%s1532 + $0x281] sm:$0x1] 0.0
  %1590 = vst [vmem:[%s1532 + $0x299] sm:$0x1] 0.0
  %1591 = vst [vmem:[%s1532 + $0x2b1] sm:$0x1] 0.0
  %1592 = vst [vmem:[%s1532 + $0x2c9] sm:$0x1] 0.0
  %1593 = vst [vmem:[%s1532 + $0x2e1] sm:$0x1] 0.0
  %1594 = vst [vmem:[%s1532 + $0x2f9] sm:$0x1] 0.0
  %1595 = vst [vmem:[%s1532 + $0x311] sm:$0x1] 0.0
  %1596 = vst [vmem:[%s1532 + $0x329] sm:$0x1] 0.0
  %1597 = vst [vmem:[%s1532 + $0x1] sm:$0xff] %v1455
  %1598 = vst [vmem:[%s1532 + $0x9] sm:$0xff] %v1456
  %1599 = vst [vmem:[%s1532 + $0x19] sm:$0xff] %v1457
  %1600 = vst [vmem:[%s1532 + $0x21] sm:$0xff] %v1458
  %1601 = vst [vmem:[%s1532 + $0x31] sm:$0xff] %v1459
  %1602 = vst [vmem:[%s1532 + $0x39] sm:$0xff] %v1460
  %1603 = vst [vmem:[%s1532 + $0x49] sm:$0xff] %v1461
  %1604 = vst [vmem:[%s1532 + $0x51] sm:$0xff] %v1462
  %1605 = vst [vmem:[%s1532 + $0x61] sm:$0xff] %v1463
  %1606 = vst [vmem:[%s1532 + $0x69] sm:$0xff] %v1464
  %1607 = vst [vmem:[%s1532 + $0x79] sm:$0xff] %v1465
  %1608 = vst [vmem:[%s1532 + $0x81] sm:$0xff] %v1466
  %1609 = vst [vmem:[%s1532 + $0x91] sm:$0xff] %v1467
  %1610 = vst [vmem:[%s1532 + $0x99] sm:$0xff] %v1468
  %1611 = vst [vmem:[%s1532 + $0xa9] sm:$0xff] %v1469
  %1612 = vst [vmem:[%s1532 + $0xb1] sm:$0xff] %v1470
  %1613 = vst [vmem:[%s1532 + $0xc1] sm:$0xff] %v1471
  %1614 = vst [vmem:[%s1532 + $0xc9] sm:$0xff] %v1472
  %1615 = vst [vmem:[%s1532 + $0xd9] sm:$0xff] %v1473
  %1616 = vst [vmem:[%s1532 + $0xe1] sm:$0xff] %v1474
  %1617 = vst [vmem:[%s1532 + $0xf1] sm:$0xff] %v1475
  %1618 = vst [vmem:[%s1532 + $0xf9] sm:$0xff] %v1476
  %1619 = vst [vmem:[%s1532 + $0x109] sm:$0xff] %v1477
  %1620 = vst [vmem:[%s1532 + $0x111] sm:$0xff] %v1478
  %1621 = vst [vmem:[%s1532 + $0x121] sm:$0xff] %v1479
  %1622 = vst [vmem:[%s1532 + $0x129] sm:$0xff] %v1480
  %1623 = vst [vmem:[%s1532 + $0x139] sm:$0xff] %v1481
  %1624 = vst [vmem:[%s1532 + $0x141] sm:$0xff] %v1482
  %1625 = vst [vmem:[%s1532 + $0x151] sm:$0xff] %v1483
  %1626 = vst [vmem:[%s1532 + $0x159] sm:$0xff] %v1484
  %1627 = vst [vmem:[%s1532 + $0x169] sm:$0xff] %v1485
  %1628 = vst [vmem:[%s1532 + $0x171] sm:$0xff] %v1486
  %1629 = vst [vmem:[%s1532 + $0x1b1] sm:$0xff] %v1487
  %1630 = vst [vmem:[%s1532 + $0x1b9] sm:$0xff] %v1488
  %1631 = vst [vmem:[%s1532 + $0x1c9] sm:$0xff] %v1489
  %1632 = vst [vmem:[%s1532 + $0x1d1] sm:$0xff] %v1490
  %1633 = vst [vmem:[%s1532 + $0x1e1] sm:$0xff] %v1491
  %1634 = vst [vmem:[%s1532 + $0x1e9] sm:$0xff] %v1492
  %1635 = vst [vmem:[%s1532 + $0x1f9] sm:$0xff] %v1493
  %1636 = vst [vmem:[%s1532 + $0x201] sm:$0xff] %v1494
  %1637 = vst [vmem:[%s1532 + $0x211] sm:$0xff] %v1495
  %1638 = vst [vmem:[%s1532 + $0x219] sm:$0xff] %v1496
  %1639 = vst [vmem:[%s1532 + $0x229] sm:$0xff] %v1497
  %1640 = vst [vmem:[%s1532 + $0x231] sm:$0xff] %v1498
  %1641 = vst [vmem:[%s1532 + $0x241] sm:$0xff] %v1499
  %1642 = vst [vmem:[%s1532 + $0x249] sm:$0xff] %v1500
  %1643 = vst [vmem:[%s1532 + $0x259] sm:$0xff] %v1501
  %1644 = vst [vmem:[%s1532 + $0x261] sm:$0xff] %v1502
  %1645 = vst [vmem:[%s1532 + $0x271] sm:$0xff] %v1503
  %1646 = vst [vmem:[%s1532 + $0x279] sm:$0xff] %v1504
  %1647 = vst [vmem:[%s1532 + $0x289] sm:$0xff] %v1505
  %1648 = vst [vmem:[%s1532 + $0x291] sm:$0xff] %v1506
  %1649 = vst [vmem:[%s1532 + $0x2a1] sm:$0xff] %v1507
  %1650 = vst [vmem:[%s1532 + $0x2a9] sm:$0xff] %v1508
  %1651 = vst [vmem:[%s1532 + $0x2b9] sm:$0xff] %v1509
  %1652 = vst [vmem:[%s1532 + $0x2c1] sm:$0xff] %v1510
  %1653 = vst [vmem:[%s1532 + $0x2d1] sm:$0xff] %v1511
  %1654 = vst [vmem:[%s1532 + $0x2d9] sm:$0xff] %v1512
  %1655 = vst [vmem:[%s1532 + $0x2e9] sm:$0xff] %v1513
  %1656 = vst [vmem:[%s1532 + $0x2f1] sm:$0xff] %v1514
  %1657 = vst [vmem:[%s1532 + $0x301] sm:$0xff] %v1515
  %1658 = vst [vmem:[%s1532 + $0x309] sm:$0xff] %v1516
  %1659 = vst [vmem:[%s1532 + $0x319] sm:$0xff] %v1517
  %1660 = vst [vmem:[%s1532 + $0x321] sm:$0xff] %v1518
  %v1661 = vld [vmem:[#allocation2] sm:$0xff]
  %v1662 = vld [vmem:[#allocation2 + $0x8] sm:$0xff]
  %v1663 = vld [vmem:[#allocation2 + $0x18] sm:$0xff]
  %v1664 = vld [vmem:[#allocation2 + $0x20] sm:$0xff]
  %v1665 = vld [vmem:[#allocation2 + $0x30] sm:$0xff]
  %v1666 = vld [vmem:[#allocation2 + $0x38] sm:$0xff]
  %v1667 = vld [vmem:[#allocation2 + $0x48] sm:$0xff]
  %v1668 = vld [vmem:[#allocation2 + $0x50] sm:$0xff]
  %v1669 = vld [vmem:[#allocation2 + $0x60] sm:$0xff]
  %v1670 = vld [vmem:[#allocation2 + $0x68] sm:$0xff]
  %v1671 = vld [vmem:[#allocation2 + $0x78] sm:$0xff]
  %v1672 = vld [vmem:[#allocation2 + $0x80] sm:$0xff]
  %v1673 = vld [vmem:[#allocation2 + $0x90] sm:$0xff]
  %v1674 = vld [vmem:[#allocation2 + $0x98] sm:$0xff]
  %v1675 = vld [vmem:[#allocation2 + $0xa8] sm:$0xff]
  %v1676 = vld [vmem:[#allocation2 + $0xb0] sm:$0xff]
  %v1677 = vld [vmem:[#allocation2 + $0xc0] sm:$0xff]
  %v1678 = vld [vmem:[#allocation2 + $0xc8] sm:$0xff]
  %v1679 = vld [vmem:[#allocation2 + $0xd8] sm:$0xff]
  %v1680 = vld [vmem:[#allocation2 + $0xe0] sm:$0xff]
  %v1681 = vld [vmem:[#allocation2 + $0xf0] sm:$0xff]
  %v1682 = vld [vmem:[#allocation2 + $0xf8] sm:$0xff]
  %v1683 = vld [vmem:[#allocation2 + $0x108] sm:$0xff]
  %v1684 = vld [vmem:[#allocation2 + $0x110] sm:$0xff]
  %v1685 = vld [vmem:[#allocation2 + $0x120] sm:$0xff]
  %v1686 = vld [vmem:[#allocation2 + $0x128] sm:$0xff]
  %v1687 = vld [vmem:[#allocation2 + $0x138] sm:$0xff]
  %v1688 = vld [vmem:[#allocation2 + $0x140] sm:$0xff]
  %v1689 = vld [vmem:[#allocation2 + $0x150] sm:$0xff]
  %v1690 = vld [vmem:[#allocation2 + $0x158] sm:$0xff]
  %v1691 = vld [vmem:[#allocation2 + $0x168] sm:$0xff]
  %v1692 = vld [vmem:[#allocation2 + $0x170] sm:$0xff]
  %v1693 = vld [vmem:[#allocation2 + $0x1b0] sm:$0xff]
  %v1694 = vld [vmem:[#allocation2 + $0x1b8] sm:$0xff]
  %v1695 = vld [vmem:[#allocation2 + $0x1c8] sm:$0xff]
  %v1696 = vld [vmem:[#allocation2 + $0x1d0] sm:$0xff]
  %v1697 = vld [vmem:[#allocation2 + $0x1e0] sm:$0xff]
  %v1698 = vld [vmem:[#allocation2 + $0x1e8] sm:$0xff]
  %v1699 = vld [vmem:[#allocation2 + $0x1f8] sm:$0xff]
  %v1700 = vld [vmem:[#allocation2 + $0x200] sm:$0xff]
  %v1701 = vld [vmem:[#allocation2 + $0x210] sm:$0xff]
  %v1702 = vld [vmem:[#allocation2 + $0x218] sm:$0xff]
  %v1703 = vld [vmem:[#allocation2 + $0x228] sm:$0xff]
  %v1704 = vld [vmem:[#allocation2 + $0x230] sm:$0xff]
  %v1705 = vld [vmem:[#allocation2 + $0x240] sm:$0xff]
  %v1706 = vld [vmem:[#allocation2 + $0x248] sm:$0xff]
  %v1707 = vld [vmem:[#allocation2 + $0x258] sm:$0xff]
  %v1708 = vld [vmem:[#allocation2 + $0x260] sm:$0xff]
  %v1709 = vld [vmem:[#allocation2 + $0x270] sm:$0xff]
  %v1710 = vld [vmem:[#allocation2 + $0x278] sm:$0xff]
  %v1711 = vld [vmem:[#allocation2 + $0x288] sm:$0xff]
  %v1712 = vld [vmem:[#allocation2 + $0x290] sm:$0xff]
  %v1713 = vld [vmem:[#allocation2 + $0x2a0] sm:$0xff]
  %v1714 = vld [vmem:[#allocation2 + $0x2a8] sm:$0xff]
  %v1715 = vld [vmem:[#allocation2 + $0x2b8] sm:$0xff]
  %v1716 = vld [vmem:[#allocation2 + $0x2c0] sm:$0xff]
  %v1717 = vld [vmem:[#allocation2 + $0x2d0] sm:$0xff]
  %v1718 = vld [vmem:[#allocation2 + $0x2d8] sm:$0xff]
  %v1719 = vld [vmem:[#allocation2 + $0x2e8] sm:$0xff]
  %v1720 = vld [vmem:[#allocation2 + $0x2f0] sm:$0xff]
  %v1721 = vld [vmem:[#allocation2 + $0x300] sm:$0xff]
  %v1722 = vld [vmem:[#allocation2 + $0x308] sm:$0xff]
  %v1723 = vld [vmem:[#allocation2 + $0x318] sm:$0xff]
  %v1724 = vld [vmem:[#allocation2 + $0x320] sm:$0xff]
  %v1725 = vpack.c.bf16 %v1662, %v1661
  %v1726 = vpack.c.bf16 %v1664, %v1663
  %v1727 = vpack.c.bf16 %v1666, %v1665
  %v1728 = vpack.c.bf16 %v1668, %v1667
  %v1729 = vpack.c.bf16 %v1670, %v1669
  %v1730 = vpack.c.bf16 %v1672, %v1671
  %v1731 = vpack.c.bf16 %v1674, %v1673
  %v1732 = vpack.c.bf16 %v1676, %v1675
  %v1733 = vpack.c.bf16 %v1678, %v1677
  %v1734 = vpack.c.bf16 %v1680, %v1679
  %v1735 = vpack.c.bf16 %v1682, %v1681
  %v1736 = vpack.c.bf16 %v1684, %v1683
  %v1737 = vpack.c.bf16 %v1686, %v1685
  %v1738 = vpack.c.bf16 %v1688, %v1687
  %v1739 = vpack.c.bf16 %v1690, %v1689
  %v1740 = vpack.c.bf16 %v1692, %v1691
  %v1741 = vpack.c.bf16 %v1694, %v1693
  %v1742 = vpack.c.bf16 %v1696, %v1695
  %v1743 = vpack.c.bf16 %v1698, %v1697
  %v1744 = vpack.c.bf16 %v1700, %v1699
  %v1745 = vpack.c.bf16 %v1702, %v1701
  %v1746 = vpack.c.bf16 %v1704, %v1703
  %v1747 = vpack.c.bf16 %v1706, %v1705
  %v1748 = vpack.c.bf16 %v1708, %v1707
  %v1749 = vpack.c.bf16 %v1710, %v1709
  %v1750 = vpack.c.bf16 %v1712, %v1711
  %v1751 = vpack.c.bf16 %v1714, %v1713
  %v1752 = vpack.c.bf16 %v1716, %v1715
  %v1753 = vpack.c.bf16 %v1718, %v1717
  %v1754 = vpack.c.bf16 %v1720, %v1719
  %v1755 = vpack.c.bf16 %v1722, %v1721
  %v1756 = vpack.c.bf16 %v1724, %v1723
  %v1757 = vld [vmem:[#allocation2 + $0x1] sm:$0xff]
  %v1758 = vld [vmem:[#allocation2 + $0x9] sm:$0xff]
  %v1759 = vld [vmem:[#allocation2 + $0x19] sm:$0xff]
  %v1760 = vld [vmem:[#allocation2 + $0x21] sm:$0xff]
  %v1761 = vld [vmem:[#allocation2 + $0x31] sm:$0xff]
  %v1762 = vld [vmem:[#allocation2 + $0x39] sm:$0xff]
  %v1763 = vld [vmem:[#allocation2 + $0x49] sm:$0xff]
  %v1764 = vld [vmem:[#allocation2 + $0x51] sm:$0xff]
  %v1765 = vld [vmem:[#allocation2 + $0x61] sm:$0xff]
  %v1766 = vld [vmem:[#allocation2 + $0x69] sm:$0xff]
  %v1767 = vld [vmem:[#allocation2 + $0x79] sm:$0xff]
  %v1768 = vld [vmem:[#allocation2 + $0x81] sm:$0xff]
  %v1769 = vld [vmem:[#allocation2 + $0x91] sm:$0xff]
  %v1770 = vld [vmem:[#allocation2 + $0x99] sm:$0xff]
  %v1771 = vld [vmem:[#allocation2 + $0xa9] sm:$0xff]
  %v1772 = vld [vmem:[#allocation2 + $0xb1] sm:$0xff]
  %v1773 = vld [vmem:[#allocation2 + $0xc1] sm:$0xff]
  %v1774 = vld [vmem:[#allocation2 + $0xc9] sm:$0xff]
  %v1775 = vld [vmem:[#allocation2 + $0xd9] sm:$0xff]
  %v1776 = vld [vmem:[#allocation2 + $0xe1] sm:$0xff]
  %v1777 = vld [vmem:[#allocation2 + $0xf1] sm:$0xff]
  %v1778 = vld [vmem:[#allocation2 + $0xf9] sm:$0xff]
  %v1779 = vld [vmem:[#allocation2 + $0x109] sm:$0xff]
  %v1780 = vld [vmem:[#allocation2 + $0x111] sm:$0xff]
  %v1781 = vld [vmem:[#allocation2 + $0x121] sm:$0xff]
  %v1782 = vld [vmem:[#allocation2 + $0x129] sm:$0xff]
  %v1783 = vld [vmem:[#allocation2 + $0x139] sm:$0xff]
  %v1784 = vld [vmem:[#allocation2 + $0x141] sm:$0xff]
  %v1785 = vld [vmem:[#allocation2 + $0x151] sm:$0xff]
  %v1786 = vld [vmem:[#allocation2 + $0x159] sm:$0xff]
  %v1787 = vld [vmem:[#allocation2 + $0x169] sm:$0xff]
  %v1788 = vld [vmem:[#allocation2 + $0x171] sm:$0xff]
  %v1789 = vld [vmem:[#allocation2 + $0x1b1] sm:$0xff]
  %v1790 = vld [vmem:[#allocation2 + $0x1b9] sm:$0xff]
  %v1791 = vld [vmem:[#allocation2 + $0x1c9] sm:$0xff]
  %v1792 = vld [vmem:[#allocation2 + $0x1d1] sm:$0xff]
  %v1793 = vld [vmem:[#allocation2 + $0x1e1] sm:$0xff]
  %v1794 = vld [vmem:[#allocation2 + $0x1e9] sm:$0xff]
  %v1795 = vld [vmem:[#allocation2 + $0x1f9] sm:$0xff]
  %v1796 = vld [vmem:[#allocation2 + $0x201] sm:$0xff]
  %v1797 = vld [vmem:[#allocation2 + $0x211] sm:$0xff]
  %v1798 = vld [vmem:[#allocation2 + $0x219] sm:$0xff]
  %v1799 = vld [vmem:[#allocation2 + $0x229] sm:$0xff]
  %v1800 = vld [vmem:[#allocation2 + $0x231] sm:$0xff]
  %v1801 = vld [vmem:[#allocation2 + $0x241] sm:$0xff]
  %v1802 = vld [vmem:[#allocation2 + $0x249] sm:$0xff]
  %v1803 = vld [vmem:[#allocation2 + $0x259] sm:$0xff]
  %v1804 = vld [vmem:[#allocation2 + $0x261] sm:$0xff]
  %v1805 = vld [vmem:[#allocation2 + $0x271] sm:$0xff]
  %v1806 = vld [vmem:[#allocation2 + $0x279] sm:$0xff]
  %v1807 = vld [vmem:[#allocation2 + $0x289] sm:$0xff]
  %v1808 = vld [vmem:[#allocation2 + $0x291] sm:$0xff]
  %v1809 = vld [vmem:[#allocation2 + $0x2a1] sm:$0xff]
  %v1810 = vld [vmem:[#allocation2 + $0x2a9] sm:$0xff]
  %v1811 = vld [vmem:[#allocation2 + $0x2b9] sm:$0xff]
  %v1812 = vld [vmem:[#allocation2 + $0x2c1] sm:$0xff]
  %v1813 = vld [vmem:[#allocation2 + $0x2d1] sm:$0xff]
  %v1814 = vld [vmem:[#allocation2 + $0x2d9] sm:$0xff]
  %v1815 = vld [vmem:[#allocation2 + $0x2e9] sm:$0xff]
  %v1816 = vld [vmem:[#allocation2 + $0x2f1] sm:$0xff]
  %v1817 = vld [vmem:[#allocation2 + $0x301] sm:$0xff]
  %v1818 = vld [vmem:[#allocation2 + $0x309] sm:$0xff]
  %v1819 = vld [vmem:[#allocation2 + $0x319] sm:$0xff]
  %v1820 = vld [vmem:[#allocation2 + $0x321] sm:$0xff]
  %v1821 = vpack.c.bf16 %v1758, %v1757
  %v1822 = vpack.c.bf16 %v1760, %v1759
  %v1823 = vpack.c.bf16 %v1762, %v1761
  %v1824 = vpack.c.bf16 %v1764, %v1763
  %v1825 = vpack.c.bf16 %v1766, %v1765
  %v1826 = vpack.c.bf16 %v1768, %v1767
  %v1827 = vpack.c.bf16 %v1770, %v1769
  %v1828 = vpack.c.bf16 %v1772, %v1771
  %v1829 = vpack.c.bf16 %v1774, %v1773
  %v1830 = vpack.c.bf16 %v1776, %v1775
  %v1831 = vpack.c.bf16 %v1778, %v1777
  %v1832 = vpack.c.bf16 %v1780, %v1779
  %v1833 = vpack.c.bf16 %v1782, %v1781
  %v1834 = vpack.c.bf16 %v1784, %v1783
  %v1835 = vpack.c.bf16 %v1786, %v1785
  %v1836 = vpack.c.bf16 %v1788, %v1787
  %v1837 = vpack.c.bf16 %v1790, %v1789
  %v1838 = vpack.c.bf16 %v1792, %v1791
  %v1839 = vpack.c.bf16 %v1794, %v1793
  %v1840 = vpack.c.bf16 %v1796, %v1795
  %v1841 = vpack.c.bf16 %v1798, %v1797
  %v1842 = vpack.c.bf16 %v1800, %v1799
  %v1843 = vpack.c.bf16 %v1802, %v1801
  %v1844 = vpack.c.bf16 %v1804, %v1803
  %v1845 = vpack.c.bf16 %v1806, %v1805
  %v1846 = vpack.c.bf16 %v1808, %v1807
  %v1847 = vpack.c.bf16 %v1810, %v1809
  %v1848 = vpack.c.bf16 %v1812, %v1811
  %v1849 = vpack.c.bf16 %v1814, %v1813
  %v1850 = vpack.c.bf16 %v1816, %v1815
  %v1851 = vpack.c.bf16 %v1818, %v1817
  %v1852 = vpack.c.bf16 %v1820, %v1819
  %v1853 = vld [vmem:[#allocation2 + $0x2] sm:$0xff]
  %v1854 = vld [vmem:[#allocation2 + $0xa] sm:$0xff]
  %v1855 = vld [vmem:[#allocation2 + $0x1a] sm:$0xff]
  %v1856 = vld [vmem:[#allocation2 + $0x22] sm:$0xff]
  %v1857 = vld [vmem:[#allocation2 + $0x32] sm:$0xff]
  %v1858 = vld [vmem:[#allocation2 + $0x3a] sm:$0xff]
  %v1859 = vld [vmem:[#allocation2 + $0x4a] sm:$0xff]
  %v1860 = vld [vmem:[#allocation2 + $0x52] sm:$0xff]
  %v1861 = vld [vmem:[#allocation2 + $0x62] sm:$0xff]
  %v1862 = vld [vmem:[#allocation2 + $0x6a] sm:$0xff]
  %v1863 = vld [vmem:[#allocation2 + $0x7a] sm:$0xff]
  %v1864 = vld [vmem:[#allocation2 + $0x82] sm:$0xff]
  %v1865 = vld [vmem:[#allocation2 + $0x92] sm:$0xff]
  %v1866 = vld [vmem:[#allocation2 + $0x9a] sm:$0xff]
  %v1867 = vld [vmem:[#allocation2 + $0xaa] sm:$0xff]
  %v1868 = vld [vmem:[#allocation2 + $0xb2] sm:$0xff]
  %v1869 = vld [vmem:[#allocation2 + $0xc2] sm:$0xff]
  %v1870 = vld [vmem:[#allocation2 + $0xca] sm:$0xff]
  %v1871 = vld [vmem:[#allocation2 + $0xda] sm:$0xff]
  %v1872 = vld [vmem:[#allocation2 + $0xe2] sm:$0xff]
  %v1873 = vld [vmem:[#allocation2 + $0xf2] sm:$0xff]
  %v1874 = vld [vmem:[#allocation2 + $0xfa] sm:$0xff]
  %v1875 = vld [vmem:[#allocation2 + $0x10a] sm:$0xff]
  %v1876 = vld [vmem:[#allocation2 + $0x112] sm:$0xff]
  %v1877 = vld [vmem:[#allocation2 + $0x122] sm:$0xff]
  %v1878 = vld [vmem:[#allocation2 + $0x12a] sm:$0xff]
  %v1879 = vld [vmem:[#allocation2 + $0x13a] sm:$0xff]
  %v1880 = vld [vmem:[#allocation2 + $0x142] sm:$0xff]
  %v1881 = vld [vmem:[#allocation2 + $0x152] sm:$0xff]
  %v1882 = vld [vmem:[#allocation2 + $0x15a] sm:$0xff]
  %v1883 = vld [vmem:[#allocation2 + $0x16a] sm:$0xff]
  %v1884 = vld [vmem:[#allocation2 + $0x172] sm:$0xff]
  %v1885 = vld [vmem:[#allocation2 + $0x1b2] sm:$0xff]
  %v1886 = vld [vmem:[#allocation2 + $0x1ba] sm:$0xff]
  %v1887 = vld [vmem:[#allocation2 + $0x1ca] sm:$0xff]
  %v1888 = vld [vmem:[#allocation2 + $0x1d2] sm:$0xff]
  %v1889 = vld [vmem:[#allocation2 + $0x1e2] sm:$0xff]
  %v1890 = vld [vmem:[#allocation2 + $0x1ea] sm:$0xff]
  %v1891 = vld [vmem:[#allocation2 + $0x1fa] sm:$0xff]
  %v1892 = vld [vmem:[#allocation2 + $0x202] sm:$0xff]
  %v1893 = vld [vmem:[#allocation2 + $0x212] sm:$0xff]
  %v1894 = vld [vmem:[#allocation2 + $0x21a] sm:$0xff]
  %v1895 = vld [vmem:[#allocation2 + $0x22a] sm:$0xff]
  %v1896 = vld [vmem:[#allocation2 + $0x232] sm:$0xff]
  %v1897 = vld [vmem:[#allocation2 + $0x242] sm:$0xff]
  %v1898 = vld [vmem:[#allocation2 + $0x24a] sm:$0xff]
  %v1899 = vld [vmem:[#allocation2 + $0x25a] sm:$0xff]
  %v1900 = vld [vmem:[#allocation2 + $0x262] sm:$0xff]
  %v1901 = vld [vmem:[#allocation2 + $0x272] sm:$0xff]
  %v1902 = vld [vmem:[#allocation2 + $0x27a] sm:$0xff]
  %v1903 = vld [vmem:[#allocation2 + $0x28a] sm:$0xff]
  %v1904 = vld [vmem:[#allocation2 + $0x292] sm:$0xff]
  %v1905 = vld [vmem:[#allocation2 + $0x2a2] sm:$0xff]
  %v1906 = vld [vmem:[#allocation2 + $0x2aa] sm:$0xff]
  %v1907 = vld [vmem:[#allocation2 + $0x2ba] sm:$0xff]
  %v1908 = vld [vmem:[#allocation2 + $0x2c2] sm:$0xff]
  %v1909 = vld [vmem:[#allocation2 + $0x2d2] sm:$0xff]
  %v1910 = vld [vmem:[#allocation2 + $0x2da] sm:$0xff]
  %v1911 = vld [vmem:[#allocation2 + $0x2ea] sm:$0xff]
  %v1912 = vld [vmem:[#allocation2 + $0x2f2] sm:$0xff]
  %v1913 = vld [vmem:[#allocation2 + $0x302] sm:$0xff]
  %v1914 = vld [vmem:[#allocation2 + $0x30a] sm:$0xff]
  %v1915 = vld [vmem:[#allocation2 + $0x31a] sm:$0xff]
  %v1916 = vld [vmem:[#allocation2 + $0x322] sm:$0xff]
  %v1917 = vpack.c.bf16 %v1854, %v1853
  %v1918 = vpack.c.bf16 %v1856, %v1855
  %v1919 = vpack.c.bf16 %v1858, %v1857
  %v1920 = vpack.c.bf16 %v1860, %v1859
  %v1921 = vpack.c.bf16 %v1862, %v1861
  %v1922 = vpack.c.bf16 %v1864, %v1863
  %v1923 = vpack.c.bf16 %v1866, %v1865
  %v1924 = vpack.c.bf16 %v1868, %v1867
  %v1925 = vpack.c.bf16 %v1870, %v1869
  %v1926 = vpack.c.bf16 %v1872, %v1871
  %v1927 = vpack.c.bf16 %v1874, %v1873
  %v1928 = vpack.c.bf16 %v1876, %v1875
  %v1929 = vpack.c.bf16 %v1878, %v1877
  %v1930 = vpack.c.bf16 %v1880, %v1879
  %v1931 = vpack.c.bf16 %v1882, %v1881
  %v1932 = vpack.c.bf16 %v1884, %v1883
  %v1933 = vpack.c.bf16 %v1886, %v1885
  %v1934 = vpack.c.bf16 %v1888, %v1887
  %v1935 = vpack.c.bf16 %v1890, %v1889
  %v1936 = vpack.c.bf16 %v1892, %v1891
  %v1937 = vpack.c.bf16 %v1894, %v1893
  %v1938 = vpack.c.bf16 %v1896, %v1895
  %v1939 = vpack.c.bf16 %v1898, %v1897
  %v1940 = vpack.c.bf16 %v1900, %v1899
  %v1941 = vpack.c.bf16 %v1902, %v1901
  %v1942 = vpack.c.bf16 %v1904, %v1903
  %v1943 = vpack.c.bf16 %v1906, %v1905
  %v1944 = vpack.c.bf16 %v1908, %v1907
  %v1945 = vpack.c.bf16 %v1910, %v1909
  %v1946 = vpack.c.bf16 %v1912, %v1911
  %v1947 = vpack.c.bf16 %v1914, %v1913
  %v1948 = vpack.c.bf16 %v1916, %v1915
  %v1949 = vld [vmem:[%s1532] sm:$0xff]
  %v1950 = vld [vmem:[%s1532 + $0x8] sm:$0xff]
  %v1951 = vld [vmem:[%s1532 + $0x18] sm:$0xff]
  %v1952 = vld [vmem:[%s1532 + $0x20] sm:$0xff]
  %v1953 = vld [vmem:[%s1532 + $0x30] sm:$0xff]
  %v1954 = vld [vmem:[%s1532 + $0x38] sm:$0xff]
  %v1955 = vld [vmem:[%s1532 + $0x48] sm:$0xff]
  %v1956 = vld [vmem:[%s1532 + $0x50] sm:$0xff]
  %v1957 = vld [vmem:[%s1532 + $0x60] sm:$0xff]
  %v1958 = vld [vmem:[%s1532 + $0x68] sm:$0xff]
  %v1959 = vld [vmem:[%s1532 + $0x78] sm:$0xff]
  %v1960 = vld [vmem:[%s1532 + $0x80] sm:$0xff]
  %v1961 = vld [vmem:[%s1532 + $0x90] sm:$0xff]
  %v1962 = vld [vmem:[%s1532 + $0x98] sm:$0xff]
  %v1963 = vld [vmem:[%s1532 + $0xa8] sm:$0xff]
  %v1964 = vld [vmem:[%s1532 + $0xb0] sm:$0xff]
  %v1965 = vld [vmem:[%s1532 + $0xc0] sm:$0xff]
  %v1966 = vld [vmem:[%s1532 + $0xc8] sm:$0xff]
  %v1967 = vld [vmem:[%s1532 + $0xd8] sm:$0xff]
  %v1968 = vld [vmem:[%s1532 + $0xe0] sm:$0xff]
  %v1969 = vld [vmem:[%s1532 + $0xf0] sm:$0xff]
  %v1970 = vld [vmem:[%s1532 + $0xf8] sm:$0xff]
  %v1971 = vld [vmem:[%s1532 + $0x108] sm:$0xff]
  %v1972 = vld [vmem:[%s1532 + $0x110] sm:$0xff]
  %v1973 = vld [vmem:[%s1532 + $0x120] sm:$0xff]
  %v1974 = vld [vmem:[%s1532 + $0x128] sm:$0xff]
  %v1975 = vld [vmem:[%s1532 + $0x138] sm:$0xff]
  %v1976 = vld [vmem:[%s1532 + $0x140] sm:$0xff]
  %v1977 = vld [vmem:[%s1532 + $0x150] sm:$0xff]
  %v1978 = vld [vmem:[%s1532 + $0x158] sm:$0xff]
  %v1979 = vld [vmem:[%s1532 + $0x168] sm:$0xff]
  %v1980 = vld [vmem:[%s1532 + $0x170] sm:$0xff]
  %v1981 = vld [vmem:[%s1532 + $0x1b0] sm:$0xff]
  %v1982 = vld [vmem:[%s1532 + $0x1b8] sm:$0xff]
  %v1983 = vld [vmem:[%s1532 + $0x1c8] sm:$0xff]
  %v1984 = vld [vmem:[%s1532 + $0x1d0] sm:$0xff]
  %v1985 = vld [vmem:[%s1532 + $0x1e0] sm:$0xff]
  %v1986 = vld [vmem:[%s1532 + $0x1e8] sm:$0xff]
  %v1987 = vld [vmem:[%s1532 + $0x1f8] sm:$0xff]
  %v1988 = vld [vmem:[%s1532 + $0x200] sm:$0xff]
  %v1989 = vld [vmem:[%s1532 + $0x210] sm:$0xff]
  %v1990 = vld [vmem:[%s1532 + $0x218] sm:$0xff]
  %v1991 = vld [vmem:[%s1532 + $0x228] sm:$0xff]
  %v1992 = vld [vmem:[%s1532 + $0x230] sm:$0xff]
  %v1993 = vld [vmem:[%s1532 + $0x240] sm:$0xff]
  %v1994 = vld [vmem:[%s1532 + $0x248] sm:$0xff]
  %v1995 = vld [vmem:[%s1532 + $0x258] sm:$0xff]
  %v1996 = vld [vmem:[%s1532 + $0x260] sm:$0xff]
  %v1997 = vld [vmem:[%s1532 + $0x270] sm:$0xff]
  %v1998 = vld [vmem:[%s1532 + $0x278] sm:$0xff]
  %v1999 = vld [vmem:[%s1532 + $0x288] sm:$0xff]
  %v2000 = vld [vmem:[%s1532 + $0x290] sm:$0xff]
  %v2001 = vld [vmem:[%s1532 + $0x2a0] sm:$0xff]
  %v2002 = vld [vmem:[%s1532 + $0x2a8] sm:$0xff]
  %v2003 = vld [vmem:[%s1532 + $0x2b8] sm:$0xff]
  %v2004 = vld [vmem:[%s1532 + $0x2c0] sm:$0xff]
  %v2005 = vld [vmem:[%s1532 + $0x2d0] sm:$0xff]
  %v2006 = vld [vmem:[%s1532 + $0x2d8] sm:$0xff]
  %v2007 = vld [vmem:[%s1532 + $0x2e8] sm:$0xff]
  %v2008 = vld [vmem:[%s1532 + $0x2f0] sm:$0xff]
  %v2009 = vld [vmem:[%s1532 + $0x300] sm:$0xff]
  %v2010 = vld [vmem:[%s1532 + $0x308] sm:$0xff]
  %v2011 = vld [vmem:[%s1532 + $0x318] sm:$0xff]
  %v2012 = vld [vmem:[%s1532 + $0x320] sm:$0xff]
  %v2013 = vpack.c.bf16 %v1950, %v1949
  %v2014 = vpack.c.bf16 %v1952, %v1951
  %v2015 = vpack.c.bf16 %v1954, %v1953
  %v2016 = vpack.c.bf16 %v1956, %v1955
  %v2017 = vpack.c.bf16 %v1958, %v1957
  %v2018 = vpack.c.bf16 %v1960, %v1959
  %v2019 = vpack.c.bf16 %v1962, %v1961
  %v2020 = vpack.c.bf16 %v1964, %v1963
  %v2021 = vpack.c.bf16 %v1966, %v1965
  %v2022 = vpack.c.bf16 %v1968, %v1967
  %v2023 = vpack.c.bf16 %v1970, %v1969
  %v2024 = vpack.c.bf16 %v1972, %v1971
  %v2025 = vpack.c.bf16 %v1974, %v1973
  %v2026 = vpack.c.bf16 %v1976, %v1975
  %v2027 = vpack.c.bf16 %v1978, %v1977
  %v2028 = vpack.c.bf16 %v1980, %v1979
  %v2029 = vpack.c.bf16 %v1982, %v1981
  %v2030 = vpack.c.bf16 %v1984, %v1983
  %v2031 = vpack.c.bf16 %v1986, %v1985
  %v2032 = vpack.c.bf16 %v1988, %v1987
  %v2033 = vpack.c.bf16 %v1990, %v1989
  %v2034 = vpack.c.bf16 %v1992, %v1991
  %v2035 = vpack.c.bf16 %v1994, %v1993
  %v2036 = vpack.c.bf16 %v1996, %v1995
  %v2037 = vpack.c.bf16 %v1998, %v1997
  %v2038 = vpack.c.bf16 %v2000, %v1999
  %v2039 = vpack.c.bf16 %v2002, %v2001
  %v2040 = vpack.c.bf16 %v2004, %v2003
  %v2041 = vpack.c.bf16 %v2006, %v2005
  %v2042 = vpack.c.bf16 %v2008, %v2007
  %v2043 = vpack.c.bf16 %v2010, %v2009
  %v2044 = vpack.c.bf16 %v2012, %v2011
  %v2045 = vld [vmem:[%s1532 + $0x1] sm:$0xff]
  %v2046 = vld [vmem:[%s1532 + $0x9] sm:$0xff]
  %v2047 = vld [vmem:[%s1532 + $0x19] sm:$0xff]
  %v2048 = vld [vmem:[%s1532 + $0x21] sm:$0xff]
  %v2049 = vld [vmem:[%s1532 + $0x31] sm:$0xff]
  %v2050 = vld [vmem:[%s1532 + $0x39] sm:$0xff]
  %v2051 = vld [vmem:[%s1532 + $0x49] sm:$0xff]
  %v2052 = vld [vmem:[%s1532 + $0x51] sm:$0xff]
  %v2053 = vld [vmem:[%s1532 + $0x61] sm:$0xff]
  %v2054 = vld [vmem:[%s1532 + $0x69] sm:$0xff]
  %v2055 = vld [vmem:[%s1532 + $0x79] sm:$0xff]
  %v2056 = vld [vmem:[%s1532 + $0x81] sm:$0xff]
  %v2057 = vld [vmem:[%s1532 + $0x91] sm:$0xff]
  %v2058 = vld [vmem:[%s1532 + $0x99] sm:$0xff]
  %v2059 = vld [vmem:[%s1532 + $0xa9] sm:$0xff]
  %v2060 = vld [vmem:[%s1532 + $0xb1] sm:$0xff]
  %v2061 = vld [vmem:[%s1532 + $0xc1] sm:$0xff]
  %v2062 = vld [vmem:[%s1532 + $0xc9] sm:$0xff]
  %v2063 = vld [vmem:[%s1532 + $0xd9] sm:$0xff]
  %v2064 = vld [vmem:[%s1532 + $0xe1] sm:$0xff]
  %v2065 = vld [vmem:[%s1532 + $0xf1] sm:$0xff]
  %v2066 = vld [vmem:[%s1532 + $0xf9] sm:$0xff]
  %v2067 = vld [vmem:[%s1532 + $0x109] sm:$0xff]
  %v2068 = vld [vmem:[%s1532 + $0x111] sm:$0xff]
  %v2069 = vld [vmem:[%s1532 + $0x121] sm:$0xff]
  %v2070 = vld [vmem:[%s1532 + $0x129] sm:$0xff]
  %v2071 = vld [vmem:[%s1532 + $0x139] sm:$0xff]
  %v2072 = vld [vmem:[%s1532 + $0x141] sm:$0xff]
  %v2073 = vld [vmem:[%s1532 + $0x151] sm:$0xff]
  %v2074 = vld [vmem:[%s1532 + $0x159] sm:$0xff]
  %v2075 = vld [vmem:[%s1532 + $0x169] sm:$0xff]
  %v2076 = vld [vmem:[%s1532 + $0x171] sm:$0xff]
  %v2077 = vld [vmem:[%s1532 + $0x1b1] sm:$0xff]
  %v2078 = vld [vmem:[%s1532 + $0x1b9] sm:$0xff]
  %v2079 = vld [vmem:[%s1532 + $0x1c9] sm:$0xff]
  %v2080 = vld [vmem:[%s1532 + $0x1d1] sm:$0xff]
  %v2081 = vld [vmem:[%s1532 + $0x1e1] sm:$0xff]
  %v2082 = vld [vmem:[%s1532 + $0x1e9] sm:$0xff]
  %v2083 = vld [vmem:[%s1532 + $0x1f9] sm:$0xff]
  %v2084 = vld [vmem:[%s1532 + $0x201] sm:$0xff]
  %v2085 = vld [vmem:[%s1532 + $0x211] sm:$0xff]
  %v2086 = vld [vmem:[%s1532 + $0x219] sm:$0xff]
  %v2087 = vld [vmem:[%s1532 + $0x229] sm:$0xff]
  %v2088 = vld [vmem:[%s1532 + $0x231] sm:$0xff]
  %v2089 = vld [vmem:[%s1532 + $0x241] sm:$0xff]
  %v2090 = vld [vmem:[%s1532 + $0x249] sm:$0xff]
  %v2091 = vld [vmem:[%s1532 + $0x259] sm:$0xff]
  %v2092 = vld [vmem:[%s1532 + $0x261] sm:$0xff]
  %v2093 = vld [vmem:[%s1532 + $0x271] sm:$0xff]
  %v2094 = vld [vmem:[%s1532 + $0x279] sm:$0xff]
  %v2095 = vld [vmem:[%s1532 + $0x289] sm:$0xff]
  %v2096 = vld [vmem:[%s1532 + $0x291] sm:$0xff]
  %v2097 = vld [vmem:[%s1532 + $0x2a1] sm:$0xff]
  %v2098 = vld [vmem:[%s1532 + $0x2a9] sm:$0xff]
  %v2099 = vld [vmem:[%s1532 + $0x2b9] sm:$0xff]
  %v2100 = vld [vmem:[%s1532 + $0x2c1] sm:$0xff]
  %v2101 = vld [vmem:[%s1532 + $0x2d1] sm:$0xff]
  %v2102 = vld [vmem:[%s1532 + $0x2d9] sm:$0xff]
  %v2103 = vld [vmem:[%s1532 + $0x2e9] sm:$0xff]
  %v2104 = vld [vmem:[%s1532 + $0x2f1] sm:$0xff]
  %v2105 = vld [vmem:[%s1532 + $0x301] sm:$0xff]
  %v2106 = vld [vmem:[%s1532 + $0x309] sm:$0xff]
  %v2107 = vld [vmem:[%s1532 + $0x319] sm:$0xff]
  %v2108 = vld [vmem:[%s1532 + $0x321] sm:$0xff]
  %v2109 = vpack.c.bf16 %v2046, %v2045
  %v2110 = vpack.c.bf16 %v2048, %v2047
  %v2111 = vpack.c.bf16 %v2050, %v2049
  %v2112 = vpack.c.bf16 %v2052, %v2051
  %v2113 = vpack.c.bf16 %v2054, %v2053
  %v2114 = vpack.c.bf16 %v2056, %v2055
  %v2115 = vpack.c.bf16 %v2058, %v2057
  %v2116 = vpack.c.bf16 %v2060, %v2059
  %v2117 = vpack.c.bf16 %v2062, %v2061
  %v2118 = vpack.c.bf16 %v2064, %v2063
  %v2119 = vpack.c.bf16 %v2066, %v2065
  %v2120 = vpack.c.bf16 %v2068, %v2067
  %v2121 = vpack.c.bf16 %v2070, %v2069
  %v2122 = vpack.c.bf16 %v2072, %v2071
  %v2123 = vpack.c.bf16 %v2074, %v2073
  %v2124 = vpack.c.bf16 %v2076, %v2075
  %v2125 = vpack.c.bf16 %v2078, %v2077
  %v2126 = vpack.c.bf16 %v2080, %v2079
  %v2127 = vpack.c.bf16 %v2082, %v2081
  %v2128 = vpack.c.bf16 %v2084, %v2083
  %v2129 = vpack.c.bf16 %v2086, %v2085
  %v2130 = vpack.c.bf16 %v2088, %v2087
  %v2131 = vpack.c.bf16 %v2090, %v2089
  %v2132 = vpack.c.bf16 %v2092, %v2091
  %v2133 = vpack.c.bf16 %v2094, %v2093
  %v2134 = vpack.c.bf16 %v2096, %v2095
  %v2135 = vpack.c.bf16 %v2098, %v2097
  %v2136 = vpack.c.bf16 %v2100, %v2099
  %v2137 = vpack.c.bf16 %v2102, %v2101
  %v2138 = vpack.c.bf16 %v2104, %v2103
  %v2139 = vpack.c.bf16 %v2106, %v2105
  %v2140 = vpack.c.bf16 %v2108, %v2107
  %v2141 = vld [vmem:[%s1532 + $0x2] sm:$0xff]
  %v2142 = vld [vmem:[%s1532 + $0xa] sm:$0xff]
  %v2143 = vld [vmem:[%s1532 + $0x1a] sm:$0xff]
  %v2144 = vld [vmem:[%s1532 + $0x22] sm:$0xff]
  %v2145 = vld [vmem:[%s1532 + $0x32] sm:$0xff]
  %v2146 = vld [vmem:[%s1532 + $0x3a] sm:$0xff]
  %v2147 = vld [vmem:[%s1532 + $0x4a] sm:$0xff]
  %v2148 = vld [vmem:[%s1532 + $0x52] sm:$0xff]
  %v2149 = vld [vmem:[%s1532 + $0x62] sm:$0xff]
  %v2150 = vld [vmem:[%s1532 + $0x6a] sm:$0xff]
  %v2151 = vld [vmem:[%s1532 + $0x7a] sm:$0xff]
  %v2152 = vld [vmem:[%s1532 + $0x82] sm:$0xff]
  %v2153 = vld [vmem:[%s1532 + $0x92] sm:$0xff]
  %v2154 = vld [vmem:[%s1532 + $0x9a] sm:$0xff]
  %v2155 = vld [vmem:[%s1532 + $0xaa] sm:$0xff]
  %v2156 = vld [vmem:[%s1532 + $0xb2] sm:$0xff]
  %v2157 = vld [vmem:[%s1532 + $0xc2] sm:$0xff]
  %v2158 = vld [vmem:[%s1532 + $0xca] sm:$0xff]
  %v2159 = vld [vmem:[%s1532 + $0xda] sm:$0xff]
  %v2160 = vld [vmem:[%s1532 + $0xe2] sm:$0xff]
  %v2161 = vld [vmem:[%s1532 + $0xf2] sm:$0xff]
  %v2162 = vld [vmem:[%s1532 + $0xfa] sm:$0xff]
  %v2163 = vld [vmem:[%s1532 + $0x10a] sm:$0xff]
  %v2164 = vld [vmem:[%s1532 + $0x112] sm:$0xff]
  %v2165 = vld [vmem:[%s1532 + $0x122] sm:$0xff]
  %v2166 = vld [vmem:[%s1532 + $0x12a] sm:$0xff]
  %v2167 = vld [vmem:[%s1532 + $0x13a] sm:$0xff]
  %v2168 = vld [vmem:[%s1532 + $0x142] sm:$0xff]
  %v2169 = vld [vmem:[%s1532 + $0x152] sm:$0xff]
  %v2170 = vld [vmem:[%s1532 + $0x15a] sm:$0xff]
  %v2171 = vld [vmem:[%s1532 + $0x16a] sm:$0xff]
  %v2172 = vld [vmem:[%s1532 + $0x172] sm:$0xff]
  %v2173 = vld [vmem:[%s1532 + $0x1b2] sm:$0xff]
  %v2174 = vld [vmem:[%s1532 + $0x1ba] sm:$0xff]
  %v2175 = vld [vmem:[%s1532 + $0x1ca] sm:$0xff]
  %v2176 = vld [vmem:[%s1532 + $0x1d2] sm:$0xff]
  %v2177 = vld [vmem:[%s1532 + $0x1e2] sm:$0xff]
  %v2178 = vld [vmem:[%s1532 + $0x1ea] sm:$0xff]
  %v2179 = vld [vmem:[%s1532 + $0x1fa] sm:$0xff]
  %v2180 = vld [vmem:[%s1532 + $0x202] sm:$0xff]
  %v2181 = vld [vmem:[%s1532 + $0x212] sm:$0xff]
  %v2182 = vld [vmem:[%s1532 + $0x21a] sm:$0xff]
  %v2183 = vld [vmem:[%s1532 + $0x22a] sm:$0xff]
  %v2184 = vld [vmem:[%s1532 + $0x232] sm:$0xff]
  %v2185 = vld [vmem:[%s1532 + $0x242] sm:$0xff]
  %v2186 = vld [vmem:[%s1532 + $0x24a] sm:$0xff]
  %v2187 = vld [vmem:[%s1532 + $0x25a] sm:$0xff]
  %v2188 = vld [vmem:[%s1532 + $0x262] sm:$0xff]
  %v2189 = vld [vmem:[%s1532 + $0x272] sm:$0xff]
  %v2190 = vld [vmem:[%s1532 + $0x27a] sm:$0xff]
  %v2191 = vld [vmem:[%s1532 + $0x28a] sm:$0xff]
  %v2192 = vld [vmem:[%s1532 + $0x292] sm:$0xff]
  %v2193 = vld [vmem:[%s1532 + $0x2a2] sm:$0xff]
  %v2194 = vld [vmem:[%s1532 + $0x2aa] sm:$0xff]
  %v2195 = vld [vmem:[%s1532 + $0x2ba] sm:$0xff]
  %v2196 = vld [vmem:[%s1532 + $0x2c2] sm:$0xff]
  %v2197 = vld [vmem:[%s1532 + $0x2d2] sm:$0xff]
  %v2198 = vld [vmem:[%s1532 + $0x2da] sm:$0xff]
  %v2199 = vld [vmem:[%s1532 + $0x2ea] sm:$0xff]
  %v2200 = vld [vmem:[%s1532 + $0x2f2] sm:$0xff]
  %v2201 = vld [vmem:[%s1532 + $0x302] sm:$0xff]
  %v2202 = vld [vmem:[%s1532 + $0x30a] sm:$0xff]
  %v2203 = vld [vmem:[%s1532 + $0x31a] sm:$0xff]
  %v2204 = vld [vmem:[%s1532 + $0x322] sm:$0xff]
  %v2205 = vpack.c.bf16 %v2142, %v2141
  %v2206 = vpack.c.bf16 %v2144, %v2143
  %v2207 = vpack.c.bf16 %v2146, %v2145
  %v2208 = vpack.c.bf16 %v2148, %v2147
  %v2209 = vpack.c.bf16 %v2150, %v2149
  %v2210 = vpack.c.bf16 %v2152, %v2151
  %v2211 = vpack.c.bf16 %v2154, %v2153
  %v2212 = vpack.c.bf16 %v2156, %v2155
  %v2213 = vpack.c.bf16 %v2158, %v2157
  %v2214 = vpack.c.bf16 %v2160, %v2159
  %v2215 = vpack.c.bf16 %v2162, %v2161
  %v2216 = vpack.c.bf16 %v2164, %v2163
  %v2217 = vpack.c.bf16 %v2166, %v2165
  %v2218 = vpack.c.bf16 %v2168, %v2167
  %v2219 = vpack.c.bf16 %v2170, %v2169
  %v2220 = vpack.c.bf16 %v2172, %v2171
  %v2221 = vpack.c.bf16 %v2174, %v2173
  %v2222 = vpack.c.bf16 %v2176, %v2175
  %v2223 = vpack.c.bf16 %v2178, %v2177
  %v2224 = vpack.c.bf16 %v2180, %v2179
  %v2225 = vpack.c.bf16 %v2182, %v2181
  %v2226 = vpack.c.bf16 %v2184, %v2183
  %v2227 = vpack.c.bf16 %v2186, %v2185
  %v2228 = vpack.c.bf16 %v2188, %v2187
  %v2229 = vpack.c.bf16 %v2190, %v2189
  %v2230 = vpack.c.bf16 %v2192, %v2191
  %v2231 = vpack.c.bf16 %v2194, %v2193
  %v2232 = vpack.c.bf16 %v2196, %v2195
  %v2233 = vpack.c.bf16 %v2198, %v2197
  %v2234 = vpack.c.bf16 %v2200, %v2199
  %v2235 = vpack.c.bf16 %v2202, %v2201
  %v2236 = vpack.c.bf16 %v2204, %v2203
  %s2237 = scalar_lea.vmem [#allocation2], 48
  %v2238 = vld [vmem:[%s2237] sm:$0xff]
  %v2239 = vld [vmem:[%s2237 + $0x8] sm:$0xff]
  %v2240 = vld [vmem:[%s2237 + $0x18] sm:$0xff]
  %v2241 = vld [vmem:[%s2237 + $0x20] sm:$0xff]
  %v2242 = vld [vmem:[%s2237 + $0x30] sm:$0xff]
  %v2243 = vld [vmem:[%s2237 + $0x38] sm:$0xff]
  %v2244 = vld [vmem:[%s2237 + $0x48] sm:$0xff]
  %v2245 = vld [vmem:[%s2237 + $0x50] sm:$0xff]
  %v2246 = vld [vmem:[%s2237 + $0x60] sm:$0xff]
  %v2247 = vld [vmem:[%s2237 + $0x68] sm:$0xff]
  %v2248 = vld [vmem:[%s2237 + $0x78] sm:$0xff]
  %v2249 = vld [vmem:[%s2237 + $0x80] sm:$0xff]
  %v2250 = vld [vmem:[%s2237 + $0x90] sm:$0xff]
  %v2251 = vld [vmem:[%s2237 + $0x98] sm:$0xff]
  %v2252 = vld [vmem:[%s2237 + $0xa8] sm:$0xff]
  %v2253 = vld [vmem:[%s2237 + $0xb0] sm:$0xff]
  %v2254 = vld [vmem:[%s2237 + $0xc0] sm:$0xff]
  %v2255 = vld [vmem:[%s2237 + $0xc8] sm:$0xff]
  %v2256 = vld [vmem:[%s2237 + $0xd8] sm:$0xff]
  %v2257 = vld [vmem:[%s2237 + $0xe0] sm:$0xff]
  %v2258 = vld [vmem:[%s2237 + $0xf0] sm:$0xff]
  %v2259 = vld [vmem:[%s2237 + $0xf8] sm:$0xff]
  %v2260 = vld [vmem:[%s2237 + $0x108] sm:$0xff]
  %v2261 = vld [vmem:[%s2237 + $0x110] sm:$0xff]
  %v2262 = vld [vmem:[%s2237 + $0x120] sm:$0xff]
  %v2263 = vld [vmem:[%s2237 + $0x128] sm:$0xff]
  %v2264 = vld [vmem:[%s2237 + $0x138] sm:$0xff]
  %v2265 = vld [vmem:[%s2237 + $0x140] sm:$0xff]
  %v2266 = vld [vmem:[%s2237 + $0x150] sm:$0xff]
  %v2267 = vld [vmem:[%s2237 + $0x158] sm:$0xff]
  %v2268 = vld [vmem:[%s2237 + $0x168] sm:$0xff]
  %v2269 = vld [vmem:[%s2237 + $0x170] sm:$0xff]
  %v2270 = vld [vmem:[%s2237 + $0x1b0] sm:$0xff]
  %v2271 = vld [vmem:[%s2237 + $0x1b8] sm:$0xff]
  %v2272 = vld [vmem:[%s2237 + $0x1c8] sm:$0xff]
  %v2273 = vld [vmem:[%s2237 + $0x1d0] sm:$0xff]
  %v2274 = vld [vmem:[%s2237 + $0x1e0] sm:$0xff]
  %v2275 = vld [vmem:[%s2237 + $0x1e8] sm:$0xff]
  %v2276 = vld [vmem:[%s2237 + $0x1f8] sm:$0xff]
  %v2277 = vld [vmem:[%s2237 + $0x200] sm:$0xff]
  %v2278 = vld [vmem:[%s2237 + $0x210] sm:$0xff]
  %v2279 = vld [vmem:[%s2237 + $0x218] sm:$0xff]
  %v2280 = vld [vmem:[%s2237 + $0x228] sm:$0xff]
  %v2281 = vld [vmem:[%s2237 + $0x230] sm:$0xff]
  %v2282 = vld [vmem:[%s2237 + $0x240] sm:$0xff]
  %v2283 = vld [vmem:[%s2237 + $0x248] sm:$0xff]
  %v2284 = vld [vmem:[%s2237 + $0x258] sm:$0xff]
  %v2285 = vld [vmem:[%s2237 + $0x260] sm:$0xff]
  %v2286 = vld [vmem:[%s2237 + $0x270] sm:$0xff]
  %v2287 = vld [vmem:[%s2237 + $0x278] sm:$0xff]
  %v2288 = vld [vmem:[%s2237 + $0x288] sm:$0xff]
  %v2289 = vld [vmem:[%s2237 + $0x290] sm:$0xff]
  %v2290 = vld [vmem:[%s2237 + $0x2a0] sm:$0xff]
  %v2291 = vld [vmem:[%s2237 + $0x2a8] sm:$0xff]
  %v2292 = vld [vmem:[%s2237 + $0x2b8] sm:$0xff]
  %v2293 = vld [vmem:[%s2237 + $0x2c0] sm:$0xff]
  %v2294 = vld [vmem:[%s2237 + $0x2d0] sm:$0xff]
  %v2295 = vld [vmem:[%s2237 + $0x2d8] sm:$0xff]
  %v2296 = vld [vmem:[%s2237 + $0x2e8] sm:$0xff]
  %v2297 = vld [vmem:[%s2237 + $0x2f0] sm:$0xff]
  %v2298 = vld [vmem:[%s2237 + $0x300] sm:$0xff]
  %v2299 = vld [vmem:[%s2237 + $0x308] sm:$0xff]
  %v2300 = vld [vmem:[%s2237 + $0x318] sm:$0xff]
  %v2301 = vld [vmem:[%s2237 + $0x320] sm:$0xff]
  %v2302 = vpack.c.bf16 %v2239, %v2238
  %v2303 = vpack.c.bf16 %v2241, %v2240
  %v2304 = vpack.c.bf16 %v2243, %v2242
  %v2305 = vpack.c.bf16 %v2245, %v2244
  %v2306 = vpack.c.bf16 %v2247, %v2246
  %v2307 = vpack.c.bf16 %v2249, %v2248
  %v2308 = vpack.c.bf16 %v2251, %v2250
  %v2309 = vpack.c.bf16 %v2253, %v2252
  %v2310 = vpack.c.bf16 %v2255, %v2254
  %v2311 = vpack.c.bf16 %v2257, %v2256
  %v2312 = vpack.c.bf16 %v2259, %v2258
  %v2313 = vpack.c.bf16 %v2261, %v2260
  %v2314 = vpack.c.bf16 %v2263, %v2262
  %v2315 = vpack.c.bf16 %v2265, %v2264
  %v2316 = vpack.c.bf16 %v2267, %v2266
  %v2317 = vpack.c.bf16 %v2269, %v2268
  %v2318 = vpack.c.bf16 %v2271, %v2270
  %v2319 = vpack.c.bf16 %v2273, %v2272
  %v2320 = vpack.c.bf16 %v2275, %v2274
  %v2321 = vpack.c.bf16 %v2277, %v2276
  %v2322 = vpack.c.bf16 %v2279, %v2278
  %v2323 = vpack.c.bf16 %v2281, %v2280
  %v2324 = vpack.c.bf16 %v2283, %v2282
  %v2325 = vpack.c.bf16 %v2285, %v2284
  %v2326 = vpack.c.bf16 %v2287, %v2286
  %v2327 = vpack.c.bf16 %v2289, %v2288
  %v2328 = vpack.c.bf16 %v2291, %v2290
  %v2329 = vpack.c.bf16 %v2293, %v2292
  %v2330 = vpack.c.bf16 %v2295, %v2294
  %v2331 = vpack.c.bf16 %v2297, %v2296
  %v2332 = vpack.c.bf16 %v2299, %v2298
  %v2333 = vpack.c.bf16 %v2301, %v2300
  %v2334 = vld [vmem:[%s2237 + $0x1] sm:$0xff]
  %v2335 = vld [vmem:[%s2237 + $0x9] sm:$0xff]
  %v2336 = vld [vmem:[%s2237 + $0x19] sm:$0xff]
  %v2337 = vld [vmem:[%s2237 + $0x21] sm:$0xff]
  %v2338 = vld [vmem:[%s2237 + $0x31] sm:$0xff]
  %v2339 = vld [vmem:[%s2237 + $0x39] sm:$0xff]
  %v2340 = vld [vmem:[%s2237 + $0x49] sm:$0xff]
  %v2341 = vld [vmem:[%s2237 + $0x51] sm:$0xff]
  %v2342 = vld [vmem:[%s2237 + $0x61] sm:$0xff]
  %v2343 = vld [vmem:[%s2237 + $0x69] sm:$0xff]
  %v2344 = vld [vmem:[%s2237 + $0x79] sm:$0xff]
  %v2345 = vld [vmem:[%s2237 + $0x81] sm:$0xff]
  %v2346 = vld [vmem:[%s2237 + $0x91] sm:$0xff]
  %v2347 = vld [vmem:[%s2237 + $0x99] sm:$0xff]
  %v2348 = vld [vmem:[%s2237 + $0xa9] sm:$0xff]
  %v2349 = vld [vmem:[%s2237 + $0xb1] sm:$0xff]
  %v2350 = vld [vmem:[%s2237 + $0xc1] sm:$0xff]
  %v2351 = vld [vmem:[%s2237 + $0xc9] sm:$0xff]
  %v2352 = vld [vmem:[%s2237 + $0xd9] sm:$0xff]
  %v2353 = vld [vmem:[%s2237 + $0xe1] sm:$0xff]
  %v2354 = vld [vmem:[%s2237 + $0xf1] sm:$0xff]
  %v2355 = vld [vmem:[%s2237 + $0xf9] sm:$0xff]
  %v2356 = vld [vmem:[%s2237 + $0x109] sm:$0xff]
  %v2357 = vld [vmem:[%s2237 + $0x111] sm:$0xff]
  %v2358 = vld [vmem:[%s2237 + $0x121] sm:$0xff]
  %v2359 = vld [vmem:[%s2237 + $0x129] sm:$0xff]
  %v2360 = vld [vmem:[%s2237 + $0x139] sm:$0xff]
  %v2361 = vld [vmem:[%s2237 + $0x141] sm:$0xff]
  %v2362 = vld [vmem:[%s2237 + $0x151] sm:$0xff]
  %v2363 = vld [vmem:[%s2237 + $0x159] sm:$0xff]
  %v2364 = vld [vmem:[%s2237 + $0x169] sm:$0xff]
  %v2365 = vld [vmem:[%s2237 + $0x171] sm:$0xff]
  %v2366 = vld [vmem:[%s2237 + $0x1b1] sm:$0xff]
  %v2367 = vld [vmem:[%s2237 + $0x1b9] sm:$0xff]
  %v2368 = vld [vmem:[%s2237 + $0x1c9] sm:$0xff]
  %v2369 = vld [vmem:[%s2237 + $0x1d1] sm:$0xff]
  %v2370 = vld [vmem:[%s2237 + $0x1e1] sm:$0xff]
  %v2371 = vld [vmem:[%s2237 + $0x1e9] sm:$0xff]
  %v2372 = vld [vmem:[%s2237 + $0x1f9] sm:$0xff]
  %v2373 = vld [vmem:[%s2237 + $0x201] sm:$0xff]
  %v2374 = vld [vmem:[%s2237 + $0x211] sm:$0xff]
  %v2375 = vld [vmem:[%s2237 + $0x219] sm:$0xff]
  %v2376 = vld [vmem:[%s2237 + $0x229] sm:$0xff]
  %v2377 = vld [vmem:[%s2237 + $0x231] sm:$0xff]
  %v2378 = vld [vmem:[%s2237 + $0x241] sm:$0xff]
  %v2379 = vld [vmem:[%s2237 + $0x249] sm:$0xff]
  %v2380 = vld [vmem:[%s2237 + $0x259] sm:$0xff]
  %v2381 = vld [vmem:[%s2237 + $0x261] sm:$0xff]
  %v2382 = vld [vmem:[%s2237 + $0x271] sm:$0xff]
  %v2383 = vld [vmem:[%s2237 + $0x279] sm:$0xff]
  %v2384 = vld [vmem:[%s2237 + $0x289] sm:$0xff]
  %v2385 = vld [vmem:[%s2237 + $0x291] sm:$0xff]
  %v2386 = vld [vmem:[%s2237 + $0x2a1] sm:$0xff]
  %v2387 = vld [vmem:[%s2237 + $0x2a9] sm:$0xff]
  %v2388 = vld [vmem:[%s2237 + $0x2b9] sm:$0xff]
  %v2389 = vld [vmem:[%s2237 + $0x2c1] sm:$0xff]
  %v2390 = vld [vmem:[%s2237 + $0x2d1] sm:$0xff]
  %v2391 = vld [vmem:[%s2237 + $0x2d9] sm:$0xff]
  %v2392 = vld [vmem:[%s2237 + $0x2e9] sm:$0xff]
  %v2393 = vld [vmem:[%s2237 + $0x2f1] sm:$0xff]
  %v2394 = vld [vmem:[%s2237 + $0x301] sm:$0xff]
  %v2395 = vld [vmem:[%s2237 + $0x309] sm:$0xff]
  %v2396 = vld [vmem:[%s2237 + $0x319] sm:$0xff]
  %v2397 = vld [vmem:[%s2237 + $0x321] sm:$0xff]
  %v2398 = vpack.c.bf16 %v2335, %v2334
  %v2399 = vpack.c.bf16 %v2337, %v2336
  %v2400 = vpack.c.bf16 %v2339, %v2338
  %v2401 = vpack.c.bf16 %v2341, %v2340
  %v2402 = vpack.c.bf16 %v2343, %v2342
  %v2403 = vpack.c.bf16 %v2345, %v2344
  %v2404 = vpack.c.bf16 %v2347, %v2346
  %v2405 = vpack.c.bf16 %v2349, %v2348
  %v2406 = vpack.c.bf16 %v2351, %v2350
  %v2407 = vpack.c.bf16 %v2353, %v2352
  %v2408 = vpack.c.bf16 %v2355, %v2354
  %v2409 = vpack.c.bf16 %v2357, %v2356
  %v2410 = vpack.c.bf16 %v2359, %v2358
  %v2411 = vpack.c.bf16 %v2361, %v2360
  %v2412 = vpack.c.bf16 %v2363, %v2362
  %v2413 = vpack.c.bf16 %v2365, %v2364
  %v2414 = vpack.c.bf16 %v2367, %v2366
  %v2415 = vpack.c.bf16 %v2369, %v2368
  %v2416 = vpack.c.bf16 %v2371, %v2370
  %v2417 = vpack.c.bf16 %v2373, %v2372
  %v2418 = vpack.c.bf16 %v2375, %v2374
  %v2419 = vpack.c.bf16 %v2377, %v2376
  %v2420 = vpack.c.bf16 %v2379, %v2378
  %v2421 = vpack.c.bf16 %v2381, %v2380
  %v2422 = vpack.c.bf16 %v2383, %v2382
  %v2423 = vpack.c.bf16 %v2385, %v2384
  %v2424 = vpack.c.bf16 %v2387, %v2386
  %v2425 = vpack.c.bf16 %v2389, %v2388
  %v2426 = vpack.c.bf16 %v2391, %v2390
  %v2427 = vpack.c.bf16 %v2393, %v2392
  %v2428 = vpack.c.bf16 %v2395, %v2394
  %v2429 = vpack.c.bf16 %v2397, %v2396
  %v2430 = vld [vmem:[%s2237 + $0x2] sm:$0xff]
  %v2431 = vld [vmem:[%s2237 + $0xa] sm:$0xff]
  %v2432 = vld [vmem:[%s2237 + $0x1a] sm:$0xff]
  %v2433 = vld [vmem:[%s2237 + $0x22] sm:$0xff]
  %v2434 = vld [vmem:[%s2237 + $0x32] sm:$0xff]
  %v2435 = vld [vmem:[%s2237 + $0x3a] sm:$0xff]
  %v2436 = vld [vmem:[%s2237 + $0x4a] sm:$0xff]
  %v2437 = vld [vmem:[%s2237 + $0x52] sm:$0xff]
  %v2438 = vld [vmem:[%s2237 + $0x62] sm:$0xff]
  %v2439 = vld [vmem:[%s2237 + $0x6a] sm:$0xff]
  %v2440 = vld [vmem:[%s2237 + $0x7a] sm:$0xff]
  %v2441 = vld [vmem:[%s2237 + $0x82] sm:$0xff]
  %v2442 = vld [vmem:[%s2237 + $0x92] sm:$0xff]
  %v2443 = vld [vmem:[%s2237 + $0x9a] sm:$0xff]
  %v2444 = vld [vmem:[%s2237 + $0xaa] sm:$0xff]
  %v2445 = vld [vmem:[%s2237 + $0xb2] sm:$0xff]
  %v2446 = vld [vmem:[%s2237 + $0xc2] sm:$0xff]
  %v2447 = vld [vmem:[%s2237 + $0xca] sm:$0xff]
  %v2448 = vld [vmem:[%s2237 + $0xda] sm:$0xff]
  %v2449 = vld [vmem:[%s2237 + $0xe2] sm:$0xff]
  %v2450 = vld [vmem:[%s2237 + $0xf2] sm:$0xff]
  %v2451 = vld [vmem:[%s2237 + $0xfa] sm:$0xff]
  %v2452 = vld [vmem:[%s2237 + $0x10a] sm:$0xff]
  %v2453 = vld [vmem:[%s2237 + $0x112] sm:$0xff]
  %v2454 = vld [vmem:[%s2237 + $0x122] sm:$0xff]
  %v2455 = vld [vmem:[%s2237 + $0x12a] sm:$0xff]
  %v2456 = vld [vmem:[%s2237 + $0x13a] sm:$0xff]
  %v2457 = vld [vmem:[%s2237 + $0x142] sm:$0xff]
  %v2458 = vld [vmem:[%s2237 + $0x152] sm:$0xff]
  %v2459 = vld [vmem:[%s2237 + $0x15a] sm:$0xff]
  %v2460 = vld [vmem:[%s2237 + $0x16a] sm:$0xff]
  %v2461 = vld [vmem:[%s2237 + $0x172] sm:$0xff]
  %v2462 = vld [vmem:[%s2237 + $0x1b2] sm:$0xff]
  %v2463 = vld [vmem:[%s2237 + $0x1ba] sm:$0xff]
  %v2464 = vld [vmem:[%s2237 + $0x1ca] sm:$0xff]
  %v2465 = vld [vmem:[%s2237 + $0x1d2] sm:$0xff]
  %v2466 = vld [vmem:[%s2237 + $0x1e2] sm:$0xff]
  %v2467 = vld [vmem:[%s2237 + $0x1ea] sm:$0xff]
  %v2468 = vld [vmem:[%s2237 + $0x1fa] sm:$0xff]
  %v2469 = vld [vmem:[%s2237 + $0x202] sm:$0xff]
  %v2470 = vld [vmem:[%s2237 + $0x212] sm:$0xff]
  %v2471 = vld [vmem:[%s2237 + $0x21a] sm:$0xff]
  %v2472 = vld [vmem:[%s2237 + $0x22a] sm:$0xff]
  %v2473 = vld [vmem:[%s2237 + $0x232] sm:$0xff]
  %v2474 = vld [vmem:[%s2237 + $0x242] sm:$0xff]
  %v2475 = vld [vmem:[%s2237 + $0x24a] sm:$0xff]
  %v2476 = vld [vmem:[%s2237 + $0x25a] sm:$0xff]
  %v2477 = vld [vmem:[%s2237 + $0x262] sm:$0xff]
  %v2478 = vld [vmem:[%s2237 + $0x272] sm:$0xff]
  %v2479 = vld [vmem:[%s2237 + $0x27a] sm:$0xff]
  %v2480 = vld [vmem:[%s2237 + $0x28a] sm:$0xff]
  %v2481 = vld [vmem:[%s2237 + $0x292] sm:$0xff]
  %v2482 = vld [vmem:[%s2237 + $0x2a2] sm:$0xff]
  %v2483 = vld [vmem:[%s2237 + $0x2aa] sm:$0xff]
  %v2484 = vld [vmem:[%s2237 + $0x2ba] sm:$0xff]
  %v2485 = vld [vmem:[%s2237 + $0x2c2] sm:$0xff]
  %v2486 = vld [vmem:[%s2237 + $0x2d2] sm:$0xff]
  %v2487 = vld [vmem:[%s2237 + $0x2da] sm:$0xff]
  %v2488 = vld [vmem:[%s2237 + $0x2ea] sm:$0xff]
  %v2489 = vld [vmem:[%s2237 + $0x2f2] sm:$0xff]
  %v2490 = vld [vmem:[%s2237 + $0x302] sm:$0xff]
  %v2491 = vld [vmem:[%s2237 + $0x30a] sm:$0xff]
  %v2492 = vld [vmem:[%s2237 + $0x31a] sm:$0xff]
  %v2493 = vld [vmem:[%s2237 + $0x322] sm:$0xff]
  %v2494 = vpack.c.bf16 %v2431, %v2430
  %v2495 = vpack.c.bf16 %v2433, %v2432
  %v2496 = vpack.c.bf16 %v2435, %v2434
  %v2497 = vpack.c.bf16 %v2437, %v2436
  %v2498 = vpack.c.bf16 %v2439, %v2438
  %v2499 = vpack.c.bf16 %v2441, %v2440
  %v2500 = vpack.c.bf16 %v2443, %v2442
  %v2501 = vpack.c.bf16 %v2445, %v2444
  %v2502 = vpack.c.bf16 %v2447, %v2446
  %v2503 = vpack.c.bf16 %v2449, %v2448
  %v2504 = vpack.c.bf16 %v2451, %v2450
  %v2505 = vpack.c.bf16 %v2453, %v2452
  %v2506 = vpack.c.bf16 %v2455, %v2454
  %v2507 = vpack.c.bf16 %v2457, %v2456
  %v2508 = vpack.c.bf16 %v2459, %v2458
  %v2509 = vpack.c.bf16 %v2461, %v2460
  %v2510 = vpack.c.bf16 %v2463, %v2462
  %v2511 = vpack.c.bf16 %v2465, %v2464
  %v2512 = vpack.c.bf16 %v2467, %v2466
  %v2513 = vpack.c.bf16 %v2469, %v2468
  %v2514 = vpack.c.bf16 %v2471, %v2470
  %v2515 = vpack.c.bf16 %v2473, %v2472
  %v2516 = vpack.c.bf16 %v2475, %v2474
  %v2517 = vpack.c.bf16 %v2477, %v2476
  %v2518 = vpack.c.bf16 %v2479, %v2478
  %v2519 = vpack.c.bf16 %v2481, %v2480
  %v2520 = vpack.c.bf16 %v2483, %v2482
  %v2521 = vpack.c.bf16 %v2485, %v2484
  %v2522 = vpack.c.bf16 %v2487, %v2486
  %v2523 = vpack.c.bf16 %v2489, %v2488
  %v2524 = vpack.c.bf16 %v2491, %v2490
  %v2525 = vpack.c.bf16 %v2493, %v2492
  %v2526 = vld [vmem:[%s2] sm:$0xf]
  %v2527 = vld [vmem:[%s2 + $0x4] sm:$0xf]
  %v2528 = vld [vmem:[%s2 + $0x8] sm:$0xf]
  %v2529 = vld [vmem:[%s2 + $0xc] sm:$0xf]
  %v2530 = vld [vmem:[%s2 + $0x10] sm:$0xf]
  %v2531 = vld [vmem:[%s2 + $0x14] sm:$0xf]
  %v2532 = vld [vmem:[%s2 + $0x18] sm:$0xf]
  %v2533 = vld [vmem:[%s2 + $0x1c] sm:$0xf]
  %v2534 = vld [vmem:[%s2 + $0x20] sm:$0xf]
  %v2535 = vld [vmem:[%s2 + $0x24] sm:$0xf]
  %v2536 = vld [vmem:[%s2 + $0x28] sm:$0xf]
  %v2537 = vld [vmem:[%s2 + $0x2c] sm:$0xf]
  %v2538 = vld [vmem:[%s2 + $0x30] sm:$0xf]
  %v2539 = vld [vmem:[%s2 + $0x34] sm:$0xf]
  %v2540 = vld [vmem:[%s2 + $0x38] sm:$0xf]
  %v2541 = vld [vmem:[%s2 + $0x3c] sm:$0xf]
  %v2542 = vld [vmem:[%s2 + $0x40] sm:$0xf]
  %v2543 = vld [vmem:[%s2 + $0x44] sm:$0xf]
  %v2544 = vld [vmem:[%s2 + $0x48] sm:$0xf]
  %v2545 = vld [vmem:[%s2 + $0x4c] sm:$0xf]
  %v2546 = vld [vmem:[%s2 + $0x50] sm:$0xf]
  %v2547 = vld [vmem:[%s2 + $0x54] sm:$0xf]
  %v2548 = vld [vmem:[%s2 + $0x58] sm:$0xf]
  %v2549 = vld [vmem:[%s2 + $0x5c] sm:$0xf]
  %v2550 = vld [vmem:[%s2 + $0x60] sm:$0xf]
  %v2551 = vld [vmem:[%s2 + $0x64] sm:$0xf]
  %v2552 = vld [vmem:[%s2 + $0x68] sm:$0xf]
  %v2553 = vld [vmem:[%s2 + $0x6c] sm:$0xf]
  %v2554 = vld [vmem:[%s2 + $0x70] sm:$0xf]
  %v2555 = vld [vmem:[%s2 + $0x74] sm:$0xf]
  %v2556 = vld [vmem:[%s2 + $0x78] sm:$0xf]
  %v2557 = vld [vmem:[%s2 + $0x7c] sm:$0xf]
  %v2558 = vld [vmem:[%s2 + $0x80] sm:$0xf]
  %v2559 = vld [vmem:[%s2 + $0x84] sm:$0xf]
  %v2560 = vld [vmem:[%s2 + $0x88] sm:$0xf]
  %v2561 = vld [vmem:[%s2 + $0x8c] sm:$0xf]
  %v2562 = vld [vmem:[%s2 + $0x90] sm:$0xf]
  %v2563 = vld [vmem:[%s2 + $0x94] sm:$0xf]
  %v2564 = vld [vmem:[%s2 + $0x98] sm:$0xf]
  %v2565 = vld [vmem:[%s2 + $0x9c] sm:$0xf]
  %v2566 = vld [vmem:[%s2 + $0xa0] sm:$0xf]
  %v2567 = vld [vmem:[%s2 + $0xa4] sm:$0xf]
  %v2568 = vld [vmem:[%s2 + $0xa8] sm:$0xf]
  %v2569 = vld [vmem:[%s2 + $0xac] sm:$0xf]
  %v2570 = vld [vmem:[%s2 + $0xb0] sm:$0xf]
  %v2571 = vld [vmem:[%s2 + $0xb4] sm:$0xf]
  %v2572 = vld [vmem:[%s2 + $0xb8] sm:$0xf]
  %v2573 = vld [vmem:[%s2 + $0xbc] sm:$0xf]
  %v2574 = vld [vmem:[%s2 + $0xc0] sm:$0xf]
  %v2575 = vld [vmem:[%s2 + $0xc4] sm:$0xf]
  %v2576 = vld [vmem:[%s2 + $0xc8] sm:$0xf]
  %v2577 = vld [vmem:[%s2 + $0xcc] sm:$0xf]
  %v2578 = vld [vmem:[%s2 + $0xd0] sm:$0xf]
  %v2579 = vld [vmem:[%s2 + $0xd4] sm:$0xf]
  %v2580 = vld [vmem:[%s2 + $0xd8] sm:$0xf]
  %v2581 = vld [vmem:[%s2 + $0xdc] sm:$0xf]
  %v2582 = vld [vmem:[%s2 + $0xe0] sm:$0xf]
  %v2583 = vld [vmem:[%s2 + $0xe4] sm:$0xf]
  %v2584 = vld [vmem:[%s2 + $0xe8] sm:$0xf]
  %v2585 = vld [vmem:[%s2 + $0xec] sm:$0xf]
  %v2586 = vld [vmem:[%s2 + $0xf0] sm:$0xf]
  %v2587 = vld [vmem:[%s2 + $0xf4] sm:$0xf]
  %v2588 = vld [vmem:[%s2 + $0xf8] sm:$0xf]
  %v2589 = vld [vmem:[%s2 + $0xfc] sm:$0xf]
  %v2590 = vld [vmem:[%s2 + $0x100] sm:$0xf]
  %v2591 = vld [vmem:[%s2 + $0x104] sm:$0xf]
  %v2592 = vld [vmem:[%s2 + $0x108] sm:$0xf]
  %v2593 = vld [vmem:[%s2 + $0x10c] sm:$0xf]
  %v2594 = vld [vmem:[%s2 + $0x110] sm:$0xf]
  %v2595 = vld [vmem:[%s2 + $0x114] sm:$0xf]
  %v2596 = vld [vmem:[%s2 + $0x118] sm:$0xf]
  %v2597 = vld [vmem:[%s2 + $0x11c] sm:$0xf]
  %v2598 = vld [vmem:[%s2 + $0x120] sm:$0xf]
  %v2599 = vld [vmem:[%s2 + $0x124] sm:$0xf]
  %v2600 = vld [vmem:[%s2 + $0x128] sm:$0xf]
  %v2601 = vld [vmem:[%s2 + $0x12c] sm:$0xf]
  %v2602 = vld [vmem:[%s2 + $0x130] sm:$0xf]
  %v2603 = vld [vmem:[%s2 + $0x134] sm:$0xf]
  %v2604 = vld [vmem:[%s2 + $0x138] sm:$0xf]
  %v2605 = vld [vmem:[%s2 + $0x13c] sm:$0xf]
  %v2606 = vld [vmem:[%s2 + $0x140] sm:$0xf]
  %v2607 = vld [vmem:[%s2 + $0x144] sm:$0xf]
  %v2608 = vld [vmem:[%s2 + $0x148] sm:$0xf]
  %v2609 = vld [vmem:[%s2 + $0x14c] sm:$0xf]
  %v2610 = vld [vmem:[%s2 + $0x150] sm:$0xf]
  %v2611 = vld [vmem:[%s2 + $0x154] sm:$0xf]
  %v2612 = vld [vmem:[%s2 + $0x158] sm:$0xf]
  %v2613 = vld [vmem:[%s2 + $0x15c] sm:$0xf]
  %v2614 = vld [vmem:[%s2 + $0x160] sm:$0xf]
  %v2615 = vld [vmem:[%s2 + $0x164] sm:$0xf]
  %v2616 = vld [vmem:[%s2 + $0x168] sm:$0xf]
  %v2617 = vld [vmem:[%s2 + $0x16c] sm:$0xf]
  %v2618 = vld [vmem:[%s2 + $0x170] sm:$0xf]
  %v2619 = vld [vmem:[%s2 + $0x174] sm:$0xf]
  %v2620 = vld [vmem:[%s2 + $0x178] sm:$0xf]
  %v2621 = vld [vmem:[%s2 + $0x17c] sm:$0xf]
  %v2622 = vld [vmem:[%s2 + $0x180] sm:$0xf]
  %v2623 = vld [vmem:[%s2 + $0x184] sm:$0xf]
  %v2624 = vld [vmem:[%s2 + $0x188] sm:$0xf]
  %v2625 = vld [vmem:[%s2 + $0x18c] sm:$0xf]
  %v2626 = vld [vmem:[%s2 + $0x190] sm:$0xf]
  %v2627 = vld [vmem:[%s2 + $0x194] sm:$0xf]
  %v2628 = vld [vmem:[%s2 + $0x198] sm:$0xf]
  %v2629 = vld [vmem:[%s2 + $0x19c] sm:$0xf]
  %v2630 = vld [vmem:[%s2 + $0x1a0] sm:$0xf]
  %v2631 = vld [vmem:[%s2 + $0x1a4] sm:$0xf]
  %v2632 = vld [vmem:[%s2 + $0x1a8] sm:$0xf]
  %v2633 = vld [vmem:[%s2 + $0x1ac] sm:$0xf]
  %v2634 = vld [vmem:[%s2 + $0x1b0] sm:$0xf]
  %v2635 = vld [vmem:[%s2 + $0x1b4] sm:$0xf]
  %v2636 = vld [vmem:[%s2 + $0x1b8] sm:$0xf]
  %v2637 = vld [vmem:[%s2 + $0x1bc] sm:$0xf]
  %v2638 = vld [vmem:[%s2 + $0x1c0] sm:$0xf]
  %v2639 = vld [vmem:[%s2 + $0x1c4] sm:$0xf]
  %v2640 = vld [vmem:[%s2 + $0x1c8] sm:$0xf]
  %v2641 = vld [vmem:[%s2 + $0x1cc] sm:$0xf]
  %v2642 = vld [vmem:[%s2 + $0x1d0] sm:$0xf]
  %v2643 = vld [vmem:[%s2 + $0x1d4] sm:$0xf]
  %v2644 = vld [vmem:[%s2 + $0x1d8] sm:$0xf]
  %v2645 = vld [vmem:[%s2 + $0x1dc] sm:$0xf]
  %v2646 = vld [vmem:[%s2 + $0x1e0] sm:$0xf]
  %v2647 = vld [vmem:[%s2 + $0x1e4] sm:$0xf]
  %v2648 = vld [vmem:[%s2 + $0x1e8] sm:$0xf]
  %v2649 = vld [vmem:[%s2 + $0x1ec] sm:$0xf]
  %v2650 = vld [vmem:[%s2 + $0x1f0] sm:$0xf]
  %v2651 = vld [vmem:[%s2 + $0x1f4] sm:$0xf]
  %v2652 = vld [vmem:[%s2 + $0x1f8] sm:$0xf]
  %v2653 = vld [vmem:[%s2 + $0x1fc] sm:$0xf]
  %v2654 = vld [vmem:[%s2 + $0x200] sm:$0xf]
  %v2655 = vld [vmem:[%s2 + $0x204] sm:$0xf]
  %v2656 = vld [vmem:[%s2 + $0x208] sm:$0xf]
  %v2657 = vld [vmem:[%s2 + $0x20c] sm:$0xf]
  %v2658 = vld [vmem:[%s2 + $0x210] sm:$0xf]
  %v2659 = vld [vmem:[%s2 + $0x214] sm:$0xf]
  %v2660 = vld [vmem:[%s2 + $0x218] sm:$0xf]
  %v2661 = vld [vmem:[%s2 + $0x21c] sm:$0xf]
  %v2662 = vld [vmem:[%s2 + $0x220] sm:$0xf]
  %v2663 = vld [vmem:[%s2 + $0x224] sm:$0xf]
  %v2664 = vld [vmem:[%s2 + $0x228] sm:$0xf]
  %v2665 = vld [vmem:[%s2 + $0x22c] sm:$0xf]
  %v2666 = vld [vmem:[%s2 + $0x230] sm:$0xf]
  %v2667 = vld [vmem:[%s2 + $0x234] sm:$0xf]
  %v2668 = vld [vmem:[%s2 + $0x238] sm:$0xf]
  %v2669 = vld [vmem:[%s2 + $0x23c] sm:$0xf]
  %v2814 = vunpack.c.l.b16 %v2526
  %v2815 = vunpack.c.l.b16 %v2527
  %v2816 = vunpack.c.l.b16 %v2528
  %v2817 = vunpack.c.l.b16 %v2529
  %v2818 = vunpack.c.l.b16 %v2530
  %v2819 = vunpack.c.l.b16 %v2531
  %v2820 = vunpack.c.l.b16 %v2532
  %v2821 = vunpack.c.l.b16 %v2533
  %v2822 = vunpack.c.l.b16 %v2534
  %v2823 = vunpack.c.l.b16 %v2535
  %v2824 = vunpack.c.l.b16 %v2536
  %v2825 = vunpack.c.l.b16 %v2537
  %v2826 = vunpack.c.l.b16 %v2538
  %v2827 = vunpack.c.l.b16 %v2539
  %v2828 = vunpack.c.l.b16 %v2540
  %v2829 = vunpack.c.l.b16 %v2541
  %v2830 = vunpack.c.l.b16 %v2542
  %v2831 = vunpack.c.l.b16 %v2543
  %v2832 = vunpack.c.l.b16 %v2544
  %v2833 = vunpack.c.l.b16 %v2545
  %v2834 = vunpack.c.l.b16 %v2546
  %v2835 = vunpack.c.l.b16 %v2547
  %v2836 = vunpack.c.l.b16 %v2548
  %v2837 = vunpack.c.l.b16 %v2549
  %v2838 = vunpack.c.l.b16 %v2550
  %v2839 = vunpack.c.l.b16 %v2551
  %v2840 = vunpack.c.l.b16 %v2552
  %v2841 = vunpack.c.l.b16 %v2553
  %v2842 = vunpack.c.l.b16 %v2554
  %v2843 = vunpack.c.l.b16 %v2555
  %v2844 = vunpack.c.l.b16 %v2556
  %v2845 = vunpack.c.l.b16 %v2557
  %v2846 = vunpack.c.l.b16 %v2558
  %v2847 = vunpack.c.l.b16 %v2559
  %v2848 = vunpack.c.l.b16 %v2560
  %v2849 = vunpack.c.l.b16 %v2561
  %v2850 = vunpack.c.l.b16 %v2562
  %v2851 = vunpack.c.l.b16 %v2563
  %v2852 = vunpack.c.l.b16 %v2564
  %v2853 = vunpack.c.l.b16 %v2565
  %v2854 = vunpack.c.l.b16 %v2566
  %v2855 = vunpack.c.l.b16 %v2567
  %v2856 = vunpack.c.l.b16 %v2568
  %v2857 = vunpack.c.l.b16 %v2569
  %v2858 = vunpack.c.l.b16 %v2570
  %v2859 = vunpack.c.l.b16 %v2571
  %v2860 = vunpack.c.l.b16 %v2572
  %v2861 = vunpack.c.l.b16 %v2573
  %v2862 = vunpack.c.l.b16 %v2574
  %v2863 = vunpack.c.l.b16 %v2575
  %v2864 = vunpack.c.l.b16 %v2576
  %v2865 = vunpack.c.l.b16 %v2577
  %v2866 = vunpack.c.l.b16 %v2578
  %v2867 = vunpack.c.l.b16 %v2579
  %v2868 = vunpack.c.l.b16 %v2580
  %v2869 = vunpack.c.l.b16 %v2581
  %v2870 = vunpack.c.l.b16 %v2582
  %v2871 = vunpack.c.l.b16 %v2583
  %v2872 = vunpack.c.l.b16 %v2584
  %v2873 = vunpack.c.l.b16 %v2585
  %v2874 = vunpack.c.l.b16 %v2586
  %v2875 = vunpack.c.l.b16 %v2587
  %v2876 = vunpack.c.l.b16 %v2588
  %v2877 = vunpack.c.l.b16 %v2589
  %v2878 = vunpack.c.l.b16 %v2590
  %v2879 = vunpack.c.l.b16 %v2591
  %v2880 = vunpack.c.l.b16 %v2592
  %v2881 = vunpack.c.l.b16 %v2593
  %v2882 = vunpack.c.l.b16 %v2594
  %v2883 = vunpack.c.l.b16 %v2595
  %v2884 = vunpack.c.l.b16 %v2596
  %v2885 = vunpack.c.l.b16 %v2597
  %v2886 = vunpack.c.l.b16 %v2598
  %v2887 = vunpack.c.l.b16 %v2599
  %v2888 = vunpack.c.l.b16 %v2600
  %v2889 = vunpack.c.l.b16 %v2601
  %v2890 = vunpack.c.l.b16 %v2602
  %v2891 = vunpack.c.l.b16 %v2603
  %v2892 = vunpack.c.l.b16 %v2604
  %v2893 = vunpack.c.l.b16 %v2605
  %v2894 = vunpack.c.l.b16 %v2606
  %v2895 = vunpack.c.l.b16 %v2607
  %v2896 = vunpack.c.l.b16 %v2608
  %v2897 = vunpack.c.l.b16 %v2609
  %v2898 = vunpack.c.l.b16 %v2610
  %v2899 = vunpack.c.l.b16 %v2611
  %v2900 = vunpack.c.l.b16 %v2612
  %v2901 = vunpack.c.l.b16 %v2613
  %v2902 = vunpack.c.l.b16 %v2614
  %v2903 = vunpack.c.l.b16 %v2615
  %v2904 = vunpack.c.l.b16 %v2616
  %v2905 = vunpack.c.l.b16 %v2617
  %v2906 = vunpack.c.l.b16 %v2618
  %v2907 = vunpack.c.l.b16 %v2619
  %v2908 = vunpack.c.l.b16 %v2620
  %v2909 = vunpack.c.l.b16 %v2621
  %v2910 = vunpack.c.l.b16 %v2622
  %v2911 = vunpack.c.l.b16 %v2623
  %v2912 = vunpack.c.l.b16 %v2624
  %v2913 = vunpack.c.l.b16 %v2625
  %v2914 = vunpack.c.l.b16 %v2626
  %v2915 = vunpack.c.l.b16 %v2627
  %v2916 = vunpack.c.l.b16 %v2628
  %v2917 = vunpack.c.l.b16 %v2629
  %v2918 = vunpack.c.l.b16 %v2630
  %v2919 = vunpack.c.l.b16 %v2631
  %v2920 = vunpack.c.l.b16 %v2632
  %v2921 = vunpack.c.l.b16 %v2633
  %v2922 = vunpack.c.l.b16 %v2634
  %v2923 = vunpack.c.l.b16 %v2635
  %v2924 = vunpack.c.l.b16 %v2636
  %v2925 = vunpack.c.l.b16 %v2637
  %v2926 = vunpack.c.l.b16 %v2638
  %v2927 = vunpack.c.l.b16 %v2639
  %v2928 = vunpack.c.l.b16 %v2640
  %v2929 = vunpack.c.l.b16 %v2641
  %v2930 = vunpack.c.l.b16 %v2642
  %v2931 = vunpack.c.l.b16 %v2643
  %v2932 = vunpack.c.l.b16 %v2644
  %v2933 = vunpack.c.l.b16 %v2645
  %v2934 = vunpack.c.l.b16 %v2646
  %v2935 = vunpack.c.l.b16 %v2647
  %v2936 = vunpack.c.l.b16 %v2648
  %v2937 = vunpack.c.l.b16 %v2649
  %v2938 = vunpack.c.l.b16 %v2650
  %v2939 = vunpack.c.l.b16 %v2651
  %v2940 = vunpack.c.l.b16 %v2652
  %v2941 = vunpack.c.l.b16 %v2653
  %v2942 = vunpack.c.l.b16 %v2654
  %v2943 = vunpack.c.l.b16 %v2655
  %v2944 = vunpack.c.l.b16 %v2656
  %v2945 = vunpack.c.l.b16 %v2657
  %v2946 = vunpack.c.l.b16 %v2658
  %v2947 = vunpack.c.l.b16 %v2659
  %v2948 = vunpack.c.l.b16 %v2660
  %v2949 = vunpack.c.l.b16 %v2661
  %v2950 = vunpack.c.l.b16 %v2662
  %v2951 = vunpack.c.l.b16 %v2663
  %v2952 = vunpack.c.l.b16 %v2664
  %v2953 = vunpack.c.l.b16 %v2665
  %v2954 = vunpack.c.l.b16 %v2666
  %v2955 = vunpack.c.l.b16 %v2667
  %v2956 = vunpack.c.l.b16 %v2668
  %v2957 = vunpack.c.l.b16 %v2669
  %v2958 = vpack.c.b16 %v2815, %v2814
  %v2959 = vpack.c.b16 %v2817, %v2816
  %v2960 = vpack.c.b16 %v2819, %v2818
  %v2961 = vpack.c.b16 %v2821, %v2820
  %v2962 = vpack.c.b16 %v2823, %v2822
  %v2963 = vpack.c.b16 %v2825, %v2824
  %v2964 = vpack.c.b16 %v2827, %v2826
  %v2965 = vpack.c.b16 %v2829, %v2828
  %v2966 = vpack.c.b16 %v2831, %v2830
  %v2967 = vpack.c.b16 %v2833, %v2832
  %v2968 = vpack.c.b16 %v2835, %v2834
  %v2969 = vpack.c.b16 %v2837, %v2836
  %v2970 = vpack.c.b16 %v2839, %v2838
  %v2971 = vpack.c.b16 %v2841, %v2840
  %v2972 = vpack.c.b16 %v2843, %v2842
  %v2973 = vpack.c.b16 %v2845, %v2844
  %v2974 = vpack.c.b16 %v2847, %v2846
  %v2975 = vpack.c.b16 %v2849, %v2848
  %v2976 = vpack.c.b16 %v2851, %v2850
  %v2977 = vpack.c.b16 %v2853, %v2852
  %v2978 = vpack.c.b16 %v2855, %v2854
  %v2979 = vpack.c.b16 %v2857, %v2856
  %v2980 = vpack.c.b16 %v2859, %v2858
  %v2981 = vpack.c.b16 %v2861, %v2860
  %v2982 = vpack.c.b16 %v2863, %v2862
  %v2983 = vpack.c.b16 %v2865, %v2864
  %v2984 = vpack.c.b16 %v2867, %v2866
  %v2985 = vpack.c.b16 %v2869, %v2868
  %v2986 = vpack.c.b16 %v2871, %v2870
  %v2987 = vpack.c.b16 %v2873, %v2872
  %v2988 = vpack.c.b16 %v2875, %v2874
  %v2989 = vpack.c.b16 %v2877, %v2876
  %v2990 = vpack.c.b16 %v2879, %v2878
  %v2991 = vpack.c.b16 %v2881, %v2880
  %v2992 = vpack.c.b16 %v2883, %v2882
  %v2993 = vpack.c.b16 %v2885, %v2884
  %v2994 = vpack.c.b16 %v2887, %v2886
  %v2995 = vpack.c.b16 %v2889, %v2888
  %v2996 = vpack.c.b16 %v2891, %v2890
  %v2997 = vpack.c.b16 %v2893, %v2892
  %v2998 = vpack.c.b16 %v2895, %v2894
  %v2999 = vpack.c.b16 %v2897, %v2896
  %v3000 = vpack.c.b16 %v2899, %v2898
  %v3001 = vpack.c.b16 %v2901, %v2900
  %v3002 = vpack.c.b16 %v2903, %v2902
  %v3003 = vpack.c.b16 %v2905, %v2904
  %v3004 = vpack.c.b16 %v2907, %v2906
  %v3005 = vpack.c.b16 %v2909, %v2908
  %v3006 = vpack.c.b16 %v2911, %v2910
  %v3007 = vpack.c.b16 %v2913, %v2912
  %v3008 = vpack.c.b16 %v2915, %v2914
  %v3009 = vpack.c.b16 %v2917, %v2916
  %v3010 = vpack.c.b16 %v2919, %v2918
  %v3011 = vpack.c.b16 %v2921, %v2920
  %v3012 = vpack.c.b16 %v2923, %v2922
  %v3013 = vpack.c.b16 %v2925, %v2924
  %v3014 = vpack.c.b16 %v2927, %v2926
  %v3015 = vpack.c.b16 %v2929, %v2928
  %v3016 = vpack.c.b16 %v2931, %v2930
  %v3017 = vpack.c.b16 %v2933, %v2932
  %v3018 = vpack.c.b16 %v2935, %v2934
  %v3019 = vpack.c.b16 %v2937, %v2936
  %v3020 = vpack.c.b16 %v2939, %v2938
  %v3021 = vpack.c.b16 %v2941, %v2940
  %v3022 = vpack.c.b16 %v2943, %v2942
  %v3023 = vpack.c.b16 %v2945, %v2944
  %v3024 = vpack.c.b16 %v2947, %v2946
  %v3025 = vpack.c.b16 %v2949, %v2948
  %v3026 = vpack.c.b16 %v2951, %v2950
  %v3027 = vpack.c.b16 %v2953, %v2952
  %v3028 = vpack.c.b16 %v2955, %v2954
  %v3029 = vpack.c.b16 %v2957, %v2956
  %3102 = vmatprep.subr.bf16.mxu0 0
  %3103 = vmatpush1.bf16.msra.mxu0 %v2958
  %3104 = vmatprep.subr.bf16.mxu0 0
  %3105 = vmatpush1.bf16.msra.mxu0 %v2959
  %3106 = vmatprep.subr.bf16.mxu0 0
  %3107 = vmatpush1.bf16.msra.mxu0 %v2960
  %3108 = vmatprep.subr.bf16.mxu0 0
  %3109 = vmatpush1.bf16.msra.mxu0 %v2961
  %3110 = vmatprep.subr.bf16.mxu0 0
  %3111 = vmatpush1.bf16.msra.mxu0 %v2962
  %3112 = vmatprep.subr.bf16.mxu0 0
  %3113 = vmatpush1.bf16.msra.mxu0 %v2963
  %3114 = vmatprep.subr.bf16.mxu0 0
  %3115 = vmatpush1.bf16.msra.mxu0 %v2964
  %3116 = vmatprep.subr.bf16.mxu0 0
  %3117 = vmatpush1.bf16.msra.mxu0 %v2965
  %3118 = vmatprep.subr.bf16.mxu0 0
  %3119 = vmatpush1.bf16.msra.mxu0 %v2966
  %3120 = vmatprep.subr.bf16.mxu0 0
  %3121 = vmatpush1.bf16.msra.mxu0 %v2967
  %3122 = vmatprep.subr.bf16.mxu0 0
  %3123 = vmatpush1.bf16.msra.mxu0 %v2968
  %3124 = vmatprep.subr.bf16.mxu0 0
  %3125 = vmatpush1.bf16.msra.mxu0 %v2969
  %3126 = vmatprep.subr.bf16.mxu0 0
  %3127 = vmatpush1.bf16.msra.mxu0 %v2970
  %3128 = vmatprep.subr.bf16.mxu0 0
  %3129 = vmatpush1.bf16.msra.mxu0 %v2971
  %3130 = vmatprep.subr.bf16.mxu0 0
  %3131 = vmatpush1.bf16.msra.mxu0 %v2972
  %3132 = vmatprep.subr.bf16.mxu0 0
  %3133 = vmatpush1.bf16.msra.mxu0 %v2973
  %3134 = vmatprep.mubr.bf16.mxu0 %v1821
  %3135 = vmatmul.mubr.bf16.gmra.mrb[0].mxu0 %v1725
  %v3136 = vpop.f32.mrb[0].mxu0
  %v3137 = vadd.f32 0.0, %v3136
  %v3138 = vpop.f32.mrb[0].mxu0
  %v3139 = vpop.f32.mrb[0].mxu0
  %v3140 = vadd.f32 0.0, %v3139
  %v3141 = vpop.f32.mrb[0].mxu0
  %3142 = vmatprep.mubr.bf16.mxu0 %v1822
  %3143 = vmatmul.mubr.bf16.gmra.mrb[0].mxu0 %v1726
  %v3144 = vpop.f32.mrb[0].mxu0
  %v3145 = vadd.f32 0.0, %v3144
  %v3146 = vpop.f32.mrb[0].mxu0
  %v3147 = vpop.f32.mrb[0].mxu0
  %v3148 = vadd.f32 0.0, %v3147
  %v3149 = vpop.f32.mrb[0].mxu0
  %3150 = vmatprep.mubr.bf16.mxu0 %v1823
  %3151 = vmatmul.mubr.bf16.gmra.mrb[0].mxu0 %v1727
  %v3152 = vpop.f32.mrb[0].mxu0
  %v3153 = vadd.f32 0.0, %v3152
  %v3154 = vpop.f32.mrb[0].mxu0
  %v3155 = vpop.f32.mrb[0].mxu0
  %v3156 = vadd.f32 0.0, %v3155
  %v3157 = vpop.f32.mrb[0].mxu0
  %3158 = vmatprep.mubr.bf16.mxu0 %v1824
  %3159 = vmatmul.mubr.bf16.gmra.mrb[0].mxu0 %v1728
  %v3160 = vpop.f32.mrb[0].mxu0
  %v3161 = vadd.f32 0.0, %v3160
  %v3162 = vpop.f32.mrb[0].mxu0
  %v3163 = vpop.f32.mrb[0].mxu0
  %v3164 = vadd.f32 0.0, %v3163
  %v3165 = vpop.f32.mrb[0].mxu0
  %3166 = vmatprep.mubr.bf16.mxu0 %v1825
  %3167 = vmatmul.mubr.bf16.gmra.mrb[0].mxu0 %v1729
  %v3168 = vpop.f32.mrb[0].mxu0
  %v3169 = vadd.f32 0.0, %v3168
  %v3170 = vpop.f32.mrb[0].mxu0
  %v3171 = vpop.f32.mrb[0].mxu0
  %v3172 = vadd.f32 0.0, %v3171
  %v3173 = vpop.f32.mrb[0].mxu0
  %3174 = vmatprep.mubr.bf16.mxu0 %v1826
  %3175 = vmatmul.mubr.bf16.gmra.mrb[0].mxu0 %v1730
  %v3176 = vpop.f32.mrb[0].mxu0
  %v3177 = vadd.f32 0.0, %v3176
  %v3178 = vpop.f32.mrb[0].mxu0
  %v3179 = vpop.f32.mrb[0].mxu0
  %v3180 = vadd.f32 0.0, %v3179
  %v3181 = vpop.f32.mrb[0].mxu0
  %3182 = vmatprep.mubr.bf16.mxu0 %v1827
  %3183 = vmatmul.mubr.bf16.gmra.mrb[0].mxu0 %v1731
  %v3184 = vpop.f32.mrb[0].mxu0
  %v3185 = vadd.f32 0.0, %v3184
  %v3186 = vpop.f32.mrb[0].mxu0
  %v3187 = vpop.f32.mrb[0].mxu0
  %v3188 = vadd.f32 0.0, %v3187
  %v3189 = vpop.f32.mrb[0].mxu0
  %3190 = vmatprep.mubr.bf16.mxu0 %v1828
  %3191 = vmatmul.mubr.bf16.gmra.mrb[0].mxu0 %v1732
  %v3192 = vpop.f32.mrb[0].mxu0
  %v3193 = vadd.f32 0.0, %v3192
  %v3194 = vpop.f32.mrb[0].mxu0
  %v3195 = vpop.f32.mrb[0].mxu0
  %v3196 = vadd.f32 0.0, %v3195
  %v3197 = vpop.f32.mrb[0].mxu0
  %3198 = vmatprep.mubr.bf16.mxu0 %v1829
  %3199 = vmatmul.mubr.bf16.gmra.mrb[0].mxu0 %v1733
  %v3200 = vpop.f32.mrb[0].mxu0
  %v3201 = vadd.f32 0.0, %v3200
  %v3202 = vpop.f32.mrb[0].mxu0
  %v3203 = vpop.f32.mrb[0].mxu0
  %v3204 = vadd.f32 0.0, %v3203
  %v3205 = vpop.f32.mrb[0].mxu0
  %3206 = vmatprep.mubr.bf16.mxu0 %v1830
  %3207 = vmatmul.mubr.bf16.gmra.mrb[0].mxu0 %v1734
  %v3208 = vpop.f32.mrb[0].mxu0
  %v3209 = vadd.f32 0.0, %v3208
  %v3210 = vpop.f32.mrb[0].mxu0
  %v3211 = vpop.f32.mrb[0].mxu0
  %v3212 = vadd.f32 0.0, %v3211
  %v3213 = vpop.f32.mrb[0].mxu0
  %3214 = vmatprep.mubr.bf16.mxu0 %v1831
  %3215 = vmatmul.mubr.bf16.gmra.mrb[0].mxu0 %v1735
  %v3216 = vpop.f32.mrb[0].mxu0
  %v3217 = vadd.f32 0.0, %v3216
  %v3218 = vpop.f32.mrb[0].mxu0
  %v3219 = vpop.f32.mrb[0].mxu0
  %v3220 = vadd.f32 0.0, %v3219
  %v3221 = vpop.f32.mrb[0].mxu0
  %3222 = vmatprep.mubr.bf16.mxu0 %v1832
  %3223 = vmatmul.mubr.bf16.gmra.mrb[0].mxu0 %v1736
  %v3224 = vpop.f32.mrb[0].mxu0
  %v3225 = vadd.f32 0.0, %v3224
  %v3226 = vpop.f32.mrb[0].mxu0
  %v3227 = vpop.f32.mrb[0].mxu0
  %v3228 = vadd.f32 0.0, %v3227
  %v3229 = vpop.f32.mrb[0].mxu0
  %3230 = vmatprep.mubr.bf16.mxu0 %v1833
  %3231 = vmatmul.mubr.bf16.gmra.mrb[0].mxu0 %v1737
  %v3232 = vpop.f32.mrb[0].mxu0
  %v3233 = vadd.f32 0.0, %v3232
  %v3234 = vpop.f32.mrb[0].mxu0
  %v3235 = vpop.f32.mrb[0].mxu0
  %v3236 = vadd.f32 0.0, %v3235
  %v3237 = vpop.f32.mrb[0].mxu0
  %3238 = vmatprep.mubr.bf16.mxu0 %v1834
  %3239 = vmatmul.mubr.bf16.gmra.mrb[0].mxu0 %v1738
  %v3240 = vpop.f32.mrb[0].mxu0
  %v3241 = vadd.f32 0.0, %v3240
  %v3242 = vpop.f32.mrb[0].mxu0
  %v3243 = vpop.f32.mrb[0].mxu0
  %v3244 = vadd.f32 0.0, %v3243
  %v3245 = vpop.f32.mrb[0].mxu0
  %3246 = vmatprep.mubr.bf16.mxu0 %v1835
  %3247 = vmatmul.mubr.bf16.gmra.mrb[0].mxu0 %v1739
  %v3248 = vpop.f32.mrb[0].mxu0
  %v3249 = vadd.f32 0.0, %v3248
  %v3250 = vpop.f32.mrb[0].mxu0
  %v3251 = vpop.f32.mrb[0].mxu0
  %v3252 = vadd.f32 0.0, %v3251
  %v3253 = vpop.f32.mrb[0].mxu0
  %3254 = vmatprep.mubr.bf16.mxu0 %v1836
  %3255 = vmatmul.mubr.bf16.gmra.mrb[0].mxu0 %v1740
  %v3256 = vpop.f32.mrb[0].mxu0
  %v3257 = vadd.f32 0.0, %v3256
  %v3258 = vpop.f32.mrb[0].mxu0
  %v3259 = vpop.f32.mrb[0].mxu0
  %v3260 = vadd.f32 0.0, %v3259
  %v3261 = vpop.f32.mrb[0].mxu0
  %3262 = vmatprep.mubr.bf16.mxu0 %v1837
  %3263 = vmatmul.mubr.bf16.gmra.mrb[0].mxu0 %v1741
  %v3264 = vpop.f32.mrb[0].mxu0
  %v3265 = vadd.f32 0.0, %v3264
  %v3266 = vpop.f32.mrb[0].mxu0
  %v3267 = vpop.f32.mrb[0].mxu0
  %v3268 = vadd.f32 0.0, %v3267
  %v3269 = vpop.f32.mrb[0].mxu0
  %3270 = vmatprep.mubr.bf16.mxu0 %v1838
  %3271 = vmatmul.mubr.bf16.gmra.mrb[0].mxu0 %v1742
  %v3272 = vpop.f32.mrb[0].mxu0
  %v3273 = vadd.f32 0.0, %v3272
  %v3274 = vpop.f32.mrb[0].mxu0
  %v3275 = vpop.f32.mrb[0].mxu0
  %v3276 = vadd.f32 0.0, %v3275
  %v3277 = vpop.f32.mrb[0].mxu0
  %3278 = vmatprep.mubr.bf16.mxu0 %v1839
  %3279 = vmatmul.mubr.bf16.gmra.mrb[0].mxu0 %v1743
  %v3280 = vpop.f32.mrb[0].mxu0
  %v3281 = vadd.f32 0.0, %v3280
  %v3282 = vpop.f32.mrb[0].mxu0
  %v3283 = vpop.f32.mrb[0].mxu0
  %v3284 = vadd.f32 0.0, %v3283
  %v3285 = vpop.f32.mrb[0].mxu0
  %3286 = vmatprep.mubr.bf16.mxu0 %v1840
  %3287 = vmatmul.mubr.bf16.gmra.mrb[0].mxu0 %v1744
  %v3288 = vpop.f32.mrb[0].mxu0
  %v3289 = vadd.f32 0.0, %v3288
  %v3290 = vpop.f32.mrb[0].mxu0
  %v3291 = vpop.f32.mrb[0].mxu0
  %v3292 = vadd.f32 0.0, %v3291
  %v3293 = vpop.f32.mrb[0].mxu0
  %3294 = vmatprep.mubr.bf16.mxu0 %v1841
  %3295 = vmatmul.mubr.bf16.gmra.mrb[0].mxu0 %v1745
  %v3296 = vpop.f32.mrb[0].mxu0
  %v3297 = vadd.f32 0.0, %v3296
  %v3298 = vpop.f32.mrb[0].mxu0
  %v3299 = vpop.f32.mrb[0].mxu0
  %v3300 = vadd.f32 0.0, %v3299
  %v3301 = vpop.f32.mrb[0].mxu0
  %3302 = vmatprep.mubr.bf16.mxu0 %v1842
  %3303 = vmatmul.mubr.bf16.gmra.mrb[0].mxu0 %v1746
  %v3304 = vpop.f32.mrb[0].mxu0
  %v3305 = vadd.f32 0.0, %v3304
  %v3306 = vpop.f32.mrb[0].mxu0
  %v3307 = vpop.f32.mrb[0].mxu0
  %v3308 = vadd.f32 0.0, %v3307
  %v3309 = vpop.f32.mrb[0].mxu0
  %3310 = vmatprep.mubr.bf16.mxu0 %v1843
  %3311 = vmatmul.mubr.bf16.gmra.mrb[0].mxu0 %v1747
  %v3312 = vpop.f32.mrb[0].mxu0
  %v3313 = vadd.f32 0.0, %v3312
  %v3314 = vpop.f32.mrb[0].mxu0
  %v3315 = vpop.f32.mrb[0].mxu0
  %v3316 = vadd.f32 0.0, %v3315
  %v3317 = vpop.f32.mrb[0].mxu0
  %3318 = vmatprep.mubr.bf16.mxu0 %v1844
  %3319 = vmatmul.mubr.bf16.gmra.mrb[0].mxu0 %v1748
  %v3320 = vpop.f32.mrb[0].mxu0
  %v3321 = vadd.f32 0.0, %v3320
  %v3322 = vpop.f32.mrb[0].mxu0
  %v3323 = vpop.f32.mrb[0].mxu0
  %v3324 = vadd.f32 0.0, %v3323
  %v3325 = vpop.f32.mrb[0].mxu0
  %3326 = vmatprep.mubr.bf16.mxu0 %v1845
  %3327 = vmatmul.mubr.bf16.gmra.mrb[0].mxu0 %v1749
  %v3328 = vpop.f32.mrb[0].mxu0
  %v3329 = vadd.f32 0.0, %v3328
  %v3330 = vpop.f32.mrb[0].mxu0
  %v3331 = vpop.f32.mrb[0].mxu0
  %v3332 = vadd.f32 0.0, %v3331
  %v3333 = vpop.f32.mrb[0].mxu0
  %3334 = vmatprep.mubr.bf16.mxu0 %v1846
  %3335 = vmatmul.mubr.bf16.gmra.mrb[0].mxu0 %v1750
  %v3336 = vpop.f32.mrb[0].mxu0
  %v3337 = vadd.f32 0.0, %v3336
  %v3338 = vpop.f32.mrb[0].mxu0
  %v3339 = vpop.f32.mrb[0].mxu0
  %v3340 = vadd.f32 0.0, %v3339
  %v3341 = vpop.f32.mrb[0].mxu0
  %3342 = vmatprep.mubr.bf16.mxu0 %v1847
  %3343 = vmatmul.mubr.bf16.gmra.mrb[0].mxu0 %v1751
  %v3344 = vpop.f32.mrb[0].mxu0
  %v3345 = vadd.f32 0.0, %v3344
  %v3346 = vpop.f32.mrb[0].mxu0
  %v3347 = vpop.f32.mrb[0].mxu0
  %v3348 = vadd.f32 0.0, %v3347
  %v3349 = vpop.f32.mrb[0].mxu0
  %3350 = vmatprep.mubr.bf16.mxu0 %v1848
  %3351 = vmatmul.mubr.bf16.gmra.mrb[0].mxu0 %v1752
  %v3352 = vpop.f32.mrb[0].mxu0
  %v3353 = vadd.f32 0.0, %v3352
  %v3354 = vpop.f32.mrb[0].mxu0
  %v3355 = vpop.f32.mrb[0].mxu0
  %v3356 = vadd.f32 0.0, %v3355
  %v3357 = vpop.f32.mrb[0].mxu0
  %3358 = vmatprep.mubr.bf16.mxu0 %v1849
  %3359 = vmatmul.mubr.bf16.gmra.mrb[0].mxu0 %v1753
  %v3360 = vpop.f32.mrb[0].mxu0
  %v3361 = vadd.f32 0.0, %v3360
  %v3362 = vpop.f32.mrb[0].mxu0
  %v3363 = vpop.f32.mrb[0].mxu0
  %v3364 = vadd.f32 0.0, %v3363
  %v3365 = vpop.f32.mrb[0].mxu0
  %3366 = vmatprep.mubr.bf16.mxu0 %v1850
  %3367 = vmatmul.mubr.bf16.gmra.mrb[0].mxu0 %v1754
  %v3368 = vpop.f32.mrb[0].mxu0
  %v3369 = vadd.f32 0.0, %v3368
  %v3370 = vpop.f32.mrb[0].mxu0
  %v3371 = vpop.f32.mrb[0].mxu0
  %v3372 = vadd.f32 0.0, %v3371
  %v3373 = vpop.f32.mrb[0].mxu0
  %3374 = vmatprep.mubr.bf16.mxu0 %v1851
  %3375 = vmatmul.mubr.bf16.gmra.mrb[0].mxu0 %v1755
  %v3376 = vpop.f32.mrb[0].mxu0
  %v3377 = vadd.f32 0.0, %v3376
  %v3378 = vpop.f32.mrb[0].mxu0
  %v3379 = vpop.f32.mrb[0].mxu0
  %v3380 = vadd.f32 0.0, %v3379
  %v3381 = vpop.f32.mrb[0].mxu0
  %3382 = vmatprep.mubr.bf16.mxu0 %v1852
  %3383 = vmatmul.mubr.bf16.gmra.mrb[0].mxu0 %v1756
  %v3384 = vpop.f32.mrb[0].mxu0
  %v3385 = vadd.f32 0.0, %v3384
  %v3386 = vpop.f32.mrb[0].mxu0
  %v3387 = vpop.f32.mrb[0].mxu0
  %v3388 = vadd.f32 0.0, %v3387
  %v3389 = vpop.f32.mrb[0].mxu0
  %3390 = vdwg.mxu0
  %3391 = vmatprep.subr.bf16.mxu0 0
  %3392 = vmatpush1.bf16.msra.mxu0 %v2974
  %3393 = vmatprep.subr.bf16.mxu0 0
  %3394 = vmatpush1.bf16.msra.mxu0 %v2975
  %3395 = vmatprep.subr.bf16.mxu0 0
  %3396 = vmatpush1.bf16.msra.mxu0 %v2976
  %3397 = vmatprep.subr.bf16.mxu0 0
  %3398 = vmatpush1.bf16.msra.mxu0 %v2977
  %3399 = vmatprep.subr.bf16.mxu0 0
  %3400 = vmatpush1.bf16.msra.mxu0 %v2978
  %3401 = vmatprep.subr.bf16.mxu0 0
  %3402 = vmatpush1.bf16.msra.mxu0 %v2979
  %3403 = vmatprep.subr.bf16.mxu0 0
  %3404 = vmatpush1.bf16.msra.mxu0 %v2980
  %3405 = vmatprep.subr.bf16.mxu0 0
  %3406 = vmatpush1.bf16.msra.mxu0 %v2981
  %3407 = vmatprep.subr.bf16.mxu0 0
  %3408 = vmatpush1.bf16.msra.mxu0 %v2982
  %3409 = vmatprep.subr.bf16.mxu0 0
  %3410 = vmatpush1.bf16.msra.mxu0 %v2983
  %3411 = vmatprep.subr.bf16.mxu0 0
  %3412 = vmatpush1.bf16.msra.mxu0 %v2984
  %3413 = vmatprep.subr.bf16.mxu0 0
  %3414 = vmatpush1.bf16.msra.mxu0 %v2985
  %3415 = vmatprep.subr.bf16.mxu0 0
  %3416 = vmatpush1.bf16.msra.mxu0 %v2986
  %3417 = vmatprep.subr.bf16.mxu0 0
  %3418 = vmatpush1.bf16.msra.mxu0 %v2987
  %3419 = vmatprep.subr.bf16.mxu0 0
  %3420 = vmatpush1.bf16.msra.mxu0 %v2988
  %3421 = vmatprep.subr.bf16.mxu0 0
  %3422 = vmatpush1.bf16.msra.mxu0 %v2989
  %3423 = vmatprep.mubr.bf16.mxu0 %v2013
  %3424 = vmatmul.mubr.bf16.gmra.mrb[0].mxu0 %v1917
  %v3425 = vpop.f32.mrb[0].mxu0
  %v3426 = vadd.f32 %v3137, %v3425
  %v3427 = vpop.f32.mrb[0].mxu0
  %v3428 = vpop.f32.mrb[0].mxu0
  %v3429 = vadd.f32 %v3140, %v3428
  %v3430 = vpop.f32.mrb[0].mxu0
  %3431 = vmatprep.mubr.bf16.mxu0 %v2014
  %3432 = vmatmul.mubr.bf16.gmra.mrb[0].mxu0 %v1918
  %v3433 = vpop.f32.mrb[0].mxu0
  %v3434 = vadd.f32 %v3145, %v3433
  %v3435 = vpop.f32.mrb[0].mxu0
  %v3436 = vpop.f32.mrb[0].mxu0
  %v3437 = vadd.f32 %v3148, %v3436
  %v3438 = vpop.f32.mrb[0].mxu0
  %3439 = vmatprep.mubr.bf16.mxu0 %v2015
  %3440 = vmatmul.mubr.bf16.gmra.mrb[0].mxu0 %v1919
  %v3441 = vpop.f32.mrb[0].mxu0
  %v3442 = vadd.f32 %v3153, %v3441
  %v3443 = vpop.f32.mrb[0].mxu0
  %v3444 = vpop.f32.mrb[0].mxu0
  %v3445 = vadd.f32 %v3156, %v3444
  %v3446 = vpop.f32.mrb[0].mxu0
  %3447 = vmatprep.mubr.bf16.mxu0 %v2016
  %3448 = vmatmul.mubr.bf16.gmra.mrb[0].mxu0 %v1920
  %v3449 = vpop.f32.mrb[0].mxu0
  %v3450 = vadd.f32 %v3161, %v3449
  %v3451 = vpop.f32.mrb[0].mxu0
  %v3452 = vpop.f32.mrb[0].mxu0
  %v3453 = vadd.f32 %v3164, %v3452
  %v3454 = vpop.f32.mrb[0].mxu0
  %3455 = vmatprep.mubr.bf16.mxu0 %v2017
  %3456 = vmatmul.mubr.bf16.gmra.mrb[0].mxu0 %v1921
  %v3457 = vpop.f32.mrb[0].mxu0
  %v3458 = vadd.f32 %v3169, %v3457
  %v3459 = vpop.f32.mrb[0].mxu0
  %v3460 = vpop.f32.mrb[0].mxu0
  %v3461 = vadd.f32 %v3172, %v3460
  %v3462 = vpop.f32.mrb[0].mxu0
  %3463 = vmatprep.mubr.bf16.mxu0 %v2018
  %3464 = vmatmul.mubr.bf16.gmra.mrb[0].mxu0 %v1922
  %v3465 = vpop.f32.mrb[0].mxu0
  %v3466 = vadd.f32 %v3177, %v3465
  %v3467 = vpop.f32.mrb[0].mxu0
  %v3468 = vpop.f32.mrb[0].mxu0
  %v3469 = vadd.f32 %v3180, %v3468
  %v3470 = vpop.f32.mrb[0].mxu0
  %3471 = vmatprep.mubr.bf16.mxu0 %v2019
  %3472 = vmatmul.mubr.bf16.gmra.mrb[0].mxu0 %v1923
  %v3473 = vpop.f32.mrb[0].mxu0
  %v3474 = vadd.f32 %v3185, %v3473
  %v3475 = vpop.f32.mrb[0].mxu0
  %v3476 = vpop.f32.mrb[0].mxu0
  %v3477 = vadd.f32 %v3188, %v3476
  %v3478 = vpop.f32.mrb[0].mxu0
  %3479 = vmatprep.mubr.bf16.mxu0 %v2020
  %3480 = vmatmul.mubr.bf16.gmra.mrb[0].mxu0 %v1924
  %v3481 = vpop.f32.mrb[0].mxu0
  %v3482 = vadd.f32 %v3193, %v3481
  %v3483 = vpop.f32.mrb[0].mxu0
  %v3484 = vpop.f32.mrb[0].mxu0
  %v3485 = vadd.f32 %v3196, %v3484
  %v3486 = vpop.f32.mrb[0].mxu0
  %3487 = vmatprep.mubr.bf16.mxu0 %v2021
  %3488 = vmatmul.mubr.bf16.gmra.mrb[0].mxu0 %v1925
  %v3489 = vpop.f32.mrb[0].mxu0
  %v3490 = vadd.f32 %v3201, %v3489
  %v3491 = vpop.f32.mrb[0].mxu0
  %v3492 = vpop.f32.mrb[0].mxu0
  %v3493 = vadd.f32 %v3204, %v3492
  %v3494 = vpop.f32.mrb[0].mxu0
  %3495 = vmatprep.mubr.bf16.mxu0 %v2022
  %3496 = vmatmul.mubr.bf16.gmra.mrb[0].mxu0 %v1926
  %v3497 = vpop.f32.mrb[0].mxu0
  %v3498 = vadd.f32 %v3209, %v3497
  %v3499 = vpop.f32.mrb[0].mxu0
  %v3500 = vpop.f32.mrb[0].mxu0
  %v3501 = vadd.f32 %v3212, %v3500
  %v3502 = vpop.f32.mrb[0].mxu0
  %3503 = vmatprep.mubr.bf16.mxu0 %v2023
  %3504 = vmatmul.mubr.bf16.gmra.mrb[0].mxu0 %v1927
  %v3505 = vpop.f32.mrb[0].mxu0
  %v3506 = vadd.f32 %v3217, %v3505
  %v3507 = vpop.f32.mrb[0].mxu0
  %v3508 = vpop.f32.mrb[0].mxu0
  %v3509 = vadd.f32 %v3220, %v3508
  %v3510 = vpop.f32.mrb[0].mxu0
  %3511 = vmatprep.mubr.bf16.mxu0 %v2024
  %3512 = vmatmul.mubr.bf16.gmra.mrb[0].mxu0 %v1928
  %v3513 = vpop.f32.mrb[0].mxu0
  %v3514 = vadd.f32 %v3225, %v3513
  %v3515 = vpop.f32.mrb[0].mxu0
  %v3516 = vpop.f32.mrb[0].mxu0
  %v3517 = vadd.f32 %v3228, %v3516
  %v3518 = vpop.f32.mrb[0].mxu0
  %3519 = vmatprep.mubr.bf16.mxu0 %v2025
  %3520 = vmatmul.mubr.bf16.gmra.mrb[0].mxu0 %v1929
  %v3521 = vpop.f32.mrb[0].mxu0
  %v3522 = vadd.f32 %v3233, %v3521
  %v3523 = vpop.f32.mrb[0].mxu0
  %v3524 = vpop.f32.mrb[0].mxu0
  %v3525 = vadd.f32 %v3236, %v3524
  %v3526 = vpop.f32.mrb[0].mxu0
  %3527 = vmatprep.mubr.bf16.mxu0 %v2026
  %3528 = vmatmul.mubr.bf16.gmra.mrb[0].mxu0 %v1930
  %v3529 = vpop.f32.mrb[0].mxu0
  %v3530 = vadd.f32 %v3241, %v3529
  %v3531 = vpop.f32.mrb[0].mxu0
  %v3532 = vpop.f32.mrb[0].mxu0
  %v3533 = vadd.f32 %v3244, %v3532
  %v3534 = vpop.f32.mrb[0].mxu0
  %3535 = vmatprep.mubr.bf16.mxu0 %v2027
  %3536 = vmatmul.mubr.bf16.gmra.mrb[0].mxu0 %v1931
  %v3537 = vpop.f32.mrb[0].mxu0
  %v3538 = vadd.f32 %v3249, %v3537
  %v3539 = vpop.f32.mrb[0].mxu0
  %v3540 = vpop.f32.mrb[0].mxu0
  %v3541 = vadd.f32 %v3252, %v3540
  %v3542 = vpop.f32.mrb[0].mxu0
  %3543 = vmatprep.mubr.bf16.mxu0 %v2028
  %3544 = vmatmul.mubr.bf16.gmra.mrb[0].mxu0 %v1932
  %v3545 = vpop.f32.mrb[0].mxu0
  %v3546 = vadd.f32 %v3257, %v3545
  %v3547 = vpop.f32.mrb[0].mxu0
  %v3548 = vpop.f32.mrb[0].mxu0
  %v3549 = vadd.f32 %v3260, %v3548
  %v3550 = vpop.f32.mrb[0].mxu0
  %3551 = vmatprep.mubr.bf16.mxu0 %v2029
  %3552 = vmatmul.mubr.bf16.gmra.mrb[0].mxu0 %v1933
  %v3553 = vpop.f32.mrb[0].mxu0
  %v3554 = vadd.f32 %v3265, %v3553
  %v3555 = vpop.f32.mrb[0].mxu0
  %v3556 = vpop.f32.mrb[0].mxu0
  %v3557 = vadd.f32 %v3268, %v3556
  %v3558 = vpop.f32.mrb[0].mxu0
  %3559 = vmatprep.mubr.bf16.mxu0 %v2030
  %3560 = vmatmul.mubr.bf16.gmra.mrb[0].mxu0 %v1934
  %v3561 = vpop.f32.mrb[0].mxu0
  %v3562 = vadd.f32 %v3273, %v3561
  %v3563 = vpop.f32.mrb[0].mxu0
  %v3564 = vpop.f32.mrb[0].mxu0
  %v3565 = vadd.f32 %v3276, %v3564
  %v3566 = vpop.f32.mrb[0].mxu0
  %3567 = vmatprep.mubr.bf16.mxu0 %v2031
  %3568 = vmatmul.mubr.bf16.gmra.mrb[0].mxu0 %v1935
  %v3569 = vpop.f32.mrb[0].mxu0
  %v3570 = vadd.f32 %v3281, %v3569
  %v3571 = vpop.f32.mrb[0].mxu0
  %v3572 = vpop.f32.mrb[0].mxu0
  %v3573 = vadd.f32 %v3284, %v3572
  %v3574 = vpop.f32.mrb[0].mxu0
  %3575 = vmatprep.mubr.bf16.mxu0 %v2032
  %3576 = vmatmul.mubr.bf16.gmra.mrb[0].mxu0 %v1936
  %v3577 = vpop.f32.mrb[0].mxu0
  %v3578 = vadd.f32 %v3289, %v3577
  %v3579 = vpop.f32.mrb[0].mxu0
  %v3580 = vpop.f32.mrb[0].mxu0
  %v3581 = vadd.f32 %v3292, %v3580
  %v3582 = vpop.f32.mrb[0].mxu0
  %3583 = vmatprep.mubr.bf16.mxu0 %v2033
  %3584 = vmatmul.mubr.bf16.gmra.mrb[0].mxu0 %v1937
  %v3585 = vpop.f32.mrb[0].mxu0
  %v3586 = vadd.f32 %v3297, %v3585
  %v3587 = vpop.f32.mrb[0].mxu0
  %v3588 = vpop.f32.mrb[0].mxu0
  %v3589 = vadd.f32 %v3300, %v3588
  %v3590 = vpop.f32.mrb[0].mxu0
  %3591 = vmatprep.mubr.bf16.mxu0 %v2034
  %3592 = vmatmul.mubr.bf16.gmra.mrb[0].mxu0 %v1938
  %v3593 = vpop.f32.mrb[0].mxu0
  %v3594 = vadd.f32 %v3305, %v3593
  %v3595 = vpop.f32.mrb[0].mxu0
  %v3596 = vpop.f32.mrb[0].mxu0
  %v3597 = vadd.f32 %v3308, %v3596
  %v3598 = vpop.f32.mrb[0].mxu0
  %3599 = vmatprep.mubr.bf16.mxu0 %v2035
  %3600 = vmatmul.mubr.bf16.gmra.mrb[0].mxu0 %v1939
  %v3601 = vpop.f32.mrb[0].mxu0
  %v3602 = vadd.f32 %v3313, %v3601
  %v3603 = vpop.f32.mrb[0].mxu0
  %v3604 = vpop.f32.mrb[0].mxu0
  %v3605 = vadd.f32 %v3316, %v3604
  %v3606 = vpop.f32.mrb[0].mxu0
  %3607 = vmatprep.mubr.bf16.mxu0 %v2036
  %3608 = vmatmul.mubr.bf16.gmra.mrb[0].mxu0 %v1940
  %v3609 = vpop.f32.mrb[0].mxu0
  %v3610 = vadd.f32 %v3321, %v3609
  %v3611 = vpop.f32.mrb[0].mxu0
  %v3612 = vpop.f32.mrb[0].mxu0
  %v3613 = vadd.f32 %v3324, %v3612
  %v3614 = vpop.f32.mrb[0].mxu0
  %3615 = vmatprep.mubr.bf16.mxu0 %v2037
  %3616 = vmatmul.mubr.bf16.gmra.mrb[0].mxu0 %v1941
  %v3617 = vpop.f32.mrb[0].mxu0
  %v3618 = vadd.f32 %v3329, %v3617
  %v3619 = vpop.f32.mrb[0].mxu0
  %v3620 = vpop.f32.mrb[0].mxu0
  %v3621 = vadd.f32 %v3332, %v3620
  %v3622 = vpop.f32.mrb[0].mxu0
  %3623 = vmatprep.mubr.bf16.mxu0 %v2038
  %3624 = vmatmul.mubr.bf16.gmra.mrb[0].mxu0 %v1942
  %v3625 = vpop.f32.mrb[0].mxu0
  %v3626 = vadd.f32 %v3337, %v3625
  %v3627 = vpop.f32.mrb[0].mxu0
  %v3628 = vpop.f32.mrb[0].mxu0
  %v3629 = vadd.f32 %v3340, %v3628
  %v3630 = vpop.f32.mrb[0].mxu0
  %3631 = vmatprep.mubr.bf16.mxu0 %v2039
  %3632 = vmatmul.mubr.bf16.gmra.mrb[0].mxu0 %v1943
  %v3633 = vpop.f32.mrb[0].mxu0
  %v3634 = vadd.f32 %v3345, %v3633
  %v3635 = vpop.f32.mrb[0].mxu0
  %v3636 = vpop.f32.mrb[0].mxu0
  %v3637 = vadd.f32 %v3348, %v3636
  %v3638 = vpop.f32.mrb[0].mxu0
  %3639 = vmatprep.mubr.bf16.mxu0 %v2040
  %3640 = vmatmul.mubr.bf16.gmra.mrb[0].mxu0 %v1944
  %v3641 = vpop.f32.mrb[0].mxu0
  %v3642 = vadd.f32 %v3353, %v3641
  %v3643 = vpop.f32.mrb[0].mxu0
  %v3644 = vpop.f32.mrb[0].mxu0
  %v3645 = vadd.f32 %v3356, %v3644
  %v3646 = vpop.f32.mrb[0].mxu0
  %3647 = vmatprep.mubr.bf16.mxu0 %v2041
  %3648 = vmatmul.mubr.bf16.gmra.mrb[0].mxu0 %v1945
  %v3649 = vpop.f32.mrb[0].mxu0
  %v3650 = vadd.f32 %v3361, %v3649
  %v3651 = vpop.f32.mrb[0].mxu0
  %v3652 = vpop.f32.mrb[0].mxu0
  %v3653 = vadd.f32 %v3364, %v3652
  %v3654 = vpop.f32.mrb[0].mxu0
  %3655 = vmatprep.mubr.bf16.mxu0 %v2042
  %3656 = vmatmul.mubr.bf16.gmra.mrb[0].mxu0 %v1946
  %v3657 = vpop.f32.mrb[0].mxu0
  %v3658 = vadd.f32 %v3369, %v3657
  %v3659 = vpop.f32.mrb[0].mxu0
  %v3660 = vpop.f32.mrb[0].mxu0
  %v3661 = vadd.f32 %v3372, %v3660
  %v3662 = vpop.f32.mrb[0].mxu0
  %3663 = vmatprep.mubr.bf16.mxu0 %v2043
  %3664 = vmatmul.mubr.bf16.gmra.mrb[0].mxu0 %v1947
  %v3665 = vpop.f32.mrb[0].mxu0
  %v3666 = vadd.f32 %v3377, %v3665
  %v3667 = vpop.f32.mrb[0].mxu0
  %v3668 = vpop.f32.mrb[0].mxu0
  %v3669 = vadd.f32 %v3380, %v3668
  %v3670 = vpop.f32.mrb[0].mxu0
  %3671 = vmatprep.mubr.bf16.mxu0 %v2044
  %3672 = vmatmul.mubr.bf16.gmra.mrb[0].mxu0 %v1948
  %v3673 = vpop.f32.mrb[0].mxu0
  %v3674 = vadd.f32 %v3385, %v3673
  %v3675 = vpop.f32.mrb[0].mxu0
  %v3676 = vpop.f32.mrb[0].mxu0
  %v3677 = vadd.f32 %v3388, %v3676
  %v3678 = vpop.f32.mrb[0].mxu0
  %3679 = vdwg.mxu0
  %3680 = vmatprep.subr.bf16.mxu0 0
  %3681 = vmatpush1.bf16.msra.mxu0 %v2990
  %3682 = vmatprep.subr.bf16.mxu0 0
  %3683 = vmatpush1.bf16.msra.mxu0 %v2991
  %3684 = vmatprep.subr.bf16.mxu0 0
  %3685 = vmatpush1.bf16.msra.mxu0 %v2992
  %3686 = vmatprep.subr.bf16.mxu0 0
  %3687 = vmatpush1.bf16.msra.mxu0 %v2993
  %3688 = vmatprep.subr.bf16.mxu0 0
  %3689 = vmatpush1.bf16.msra.mxu0 %v2994
  %3690 = vmatprep.subr.bf16.mxu0 0
  %3691 = vmatpush1.bf16.msra.mxu0 %v2995
  %3692 = vmatprep.subr.bf16.mxu0 0
  %3693 = vmatpush1.bf16.msra.mxu0 %v2996
  %3694 = vmatprep.subr.bf16.mxu0 0
  %3695 = vmatpush1.bf16.msra.mxu0 %v2997
  %3696 = vmatprep.subr.bf16.mxu0 0
  %3697 = vmatpush1.bf16.msra.mxu0 %v2998
  %3698 = vmatprep.subr.bf16.mxu0 0
  %3699 = vmatpush1.bf16.msra.mxu0 %v2999
  %3700 = vmatprep.subr.bf16.mxu0 0
  %3701 = vmatpush1.bf16.msra.mxu0 %v3000
  %3702 = vmatprep.subr.bf16.mxu0 0
  %3703 = vmatpush1.bf16.msra.mxu0 %v3001
  %3704 = vmatprep.subr.bf16.mxu0 0
  %3705 = vmatpush1.bf16.msra.mxu0 %v3002
  %3706 = vmatprep.subr.bf16.mxu0 0
  %3707 = vmatpush1.bf16.msra.mxu0 %v3003
  %3708 = vmatprep.subr.bf16.mxu0 0
  %3709 = vmatpush1.bf16.msra.mxu0 %v3004
  %3710 = vmatprep.subr.bf16.mxu0 0
  %3711 = vmatpush1.bf16.msra.mxu0 %v3005
  %3712 = vmatprep.mubr.bf16.mxu0 %v2205
  %3713 = vmatmul.mubr.bf16.gmra.mrb[0].mxu0 %v2109
  %v3714 = vpop.f32.mrb[0].mxu0
  %v3715 = vadd.f32 %v3426, %v3714
  %v3716 = vpop.f32.mrb[0].mxu0
  %v3717 = vpop.f32.mrb[0].mxu0
  %v3718 = vadd.f32 %v3429, %v3717
  %v3719 = vpop.f32.mrb[0].mxu0
  %3720 = vmatprep.mubr.bf16.mxu0 %v2206
  %3721 = vmatmul.mubr.bf16.gmra.mrb[0].mxu0 %v2110
  %v3722 = vpop.f32.mrb[0].mxu0
  %v3723 = vadd.f32 %v3434, %v3722
  %v3724 = vpop.f32.mrb[0].mxu0
  %v3725 = vpop.f32.mrb[0].mxu0
  %v3726 = vadd.f32 %v3437, %v3725
  %v3727 = vpop.f32.mrb[0].mxu0
  %3728 = vmatprep.mubr.bf16.mxu0 %v2207
  %3729 = vmatmul.mubr.bf16.gmra.mrb[0].mxu0 %v2111
  %v3730 = vpop.f32.mrb[0].mxu0
  %v3731 = vadd.f32 %v3442, %v3730
  %v3732 = vpop.f32.mrb[0].mxu0
  %v3733 = vpop.f32.mrb[0].mxu0
  %v3734 = vadd.f32 %v3445, %v3733
  %v3735 = vpop.f32.mrb[0].mxu0
  %3736 = vmatprep.mubr.bf16.mxu0 %v2208
  %3737 = vmatmul.mubr.bf16.gmra.mrb[0].mxu0 %v2112
  %v3738 = vpop.f32.mrb[0].mxu0
  %v3739 = vadd.f32 %v3450, %v3738
  %v3740 = vpop.f32.mrb[0].mxu0
  %v3741 = vpop.f32.mrb[0].mxu0
  %v3742 = vadd.f32 %v3453, %v3741
  %v3743 = vpop.f32.mrb[0].mxu0
  %3744 = vmatprep.mubr.bf16.mxu0 %v2209
  %3745 = vmatmul.mubr.bf16.gmra.mrb[0].mxu0 %v2113
  %v3746 = vpop.f32.mrb[0].mxu0
  %v3747 = vadd.f32 %v3458, %v3746
  %v3748 = vpop.f32.mrb[0].mxu0
  %v3749 = vpop.f32.mrb[0].mxu0
  %v3750 = vadd.f32 %v3461, %v3749
  %v3751 = vpop.f32.mrb[0].mxu0
  %3752 = vmatprep.mubr.bf16.mxu0 %v2210
  %3753 = vmatmul.mubr.bf16.gmra.mrb[0].mxu0 %v2114
  %v3754 = vpop.f32.mrb[0].mxu0
  %v3755 = vadd.f32 %v3466, %v3754
  %v3756 = vpop.f32.mrb[0].mxu0
  %v3757 = vpop.f32.mrb[0].mxu0
  %v3758 = vadd.f32 %v3469, %v3757
  %v3759 = vpop.f32.mrb[0].mxu0
  %3760 = vmatprep.mubr.bf16.mxu0 %v2211
  %3761 = vmatmul.mubr.bf16.gmra.mrb[0].mxu0 %v2115
  %v3762 = vpop.f32.mrb[0].mxu0
  %v3763 = vadd.f32 %v3474, %v3762
  %v3764 = vpop.f32.mrb[0].mxu0
  %v3765 = vpop.f32.mrb[0].mxu0
  %v3766 = vadd.f32 %v3477, %v3765
  %v3767 = vpop.f32.mrb[0].mxu0
  %3768 = vmatprep.mubr.bf16.mxu0 %v2212
  %3769 = vmatmul.mubr.bf16.gmra.mrb[0].mxu0 %v2116
  %v3770 = vpop.f32.mrb[0].mxu0
  %v3771 = vadd.f32 %v3482, %v3770
  %v3772 = vpop.f32.mrb[0].mxu0
  %v3773 = vpop.f32.mrb[0].mxu0
  %v3774 = vadd.f32 %v3485, %v3773
  %v3775 = vpop.f32.mrb[0].mxu0
  %3776 = vmatprep.mubr.bf16.mxu0 %v2213
  %3777 = vmatmul.mubr.bf16.gmra.mrb[0].mxu0 %v2117
  %v3778 = vpop.f32.mrb[0].mxu0
  %v3779 = vadd.f32 %v3490, %v3778
  %v3780 = vpop.f32.mrb[0].mxu0
  %v3781 = vpop.f32.mrb[0].mxu0
  %v3782 = vadd.f32 %v3493, %v3781
  %v3783 = vpop.f32.mrb[0].mxu0
  %3784 = vmatprep.mubr.bf16.mxu0 %v2214
  %3785 = vmatmul.mubr.bf16.gmra.mrb[0].mxu0 %v2118
  %v3786 = vpop.f32.mrb[0].mxu0
  %v3787 = vadd.f32 %v3498, %v3786
  %v3788 = vpop.f32.mrb[0].mxu0
  %v3789 = vpop.f32.mrb[0].mxu0
  %v3790 = vadd.f32 %v3501, %v3789
  %v3791 = vpop.f32.mrb[0].mxu0
  %3792 = vmatprep.mubr.bf16.mxu0 %v2215
  %3793 = vmatmul.mubr.bf16.gmra.mrb[0].mxu0 %v2119
  %v3794 = vpop.f32.mrb[0].mxu0
  %v3795 = vadd.f32 %v3506, %v3794
  %v3796 = vpop.f32.mrb[0].mxu0
  %v3797 = vpop.f32.mrb[0].mxu0
  %v3798 = vadd.f32 %v3509, %v3797
  %v3799 = vpop.f32.mrb[0].mxu0
  %3800 = vmatprep.mubr.bf16.mxu0 %v2216
  %3801 = vmatmul.mubr.bf16.gmra.mrb[0].mxu0 %v2120
  %v3802 = vpop.f32.mrb[0].mxu0
  %v3803 = vadd.f32 %v3514, %v3802
  %v3804 = vpop.f32.mrb[0].mxu0
  %v3805 = vpop.f32.mrb[0].mxu0
  %v3806 = vadd.f32 %v3517, %v3805
  %v3807 = vpop.f32.mrb[0].mxu0
  %3808 = vmatprep.mubr.bf16.mxu0 %v2217
  %3809 = vmatmul.mubr.bf16.gmra.mrb[0].mxu0 %v2121
  %v3810 = vpop.f32.mrb[0].mxu0
  %v3811 = vadd.f32 %v3522, %v3810
  %v3812 = vpop.f32.mrb[0].mxu0
  %v3813 = vpop.f32.mrb[0].mxu0
  %v3814 = vadd.f32 %v3525, %v3813
  %v3815 = vpop.f32.mrb[0].mxu0
  %3816 = vmatprep.mubr.bf16.mxu0 %v2218
  %3817 = vmatmul.mubr.bf16.gmra.mrb[0].mxu0 %v2122
  %v3818 = vpop.f32.mrb[0].mxu0
  %v3819 = vadd.f32 %v3530, %v3818
  %v3820 = vpop.f32.mrb[0].mxu0
  %v3821 = vpop.f32.mrb[0].mxu0
  %v3822 = vadd.f32 %v3533, %v3821
  %v3823 = vpop.f32.mrb[0].mxu0
  %3824 = vmatprep.mubr.bf16.mxu0 %v2219
  %3825 = vmatmul.mubr.bf16.gmra.mrb[0].mxu0 %v2123
  %v3826 = vpop.f32.mrb[0].mxu0
  %v3827 = vadd.f32 %v3538, %v3826
  %v3828 = vpop.f32.mrb[0].mxu0
  %v3829 = vpop.f32.mrb[0].mxu0
  %v3830 = vadd.f32 %v3541, %v3829
  %v3831 = vpop.f32.mrb[0].mxu0
  %3832 = vmatprep.mubr.bf16.mxu0 %v2220
  %3833 = vmatmul.mubr.bf16.gmra.mrb[0].mxu0 %v2124
  %v3834 = vpop.f32.mrb[0].mxu0
  %v3835 = vadd.f32 %v3546, %v3834
  %v3836 = vpop.f32.mrb[0].mxu0
  %v3837 = vpop.f32.mrb[0].mxu0
  %v3838 = vadd.f32 %v3549, %v3837
  %v3839 = vpop.f32.mrb[0].mxu0
  %3840 = vmatprep.mubr.bf16.mxu0 %v2221
  %3841 = vmatmul.mubr.bf16.gmra.mrb[0].mxu0 %v2125
  %v3842 = vpop.f32.mrb[0].mxu0
  %v3843 = vadd.f32 %v3554, %v3842
  %v3844 = vpop.f32.mrb[0].mxu0
  %v3845 = vpop.f32.mrb[0].mxu0
  %v3846 = vadd.f32 %v3557, %v3845
  %v3847 = vpop.f32.mrb[0].mxu0
  %3848 = vmatprep.mubr.bf16.mxu0 %v2222
  %3849 = vmatmul.mubr.bf16.gmra.mrb[0].mxu0 %v2126
  %v3850 = vpop.f32.mrb[0].mxu0
  %v3851 = vadd.f32 %v3562, %v3850
  %v3852 = vpop.f32.mrb[0].mxu0
  %v3853 = vpop.f32.mrb[0].mxu0
  %v3854 = vadd.f32 %v3565, %v3853
  %v3855 = vpop.f32.mrb[0].mxu0
  %3856 = vmatprep.mubr.bf16.mxu0 %v2223
  %3857 = vmatmul.mubr.bf16.gmra.mrb[0].mxu0 %v2127
  %v3858 = vpop.f32.mrb[0].mxu0
  %v3859 = vadd.f32 %v3570, %v3858
  %v3860 = vpop.f32.mrb[0].mxu0
  %v3861 = vpop.f32.mrb[0].mxu0
  %v3862 = vadd.f32 %v3573, %v3861
  %v3863 = vpop.f32.mrb[0].mxu0
  %3864 = vmatprep.mubr.bf16.mxu0 %v2224
  %3865 = vmatmul.mubr.bf16.gmra.mrb[0].mxu0 %v2128
  %v3866 = vpop.f32.mrb[0].mxu0
  %v3867 = vadd.f32 %v3578, %v3866
  %v3868 = vpop.f32.mrb[0].mxu0
  %v3869 = vpop.f32.mrb[0].mxu0
  %v3870 = vadd.f32 %v3581, %v3869
  %v3871 = vpop.f32.mrb[0].mxu0
  %3872 = vmatprep.mubr.bf16.mxu0 %v2225
  %3873 = vmatmul.mubr.bf16.gmra.mrb[0].mxu0 %v2129
  %v3874 = vpop.f32.mrb[0].mxu0
  %v3875 = vadd.f32 %v3586, %v3874
  %v3876 = vpop.f32.mrb[0].mxu0
  %v3877 = vpop.f32.mrb[0].mxu0
  %v3878 = vadd.f32 %v3589, %v3877
  %v3879 = vpop.f32.mrb[0].mxu0
  %3880 = vmatprep.mubr.bf16.mxu0 %v2226
  %3881 = vmatmul.mubr.bf16.gmra.mrb[0].mxu0 %v2130
  %v3882 = vpop.f32.mrb[0].mxu0
  %v3883 = vadd.f32 %v3594, %v3882
  %v3884 = vpop.f32.mrb[0].mxu0
  %v3885 = vpop.f32.mrb[0].mxu0
  %v3886 = vadd.f32 %v3597, %v3885
  %v3887 = vpop.f32.mrb[0].mxu0
  %3888 = vmatprep.mubr.bf16.mxu0 %v2227
  %3889 = vmatmul.mubr.bf16.gmra.mrb[0].mxu0 %v2131
  %v3890 = vpop.f32.mrb[0].mxu0
  %v3891 = vadd.f32 %v3602, %v3890
  %v3892 = vpop.f32.mrb[0].mxu0
  %v3893 = vpop.f32.mrb[0].mxu0
  %v3894 = vadd.f32 %v3605, %v3893
  %v3895 = vpop.f32.mrb[0].mxu0
  %3896 = vmatprep.mubr.bf16.mxu0 %v2228
  %3897 = vmatmul.mubr.bf16.gmra.mrb[0].mxu0 %v2132
  %v3898 = vpop.f32.mrb[0].mxu0
  %v3899 = vadd.f32 %v3610, %v3898
  %v3900 = vpop.f32.mrb[0].mxu0
  %v3901 = vpop.f32.mrb[0].mxu0
  %v3902 = vadd.f32 %v3613, %v3901
  %v3903 = vpop.f32.mrb[0].mxu0
  %3904 = vmatprep.mubr.bf16.mxu0 %v2229
  %3905 = vmatmul.mubr.bf16.gmra.mrb[0].mxu0 %v2133
  %v3906 = vpop.f32.mrb[0].mxu0
  %v3907 = vadd.f32 %v3618, %v3906
  %v3908 = vpop.f32.mrb[0].mxu0
  %v3909 = vpop.f32.mrb[0].mxu0
  %v3910 = vadd.f32 %v3621, %v3909
  %v3911 = vpop.f32.mrb[0].mxu0
  %3912 = vmatprep.mubr.bf16.mxu0 %v2230
  %3913 = vmatmul.mubr.bf16.gmra.mrb[0].mxu0 %v2134
  %v3914 = vpop.f32.mrb[0].mxu0
  %v3915 = vadd.f32 %v3626, %v3914
  %v3916 = vpop.f32.mrb[0].mxu0
  %v3917 = vpop.f32.mrb[0].mxu0
  %v3918 = vadd.f32 %v3629, %v3917
  %v3919 = vpop.f32.mrb[0].mxu0
  %3920 = vmatprep.mubr.bf16.mxu0 %v2231
  %3921 = vmatmul.mubr.bf16.gmra.mrb[0].mxu0 %v2135
  %v3922 = vpop.f32.mrb[0].mxu0
  %v3923 = vadd.f32 %v3634, %v3922
  %v3924 = vpop.f32.mrb[0].mxu0
  %v3925 = vpop.f32.mrb[0].mxu0
  %v3926 = vadd.f32 %v3637, %v3925
  %v3927 = vpop.f32.mrb[0].mxu0
  %3928 = vmatprep.mubr.bf16.mxu0 %v2232
  %3929 = vmatmul.mubr.bf16.gmra.mrb[0].mxu0 %v2136
  %v3930 = vpop.f32.mrb[0].mxu0
  %v3931 = vadd.f32 %v3642, %v3930
  %v3932 = vpop.f32.mrb[0].mxu0
  %v3933 = vpop.f32.mrb[0].mxu0
  %v3934 = vadd.f32 %v3645, %v3933
  %v3935 = vpop.f32.mrb[0].mxu0
  %3936 = vmatprep.mubr.bf16.mxu0 %v2233
  %3937 = vmatmul.mubr.bf16.gmra.mrb[0].mxu0 %v2137
  %v3938 = vpop.f32.mrb[0].mxu0
  %v3939 = vadd.f32 %v3650, %v3938
  %v3940 = vpop.f32.mrb[0].mxu0
  %v3941 = vpop.f32.mrb[0].mxu0
  %v3942 = vadd.f32 %v3653, %v3941
  %v3943 = vpop.f32.mrb[0].mxu0
  %3944 = vmatprep.mubr.bf16.mxu0 %v2234
  %3945 = vmatmul.mubr.bf16.gmra.mrb[0].mxu0 %v2138
  %v3946 = vpop.f32.mrb[0].mxu0
  %v3947 = vadd.f32 %v3658, %v3946
  %v3948 = vpop.f32.mrb[0].mxu0
  %v3949 = vpop.f32.mrb[0].mxu0
  %v3950 = vadd.f32 %v3661, %v3949
  %v3951 = vpop.f32.mrb[0].mxu0
  %3952 = vmatprep.mubr.bf16.mxu0 %v2235
  %3953 = vmatmul.mubr.bf16.gmra.mrb[0].mxu0 %v2139
  %v3954 = vpop.f32.mrb[0].mxu0
  %v3955 = vadd.f32 %v3666, %v3954
  %v3956 = vpop.f32.mrb[0].mxu0
  %v3957 = vpop.f32.mrb[0].mxu0
  %v3958 = vadd.f32 %v3669, %v3957
  %v3959 = vpop.f32.mrb[0].mxu0
  %3960 = vmatprep.mubr.bf16.mxu0 %v2236
  %3961 = vmatmul.mubr.bf16.gmra.mrb[0].mxu0 %v2140
  %v3962 = vpop.f32.mrb[0].mxu0
  %v3963 = vadd.f32 %v3674, %v3962
  %v3964 = vpop.f32.mrb[0].mxu0
  %v3965 = vpop.f32.mrb[0].mxu0
  %v3966 = vadd.f32 %v3677, %v3965
  %v3967 = vpop.f32.mrb[0].mxu0
  %3968 = vdwg.mxu0
  %3969 = vmatprep.subr.bf16.mxu0 0
  %3970 = vmatpush1.bf16.msra.mxu0 %v3006
  %3971 = vmatprep.subr.bf16.mxu0 0
  %3972 = vmatpush1.bf16.msra.mxu0 %v3007
  %3973 = vmatprep.subr.bf16.mxu0 0
  %3974 = vmatpush1.bf16.msra.mxu0 %v3008
  %3975 = vmatprep.subr.bf16.mxu0 0
  %3976 = vmatpush1.bf16.msra.mxu0 %v3009
  %3977 = vmatprep.subr.bf16.mxu0 0
  %3978 = vmatpush1.bf16.msra.mxu0 %v3010
  %3979 = vmatprep.subr.bf16.mxu0 0
  %3980 = vmatpush1.bf16.msra.mxu0 %v3011
  %3981 = vmatprep.subr.bf16.mxu0 0
  %3982 = vmatpush1.bf16.msra.mxu0 %v3012
  %3983 = vmatprep.subr.bf16.mxu0 0
  %3984 = vmatpush1.bf16.msra.mxu0 %v3013
  %3985 = vmatprep.subr.bf16.mxu0 0
  %3986 = vmatpush1.bf16.msra.mxu0 %v3014
  %3987 = vmatprep.subr.bf16.mxu0 0
  %3988 = vmatpush1.bf16.msra.mxu0 %v3015
  %3989 = vmatprep.subr.bf16.mxu0 0
  %3990 = vmatpush1.bf16.msra.mxu0 %v3016
  %3991 = vmatprep.subr.bf16.mxu0 0
  %3992 = vmatpush1.bf16.msra.mxu0 %v3017
  %3993 = vmatprep.subr.bf16.mxu0 0
  %3994 = vmatpush1.bf16.msra.mxu0 %v3018
  %3995 = vmatprep.subr.bf16.mxu0 0
  %3996 = vmatpush1.bf16.msra.mxu0 %v3019
  %3997 = vmatprep.subr.bf16.mxu0 0
  %3998 = vmatpush1.bf16.msra.mxu0 %v3020
  %3999 = vmatprep.subr.bf16.mxu0 0
  %4000 = vmatpush1.bf16.msra.mxu0 %v3021
  %4001 = vmatprep.mubr.bf16.mxu0 %v2398
  %4002 = vmatmul.mubr.bf16.gmra.mrb[0].mxu0 %v2302
  %v4003 = vpop.f32.mrb[0].mxu0
  %v4004 = vadd.f32 %v3715, %v4003
  %v4005 = vpop.f32.mrb[0].mxu0
  %v4006 = vpop.f32.mrb[0].mxu0
  %v4007 = vadd.f32 %v3718, %v4006
  %v4008 = vpop.f32.mrb[0].mxu0
  %4009 = vmatprep.mubr.bf16.mxu0 %v2399
  %4010 = vmatmul.mubr.bf16.gmra.mrb[0].mxu0 %v2303
  %v4011 = vpop.f32.mrb[0].mxu0
  %v4012 = vadd.f32 %v3723, %v4011
  %v4013 = vpop.f32.mrb[0].mxu0
  %v4014 = vpop.f32.mrb[0].mxu0
  %v4015 = vadd.f32 %v3726, %v4014
  %v4016 = vpop.f32.mrb[0].mxu0
  %4017 = vmatprep.mubr.bf16.mxu0 %v2400
  %4018 = vmatmul.mubr.bf16.gmra.mrb[0].mxu0 %v2304
  %v4019 = vpop.f32.mrb[0].mxu0
  %v4020 = vadd.f32 %v3731, %v4019
  %v4021 = vpop.f32.mrb[0].mxu0
  %v4022 = vpop.f32.mrb[0].mxu0
  %v4023 = vadd.f32 %v3734, %v4022
  %v4024 = vpop.f32.mrb[0].mxu0
  %4025 = vmatprep.mubr.bf16.mxu0 %v2401
  %4026 = vmatmul.mubr.bf16.gmra.mrb[0].mxu0 %v2305
  %v4027 = vpop.f32.mrb[0].mxu0
  %v4028 = vadd.f32 %v3739, %v4027
  %v4029 = vpop.f32.mrb[0].mxu0
  %v4030 = vpop.f32.mrb[0].mxu0
  %v4031 = vadd.f32 %v3742, %v4030
  %v4032 = vpop.f32.mrb[0].mxu0
  %4033 = vmatprep.mubr.bf16.mxu0 %v2402
  %4034 = vmatmul.mubr.bf16.gmra.mrb[0].mxu0 %v2306
  %v4035 = vpop.f32.mrb[0].mxu0
  %v4036 = vadd.f32 %v3747, %v4035
  %v4037 = vpop.f32.mrb[0].mxu0
  %v4038 = vpop.f32.mrb[0].mxu0
  %v4039 = vadd.f32 %v3750, %v4038
  %v4040 = vpop.f32.mrb[0].mxu0
  %4041 = vmatprep.mubr.bf16.mxu0 %v2403
  %4042 = vmatmul.mubr.bf16.gmra.mrb[0].mxu0 %v2307
  %v4043 = vpop.f32.mrb[0].mxu0
  %v4044 = vadd.f32 %v3755, %v4043
  %v4045 = vpop.f32.mrb[0].mxu0
  %v4046 = vpop.f32.mrb[0].mxu0
  %v4047 = vadd.f32 %v3758, %v4046
  %v4048 = vpop.f32.mrb[0].mxu0
  %4049 = vmatprep.mubr.bf16.mxu0 %v2404
  %4050 = vmatmul.mubr.bf16.gmra.mrb[0].mxu0 %v2308
  %v4051 = vpop.f32.mrb[0].mxu0
  %v4052 = vadd.f32 %v3763, %v4051
  %v4053 = vpop.f32.mrb[0].mxu0
  %v4054 = vpop.f32.mrb[0].mxu0
  %v4055 = vadd.f32 %v3766, %v4054
  %v4056 = vpop.f32.mrb[0].mxu0
  %4057 = vmatprep.mubr.bf16.mxu0 %v2405
  %4058 = vmatmul.mubr.bf16.gmra.mrb[0].mxu0 %v2309
  %v4059 = vpop.f32.mrb[0].mxu0
  %v4060 = vadd.f32 %v3771, %v4059
  %v4061 = vpop.f32.mrb[0].mxu0
  %v4062 = vpop.f32.mrb[0].mxu0
  %v4063 = vadd.f32 %v3774, %v4062
  %v4064 = vpop.f32.mrb[0].mxu0
  %4065 = vmatprep.mubr.bf16.mxu0 %v2406
  %4066 = vmatmul.mubr.bf16.gmra.mrb[0].mxu0 %v2310
  %v4067 = vpop.f32.mrb[0].mxu0
  %v4068 = vadd.f32 %v3779, %v4067
  %v4069 = vpop.f32.mrb[0].mxu0
  %v4070 = vpop.f32.mrb[0].mxu0
  %v4071 = vadd.f32 %v3782, %v4070
  %v4072 = vpop.f32.mrb[0].mxu0
  %4073 = vmatprep.mubr.bf16.mxu0 %v2407
  %4074 = vmatmul.mubr.bf16.gmra.mrb[0].mxu0 %v2311
  %v4075 = vpop.f32.mrb[0].mxu0
  %v4076 = vadd.f32 %v3787, %v4075
  %v4077 = vpop.f32.mrb[0].mxu0
  %v4078 = vpop.f32.mrb[0].mxu0
  %v4079 = vadd.f32 %v3790, %v4078
  %v4080 = vpop.f32.mrb[0].mxu0
  %4081 = vmatprep.mubr.bf16.mxu0 %v2408
  %4082 = vmatmul.mubr.bf16.gmra.mrb[0].mxu0 %v2312
  %v4083 = vpop.f32.mrb[0].mxu0
  %v4084 = vadd.f32 %v3795, %v4083
  %v4085 = vpop.f32.mrb[0].mxu0
  %v4086 = vpop.f32.mrb[0].mxu0
  %v4087 = vadd.f32 %v3798, %v4086
  %v4088 = vpop.f32.mrb[0].mxu0
  %4089 = vmatprep.mubr.bf16.mxu0 %v2409
  %4090 = vmatmul.mubr.bf16.gmra.mrb[0].mxu0 %v2313
  %v4091 = vpop.f32.mrb[0].mxu0
  %v4092 = vadd.f32 %v3803, %v4091
  %v4093 = vpop.f32.mrb[0].mxu0
  %v4094 = vpop.f32.mrb[0].mxu0
  %v4095 = vadd.f32 %v3806, %v4094
  %v4096 = vpop.f32.mrb[0].mxu0
  %4097 = vmatprep.mubr.bf16.mxu0 %v2410
  %4098 = vmatmul.mubr.bf16.gmra.mrb[0].mxu0 %v2314
  %v4099 = vpop.f32.mrb[0].mxu0
  %v4100 = vadd.f32 %v3811, %v4099
  %v4101 = vpop.f32.mrb[0].mxu0
  %v4102 = vpop.f32.mrb[0].mxu0
  %v4103 = vadd.f32 %v3814, %v4102
  %v4104 = vpop.f32.mrb[0].mxu0
  %4105 = vmatprep.mubr.bf16.mxu0 %v2411
  %4106 = vmatmul.mubr.bf16.gmra.mrb[0].mxu0 %v2315
  %v4107 = vpop.f32.mrb[0].mxu0
  %v4108 = vadd.f32 %v3819, %v4107
  %v4109 = vpop.f32.mrb[0].mxu0
  %v4110 = vpop.f32.mrb[0].mxu0
  %v4111 = vadd.f32 %v3822, %v4110
  %v4112 = vpop.f32.mrb[0].mxu0
  %4113 = vmatprep.mubr.bf16.mxu0 %v2412
  %4114 = vmatmul.mubr.bf16.gmra.mrb[0].mxu0 %v2316
  %v4115 = vpop.f32.mrb[0].mxu0
  %v4116 = vadd.f32 %v3827, %v4115
  %v4117 = vpop.f32.mrb[0].mxu0
  %v4118 = vpop.f32.mrb[0].mxu0
  %v4119 = vadd.f32 %v3830, %v4118
  %v4120 = vpop.f32.mrb[0].mxu0
  %4121 = vmatprep.mubr.bf16.mxu0 %v2413
  %4122 = vmatmul.mubr.bf16.gmra.mrb[0].mxu0 %v2317
  %v4123 = vpop.f32.mrb[0].mxu0
  %v4124 = vadd.f32 %v3835, %v4123
  %v4125 = vpop.f32.mrb[0].mxu0
  %v4126 = vpop.f32.mrb[0].mxu0
  %v4127 = vadd.f32 %v3838, %v4126
  %v4128 = vpop.f32.mrb[0].mxu0
  %4129 = vmatprep.mubr.bf16.mxu0 %v2414
  %4130 = vmatmul.mubr.bf16.gmra.mrb[0].mxu0 %v2318
  %v4131 = vpop.f32.mrb[0].mxu0
  %v4132 = vadd.f32 %v3843, %v4131
  %v4133 = vpop.f32.mrb[0].mxu0
  %v4134 = vpop.f32.mrb[0].mxu0
  %v4135 = vadd.f32 %v3846, %v4134
  %v4136 = vpop.f32.mrb[0].mxu0
  %4137 = vmatprep.mubr.bf16.mxu0 %v2415
  %4138 = vmatmul.mubr.bf16.gmra.mrb[0].mxu0 %v2319
  %v4139 = vpop.f32.mrb[0].mxu0
  %v4140 = vadd.f32 %v3851, %v4139
  %v4141 = vpop.f32.mrb[0].mxu0
  %v4142 = vpop.f32.mrb[0].mxu0
  %v4143 = vadd.f32 %v3854, %v4142
  %v4144 = vpop.f32.mrb[0].mxu0
  %4145 = vmatprep.mubr.bf16.mxu0 %v2416
  %4146 = vmatmul.mubr.bf16.gmra.mrb[0].mxu0 %v2320
  %v4147 = vpop.f32.mrb[0].mxu0
  %v4148 = vadd.f32 %v3859, %v4147
  %v4149 = vpop.f32.mrb[0].mxu0
  %v4150 = vpop.f32.mrb[0].mxu0
  %v4151 = vadd.f32 %v3862, %v4150
  %v4152 = vpop.f32.mrb[0].mxu0
  %4153 = vmatprep.mubr.bf16.mxu0 %v2417
  %4154 = vmatmul.mubr.bf16.gmra.mrb[0].mxu0 %v2321
  %v4155 = vpop.f32.mrb[0].mxu0
  %v4156 = vadd.f32 %v3867, %v4155
  %v4157 = vpop.f32.mrb[0].mxu0
  %v4158 = vpop.f32.mrb[0].mxu0
  %v4159 = vadd.f32 %v3870, %v4158
  %v4160 = vpop.f32.mrb[0].mxu0
  %4161 = vmatprep.mubr.bf16.mxu0 %v2418
  %4162 = vmatmul.mubr.bf16.gmra.mrb[0].mxu0 %v2322
  %v4163 = vpop.f32.mrb[0].mxu0
  %v4164 = vadd.f32 %v3875, %v4163
  %v4165 = vpop.f32.mrb[0].mxu0
  %v4166 = vpop.f32.mrb[0].mxu0
  %v4167 = vadd.f32 %v3878, %v4166
  %v4168 = vpop.f32.mrb[0].mxu0
  %4169 = vmatprep.mubr.bf16.mxu0 %v2419
  %4170 = vmatmul.mubr.bf16.gmra.mrb[0].mxu0 %v2323
  %v4171 = vpop.f32.mrb[0].mxu0
  %v4172 = vadd.f32 %v3883, %v4171
  %v4173 = vpop.f32.mrb[0].mxu0
  %v4174 = vpop.f32.mrb[0].mxu0
  %v4175 = vadd.f32 %v3886, %v4174
  %v4176 = vpop.f32.mrb[0].mxu0
  %4177 = vmatprep.mubr.bf16.mxu0 %v2420
  %4178 = vmatmul.mubr.bf16.gmra.mrb[0].mxu0 %v2324
  %v4179 = vpop.f32.mrb[0].mxu0
  %v4180 = vadd.f32 %v3891, %v4179
  %v4181 = vpop.f32.mrb[0].mxu0
  %v4182 = vpop.f32.mrb[0].mxu0
  %v4183 = vadd.f32 %v3894, %v4182
  %v4184 = vpop.f32.mrb[0].mxu0
  %4185 = vmatprep.mubr.bf16.mxu0 %v2421
  %4186 = vmatmul.mubr.bf16.gmra.mrb[0].mxu0 %v2325
  %v4187 = vpop.f32.mrb[0].mxu0
  %v4188 = vadd.f32 %v3899, %v4187
  %v4189 = vpop.f32.mrb[0].mxu0
  %v4190 = vpop.f32.mrb[0].mxu0
  %v4191 = vadd.f32 %v3902, %v4190
  %v4192 = vpop.f32.mrb[0].mxu0
  %4193 = vmatprep.mubr.bf16.mxu0 %v2422
  %4194 = vmatmul.mubr.bf16.gmra.mrb[0].mxu0 %v2326
  %v4195 = vpop.f32.mrb[0].mxu0
  %v4196 = vadd.f32 %v3907, %v4195
  %v4197 = vpop.f32.mrb[0].mxu0
  %v4198 = vpop.f32.mrb[0].mxu0
  %v4199 = vadd.f32 %v3910, %v4198
  %v4200 = vpop.f32.mrb[0].mxu0
  %4201 = vmatprep.mubr.bf16.mxu0 %v2423
  %4202 = vmatmul.mubr.bf16.gmra.mrb[0].mxu0 %v2327
  %v4203 = vpop.f32.mrb[0].mxu0
  %v4204 = vadd.f32 %v3915, %v4203
  %v4205 = vpop.f32.mrb[0].mxu0
  %v4206 = vpop.f32.mrb[0].mxu0
  %v4207 = vadd.f32 %v3918, %v4206
  %v4208 = vpop.f32.mrb[0].mxu0
  %4209 = vmatprep.mubr.bf16.mxu0 %v2424
  %4210 = vmatmul.mubr.bf16.gmra.mrb[0].mxu0 %v2328
  %v4211 = vpop.f32.mrb[0].mxu0
  %v4212 = vadd.f32 %v3923, %v4211
  %v4213 = vpop.f32.mrb[0].mxu0
  %v4214 = vpop.f32.mrb[0].mxu0
  %v4215 = vadd.f32 %v3926, %v4214
  %v4216 = vpop.f32.mrb[0].mxu0
  %4217 = vmatprep.mubr.bf16.mxu0 %v2425
  %4218 = vmatmul.mubr.bf16.gmra.mrb[0].mxu0 %v2329
  %v4219 = vpop.f32.mrb[0].mxu0
  %v4220 = vadd.f32 %v3931, %v4219
  %v4221 = vpop.f32.mrb[0].mxu0
  %v4222 = vpop.f32.mrb[0].mxu0
  %v4223 = vadd.f32 %v3934, %v4222
  %v4224 = vpop.f32.mrb[0].mxu0
  %4225 = vmatprep.mubr.bf16.mxu0 %v2426
  %4226 = vmatmul.mubr.bf16.gmra.mrb[0].mxu0 %v2330
  %v4227 = vpop.f32.mrb[0].mxu0
  %v4228 = vadd.f32 %v3939, %v4227
  %v4229 = vpop.f32.mrb[0].mxu0
  %v4230 = vpop.f32.mrb[0].mxu0
  %v4231 = vadd.f32 %v3942, %v4230
  %v4232 = vpop.f32.mrb[0].mxu0
  %4233 = vmatprep.mubr.bf16.mxu0 %v2427
  %4234 = vmatmul.mubr.bf16.gmra.mrb[0].mxu0 %v2331
  %v4235 = vpop.f32.mrb[0].mxu0
  %v4236 = vadd.f32 %v3947, %v4235
  %v4237 = vpop.f32.mrb[0].mxu0
  %v4238 = vpop.f32.mrb[0].mxu0
  %v4239 = vadd.f32 %v3950, %v4238
  %v4240 = vpop.f32.mrb[0].mxu0
  %4241 = vmatprep.mubr.bf16.mxu0 %v2428
  %4242 = vmatmul.mubr.bf16.gmra.mrb[0].mxu0 %v2332
  %v4243 = vpop.f32.mrb[0].mxu0
  %v4244 = vadd.f32 %v3955, %v4243
  %v4245 = vpop.f32.mrb[0].mxu0
  %v4246 = vpop.f32.mrb[0].mxu0
  %v4247 = vadd.f32 %v3958, %v4246
  %v4248 = vpop.f32.mrb[0].mxu0
  %4249 = vmatprep.mubr.bf16.mxu0 %v2429
  %4250 = vmatmul.mubr.bf16.gmra.mrb[0].mxu0 %v2333
  %v4251 = vpop.f32.mrb[0].mxu0
  %v4252 = vadd.f32 %v3963, %v4251
  %v4253 = vpop.f32.mrb[0].mxu0
  %v4254 = vpop.f32.mrb[0].mxu0
  %v4255 = vadd.f32 %v3966, %v4254
  %v4256 = vpop.f32.mrb[0].mxu0
  %4257 = vdwg.mxu0
  %4258 = vmatprep.subr.bf16.mxu0 0
  %4259 = vmatpush1.bf16.msra.mxu0 %v3022
  %4260 = vmatprep.subr.bf16.mxu0 0
  %4261 = vmatpush1.bf16.msra.mxu0 %v3023
  %4262 = vmatprep.subr.bf16.mxu0 0
  %4263 = vmatpush1.bf16.msra.mxu0 %v3024
  %4264 = vmatprep.subr.bf16.mxu0 0
  %4265 = vmatpush1.bf16.msra.mxu0 %v3025
  %4266 = vmatprep.subr.bf16.mxu0 0
  %4267 = vmatpush1.bf16.msra.mxu0 %v3026
  %4268 = vmatprep.subr.bf16.mxu0 0
  %4269 = vmatpush1.bf16.msra.mxu0 %v3027
  %4270 = vmatprep.subr.bf16.mxu0 0
  %4271 = vmatpush1.bf16.msra.mxu0 %v3028
  %4272 = vmatprep.subr.bf16.mxu0 0
  %4273 = vmatpush1.bf16.msra.mxu0 %v3029
  %4274 = vmatprep.subr.bf16.mxu0 0
  %4275 = vmatpush1.bf16.msra.mxu0 0
  %4276 = vmatprep.subr.bf16.mxu0 0
  %4277 = vmatpush1.bf16.msra.mxu0 0
  %4278 = vmatprep.subr.bf16.mxu0 0
  %4279 = vmatpush1.bf16.msra.mxu0 0
  %4280 = vmatprep.subr.bf16.mxu0 0
  %4281 = vmatpush1.bf16.msra.mxu0 0
  %4282 = vmatprep.subr.bf16.mxu0 0
  %4283 = vmatpush1.bf16.msra.mxu0 0
  %4284 = vmatprep.subr.bf16.mxu0 0
  %4285 = vmatpush1.bf16.msra.mxu0 0
  %4286 = vmatprep.subr.bf16.mxu0 0
  %4287 = vmatpush1.bf16.msra.mxu0 0
  %4288 = vmatprep.subr.bf16.mxu0 0
  %4289 = vmatpush1.bf16.msra.mxu0 0
  %4290 = vmatprep.mubr.bf16.mxu0 0
  %4291 = vmatmul.mubr.bf16.gmra.mrb[0].mxu0 %v2494
  %v4292 = vpop.f32.mrb[0].mxu0
  %v4293 = vadd.f32 %v4004, %v4292
  %v4294 = vpop.f32.mrb[0].mxu0
  %v4295 = vpop.f32.mrb[0].mxu0
  %v4296 = vadd.f32 %v4007, %v4295
  %v4297 = vpop.f32.mrb[0].mxu0
  %4298 = vmatprep.mubr.bf16.mxu0 0
  %4299 = vmatmul.mubr.bf16.gmra.mrb[0].mxu0 %v2495
  %v4300 = vpop.f32.mrb[0].mxu0
  %v4301 = vadd.f32 %v4012, %v4300
  %v4302 = vpop.f32.mrb[0].mxu0
  %v4303 = vpop.f32.mrb[0].mxu0
  %v4304 = vadd.f32 %v4015, %v4303
  %v4305 = vpop.f32.mrb[0].mxu0
  %4306 = vmatprep.mubr.bf16.mxu0 0
  %4307 = vmatmul.mubr.bf16.gmra.mrb[0].mxu0 %v2496
  %v4308 = vpop.f32.mrb[0].mxu0
  %v4309 = vadd.f32 %v4020, %v4308
  %v4310 = vpop.f32.mrb[0].mxu0
  %v4311 = vpop.f32.mrb[0].mxu0
  %v4312 = vadd.f32 %v4023, %v4311
  %v4313 = vpop.f32.mrb[0].mxu0
  %4314 = vmatprep.mubr.bf16.mxu0 0
  %4315 = vmatmul.mubr.bf16.gmra.mrb[0].mxu0 %v2497
  %v4316 = vpop.f32.mrb[0].mxu0
  %v4317 = vadd.f32 %v4028, %v4316
  %v4318 = vpop.f32.mrb[0].mxu0
  %v4319 = vpop.f32.mrb[0].mxu0
  %v4320 = vadd.f32 %v4031, %v4319
  %v4321 = vpop.f32.mrb[0].mxu0
  %4322 = vmatprep.mubr.bf16.mxu0 0
  %4323 = vmatmul.mubr.bf16.gmra.mrb[0].mxu0 %v2498
  %v4324 = vpop.f32.mrb[0].mxu0
  %v4325 = vadd.f32 %v4036, %v4324
  %v4326 = vpop.f32.mrb[0].mxu0
  %v4327 = vpop.f32.mrb[0].mxu0
  %v4328 = vadd.f32 %v4039, %v4327
  %v4329 = vpop.f32.mrb[0].mxu0
  %4330 = vmatprep.mubr.bf16.mxu0 0
  %4331 = vmatmul.mubr.bf16.gmra.mrb[0].mxu0 %v2499
  %v4332 = vpop.f32.mrb[0].mxu0
  %v4333 = vadd.f32 %v4044, %v4332
  %v4334 = vpop.f32.mrb[0].mxu0
  %v4335 = vpop.f32.mrb[0].mxu0
  %v4336 = vadd.f32 %v4047, %v4335
  %v4337 = vpop.f32.mrb[0].mxu0
  %4338 = vmatprep.mubr.bf16.mxu0 0
  %4339 = vmatmul.mubr.bf16.gmra.mrb[0].mxu0 %v2500
  %v4340 = vpop.f32.mrb[0].mxu0
  %v4341 = vadd.f32 %v4052, %v4340
  %v4342 = vpop.f32.mrb[0].mxu0
  %v4343 = vpop.f32.mrb[0].mxu0
  %v4344 = vadd.f32 %v4055, %v4343
  %v4345 = vpop.f32.mrb[0].mxu0
  %4346 = vmatprep.mubr.bf16.mxu0 0
  %4347 = vmatmul.mubr.bf16.gmra.mrb[0].mxu0 %v2501
  %v4348 = vpop.f32.mrb[0].mxu0
  %v4349 = vadd.f32 %v4060, %v4348
  %v4350 = vpop.f32.mrb[0].mxu0
  %v4351 = vpop.f32.mrb[0].mxu0
  %v4352 = vadd.f32 %v4063, %v4351
  %v4353 = vpop.f32.mrb[0].mxu0
  %4354 = vmatprep.mubr.bf16.mxu0 0
  %4355 = vmatmul.mubr.bf16.gmra.mrb[0].mxu0 %v2502
  %v4356 = vpop.f32.mrb[0].mxu0
  %v4357 = vadd.f32 %v4068, %v4356
  %v4358 = vpop.f32.mrb[0].mxu0
  %v4359 = vpop.f32.mrb[0].mxu0
  %v4360 = vadd.f32 %v4071, %v4359
  %v4361 = vpop.f32.mrb[0].mxu0
  %4362 = vmatprep.mubr.bf16.mxu0 0
  %4363 = vmatmul.mubr.bf16.gmra.mrb[0].mxu0 %v2503
  %v4364 = vpop.f32.mrb[0].mxu0
  %v4365 = vadd.f32 %v4076, %v4364
  %v4366 = vpop.f32.mrb[0].mxu0
  %v4367 = vpop.f32.mrb[0].mxu0
  %v4368 = vadd.f32 %v4079, %v4367
  %v4369 = vpop.f32.mrb[0].mxu0
  %4370 = vmatprep.mubr.bf16.mxu0 0
  %4371 = vmatmul.mubr.bf16.gmra.mrb[0].mxu0 %v2504
  %v4372 = vpop.f32.mrb[0].mxu0
  %v4373 = vadd.f32 %v4084, %v4372
  %v4374 = vpop.f32.mrb[0].mxu0
  %v4375 = vpop.f32.mrb[0].mxu0
  %v4376 = vadd.f32 %v4087, %v4375
  %v4377 = vpop.f32.mrb[0].mxu0
  %4378 = vmatprep.mubr.bf16.mxu0 0
  %4379 = vmatmul.mubr.bf16.gmra.mrb[0].mxu0 %v2505
  %v4380 = vpop.f32.mrb[0].mxu0
  %v4381 = vadd.f32 %v4092, %v4380
  %v4382 = vpop.f32.mrb[0].mxu0
  %v4383 = vpop.f32.mrb[0].mxu0
  %v4384 = vadd.f32 %v4095, %v4383
  %v4385 = vpop.f32.mrb[0].mxu0
  %4386 = vmatprep.mubr.bf16.mxu0 0
  %4387 = vmatmul.mubr.bf16.gmra.mrb[0].mxu0 %v2506
  %v4388 = vpop.f32.mrb[0].mxu0
  %v4389 = vadd.f32 %v4100, %v4388
  %v4390 = vpop.f32.mrb[0].mxu0
  %v4391 = vpop.f32.mrb[0].mxu0
  %v4392 = vadd.f32 %v4103, %v4391
  %v4393 = vpop.f32.mrb[0].mxu0
  %4394 = vmatprep.mubr.bf16.mxu0 0
  %4395 = vmatmul.mubr.bf16.gmra.mrb[0].mxu0 %v2507
  %v4396 = vpop.f32.mrb[0].mxu0
  %v4397 = vadd.f32 %v4108, %v4396
  %v4398 = vpop.f32.mrb[0].mxu0
  %v4399 = vpop.f32.mrb[0].mxu0
  %v4400 = vadd.f32 %v4111, %v4399
  %v4401 = vpop.f32.mrb[0].mxu0
  %4402 = vmatprep.mubr.bf16.mxu0 0
  %4403 = vmatmul.mubr.bf16.gmra.mrb[0].mxu0 %v2508
  %v4404 = vpop.f32.mrb[0].mxu0
  %v4405 = vadd.f32 %v4116, %v4404
  %v4406 = vpop.f32.mrb[0].mxu0
  %v4407 = vpop.f32.mrb[0].mxu0
  %v4408 = vadd.f32 %v4119, %v4407
  %v4409 = vpop.f32.mrb[0].mxu0
  %4410 = vmatprep.mubr.bf16.mxu0 0
  %4411 = vmatmul.mubr.bf16.gmra.mrb[0].mxu0 %v2509
  %v4412 = vpop.f32.mrb[0].mxu0
  %v4413 = vadd.f32 %v4124, %v4412
  %v4414 = vpop.f32.mrb[0].mxu0
  %v4415 = vpop.f32.mrb[0].mxu0
  %v4416 = vadd.f32 %v4127, %v4415
  %v4417 = vpop.f32.mrb[0].mxu0
  %4418 = vmatprep.mubr.bf16.mxu0 0
  %4419 = vmatmul.mubr.bf16.gmra.mrb[0].mxu0 %v2510
  %v4420 = vpop.f32.mrb[0].mxu0
  %v4421 = vadd.f32 %v4132, %v4420
  %v4422 = vpop.f32.mrb[0].mxu0
  %v4423 = vpop.f32.mrb[0].mxu0
  %v4424 = vadd.f32 %v4135, %v4423
  %v4425 = vpop.f32.mrb[0].mxu0
  %4426 = vmatprep.mubr.bf16.mxu0 0
  %4427 = vmatmul.mubr.bf16.gmra.mrb[0].mxu0 %v2511
  %v4428 = vpop.f32.mrb[0].mxu0
  %v4429 = vadd.f32 %v4140, %v4428
  %v4430 = vpop.f32.mrb[0].mxu0
  %v4431 = vpop.f32.mrb[0].mxu0
  %v4432 = vadd.f32 %v4143, %v4431
  %v4433 = vpop.f32.mrb[0].mxu0
  %4434 = vmatprep.mubr.bf16.mxu0 0
  %4435 = vmatmul.mubr.bf16.gmra.mrb[0].mxu0 %v2512
  %v4436 = vpop.f32.mrb[0].mxu0
  %v4437 = vadd.f32 %v4148, %v4436
  %v4438 = vpop.f32.mrb[0].mxu0
  %v4439 = vpop.f32.mrb[0].mxu0
  %v4440 = vadd.f32 %v4151, %v4439
  %v4441 = vpop.f32.mrb[0].mxu0
  %4442 = vmatprep.mubr.bf16.mxu0 0
  %4443 = vmatmul.mubr.bf16.gmra.mrb[0].mxu0 %v2513
  %v4444 = vpop.f32.mrb[0].mxu0
  %v4445 = vadd.f32 %v4156, %v4444
  %v4446 = vpop.f32.mrb[0].mxu0
  %v4447 = vpop.f32.mrb[0].mxu0
  %v4448 = vadd.f32 %v4159, %v4447
  %v4449 = vpop.f32.mrb[0].mxu0
  %4450 = vmatprep.mubr.bf16.mxu0 0
  %4451 = vmatmul.mubr.bf16.gmra.mrb[0].mxu0 %v2514
  %v4452 = vpop.f32.mrb[0].mxu0
  %v4453 = vadd.f32 %v4164, %v4452
  %v4454 = vpop.f32.mrb[0].mxu0
  %v4455 = vpop.f32.mrb[0].mxu0
  %v4456 = vadd.f32 %v4167, %v4455
  %v4457 = vpop.f32.mrb[0].mxu0
  %4458 = vmatprep.mubr.bf16.mxu0 0
  %4459 = vmatmul.mubr.bf16.gmra.mrb[0].mxu0 %v2515
  %v4460 = vpop.f32.mrb[0].mxu0
  %v4461 = vadd.f32 %v4172, %v4460
  %v4462 = vpop.f32.mrb[0].mxu0
  %v4463 = vpop.f32.mrb[0].mxu0
  %v4464 = vadd.f32 %v4175, %v4463
  %v4465 = vpop.f32.mrb[0].mxu0
  %4466 = vmatprep.mubr.bf16.mxu0 0
  %4467 = vmatmul.mubr.bf16.gmra.mrb[0].mxu0 %v2516
  %v4468 = vpop.f32.mrb[0].mxu0
  %v4469 = vadd.f32 %v4180, %v4468
  %v4470 = vpop.f32.mrb[0].mxu0
  %v4471 = vpop.f32.mrb[0].mxu0
  %v4472 = vadd.f32 %v4183, %v4471
  %v4473 = vpop.f32.mrb[0].mxu0
  %4474 = vmatprep.mubr.bf16.mxu0 0
  %4475 = vmatmul.mubr.bf16.gmra.mrb[0].mxu0 %v2517
  %v4476 = vpop.f32.mrb[0].mxu0
  %v4477 = vadd.f32 %v4188, %v4476
  %v4478 = vpop.f32.mrb[0].mxu0
  %v4479 = vpop.f32.mrb[0].mxu0
  %v4480 = vadd.f32 %v4191, %v4479
  %v4481 = vpop.f32.mrb[0].mxu0
  %4482 = vmatprep.mubr.bf16.mxu0 0
  %4483 = vmatmul.mubr.bf16.gmra.mrb[0].mxu0 %v2518
  %v4484 = vpop.f32.mrb[0].mxu0
  %v4485 = vadd.f32 %v4196, %v4484
  %v4486 = vpop.f32.mrb[0].mxu0
  %v4487 = vpop.f32.mrb[0].mxu0
  %v4488 = vadd.f32 %v4199, %v4487
  %v4489 = vpop.f32.mrb[0].mxu0
  %4490 = vmatprep.mubr.bf16.mxu0 0
  %4491 = vmatmul.mubr.bf16.gmra.mrb[0].mxu0 %v2519
  %v4492 = vpop.f32.mrb[0].mxu0
  %v4493 = vadd.f32 %v4204, %v4492
  %v4494 = vpop.f32.mrb[0].mxu0
  %v4495 = vpop.f32.mrb[0].mxu0
  %v4496 = vadd.f32 %v4207, %v4495
  %v4497 = vpop.f32.mrb[0].mxu0
  %4498 = vmatprep.mubr.bf16.mxu0 0
  %4499 = vmatmul.mubr.bf16.gmra.mrb[0].mxu0 %v2520
  %v4500 = vpop.f32.mrb[0].mxu0
  %v4501 = vadd.f32 %v4212, %v4500
  %v4502 = vpop.f32.mrb[0].mxu0
  %v4503 = vpop.f32.mrb[0].mxu0
  %v4504 = vadd.f32 %v4215, %v4503
  %v4505 = vpop.f32.mrb[0].mxu0
  %4506 = vmatprep.mubr.bf16.mxu0 0
  %4507 = vmatmul.mubr.bf16.gmra.mrb[0].mxu0 %v2521
  %v4508 = vpop.f32.mrb[0].mxu0
  %v4509 = vadd.f32 %v4220, %v4508
  %v4510 = vpop.f32.mrb[0].mxu0
  %v4511 = vpop.f32.mrb[0].mxu0
  %v4512 = vadd.f32 %v4223, %v4511
  %v4513 = vpop.f32.mrb[0].mxu0
  %4514 = vmatprep.mubr.bf16.mxu0 0
  %4515 = vmatmul.mubr.bf16.gmra.mrb[0].mxu0 %v2522
  %v4516 = vpop.f32.mrb[0].mxu0
  %v4517 = vadd.f32 %v4228, %v4516
  %v4518 = vpop.f32.mrb[0].mxu0
  %v4519 = vpop.f32.mrb[0].mxu0
  %v4520 = vadd.f32 %v4231, %v4519
  %v4521 = vpop.f32.mrb[0].mxu0
  %4522 = vmatprep.mubr.bf16.mxu0 0
  %4523 = vmatmul.mubr.bf16.gmra.mrb[0].mxu0 %v2523
  %v4524 = vpop.f32.mrb[0].mxu0
  %v4525 = vadd.f32 %v4236, %v4524
  %v4526 = vpop.f32.mrb[0].mxu0
  %v4527 = vpop.f32.mrb[0].mxu0
  %v4528 = vadd.f32 %v4239, %v4527
  %v4529 = vpop.f32.mrb[0].mxu0
  %4530 = vmatprep.mubr.bf16.mxu0 0
  %4531 = vmatmul.mubr.bf16.gmra.mrb[0].mxu0 %v2524
  %v4532 = vpop.f32.mrb[0].mxu0
  %v4533 = vadd.f32 %v4244, %v4532
  %v4534 = vpop.f32.mrb[0].mxu0
  %v4535 = vpop.f32.mrb[0].mxu0
  %v4536 = vadd.f32 %v4247, %v4535
  %v4537 = vpop.f32.mrb[0].mxu0
  %4538 = vmatprep.mubr.bf16.mxu0 0
  %4539 = vmatmul.mubr.bf16.gmra.mrb[0].mxu0 %v2525
  %v4540 = vpop.f32.mrb[0].mxu0
  %v4541 = vadd.f32 %v4252, %v4540
  %v4542 = vpop.f32.mrb[0].mxu0
  %v4543 = vpop.f32.mrb[0].mxu0
  %v4544 = vadd.f32 %v4255, %v4543
  %v4545 = vpop.f32.mrb[0].mxu0
  %4546 = vdwg.mxu0
  %v4547 = vld [vmem:[%s6] sm:$0x1]
  %v4548 = vld [vmem:[%s7] sm:$0x1]
  %v4549 = vadd.f32 %v4293, %v4296
  %v4550 = vadd.f32 %v4549, %v4301
  %v4551 = vadd.f32 %v4550, %v4304
  %v4552 = vadd.f32 %v4551, %v4309
  %v4553 = vadd.f32 %v4552, %v4312
  %v4554 = vadd.f32 %v4553, %v4317
  %v4555 = vadd.f32 %v4554, %v4320
  %v4556 = vadd.f32 %v4555, %v4325
  %v4557 = vadd.f32 %v4556, %v4328
  %v4558 = vadd.f32 %v4557, %v4333
  %v4559 = vadd.f32 %v4558, %v4336
  %v4560 = vadd.f32 %v4559, %v4341
  %v4561 = vadd.f32 %v4560, %v4344
  %v4562 = vadd.f32 %v4561, %v4349
  %v4563 = vadd.f32 %v4562, %v4352
  %v4564 = vadd.f32 %v4563, %v4357
  %v4565 = vadd.f32 %v4564, %v4360
  %v4566 = vadd.f32 %v4565, %v4365
  %v4567 = vadd.f32 %v4566, %v4368
  %v4568 = vadd.f32 %v4567, %v4373
  %v4569 = vadd.f32 %v4568, %v4376
  %v4570 = vadd.f32 %v4569, %v4381
  %v4571 = vadd.f32 %v4570, %v4384
  %v4572 = vadd.f32 %v4571, %v4389
  %v4573 = vadd.f32 %v4572, %v4392
  %v4574 = vadd.f32 %v4573, %v4397
  %v4575 = vadd.f32 %v4574, %v4400
  %v4576 = vadd.f32 %v4575, %v4405
  %v4577 = vadd.f32 %v4576, %v4408
  %v4578 = vadd.f32 %v4577, %v4413
  %v4579 = vadd.f32 %v4578, %v4416
  %v4580 = vadd.f32 %v4579, %v4421
  %v4581 = vadd.f32 %v4580, %v4424
  %v4582 = vadd.f32 %v4581, %v4429
  %v4583 = vadd.f32 %v4582, %v4432
  %v4584 = vadd.f32 %v4583, %v4437
  %v4585 = vadd.f32 %v4584, %v4440
  %v4586 = vadd.f32 %v4585, %v4445
  %v4587 = vadd.f32 %v4586, %v4448
  %v4588 = vadd.f32 %v4587, %v4453
  %v4589 = vadd.f32 %v4588, %v4456
  %v4590 = vadd.f32 %v4589, %v4461
  %v4591 = vadd.f32 %v4590, %v4464
  %v4592 = vadd.f32 %v4591, %v4469
  %v4593 = vadd.f32 %v4592, %v4472
  %v4594 = vadd.f32 %v4593, %v4477
  %v4595 = vadd.f32 %v4594, %v4480
  %v4596 = vadd.f32 %v4595, %v4485
  %v4597 = vadd.f32 %v4596, %v4488
  %v4598 = vadd.f32 %v4597, %v4493
  %v4599 = vadd.f32 %v4598, %v4496
  %v4600 = vadd.f32 %v4599, %v4501
  %v4601 = vadd.f32 %v4600, %v4504
  %v4602 = vadd.f32 %v4601, %v4509
  %v4603 = vadd.f32 %v4602, %v4512
  %v4604 = vadd.f32 %v4603, %v4517
  %v4605 = vadd.f32 %v4604, %v4520
  %v4606 = vadd.f32 %v4605, %v4525
  %v4607 = vadd.f32 %v4606, %v4528
  %v4608 = vadd.f32 %v4607, %v4533
  %v4609 = vadd.f32 %v4608, %v4536
  %v4610 = vadd.f32 %v4609, %v4541
  %v4611 = vadd.f32 %v4610, %v4544
  %v4612 = vrot.slane %v4611, 4
  %v4613 = vadd.f32 %v4611, %v4612
  %v4614 = vrot.slane %v4613, 2
  %v4615 = vadd.f32 %v4613, %v4614
  %v4616 = vrot.slane %v4615, 1
  %v4617 = vadd.f32 %v4615, %v4616
  %v4618 = vmul.f32 %v4293, %v4293
  %v4619 = vmul.f32 %v4296, %v4296
  %v4620 = vmul.f32 %v4301, %v4301
  %v4621 = vmul.f32 %v4304, %v4304
  %v4622 = vmul.f32 %v4309, %v4309
  %v4623 = vmul.f32 %v4312, %v4312
  %v4624 = vmul.f32 %v4317, %v4317
  %v4625 = vmul.f32 %v4320, %v4320
  %v4626 = vmul.f32 %v4325, %v4325
  %v4627 = vmul.f32 %v4328, %v4328
  %v4628 = vmul.f32 %v4333, %v4333
  %v4629 = vmul.f32 %v4336, %v4336
  %v4630 = vmul.f32 %v4341, %v4341
  %v4631 = vmul.f32 %v4344, %v4344
  %v4632 = vmul.f32 %v4349, %v4349
  %v4633 = vmul.f32 %v4352, %v4352
  %v4634 = vmul.f32 %v4357, %v4357
  %v4635 = vmul.f32 %v4360, %v4360
  %v4636 = vmul.f32 %v4365, %v4365
  %v4637 = vmul.f32 %v4368, %v4368
  %v4638 = vmul.f32 %v4373, %v4373
  %v4639 = vmul.f32 %v4376, %v4376
  %v4640 = vmul.f32 %v4381, %v4381
  %v4641 = vmul.f32 %v4384, %v4384
  %v4642 = vmul.f32 %v4389, %v4389
  %v4643 = vmul.f32 %v4392, %v4392
  %v4644 = vmul.f32 %v4397, %v4397
  %v4645 = vmul.f32 %v4400, %v4400
  %v4646 = vmul.f32 %v4405, %v4405
  %v4647 = vmul.f32 %v4408, %v4408
  %v4648 = vmul.f32 %v4413, %v4413
  %v4649 = vmul.f32 %v4416, %v4416
  %v4650 = vmul.f32 %v4421, %v4421
  %v4651 = vmul.f32 %v4424, %v4424
  %v4652 = vmul.f32 %v4429, %v4429
  %v4653 = vmul.f32 %v4432, %v4432
  %v4654 = vmul.f32 %v4437, %v4437
  %v4655 = vmul.f32 %v4440, %v4440
  %v4656 = vmul.f32 %v4445, %v4445
  %v4657 = vmul.f32 %v4448, %v4448
  %v4658 = vmul.f32 %v4453, %v4453
  %v4659 = vmul.f32 %v4456, %v4456
  %v4660 = vmul.f32 %v4461, %v4461
  %v4661 = vmul.f32 %v4464, %v4464
  %v4662 = vmul.f32 %v4469, %v4469
  %v4663 = vmul.f32 %v4472, %v4472
  %v4664 = vmul.f32 %v4477, %v4477
  %v4665 = vmul.f32 %v4480, %v4480
  %v4666 = vmul.f32 %v4485, %v4485
  %v4667 = vmul.f32 %v4488, %v4488
  %v4668 = vmul.f32 %v4493, %v4493
  %v4669 = vmul.f32 %v4496, %v4496
  %v4670 = vmul.f32 %v4501, %v4501
  %v4671 = vmul.f32 %v4504, %v4504
  %v4672 = vmul.f32 %v4509, %v4509
  %v4673 = vmul.f32 %v4512, %v4512
  %v4674 = vmul.f32 %v4517, %v4517
  %v4675 = vmul.f32 %v4520, %v4520
  %v4676 = vmul.f32 %v4525, %v4525
  %v4677 = vmul.f32 %v4528, %v4528
  %v4678 = vmul.f32 %v4533, %v4533
  %v4679 = vmul.f32 %v4536, %v4536
  %v4680 = vmul.f32 %v4541, %v4541
  %v4681 = vmul.f32 %v4544, %v4544
  %v4682 = vadd.f32 %v4618, %v4619
  %v4683 = vadd.f32 %v4682, %v4620
  %v4684 = vadd.f32 %v4683, %v4621
  %v4685 = vadd.f32 %v4684, %v4622
  %v4686 = vadd.f32 %v4685, %v4623
  %v4687 = vadd.f32 %v4686, %v4624
  %v4688 = vadd.f32 %v4687, %v4625
  %v4689 = vadd.f32 %v4688, %v4626
  %v4690 = vadd.f32 %v4689, %v4627
  %v4691 = vadd.f32 %v4690, %v4628
  %v4692 = vadd.f32 %v4691, %v4629
  %v4693 = vadd.f32 %v4692, %v4630
  %v4694 = vadd.f32 %v4693, %v4631
  %v4695 = vadd.f32 %v4694, %v4632
  %v4696 = vadd.f32 %v4695, %v4633
  %v4697 = vadd.f32 %v4696, %v4634
  %v4698 = vadd.f32 %v4697, %v4635
  %v4699 = vadd.f32 %v4698, %v4636
  %v4700 = vadd.f32 %v4699, %v4637
  %v4701 = vadd.f32 %v4700, %v4638
  %v4702 = vadd.f32 %v4701, %v4639
  %v4703 = vadd.f32 %v4702, %v4640
  %v4704 = vadd.f32 %v4703, %v4641
  %v4705 = vadd.f32 %v4704, %v4642
  %v4706 = vadd.f32 %v4705, %v4643
  %v4707 = vadd.f32 %v4706, %v4644
  %v4708 = vadd.f32 %v4707, %v4645
  %v4709 = vadd.f32 %v4708, %v4646
  %v4710 = vadd.f32 %v4709, %v4647
  %v4711 = vadd.f32 %v4710, %v4648
  %v4712 = vadd.f32 %v4711, %v4649
  %v4713 = vadd.f32 %v4712, %v4650
  %v4714 = vadd.f32 %v4713, %v4651
  %v4715 = vadd.f32 %v4714, %v4652
  %v4716 = vadd.f32 %v4715, %v4653
  %v4717 = vadd.f32 %v4716, %v4654
  %v4718 = vadd.f32 %v4717, %v4655
  %v4719 = vadd.f32 %v4718, %v4656
  %v4720 = vadd.f32 %v4719, %v4657
  %v4721 = vadd.f32 %v4720, %v4658
  %v4722 = vadd.f32 %v4721, %v4659
  %v4723 = vadd.f32 %v4722, %v4660
  %v4724 = vadd.f32 %v4723, %v4661
  %v4725 = vadd.f32 %v4724, %v4662
  %v4726 = vadd.f32 %v4725, %v4663
  %v4727 = vadd.f32 %v4726, %v4664
  %v4728 = vadd.f32 %v4727, %v4665
  %v4729 = vadd.f32 %v4728, %v4666
  %v4730 = vadd.f32 %v4729, %v4667
  %v4731 = vadd.f32 %v4730, %v4668
  %v4732 = vadd.f32 %v4731, %v4669
  %v4733 = vadd.f32 %v4732, %v4670
  %v4734 = vadd.f32 %v4733, %v4671
  %v4735 = vadd.f32 %v4734, %v4672
  %v4736 = vadd.f32 %v4735, %v4673
  %v4737 = vadd.f32 %v4736, %v4674
  %v4738 = vadd.f32 %v4737, %v4675
  %v4739 = vadd.f32 %v4738, %v4676
  %v4740 = vadd.f32 %v4739, %v4677
  %v4741 = vadd.f32 %v4740, %v4678
  %v4742 = vadd.f32 %v4741, %v4679
  %v4743 = vadd.f32 %v4742, %v4680
  %v4744 = vadd.f32 %v4743, %v4681
  %v4745 = vrot.slane %v4744, 4
  %v4746 = vadd.f32 %v4744, %v4745
  %v4747 = vrot.slane %v4746, 2
  %v4748 = vadd.f32 %v4746, %v4747
  %v4749 = vrot.slane %v4748, 1
  %v4750 = vadd.f32 %v4748, %v4749
  %v4751 = vmul.f32 %v4617, 0.001953125
  %v4752 = vmul.f32 %v4750, 0.001953125
  %v4753 = vmul.f32 %v4751, %v4751
  %v4754 = vsub.f32 %v4752, %v4753
  %v4755 = vmax.f32 %v4754, 0.0
  %v4756 = vadd.f32 %v4755, 1e-05
  %v4757 = vrsqrt.pop %v4756
  %v4758 = vmul.f32 %v4547, %v4757
  %v4759 = vmul.f32 %v4751, %v4758
  %v4760 = vsub.f32 %v4548, %v4759
  %v4762 = vlaneseq
  %v4763 = vshrl.u32 %v4762, 7
  %v4764 = vsub.s32 0, %v4763
  %v4765 = vrot.slane %v4758, %v4764
  %v4767 = vmul.f32 %v4293, %v4765
  %v4768 = vmul.f32 %v4296, %v4765
  %v4769 = vmul.f32 %v4301, %v4765
  %v4770 = vmul.f32 %v4304, %v4765
  %v4771 = vmul.f32 %v4309, %v4765
  %v4772 = vmul.f32 %v4312, %v4765
  %v4773 = vmul.f32 %v4317, %v4765
  %v4774 = vmul.f32 %v4320, %v4765
  %v4775 = vmul.f32 %v4325, %v4765
  %v4776 = vmul.f32 %v4328, %v4765
  %v4777 = vmul.f32 %v4333, %v4765
  %v4778 = vmul.f32 %v4336, %v4765
  %v4779 = vmul.f32 %v4341, %v4765
  %v4780 = vmul.f32 %v4344, %v4765
  %v4781 = vmul.f32 %v4349, %v4765
  %v4782 = vmul.f32 %v4352, %v4765
  %v4783 = vmul.f32 %v4357, %v4765
  %v4784 = vmul.f32 %v4360, %v4765
  %v4785 = vmul.f32 %v4365, %v4765
  %v4786 = vmul.f32 %v4368, %v4765
  %v4787 = vmul.f32 %v4373, %v4765
  %v4788 = vmul.f32 %v4376, %v4765
  %v4789 = vmul.f32 %v4381, %v4765
  %v4790 = vmul.f32 %v4384, %v4765
  %v4791 = vmul.f32 %v4389, %v4765
  %v4792 = vmul.f32 %v4392, %v4765
  %v4793 = vmul.f32 %v4397, %v4765
  %v4794 = vmul.f32 %v4400, %v4765
  %v4795 = vmul.f32 %v4405, %v4765
  %v4796 = vmul.f32 %v4408, %v4765
  %v4797 = vmul.f32 %v4413, %v4765
  %v4798 = vmul.f32 %v4416, %v4765
  %v4799 = vmul.f32 %v4421, %v4765
  %v4800 = vmul.f32 %v4424, %v4765
  %v4801 = vmul.f32 %v4429, %v4765
  %v4802 = vmul.f32 %v4432, %v4765
  %v4803 = vmul.f32 %v4437, %v4765
  %v4804 = vmul.f32 %v4440, %v4765
  %v4805 = vmul.f32 %v4445, %v4765
  %v4806 = vmul.f32 %v4448, %v4765
  %v4807 = vmul.f32 %v4453, %v4765
  %v4808 = vmul.f32 %v4456, %v4765
  %v4809 = vmul.f32 %v4461, %v4765
  %v4810 = vmul.f32 %v4464, %v4765
  %v4811 = vmul.f32 %v4469, %v4765
  %v4812 = vmul.f32 %v4472, %v4765
  %v4813 = vmul.f32 %v4477, %v4765
  %v4814 = vmul.f32 %v4480, %v4765
  %v4815 = vmul.f32 %v4485, %v4765
  %v4816 = vmul.f32 %v4488, %v4765
  %v4817 = vmul.f32 %v4493, %v4765
  %v4818 = vmul.f32 %v4496, %v4765
  %v4819 = vmul.f32 %v4501, %v4765
  %v4820 = vmul.f32 %v4504, %v4765
  %v4821 = vmul.f32 %v4509, %v4765
  %v4822 = vmul.f32 %v4512, %v4765
  %v4823 = vmul.f32 %v4517, %v4765
  %v4824 = vmul.f32 %v4520, %v4765
  %v4825 = vmul.f32 %v4525, %v4765
  %v4826 = vmul.f32 %v4528, %v4765
  %v4827 = vmul.f32 %v4533, %v4765
  %v4828 = vmul.f32 %v4536, %v4765
  %v4829 = vmul.f32 %v4541, %v4765
  %v4830 = vmul.f32 %v4544, %v4765
  %v4832 = vlaneseq
  %v4833 = vshrl.u32 %v4832, 7
  %v4834 = vsub.s32 0, %v4833
  %v4835 = vrot.slane %v4760, %v4834
  %v4837 = vadd.f32 %v4767, %v4835
  %v4838 = vadd.f32 %v4768, %v4835
  %v4839 = vadd.f32 %v4769, %v4835
  %v4840 = vadd.f32 %v4770, %v4835
  %v4841 = vadd.f32 %v4771, %v4835
  %v4842 = vadd.f32 %v4772, %v4835
  %v4843 = vadd.f32 %v4773, %v4835
  %v4844 = vadd.f32 %v4774, %v4835
  %v4845 = vadd.f32 %v4775, %v4835
  %v4846 = vadd.f32 %v4776, %v4835
  %v4847 = vadd.f32 %v4777, %v4835
  %v4848 = vadd.f32 %v4778, %v4835
  %v4849 = vadd.f32 %v4779, %v4835
  %v4850 = vadd.f32 %v4780, %v4835
  %v4851 = vadd.f32 %v4781, %v4835
  %v4852 = vadd.f32 %v4782, %v4835
  %v4853 = vadd.f32 %v4783, %v4835
  %v4854 = vadd.f32 %v4784, %v4835
  %v4855 = vadd.f32 %v4785, %v4835
  %v4856 = vadd.f32 %v4786, %v4835
  %v4857 = vadd.f32 %v4787, %v4835
  %v4858 = vadd.f32 %v4788, %v4835
  %v4859 = vadd.f32 %v4789, %v4835
  %v4860 = vadd.f32 %v4790, %v4835
  %v4861 = vadd.f32 %v4791, %v4835
  %v4862 = vadd.f32 %v4792, %v4835
  %v4863 = vadd.f32 %v4793, %v4835
  %v4864 = vadd.f32 %v4794, %v4835
  %v4865 = vadd.f32 %v4795, %v4835
  %v4866 = vadd.f32 %v4796, %v4835
  %v4867 = vadd.f32 %v4797, %v4835
  %v4868 = vadd.f32 %v4798, %v4835
  %v4869 = vadd.f32 %v4799, %v4835
  %v4870 = vadd.f32 %v4800, %v4835
  %v4871 = vadd.f32 %v4801, %v4835
  %v4872 = vadd.f32 %v4802, %v4835
  %v4873 = vadd.f32 %v4803, %v4835
  %v4874 = vadd.f32 %v4804, %v4835
  %v4875 = vadd.f32 %v4805, %v4835
  %v4876 = vadd.f32 %v4806, %v4835
  %v4877 = vadd.f32 %v4807, %v4835
  %v4878 = vadd.f32 %v4808, %v4835
  %v4879 = vadd.f32 %v4809, %v4835
  %v4880 = vadd.f32 %v4810, %v4835
  %v4881 = vadd.f32 %v4811, %v4835
  %v4882 = vadd.f32 %v4812, %v4835
  %v4883 = vadd.f32 %v4813, %v4835
  %v4884 = vadd.f32 %v4814, %v4835
  %v4885 = vadd.f32 %v4815, %v4835
  %v4886 = vadd.f32 %v4816, %v4835
  %v4887 = vadd.f32 %v4817, %v4835
  %v4888 = vadd.f32 %v4818, %v4835
  %v4889 = vadd.f32 %v4819, %v4835
  %v4890 = vadd.f32 %v4820, %v4835
  %v4891 = vadd.f32 %v4821, %v4835
  %v4892 = vadd.f32 %v4822, %v4835
  %v4893 = vadd.f32 %v4823, %v4835
  %v4894 = vadd.f32 %v4824, %v4835
  %v4895 = vadd.f32 %v4825, %v4835
  %v4896 = vadd.f32 %v4826, %v4835
  %v4897 = vadd.f32 %v4827, %v4835
  %v4898 = vadd.f32 %v4828, %v4835
  %v4899 = vadd.f32 %v4829, %v4835
  %v4900 = vadd.f32 %v4830, %v4835
  %v4901 = vmax.f32 %v4837, 0.0
  %v4902 = vmax.f32 %v4838, 0.0
  %v4903 = vmax.f32 %v4839, 0.0
  %v4904 = vmax.f32 %v4840, 0.0
  %v4905 = vmax.f32 %v4841, 0.0
  %v4906 = vmax.f32 %v4842, 0.0
  %v4907 = vmax.f32 %v4843, 0.0
  %v4908 = vmax.f32 %v4844, 0.0
  %v4909 = vmax.f32 %v4845, 0.0
  %v4910 = vmax.f32 %v4846, 0.0
  %v4911 = vmax.f32 %v4847, 0.0
  %v4912 = vmax.f32 %v4848, 0.0
  %v4913 = vmax.f32 %v4849, 0.0
  %v4914 = vmax.f32 %v4850, 0.0
  %v4915 = vmax.f32 %v4851, 0.0
  %v4916 = vmax.f32 %v4852, 0.0
  %v4917 = vmax.f32 %v4853, 0.0
  %v4918 = vmax.f32 %v4854, 0.0
  %v4919 = vmax.f32 %v4855, 0.0
  %v4920 = vmax.f32 %v4856, 0.0
  %v4921 = vmax.f32 %v4857, 0.0
  %v4922 = vmax.f32 %v4858, 0.0
  %v4923 = vmax.f32 %v4859, 0.0
  %v4924 = vmax.f32 %v4860, 0.0
  %v4925 = vmax.f32 %v4861, 0.0
  %v4926 = vmax.f32 %v4862, 0.0
  %v4927 = vmax.f32 %v4863, 0.0
  %v4928 = vmax.f32 %v4864, 0.0
  %v4929 = vmax.f32 %v4865, 0.0
  %v4930 = vmax.f32 %v4866, 0.0
  %v4931 = vmax.f32 %v4867, 0.0
  %v4932 = vmax.f32 %v4868, 0.0
  %v4933 = vmax.f32 %v4869, 0.0
  %v4934 = vmax.f32 %v4870, 0.0
  %v4935 = vmax.f32 %v4871, 0.0
  %v4936 = vmax.f32 %v4872, 0.0
  %v4937 = vmax.f32 %v4873, 0.0
  %v4938 = vmax.f32 %v4874, 0.0
  %v4939 = vmax.f32 %v4875, 0.0
  %v4940 = vmax.f32 %v4876, 0.0
  %v4941 = vmax.f32 %v4877, 0.0
  %v4942 = vmax.f32 %v4878, 0.0
  %v4943 = vmax.f32 %v4879, 0.0
  %v4944 = vmax.f32 %v4880, 0.0
  %v4945 = vmax.f32 %v4881, 0.0
  %v4946 = vmax.f32 %v4882, 0.0
  %v4947 = vmax.f32 %v4883, 0.0
  %v4948 = vmax.f32 %v4884, 0.0
  %v4949 = vmax.f32 %v4885, 0.0
  %v4950 = vmax.f32 %v4886, 0.0
  %v4951 = vmax.f32 %v4887, 0.0
  %v4952 = vmax.f32 %v4888, 0.0
  %v4953 = vmax.f32 %v4889, 0.0
  %v4954 = vmax.f32 %v4890, 0.0
  %v4955 = vmax.f32 %v4891, 0.0
  %v4956 = vmax.f32 %v4892, 0.0
  %v4957 = vmax.f32 %v4893, 0.0
  %v4958 = vmax.f32 %v4894, 0.0
  %v4959 = vmax.f32 %v4895, 0.0
  %v4960 = vmax.f32 %v4896, 0.0
  %v4961 = vmax.f32 %v4897, 0.0
  %v4962 = vmax.f32 %v4898, 0.0
  %v4963 = vmax.f32 %v4899, 0.0
  %v4964 = vmax.f32 %v4900, 0.0
  %v4965 = vpack.c.bf16 %v4902, %v4901
  %v4966 = vpack.c.bf16 %v4904, %v4903
  %v4967 = vpack.c.bf16 %v4906, %v4905
  %v4968 = vpack.c.bf16 %v4908, %v4907
  %v4969 = vpack.c.bf16 %v4910, %v4909
  %v4970 = vpack.c.bf16 %v4912, %v4911
  %v4971 = vpack.c.bf16 %v4914, %v4913
  %v4972 = vpack.c.bf16 %v4916, %v4915
  %v4973 = vpack.c.bf16 %v4918, %v4917
  %v4974 = vpack.c.bf16 %v4920, %v4919
  %v4975 = vpack.c.bf16 %v4922, %v4921
  %v4976 = vpack.c.bf16 %v4924, %v4923
  %v4977 = vpack.c.bf16 %v4926, %v4925
  %v4978 = vpack.c.bf16 %v4928, %v4927
  %v4979 = vpack.c.bf16 %v4930, %v4929
  %v4980 = vpack.c.bf16 %v4932, %v4931
  %v4981 = vpack.c.bf16 %v4934, %v4933
  %v4982 = vpack.c.bf16 %v4936, %v4935
  %v4983 = vpack.c.bf16 %v4938, %v4937
  %v4984 = vpack.c.bf16 %v4940, %v4939
  %v4985 = vpack.c.bf16 %v4942, %v4941
  %v4986 = vpack.c.bf16 %v4944, %v4943
  %v4987 = vpack.c.bf16 %v4946, %v4945
  %v4988 = vpack.c.bf16 %v4948, %v4947
  %v4989 = vpack.c.bf16 %v4950, %v4949
  %v4990 = vpack.c.bf16 %v4952, %v4951
  %v4991 = vpack.c.bf16 %v4954, %v4953
  %v4992 = vpack.c.bf16 %v4956, %v4955
  %v4993 = vpack.c.bf16 %v4958, %v4957
  %v4994 = vpack.c.bf16 %v4960, %v4959
  %v4995 = vpack.c.bf16 %v4962, %v4961
  %v4996 = vpack.c.bf16 %v4964, %v4963
  %v4997 = vld [vmem:[%s3] sm:$0xf]
  %v4998 = vld [vmem:[%s3 + $0x4] sm:$0xf]
  %v4999 = vld [vmem:[%s3 + $0x8] sm:$0xf]
  %v5000 = vld [vmem:[%s3 + $0xc] sm:$0xf]
  %v5001 = vld [vmem:[%s3 + $0x10] sm:$0xf]
  %v5002 = vld [vmem:[%s3 + $0x14] sm:$0xf]
  %v5003 = vld [vmem:[%s3 + $0x18] sm:$0xf]
  %v5004 = vld [vmem:[%s3 + $0x1c] sm:$0xf]
  %v5005 = vld [vmem:[%s3 + $0x20] sm:$0xf]
  %v5006 = vld [vmem:[%s3 + $0x24] sm:$0xf]
  %v5007 = vld [vmem:[%s3 + $0x28] sm:$0xf]
  %v5008 = vld [vmem:[%s3 + $0x2c] sm:$0xf]
  %v5009 = vld [vmem:[%s3 + $0x30] sm:$0xf]
  %v5010 = vld [vmem:[%s3 + $0x34] sm:$0xf]
  %v5011 = vld [vmem:[%s3 + $0x38] sm:$0xf]
  %v5012 = vld [vmem:[%s3 + $0x3c] sm:$0xf]
  %v5029 = vunpack.c.l.b16 %v4997
  %v5030 = vunpack.c.l.b16 %v4998
  %v5031 = vunpack.c.l.b16 %v4999
  %v5032 = vunpack.c.l.b16 %v5000
  %v5033 = vunpack.c.l.b16 %v5001
  %v5034 = vunpack.c.l.b16 %v5002
  %v5035 = vunpack.c.l.b16 %v5003
  %v5036 = vunpack.c.l.b16 %v5004
  %v5037 = vunpack.c.l.b16 %v5005
  %v5038 = vunpack.c.l.b16 %v5006
  %v5039 = vunpack.c.l.b16 %v5007
  %v5040 = vunpack.c.l.b16 %v5008
  %v5041 = vunpack.c.l.b16 %v5009
  %v5042 = vunpack.c.l.b16 %v5010
  %v5043 = vunpack.c.l.b16 %v5011
  %v5044 = vunpack.c.l.b16 %v5012
  %v5045 = vpack.c.b16 %v5030, %v5029
  %v5046 = vpack.c.b16 %v5032, %v5031
  %v5047 = vpack.c.b16 %v5034, %v5033
  %v5048 = vpack.c.b16 %v5036, %v5035
  %v5049 = vpack.c.b16 %v5038, %v5037
  %v5050 = vpack.c.b16 %v5040, %v5039
  %v5051 = vpack.c.b16 %v5042, %v5041
  %v5052 = vpack.c.b16 %v5044, %v5043
  %5061 = vmatprep.subr.bf16.mxu0 0
  %5062 = vmatpush1.bf16.msra.mxu0 %v5045
  %5063 = vmatprep.subr.bf16.mxu0 0
  %5064 = vmatpush1.bf16.msra.mxu0 %v5046
  %5065 = vmatprep.subr.bf16.mxu0 0
  %5066 = vmatpush1.bf16.msra.mxu0 %v5047
  %5067 = vmatprep.subr.bf16.mxu0 0
  %5068 = vmatpush1.bf16.msra.mxu0 %v5048
  %5069 = vmatprep.subr.bf16.mxu0 0
  %5070 = vmatpush1.bf16.msra.mxu0 %v5049
  %5071 = vmatprep.subr.bf16.mxu0 0
  %5072 = vmatpush1.bf16.msra.mxu0 %v5050
  %5073 = vmatprep.subr.bf16.mxu0 0
  %5074 = vmatpush1.bf16.msra.mxu0 %v5051
  %5075 = vmatprep.subr.bf16.mxu0 0
  %5076 = vmatpush1.bf16.msra.mxu0 %v5052
  %5077 = vmatprep.subr.bf16.mxu0 0
  %5078 = vmatpush1.bf16.msra.mxu0 0
  %5079 = vmatprep.subr.bf16.mxu0 0
  %5080 = vmatpush1.bf16.msra.mxu0 0
  %5081 = vmatprep.subr.bf16.mxu0 0
  %5082 = vmatpush1.bf16.msra.mxu0 0
  %5083 = vmatprep.subr.bf16.mxu0 0
  %5084 = vmatpush1.bf16.msra.mxu0 0
  %5085 = vmatprep.subr.bf16.mxu0 0
  %5086 = vmatpush1.bf16.msra.mxu0 0
  %5087 = vmatprep.subr.bf16.mxu0 0
  %5088 = vmatpush1.bf16.msra.mxu0 0
  %5089 = vmatprep.subr.bf16.mxu0 0
  %5090 = vmatpush1.bf16.msra.mxu0 0
  %5091 = vmatprep.subr.bf16.mxu0 0
  %5092 = vmatpush1.bf16.msra.mxu0 0
  %5093 = vmatprep.mubr.bf16.mxu0 0
  %5094 = vmatmul.mubr.bf16.gmra.mrb[0].mxu0 %v4965
  %v5095 = vpop.f32.mrb[0].mxu0
  %v5096 = vadd.f32 0.0, %v5095
  %v5097 = vpop.f32.mrb[0].mxu0
  %v5098 = vpop.f32.mrb[0].mxu0
  %v5099 = vadd.f32 0.0, %v5098
  %v5100 = vpop.f32.mrb[0].mxu0
  %5101 = vmatprep.mubr.bf16.mxu0 0
  %5102 = vmatmul.mubr.bf16.gmra.mrb[0].mxu0 %v4966
  %v5103 = vpop.f32.mrb[0].mxu0
  %v5104 = vadd.f32 0.0, %v5103
  %v5105 = vpop.f32.mrb[0].mxu0
  %v5106 = vpop.f32.mrb[0].mxu0
  %v5107 = vadd.f32 0.0, %v5106
  %v5108 = vpop.f32.mrb[0].mxu0
  %5109 = vmatprep.mubr.bf16.mxu0 0
  %5110 = vmatmul.mubr.bf16.gmra.mrb[0].mxu0 %v4967
  %v5111 = vpop.f32.mrb[0].mxu0
  %v5112 = vadd.f32 0.0, %v5111
  %v5113 = vpop.f32.mrb[0].mxu0
  %v5114 = vpop.f32.mrb[0].mxu0
  %v5115 = vadd.f32 0.0, %v5114
  %v5116 = vpop.f32.mrb[0].mxu0
  %5117 = vmatprep.mubr.bf16.mxu0 0
  %5118 = vmatmul.mubr.bf16.gmra.mrb[0].mxu0 %v4968
  %v5119 = vpop.f32.mrb[0].mxu0
  %v5120 = vadd.f32 0.0, %v5119
  %v5121 = vpop.f32.mrb[0].mxu0
  %v5122 = vpop.f32.mrb[0].mxu0
  %v5123 = vadd.f32 0.0, %v5122
  %v5124 = vpop.f32.mrb[0].mxu0
  %5125 = vmatprep.mubr.bf16.mxu0 0
  %5126 = vmatmul.mubr.bf16.gmra.mrb[0].mxu0 %v4969
  %v5127 = vpop.f32.mrb[0].mxu0
  %v5128 = vadd.f32 0.0, %v5127
  %v5129 = vpop.f32.mrb[0].mxu0
  %v5130 = vpop.f32.mrb[0].mxu0
  %v5131 = vadd.f32 0.0, %v5130
  %v5132 = vpop.f32.mrb[0].mxu0
  %5133 = vmatprep.mubr.bf16.mxu0 0
  %5134 = vmatmul.mubr.bf16.gmra.mrb[0].mxu0 %v4970
  %v5135 = vpop.f32.mrb[0].mxu0
  %v5136 = vadd.f32 0.0, %v5135
  %v5137 = vpop.f32.mrb[0].mxu0
  %v5138 = vpop.f32.mrb[0].mxu0
  %v5139 = vadd.f32 0.0, %v5138
  %v5140 = vpop.f32.mrb[0].mxu0
  %5141 = vmatprep.mubr.bf16.mxu0 0
  %5142 = vmatmul.mubr.bf16.gmra.mrb[0].mxu0 %v4971
  %v5143 = vpop.f32.mrb[0].mxu0
  %v5144 = vadd.f32 0.0, %v5143
  %v5145 = vpop.f32.mrb[0].mxu0
  %v5146 = vpop.f32.mrb[0].mxu0
  %v5147 = vadd.f32 0.0, %v5146
  %v5148 = vpop.f32.mrb[0].mxu0
  %5149 = vmatprep.mubr.bf16.mxu0 0
  %5150 = vmatmul.mubr.bf16.gmra.mrb[0].mxu0 %v4972
  %v5151 = vpop.f32.mrb[0].mxu0
  %v5152 = vadd.f32 0.0, %v5151
  %v5153 = vpop.f32.mrb[0].mxu0
  %v5154 = vpop.f32.mrb[0].mxu0
  %v5155 = vadd.f32 0.0, %v5154
  %v5156 = vpop.f32.mrb[0].mxu0
  %5157 = vmatprep.mubr.bf16.mxu0 0
  %5158 = vmatmul.mubr.bf16.gmra.mrb[0].mxu0 %v4973
  %v5159 = vpop.f32.mrb[0].mxu0
  %v5160 = vadd.f32 0.0, %v5159
  %v5161 = vpop.f32.mrb[0].mxu0
  %v5162 = vpop.f32.mrb[0].mxu0
  %v5163 = vadd.f32 0.0, %v5162
  %v5164 = vpop.f32.mrb[0].mxu0
  %5165 = vmatprep.mubr.bf16.mxu0 0
  %5166 = vmatmul.mubr.bf16.gmra.mrb[0].mxu0 %v4974
  %v5167 = vpop.f32.mrb[0].mxu0
  %v5168 = vadd.f32 0.0, %v5167
  %v5169 = vpop.f32.mrb[0].mxu0
  %v5170 = vpop.f32.mrb[0].mxu0
  %v5171 = vadd.f32 0.0, %v5170
  %v5172 = vpop.f32.mrb[0].mxu0
  %5173 = vmatprep.mubr.bf16.mxu0 0
  %5174 = vmatmul.mubr.bf16.gmra.mrb[0].mxu0 %v4975
  %v5175 = vpop.f32.mrb[0].mxu0
  %v5176 = vadd.f32 0.0, %v5175
  %v5177 = vpop.f32.mrb[0].mxu0
  %v5178 = vpop.f32.mrb[0].mxu0
  %v5179 = vadd.f32 0.0, %v5178
  %v5180 = vpop.f32.mrb[0].mxu0
  %5181 = vmatprep.mubr.bf16.mxu0 0
  %5182 = vmatmul.mubr.bf16.gmra.mrb[0].mxu0 %v4976
  %v5183 = vpop.f32.mrb[0].mxu0
  %v5184 = vadd.f32 0.0, %v5183
  %v5185 = vpop.f32.mrb[0].mxu0
  %v5186 = vpop.f32.mrb[0].mxu0
  %v5187 = vadd.f32 0.0, %v5186
  %v5188 = vpop.f32.mrb[0].mxu0
  %5189 = vmatprep.mubr.bf16.mxu0 0
  %5190 = vmatmul.mubr.bf16.gmra.mrb[0].mxu0 %v4977
  %v5191 = vpop.f32.mrb[0].mxu0
  %v5192 = vadd.f32 0.0, %v5191
  %v5193 = vpop.f32.mrb[0].mxu0
  %v5194 = vpop.f32.mrb[0].mxu0
  %v5195 = vadd.f32 0.0, %v5194
  %v5196 = vpop.f32.mrb[0].mxu0
  %5197 = vmatprep.mubr.bf16.mxu0 0
  %5198 = vmatmul.mubr.bf16.gmra.mrb[0].mxu0 %v4978
  %v5199 = vpop.f32.mrb[0].mxu0
  %v5200 = vadd.f32 0.0, %v5199
  %v5201 = vpop.f32.mrb[0].mxu0
  %v5202 = vpop.f32.mrb[0].mxu0
  %v5203 = vadd.f32 0.0, %v5202
  %v5204 = vpop.f32.mrb[0].mxu0
  %5205 = vmatprep.mubr.bf16.mxu0 0
  %5206 = vmatmul.mubr.bf16.gmra.mrb[0].mxu0 %v4979
  %v5207 = vpop.f32.mrb[0].mxu0
  %v5208 = vadd.f32 0.0, %v5207
  %v5209 = vpop.f32.mrb[0].mxu0
  %v5210 = vpop.f32.mrb[0].mxu0
  %v5211 = vadd.f32 0.0, %v5210
  %v5212 = vpop.f32.mrb[0].mxu0
  %5213 = vmatprep.mubr.bf16.mxu0 0
  %5214 = vmatmul.mubr.bf16.gmra.mrb[0].mxu0 %v4980
  %v5215 = vpop.f32.mrb[0].mxu0
  %v5216 = vadd.f32 0.0, %v5215
  %v5217 = vpop.f32.mrb[0].mxu0
  %v5218 = vpop.f32.mrb[0].mxu0
  %v5219 = vadd.f32 0.0, %v5218
  %v5220 = vpop.f32.mrb[0].mxu0
  %5221 = vmatprep.mubr.bf16.mxu0 0
  %5222 = vmatmul.mubr.bf16.gmra.mrb[0].mxu0 %v4981
  %v5223 = vpop.f32.mrb[0].mxu0
  %v5224 = vadd.f32 0.0, %v5223
  %v5225 = vpop.f32.mrb[0].mxu0
  %v5226 = vpop.f32.mrb[0].mxu0
  %v5227 = vadd.f32 0.0, %v5226
  %v5228 = vpop.f32.mrb[0].mxu0
  %5229 = vmatprep.mubr.bf16.mxu0 0
  %5230 = vmatmul.mubr.bf16.gmra.mrb[0].mxu0 %v4982
  %v5231 = vpop.f32.mrb[0].mxu0
  %v5232 = vadd.f32 0.0, %v5231
  %v5233 = vpop.f32.mrb[0].mxu0
  %v5234 = vpop.f32.mrb[0].mxu0
  %v5235 = vadd.f32 0.0, %v5234
  %v5236 = vpop.f32.mrb[0].mxu0
  %5237 = vmatprep.mubr.bf16.mxu0 0
  %5238 = vmatmul.mubr.bf16.gmra.mrb[0].mxu0 %v4983
  %v5239 = vpop.f32.mrb[0].mxu0
  %v5240 = vadd.f32 0.0, %v5239
  %v5241 = vpop.f32.mrb[0].mxu0
  %v5242 = vpop.f32.mrb[0].mxu0
  %v5243 = vadd.f32 0.0, %v5242
  %v5244 = vpop.f32.mrb[0].mxu0
  %5245 = vmatprep.mubr.bf16.mxu0 0
  %5246 = vmatmul.mubr.bf16.gmra.mrb[0].mxu0 %v4984
  %v5247 = vpop.f32.mrb[0].mxu0
  %v5248 = vadd.f32 0.0, %v5247
  %v5249 = vpop.f32.mrb[0].mxu0
  %v5250 = vpop.f32.mrb[0].mxu0
  %v5251 = vadd.f32 0.0, %v5250
  %v5252 = vpop.f32.mrb[0].mxu0
  %5253 = vmatprep.mubr.bf16.mxu0 0
  %5254 = vmatmul.mubr.bf16.gmra.mrb[0].mxu0 %v4985
  %v5255 = vpop.f32.mrb[0].mxu0
  %v5256 = vadd.f32 0.0, %v5255
  %v5257 = vpop.f32.mrb[0].mxu0
  %v5258 = vpop.f32.mrb[0].mxu0
  %v5259 = vadd.f32 0.0, %v5258
  %v5260 = vpop.f32.mrb[0].mxu0
  %5261 = vmatprep.mubr.bf16.mxu0 0
  %5262 = vmatmul.mubr.bf16.gmra.mrb[0].mxu0 %v4986
  %v5263 = vpop.f32.mrb[0].mxu0
  %v5264 = vadd.f32 0.0, %v5263
  %v5265 = vpop.f32.mrb[0].mxu0
  %v5266 = vpop.f32.mrb[0].mxu0
  %v5267 = vadd.f32 0.0, %v5266
  %v5268 = vpop.f32.mrb[0].mxu0
  %5269 = vmatprep.mubr.bf16.mxu0 0
  %5270 = vmatmul.mubr.bf16.gmra.mrb[0].mxu0 %v4987
  %v5271 = vpop.f32.mrb[0].mxu0
  %v5272 = vadd.f32 0.0, %v5271
  %v5273 = vpop.f32.mrb[0].mxu0
  %v5274 = vpop.f32.mrb[0].mxu0
  %v5275 = vadd.f32 0.0, %v5274
  %v5276 = vpop.f32.mrb[0].mxu0
  %5277 = vmatprep.mubr.bf16.mxu0 0
  %5278 = vmatmul.mubr.bf16.gmra.mrb[0].mxu0 %v4988
  %v5279 = vpop.f32.mrb[0].mxu0
  %v5280 = vadd.f32 0.0, %v5279
  %v5281 = vpop.f32.mrb[0].mxu0
  %v5282 = vpop.f32.mrb[0].mxu0
  %v5283 = vadd.f32 0.0, %v5282
  %v5284 = vpop.f32.mrb[0].mxu0
  %5285 = vmatprep.mubr.bf16.mxu0 0
  %5286 = vmatmul.mubr.bf16.gmra.mrb[0].mxu0 %v4989
  %v5287 = vpop.f32.mrb[0].mxu0
  %v5288 = vadd.f32 0.0, %v5287
  %v5289 = vpop.f32.mrb[0].mxu0
  %v5290 = vpop.f32.mrb[0].mxu0
  %v5291 = vadd.f32 0.0, %v5290
  %v5292 = vpop.f32.mrb[0].mxu0
  %5293 = vmatprep.mubr.bf16.mxu0 0
  %5294 = vmatmul.mubr.bf16.gmra.mrb[0].mxu0 %v4990
  %v5295 = vpop.f32.mrb[0].mxu0
  %v5296 = vadd.f32 0.0, %v5295
  %v5297 = vpop.f32.mrb[0].mxu0
  %v5298 = vpop.f32.mrb[0].mxu0
  %v5299 = vadd.f32 0.0, %v5298
  %v5300 = vpop.f32.mrb[0].mxu0
  %5301 = vmatprep.mubr.bf16.mxu0 0
  %5302 = vmatmul.mubr.bf16.gmra.mrb[0].mxu0 %v4991
  %v5303 = vpop.f32.mrb[0].mxu0
  %v5304 = vadd.f32 0.0, %v5303
  %v5305 = vpop.f32.mrb[0].mxu0
  %v5306 = vpop.f32.mrb[0].mxu0
  %v5307 = vadd.f32 0.0, %v5306
  %v5308 = vpop.f32.mrb[0].mxu0
  %5309 = vmatprep.mubr.bf16.mxu0 0
  %5310 = vmatmul.mubr.bf16.gmra.mrb[0].mxu0 %v4992
  %v5311 = vpop.f32.mrb[0].mxu0
  %v5312 = vadd.f32 0.0, %v5311
  %v5313 = vpop.f32.mrb[0].mxu0
  %v5314 = vpop.f32.mrb[0].mxu0
  %v5315 = vadd.f32 0.0, %v5314
  %v5316 = vpop.f32.mrb[0].mxu0
  %5317 = vmatprep.mubr.bf16.mxu0 0
  %5318 = vmatmul.mubr.bf16.gmra.mrb[0].mxu0 %v4993
  %v5319 = vpop.f32.mrb[0].mxu0
  %v5320 = vadd.f32 0.0, %v5319
  %v5321 = vpop.f32.mrb[0].mxu0
  %v5322 = vpop.f32.mrb[0].mxu0
  %v5323 = vadd.f32 0.0, %v5322
  %v5324 = vpop.f32.mrb[0].mxu0
  %5325 = vmatprep.mubr.bf16.mxu0 0
  %5326 = vmatmul.mubr.bf16.gmra.mrb[0].mxu0 %v4994
  %v5327 = vpop.f32.mrb[0].mxu0
  %v5328 = vadd.f32 0.0, %v5327
  %v5329 = vpop.f32.mrb[0].mxu0
  %v5330 = vpop.f32.mrb[0].mxu0
  %v5331 = vadd.f32 0.0, %v5330
  %v5332 = vpop.f32.mrb[0].mxu0
  %5333 = vmatprep.mubr.bf16.mxu0 0
  %5334 = vmatmul.mubr.bf16.gmra.mrb[0].mxu0 %v4995
  %v5335 = vpop.f32.mrb[0].mxu0
  %v5336 = vadd.f32 0.0, %v5335
  %v5337 = vpop.f32.mrb[0].mxu0
  %v5338 = vpop.f32.mrb[0].mxu0
  %v5339 = vadd.f32 0.0, %v5338
  %v5340 = vpop.f32.mrb[0].mxu0
  %5341 = vmatprep.mubr.bf16.mxu0 0
  %5342 = vmatmul.mubr.bf16.gmra.mrb[0].mxu0 %v4996
  %v5343 = vpop.f32.mrb[0].mxu0
  %v5344 = vadd.f32 0.0, %v5343
  %v5345 = vpop.f32.mrb[0].mxu0
  %v5346 = vpop.f32.mrb[0].mxu0
  %v5347 = vadd.f32 0.0, %v5346
  %v5348 = vpop.f32.mrb[0].mxu0
  %5349 = vdwg.mxu0
  %v5350 = vld [vmem:[%s8] sm:$0x1]
  %v5351 = vld [vmem:[%s9] sm:$0x1]
  %v5352 = vadd.f32 %v5096, %v5099
  %v5353 = vadd.f32 %v5352, %v5104
  %v5354 = vadd.f32 %v5353, %v5107
  %v5355 = vadd.f32 %v5354, %v5112
  %v5356 = vadd.f32 %v5355, %v5115
  %v5357 = vadd.f32 %v5356, %v5120
  %v5358 = vadd.f32 %v5357, %v5123
  %v5359 = vadd.f32 %v5358, %v5128
  %v5360 = vadd.f32 %v5359, %v5131
  %v5361 = vadd.f32 %v5360, %v5136
  %v5362 = vadd.f32 %v5361, %v5139
  %v5363 = vadd.f32 %v5362, %v5144
  %v5364 = vadd.f32 %v5363, %v5147
  %v5365 = vadd.f32 %v5364, %v5152
  %v5366 = vadd.f32 %v5365, %v5155
  %v5367 = vadd.f32 %v5366, %v5160
  %v5368 = vadd.f32 %v5367, %v5163
  %v5369 = vadd.f32 %v5368, %v5168
  %v5370 = vadd.f32 %v5369, %v5171
  %v5371 = vadd.f32 %v5370, %v5176
  %v5372 = vadd.f32 %v5371, %v5179
  %v5373 = vadd.f32 %v5372, %v5184
  %v5374 = vadd.f32 %v5373, %v5187
  %v5375 = vadd.f32 %v5374, %v5192
  %v5376 = vadd.f32 %v5375, %v5195
  %v5377 = vadd.f32 %v5376, %v5200
  %v5378 = vadd.f32 %v5377, %v5203
  %v5379 = vadd.f32 %v5378, %v5208
  %v5380 = vadd.f32 %v5379, %v5211
  %v5381 = vadd.f32 %v5380, %v5216
  %v5382 = vadd.f32 %v5381, %v5219
  %v5383 = vadd.f32 %v5382, %v5224
  %v5384 = vadd.f32 %v5383, %v5227
  %v5385 = vadd.f32 %v5384, %v5232
  %v5386 = vadd.f32 %v5385, %v5235
  %v5387 = vadd.f32 %v5386, %v5240
  %v5388 = vadd.f32 %v5387, %v5243
  %v5389 = vadd.f32 %v5388, %v5248
  %v5390 = vadd.f32 %v5389, %v5251
  %v5391 = vadd.f32 %v5390, %v5256
  %v5392 = vadd.f32 %v5391, %v5259
  %v5393 = vadd.f32 %v5392, %v5264
  %v5394 = vadd.f32 %v5393, %v5267
  %v5395 = vadd.f32 %v5394, %v5272
  %v5396 = vadd.f32 %v5395, %v5275
  %v5397 = vadd.f32 %v5396, %v5280
  %v5398 = vadd.f32 %v5397, %v5283
  %v5399 = vadd.f32 %v5398, %v5288
  %v5400 = vadd.f32 %v5399, %v5291
  %v5401 = vadd.f32 %v5400, %v5296
  %v5402 = vadd.f32 %v5401, %v5299
  %v5403 = vadd.f32 %v5402, %v5304
  %v5404 = vadd.f32 %v5403, %v5307
  %v5405 = vadd.f32 %v5404, %v5312
  %v5406 = vadd.f32 %v5405, %v5315
  %v5407 = vadd.f32 %v5406, %v5320
  %v5408 = vadd.f32 %v5407, %v5323
  %v5409 = vadd.f32 %v5408, %v5328
  %v5410 = vadd.f32 %v5409, %v5331
  %v5411 = vadd.f32 %v5410, %v5336
  %v5412 = vadd.f32 %v5411, %v5339
  %v5413 = vadd.f32 %v5412, %v5344
  %v5414 = vadd.f32 %v5413, %v5347
  %v5415 = vrot.slane %v5414, 4
  %v5416 = vadd.f32 %v5414, %v5415
  %v5417 = vrot.slane %v5416, 2
  %v5418 = vadd.f32 %v5416, %v5417
  %v5419 = vrot.slane %v5418, 1
  %v5420 = vadd.f32 %v5418, %v5419
  %v5421 = vmul.f32 %v5096, %v5096
  %v5422 = vmul.f32 %v5099, %v5099
  %v5423 = vmul.f32 %v5104, %v5104
  %v5424 = vmul.f32 %v5107, %v5107
  %v5425 = vmul.f32 %v5112, %v5112
  %v5426 = vmul.f32 %v5115, %v5115
  %v5427 = vmul.f32 %v5120, %v5120
  %v5428 = vmul.f32 %v5123, %v5123
  %v5429 = vmul.f32 %v5128, %v5128
  %v5430 = vmul.f32 %v5131, %v5131
  %v5431 = vmul.f32 %v5136, %v5136
  %v5432 = vmul.f32 %v5139, %v5139
  %v5433 = vmul.f32 %v5144, %v5144
  %v5434 = vmul.f32 %v5147, %v5147
  %v5435 = vmul.f32 %v5152, %v5152
  %v5436 = vmul.f32 %v5155, %v5155
  %v5437 = vmul.f32 %v5160, %v5160
  %v5438 = vmul.f32 %v5163, %v5163
  %v5439 = vmul.f32 %v5168, %v5168
  %v5440 = vmul.f32 %v5171, %v5171
  %v5441 = vmul.f32 %v5176, %v5176
  %v5442 = vmul.f32 %v5179, %v5179
  %v5443 = vmul.f32 %v5184, %v5184
  %v5444 = vmul.f32 %v5187, %v5187
  %v5445 = vmul.f32 %v5192, %v5192
  %v5446 = vmul.f32 %v5195, %v5195
  %v5447 = vmul.f32 %v5200, %v5200
  %v5448 = vmul.f32 %v5203, %v5203
  %v5449 = vmul.f32 %v5208, %v5208
  %v5450 = vmul.f32 %v5211, %v5211
  %v5451 = vmul.f32 %v5216, %v5216
  %v5452 = vmul.f32 %v5219, %v5219
  %v5453 = vmul.f32 %v5224, %v5224
  %v5454 = vmul.f32 %v5227, %v5227
  %v5455 = vmul.f32 %v5232, %v5232
  %v5456 = vmul.f32 %v5235, %v5235
  %v5457 = vmul.f32 %v5240, %v5240
  %v5458 = vmul.f32 %v5243, %v5243
  %v5459 = vmul.f32 %v5248, %v5248
  %v5460 = vmul.f32 %v5251, %v5251
  %v5461 = vmul.f32 %v5256, %v5256
  %v5462 = vmul.f32 %v5259, %v5259
  %v5463 = vmul.f32 %v5264, %v5264
  %v5464 = vmul.f32 %v5267, %v5267
  %v5465 = vmul.f32 %v5272, %v5272
  %v5466 = vmul.f32 %v5275, %v5275
  %v5467 = vmul.f32 %v5280, %v5280
  %v5468 = vmul.f32 %v5283, %v5283
  %v5469 = vmul.f32 %v5288, %v5288
  %v5470 = vmul.f32 %v5291, %v5291
  %v5471 = vmul.f32 %v5296, %v5296
  %v5472 = vmul.f32 %v5299, %v5299
  %v5473 = vmul.f32 %v5304, %v5304
  %v5474 = vmul.f32 %v5307, %v5307
  %v5475 = vmul.f32 %v5312, %v5312
  %v5476 = vmul.f32 %v5315, %v5315
  %v5477 = vmul.f32 %v5320, %v5320
  %v5478 = vmul.f32 %v5323, %v5323
  %v5479 = vmul.f32 %v5328, %v5328
  %v5480 = vmul.f32 %v5331, %v5331
  %v5481 = vmul.f32 %v5336, %v5336
  %v5482 = vmul.f32 %v5339, %v5339
  %v5483 = vmul.f32 %v5344, %v5344
  %v5484 = vmul.f32 %v5347, %v5347
  %v5485 = vadd.f32 %v5421, %v5422
  %v5486 = vadd.f32 %v5485, %v5423
  %v5487 = vadd.f32 %v5486, %v5424
  %v5488 = vadd.f32 %v5487, %v5425
  %v5489 = vadd.f32 %v5488, %v5426
  %v5490 = vadd.f32 %v5489, %v5427
  %v5491 = vadd.f32 %v5490, %v5428
  %v5492 = vadd.f32 %v5491, %v5429
  %v5493 = vadd.f32 %v5492, %v5430
  %v5494 = vadd.f32 %v5493, %v5431
  %v5495 = vadd.f32 %v5494, %v5432
  %v5496 = vadd.f32 %v5495, %v5433
  %v5497 = vadd.f32 %v5496, %v5434
  %v5498 = vadd.f32 %v5497, %v5435
  %v5499 = vadd.f32 %v5498, %v5436
  %v5500 = vadd.f32 %v5499, %v5437
  %v5501 = vadd.f32 %v5500, %v5438
  %v5502 = vadd.f32 %v5501, %v5439
  %v5503 = vadd.f32 %v5502, %v5440
  %v5504 = vadd.f32 %v5503, %v5441
  %v5505 = vadd.f32 %v5504, %v5442
  %v5506 = vadd.f32 %v5505, %v5443
  %v5507 = vadd.f32 %v5506, %v5444
  %v5508 = vadd.f32 %v5507, %v5445
  %v5509 = vadd.f32 %v5508, %v5446
  %v5510 = vadd.f32 %v5509, %v5447
  %v5511 = vadd.f32 %v5510, %v5448
  %v5512 = vadd.f32 %v5511, %v5449
  %v5513 = vadd.f32 %v5512, %v5450
  %v5514 = vadd.f32 %v5513, %v5451
  %v5515 = vadd.f32 %v5514, %v5452
  %v5516 = vadd.f32 %v5515, %v5453
  %v5517 = vadd.f32 %v5516, %v5454
  %v5518 = vadd.f32 %v5517, %v5455
  %v5519 = vadd.f32 %v5518, %v5456
  %v5520 = vadd.f32 %v5519, %v5457
  %v5521 = vadd.f32 %v5520, %v5458
  %v5522 = vadd.f32 %v5521, %v5459
  %v5523 = vadd.f32 %v5522, %v5460
  %v5524 = vadd.f32 %v5523, %v5461
  %v5525 = vadd.f32 %v5524, %v5462
  %v5526 = vadd.f32 %v5525, %v5463
  %v5527 = vadd.f32 %v5526, %v5464
  %v5528 = vadd.f32 %v5527, %v5465
  %v5529 = vadd.f32 %v5528, %v5466
  %v5530 = vadd.f32 %v5529, %v5467
  %v5531 = vadd.f32 %v5530, %v5468
  %v5532 = vadd.f32 %v5531, %v5469
  %v5533 = vadd.f32 %v5532, %v5470
  %v5534 = vadd.f32 %v5533, %v5471
  %v5535 = vadd.f32 %v5534, %v5472
  %v5536 = vadd.f32 %v5535, %v5473
  %v5537 = vadd.f32 %v5536, %v5474
  %v5538 = vadd.f32 %v5537, %v5475
  %v5539 = vadd.f32 %v5538, %v5476
  %v5540 = vadd.f32 %v5539, %v5477
  %v5541 = vadd.f32 %v5540, %v5478
  %v5542 = vadd.f32 %v5541, %v5479
  %v5543 = vadd.f32 %v5542, %v5480
  %v5544 = vadd.f32 %v5543, %v5481
  %v5545 = vadd.f32 %v5544, %v5482
  %v5546 = vadd.f32 %v5545, %v5483
  %v5547 = vadd.f32 %v5546, %v5484
  %v5548 = vrot.slane %v5547, 4
  %v5549 = vadd.f32 %v5547, %v5548
  %v5550 = vrot.slane %v5549, 2
  %v5551 = vadd.f32 %v5549, %v5550
  %v5552 = vrot.slane %v5551, 1
  %v5553 = vadd.f32 %v5551, %v5552
  %v5554 = vmul.f32 %v5420, 0.001953125
  %v5555 = vmul.f32 %v5553, 0.001953125
  %v5556 = vmul.f32 %v5554, %v5554
  %v5557 = vsub.f32 %v5555, %v5556
  %v5558 = vmax.f32 %v5557, 0.0
  %v5559 = vadd.f32 %v5558, 1e-05
  %v5560 = vrsqrt.pop %v5559
  %v5561 = vmul.f32 %v5350, %v5560
  %v5562 = vmul.f32 %v5554, %v5561
  %v5563 = vsub.f32 %v5351, %v5562
  %v5565 = vlaneseq
  %v5566 = vshrl.u32 %v5565, 7
  %v5567 = vsub.s32 0, %v5566
  %v5568 = vrot.slane %v5561, %v5567
  %v5570 = vmul.f32 %v5096, %v5568
  %v5571 = vmul.f32 %v5099, %v5568
  %v5572 = vmul.f32 %v5104, %v5568
  %v5573 = vmul.f32 %v5107, %v5568
  %v5574 = vmul.f32 %v5112, %v5568
  %v5575 = vmul.f32 %v5115, %v5568
  %v5576 = vmul.f32 %v5120, %v5568
  %v5577 = vmul.f32 %v5123, %v5568
  %v5578 = vmul.f32 %v5128, %v5568
  %v5579 = vmul.f32 %v5131, %v5568
  %v5580 = vmul.f32 %v5136, %v5568
  %v5581 = vmul.f32 %v5139, %v5568
  %v5582 = vmul.f32 %v5144, %v5568
  %v5583 = vmul.f32 %v5147, %v5568
  %v5584 = vmul.f32 %v5152, %v5568
  %v5585 = vmul.f32 %v5155, %v5568
  %v5586 = vmul.f32 %v5160, %v5568
  %v5587 = vmul.f32 %v5163, %v5568
  %v5588 = vmul.f32 %v5168, %v5568
  %v5589 = vmul.f32 %v5171, %v5568
  %v5590 = vmul.f32 %v5176, %v5568
  %v5591 = vmul.f32 %v5179, %v5568
  %v5592 = vmul.f32 %v5184, %v5568
  %v5593 = vmul.f32 %v5187, %v5568
  %v5594 = vmul.f32 %v5192, %v5568
  %v5595 = vmul.f32 %v5195, %v5568
  %v5596 = vmul.f32 %v5200, %v5568
  %v5597 = vmul.f32 %v5203, %v5568
  %v5598 = vmul.f32 %v5208, %v5568
  %v5599 = vmul.f32 %v5211, %v5568
  %v5600 = vmul.f32 %v5216, %v5568
  %v5601 = vmul.f32 %v5219, %v5568
  %v5602 = vmul.f32 %v5224, %v5568
  %v5603 = vmul.f32 %v5227, %v5568
  %v5604 = vmul.f32 %v5232, %v5568
  %v5605 = vmul.f32 %v5235, %v5568
  %v5606 = vmul.f32 %v5240, %v5568
  %v5607 = vmul.f32 %v5243, %v5568
  %v5608 = vmul.f32 %v5248, %v5568
  %v5609 = vmul.f32 %v5251, %v5568
  %v5610 = vmul.f32 %v5256, %v5568
  %v5611 = vmul.f32 %v5259, %v5568
  %v5612 = vmul.f32 %v5264, %v5568
  %v5613 = vmul.f32 %v5267, %v5568
  %v5614 = vmul.f32 %v5272, %v5568
  %v5615 = vmul.f32 %v5275, %v5568
  %v5616 = vmul.f32 %v5280, %v5568
  %v5617 = vmul.f32 %v5283, %v5568
  %v5618 = vmul.f32 %v5288, %v5568
  %v5619 = vmul.f32 %v5291, %v5568
  %v5620 = vmul.f32 %v5296, %v5568
  %v5621 = vmul.f32 %v5299, %v5568
  %v5622 = vmul.f32 %v5304, %v5568
  %v5623 = vmul.f32 %v5307, %v5568
  %v5624 = vmul.f32 %v5312, %v5568
  %v5625 = vmul.f32 %v5315, %v5568
  %v5626 = vmul.f32 %v5320, %v5568
  %v5627 = vmul.f32 %v5323, %v5568
  %v5628 = vmul.f32 %v5328, %v5568
  %v5629 = vmul.f32 %v5331, %v5568
  %v5630 = vmul.f32 %v5336, %v5568
  %v5631 = vmul.f32 %v5339, %v5568
  %v5632 = vmul.f32 %v5344, %v5568
  %v5633 = vmul.f32 %v5347, %v5568
  %v5635 = vlaneseq
  %v5636 = vshrl.u32 %v5635, 7
  %v5637 = vsub.s32 0, %v5636
  %v5638 = vrot.slane %v5563, %v5637
  %v5640 = vadd.f32 %v5570, %v5638
  %v5641 = vadd.f32 %v5571, %v5638
  %v5642 = vadd.f32 %v5572, %v5638
  %v5643 = vadd.f32 %v5573, %v5638
  %v5644 = vadd.f32 %v5574, %v5638
  %v5645 = vadd.f32 %v5575, %v5638
  %v5646 = vadd.f32 %v5576, %v5638
  %v5647 = vadd.f32 %v5577, %v5638
  %v5648 = vadd.f32 %v5578, %v5638
  %v5649 = vadd.f32 %v5579, %v5638
  %v5650 = vadd.f32 %v5580, %v5638
  %v5651 = vadd.f32 %v5581, %v5638
  %v5652 = vadd.f32 %v5582, %v5638
  %v5653 = vadd.f32 %v5583, %v5638
  %v5654 = vadd.f32 %v5584, %v5638
  %v5655 = vadd.f32 %v5585, %v5638
  %v5656 = vadd.f32 %v5586, %v5638
  %v5657 = vadd.f32 %v5587, %v5638
  %v5658 = vadd.f32 %v5588, %v5638
  %v5659 = vadd.f32 %v5589, %v5638
  %v5660 = vadd.f32 %v5590, %v5638
  %v5661 = vadd.f32 %v5591, %v5638
  %v5662 = vadd.f32 %v5592, %v5638
  %v5663 = vadd.f32 %v5593, %v5638
  %v5664 = vadd.f32 %v5594, %v5638
  %v5665 = vadd.f32 %v5595, %v5638
  %v5666 = vadd.f32 %v5596, %v5638
  %v5667 = vadd.f32 %v5597, %v5638
  %v5668 = vadd.f32 %v5598, %v5638
  %v5669 = vadd.f32 %v5599, %v5638
  %v5670 = vadd.f32 %v5600, %v5638
  %v5671 = vadd.f32 %v5601, %v5638
  %v5672 = vadd.f32 %v5602, %v5638
  %v5673 = vadd.f32 %v5603, %v5638
  %v5674 = vadd.f32 %v5604, %v5638
  %v5675 = vadd.f32 %v5605, %v5638
  %v5676 = vadd.f32 %v5606, %v5638
  %v5677 = vadd.f32 %v5607, %v5638
  %v5678 = vadd.f32 %v5608, %v5638
  %v5679 = vadd.f32 %v5609, %v5638
  %v5680 = vadd.f32 %v5610, %v5638
  %v5681 = vadd.f32 %v5611, %v5638
  %v5682 = vadd.f32 %v5612, %v5638
  %v5683 = vadd.f32 %v5613, %v5638
  %v5684 = vadd.f32 %v5614, %v5638
  %v5685 = vadd.f32 %v5615, %v5638
  %v5686 = vadd.f32 %v5616, %v5638
  %v5687 = vadd.f32 %v5617, %v5638
  %v5688 = vadd.f32 %v5618, %v5638
  %v5689 = vadd.f32 %v5619, %v5638
  %v5690 = vadd.f32 %v5620, %v5638
  %v5691 = vadd.f32 %v5621, %v5638
  %v5692 = vadd.f32 %v5622, %v5638
  %v5693 = vadd.f32 %v5623, %v5638
  %v5694 = vadd.f32 %v5624, %v5638
  %v5695 = vadd.f32 %v5625, %v5638
  %v5696 = vadd.f32 %v5626, %v5638
  %v5697 = vadd.f32 %v5627, %v5638
  %v5698 = vadd.f32 %v5628, %v5638
  %v5699 = vadd.f32 %v5629, %v5638
  %v5700 = vadd.f32 %v5630, %v5638
  %v5701 = vadd.f32 %v5631, %v5638
  %v5702 = vadd.f32 %v5632, %v5638
  %v5703 = vadd.f32 %v5633, %v5638
  %v5704 = vadd.f32 %v5640, %v1037
  %v5705 = vadd.f32 %v5641, %v1038
  %v5706 = vadd.f32 %v5642, %v1039
  %v5707 = vadd.f32 %v5643, %v1040
  %v5708 = vadd.f32 %v5644, %v1041
  %v5709 = vadd.f32 %v5645, %v1042
  %v5710 = vadd.f32 %v5646, %v1043
  %v5711 = vadd.f32 %v5647, %v1044
  %v5712 = vadd.f32 %v5648, %v1045
  %v5713 = vadd.f32 %v5649, %v1046
  %v5714 = vadd.f32 %v5650, %v1047
  %v5715 = vadd.f32 %v5651, %v1048
  %v5716 = vadd.f32 %v5652, %v1049
  %v5717 = vadd.f32 %v5653, %v1050
  %v5718 = vadd.f32 %v5654, %v1051
  %v5719 = vadd.f32 %v5655, %v1052
  %v5720 = vadd.f32 %v5656, %v1053
  %v5721 = vadd.f32 %v5657, %v1054
  %v5722 = vadd.f32 %v5658, %v1055
  %v5723 = vadd.f32 %v5659, %v1056
  %v5724 = vadd.f32 %v5660, %v1057
  %v5725 = vadd.f32 %v5661, %v1058
  %v5726 = vadd.f32 %v5662, %v1059
  %v5727 = vadd.f32 %v5663, %v1060
  %v5728 = vadd.f32 %v5664, %v1061
  %v5729 = vadd.f32 %v5665, %v1062
  %v5730 = vadd.f32 %v5666, %v1063
  %v5731 = vadd.f32 %v5667, %v1064
  %v5732 = vadd.f32 %v5668, %v1065
  %v5733 = vadd.f32 %v5669, %v1066
  %v5734 = vadd.f32 %v5670, %v1067
  %v5735 = vadd.f32 %v5671, %v1068
  %v5736 = vadd.f32 %v5672, %v1069
  %v5737 = vadd.f32 %v5673, %v1070
  %v5738 = vadd.f32 %v5674, %v1071
  %v5739 = vadd.f32 %v5675, %v1072
  %v5740 = vadd.f32 %v5676, %v1073
  %v5741 = vadd.f32 %v5677, %v1074
  %v5742 = vadd.f32 %v5678, %v1075
  %v5743 = vadd.f32 %v5679, %v1076
  %v5744 = vadd.f32 %v5680, %v1077
  %v5745 = vadd.f32 %v5681, %v1078
  %v5746 = vadd.f32 %v5682, %v1079
  %v5747 = vadd.f32 %v5683, %v1080
  %v5748 = vadd.f32 %v5684, %v1081
  %v5749 = vadd.f32 %v5685, %v1082
  %v5750 = vadd.f32 %v5686, %v1083
  %v5751 = vadd.f32 %v5687, %v1084
  %v5752 = vadd.f32 %v5688, %v1085
  %v5753 = vadd.f32 %v5689, %v1086
  %v5754 = vadd.f32 %v5690, %v1087
  %v5755 = vadd.f32 %v5691, %v1088
  %v5756 = vadd.f32 %v5692, %v1089
  %v5757 = vadd.f32 %v5693, %v1090
  %v5758 = vadd.f32 %v5694, %v1091
  %v5759 = vadd.f32 %v5695, %v1092
  %v5760 = vadd.f32 %v5696, %v1093
  %v5761 = vadd.f32 %v5697, %v1094
  %v5762 = vadd.f32 %v5698, %v1095
  %v5763 = vadd.f32 %v5699, %v1096
  %v5764 = vadd.f32 %v5700, %v1097
  %v5765 = vadd.f32 %v5701, %v1098
  %v5766 = vadd.f32 %v5702, %v1099
  %v5767 = vadd.f32 %v5703, %v1100
  %v5768 = vmax.f32 %v5704, 0.0
  %v5769 = vmax.f32 %v5705, 0.0
  %v5770 = vmax.f32 %v5706, 0.0
  %v5771 = vmax.f32 %v5707, 0.0
  %v5772 = vmax.f32 %v5708, 0.0
  %v5773 = vmax.f32 %v5709, 0.0
  %v5774 = vmax.f32 %v5710, 0.0
  %v5775 = vmax.f32 %v5711, 0.0
  %v5776 = vmax.f32 %v5712, 0.0
  %v5777 = vmax.f32 %v5713, 0.0
  %v5778 = vmax.f32 %v5714, 0.0
  %v5779 = vmax.f32 %v5715, 0.0
  %v5780 = vmax.f32 %v5716, 0.0
  %v5781 = vmax.f32 %v5717, 0.0
  %v5782 = vmax.f32 %v5718, 0.0
  %v5783 = vmax.f32 %v5719, 0.0
  %v5784 = vmax.f32 %v5720, 0.0
  %v5785 = vmax.f32 %v5721, 0.0
  %v5786 = vmax.f32 %v5722, 0.0
  %v5787 = vmax.f32 %v5723, 0.0
  %v5788 = vmax.f32 %v5724, 0.0
  %v5789 = vmax.f32 %v5725, 0.0
  %v5790 = vmax.f32 %v5726, 0.0
  %v5791 = vmax.f32 %v5727, 0.0
  %v5792 = vmax.f32 %v5728, 0.0
  %v5793 = vmax.f32 %v5729, 0.0
  %v5794 = vmax.f32 %v5730, 0.0
  %v5795 = vmax.f32 %v5731, 0.0
  %v5796 = vmax.f32 %v5732, 0.0
  %v5797 = vmax.f32 %v5733, 0.0
  %v5798 = vmax.f32 %v5734, 0.0
  %v5799 = vmax.f32 %v5735, 0.0
  %v5800 = vmax.f32 %v5736, 0.0
  %v5801 = vmax.f32 %v5737, 0.0
  %v5802 = vmax.f32 %v5738, 0.0
  %v5803 = vmax.f32 %v5739, 0.0
  %v5804 = vmax.f32 %v5740, 0.0
  %v5805 = vmax.f32 %v5741, 0.0
  %v5806 = vmax.f32 %v5742, 0.0
  %v5807 = vmax.f32 %v5743, 0.0
  %v5808 = vmax.f32 %v5744, 0.0
  %v5809 = vmax.f32 %v5745, 0.0
  %v5810 = vmax.f32 %v5746, 0.0
  %v5811 = vmax.f32 %v5747, 0.0
  %v5812 = vmax.f32 %v5748, 0.0
  %v5813 = vmax.f32 %v5749, 0.0
  %v5814 = vmax.f32 %v5750, 0.0
  %v5815 = vmax.f32 %v5751, 0.0
  %v5816 = vmax.f32 %v5752, 0.0
  %v5817 = vmax.f32 %v5753, 0.0
  %v5818 = vmax.f32 %v5754, 0.0
  %v5819 = vmax.f32 %v5755, 0.0
  %v5820 = vmax.f32 %v5756, 0.0
  %v5821 = vmax.f32 %v5757, 0.0
  %v5822 = vmax.f32 %v5758, 0.0
  %v5823 = vmax.f32 %v5759, 0.0
  %v5824 = vmax.f32 %v5760, 0.0
  %v5825 = vmax.f32 %v5761, 0.0
  %v5826 = vmax.f32 %v5762, 0.0
  %v5827 = vmax.f32 %v5763, 0.0
  %v5828 = vmax.f32 %v5764, 0.0
  %v5829 = vmax.f32 %v5765, 0.0
  %v5830 = vmax.f32 %v5766, 0.0
  %v5831 = vmax.f32 %v5767, 0.0
  %v5832 = vpack.c.bf16 %v5769, %v5768
  %v5833 = vpack.c.bf16 %v5771, %v5770
  %v5834 = vpack.c.bf16 %v5773, %v5772
  %v5835 = vpack.c.bf16 %v5775, %v5774
  %v5836 = vpack.c.bf16 %v5777, %v5776
  %v5837 = vpack.c.bf16 %v5779, %v5778
  %v5838 = vpack.c.bf16 %v5781, %v5780
  %v5839 = vpack.c.bf16 %v5783, %v5782
  %v5840 = vpack.c.bf16 %v5785, %v5784
  %v5841 = vpack.c.bf16 %v5787, %v5786
  %v5842 = vpack.c.bf16 %v5789, %v5788
  %v5843 = vpack.c.bf16 %v5791, %v5790
  %v5844 = vpack.c.bf16 %v5793, %v5792
  %v5845 = vpack.c.bf16 %v5795, %v5794
  %v5846 = vpack.c.bf16 %v5797, %v5796
  %v5847 = vpack.c.bf16 %v5799, %v5798
  %v5848 = vpack.c.bf16 %v5801, %v5800
  %v5849 = vpack.c.bf16 %v5803, %v5802
  %v5850 = vpack.c.bf16 %v5805, %v5804
  %v5851 = vpack.c.bf16 %v5807, %v5806
  %v5852 = vpack.c.bf16 %v5809, %v5808
  %v5853 = vpack.c.bf16 %v5811, %v5810
  %v5854 = vpack.c.bf16 %v5813, %v5812
  %v5855 = vpack.c.bf16 %v5815, %v5814
  %v5856 = vpack.c.bf16 %v5817, %v5816
  %v5857 = vpack.c.bf16 %v5819, %v5818
  %v5858 = vpack.c.bf16 %v5821, %v5820
  %v5859 = vpack.c.bf16 %v5823, %v5822
  %v5860 = vpack.c.bf16 %v5825, %v5824
  %v5861 = vpack.c.bf16 %v5827, %v5826
  %v5862 = vpack.c.bf16 %v5829, %v5828
  %v5863 = vpack.c.bf16 %v5831, %v5830
  %v5896 = vunpack.c.l.b16 %v5832
  %v5897 = vunpack.c.h.b16 %v5832
  %v5898 = vunpack.c.l.b16 %v5833
  %v5899 = vunpack.c.h.b16 %v5833
  %v5900 = vunpack.c.l.b16 %v5834
  %v5901 = vunpack.c.h.b16 %v5834
  %v5902 = vunpack.c.l.b16 %v5835
  %v5903 = vunpack.c.h.b16 %v5835
  %v5904 = vunpack.c.l.b16 %v5836
  %v5905 = vunpack.c.h.b16 %v5836
  %v5906 = vunpack.c.l.b16 %v5837
  %v5907 = vunpack.c.h.b16 %v5837
  %v5908 = vunpack.c.l.b16 %v5838
  %v5909 = vunpack.c.h.b16 %v5838
  %v5910 = vunpack.c.l.b16 %v5839
  %v5911 = vunpack.c.h.b16 %v5839
  %v5912 = vunpack.c.l.b16 %v5840
  %v5913 = vunpack.c.h.b16 %v5840
  %v5914 = vunpack.c.l.b16 %v5841
  %v5915 = vunpack.c.h.b16 %v5841
  %v5916 = vunpack.c.l.b16 %v5842
  %v5917 = vunpack.c.h.b16 %v5842
  %v5918 = vunpack.c.l.b16 %v5843
  %v5919 = vunpack.c.h.b16 %v5843
  %v5920 = vunpack.c.l.b16 %v5844
  %v5921 = vunpack.c.h.b16 %v5844
  %v5922 = vunpack.c.l.b16 %v5845
  %v5923 = vunpack.c.h.b16 %v5845
  %v5924 = vunpack.c.l.b16 %v5846
  %v5925 = vunpack.c.h.b16 %v5846
  %v5926 = vunpack.c.l.b16 %v5847
  %v5927 = vunpack.c.h.b16 %v5847
  %v5928 = vunpack.c.l.b16 %v5848
  %v5929 = vunpack.c.h.b16 %v5848
  %v5930 = vunpack.c.l.b16 %v5849
  %v5931 = vunpack.c.h.b16 %v5849
  %v5932 = vunpack.c.l.b16 %v5850
  %v5933 = vunpack.c.h.b16 %v5850
  %v5934 = vunpack.c.l.b16 %v5851
  %v5935 = vunpack.c.h.b16 %v5851
  %v5936 = vunpack.c.l.b16 %v5852
  %v5937 = vunpack.c.h.b16 %v5852
  %v5938 = vunpack.c.l.b16 %v5853
  %v5939 = vunpack.c.h.b16 %v5853
  %v5940 = vunpack.c.l.b16 %v5854
  %v5941 = vunpack.c.h.b16 %v5854
  %v5942 = vunpack.c.l.b16 %v5855
  %v5943 = vunpack.c.h.b16 %v5855
  %v5944 = vunpack.c.l.b16 %v5856
  %v5945 = vunpack.c.h.b16 %v5856
  %v5946 = vunpack.c.l.b16 %v5857
  %v5947 = vunpack.c.h.b16 %v5857
  %v5948 = vunpack.c.l.b16 %v5858
  %v5949 = vunpack.c.h.b16 %v5858
  %v5950 = vunpack.c.l.b16 %v5859
  %v5951 = vunpack.c.h.b16 %v5859
  %v5952 = vunpack.c.l.b16 %v5860
  %v5953 = vunpack.c.h.b16 %v5860
  %v5954 = vunpack.c.l.b16 %v5861
  %v5955 = vunpack.c.h.b16 %v5861
  %v5956 = vunpack.c.l.b16 %v5862
  %v5957 = vunpack.c.h.b16 %v5862
  %v5958 = vunpack.c.l.b16 %v5863
  %v5959 = vunpack.c.h.b16 %v5863
  %v5960 = vpack.c.b16 %v5896, %v5896
  %v5961 = vpack.c.b16 %v5897, %v5897
  %v5962 = vpack.c.b16 %v5898, %v5898
  %v5963 = vpack.c.b16 %v5899, %v5899
  %v5964 = vpack.c.b16 %v5900, %v5900
  %v5965 = vpack.c.b16 %v5901, %v5901
  %v5966 = vpack.c.b16 %v5902, %v5902
  %v5967 = vpack.c.b16 %v5903, %v5903
  %v5968 = vpack.c.b16 %v5904, %v5904
  %v5969 = vpack.c.b16 %v5905, %v5905
  %v5970 = vpack.c.b16 %v5906, %v5906
  %v5971 = vpack.c.b16 %v5907, %v5907
  %v5972 = vpack.c.b16 %v5908, %v5908
  %v5973 = vpack.c.b16 %v5909, %v5909
  %v5974 = vpack.c.b16 %v5910, %v5910
  %v5975 = vpack.c.b16 %v5911, %v5911
  %v5976 = vpack.c.b16 %v5912, %v5912
  %v5977 = vpack.c.b16 %v5913, %v5913
  %v5978 = vpack.c.b16 %v5914, %v5914
  %v5979 = vpack.c.b16 %v5915, %v5915
  %v5980 = vpack.c.b16 %v5916, %v5916
  %v5981 = vpack.c.b16 %v5917, %v5917
  %v5982 = vpack.c.b16 %v5918, %v5918
  %v5983 = vpack.c.b16 %v5919, %v5919
  %v5984 = vpack.c.b16 %v5920, %v5920
  %v5985 = vpack.c.b16 %v5921, %v5921
  %v5986 = vpack.c.b16 %v5922, %v5922
  %v5987 = vpack.c.b16 %v5923, %v5923
  %v5988 = vpack.c.b16 %v5924, %v5924
  %v5989 = vpack.c.b16 %v5925, %v5925
  %v5990 = vpack.c.b16 %v5926, %v5926
  %v5991 = vpack.c.b16 %v5927, %v5927
  %v5992 = vpack.c.b16 %v5928, %v5928
  %v5993 = vpack.c.b16 %v5929, %v5929
  %v5994 = vpack.c.b16 %v5930, %v5930
  %v5995 = vpack.c.b16 %v5931, %v5931
  %v5996 = vpack.c.b16 %v5932, %v5932
  %v5997 = vpack.c.b16 %v5933, %v5933
  %v5998 = vpack.c.b16 %v5934, %v5934
  %v5999 = vpack.c.b16 %v5935, %v5935
  %v6000 = vpack.c.b16 %v5936, %v5936
  %v6001 = vpack.c.b16 %v5937, %v5937
  %v6002 = vpack.c.b16 %v5938, %v5938
  %v6003 = vpack.c.b16 %v5939, %v5939
  %v6004 = vpack.c.b16 %v5940, %v5940
  %v6005 = vpack.c.b16 %v5941, %v5941
  %v6006 = vpack.c.b16 %v5942, %v5942
  %v6007 = vpack.c.b16 %v5943, %v5943
  %v6008 = vpack.c.b16 %v5944, %v5944
  %v6009 = vpack.c.b16 %v5945, %v5945
  %v6010 = vpack.c.b16 %v5946, %v5946
  %v6011 = vpack.c.b16 %v5947, %v5947
  %v6012 = vpack.c.b16 %v5948, %v5948
  %v6013 = vpack.c.b16 %v5949, %v5949
  %v6014 = vpack.c.b16 %v5950, %v5950
  %v6015 = vpack.c.b16 %v5951, %v5951
  %v6016 = vpack.c.b16 %v5952, %v5952
  %v6017 = vpack.c.b16 %v5953, %v5953
  %v6018 = vpack.c.b16 %v5954, %v5954
  %v6019 = vpack.c.b16 %v5955, %v5955
  %v6020 = vpack.c.b16 %v5956, %v5956
  %v6021 = vpack.c.b16 %v5957, %v5957
  %v6022 = vpack.c.b16 %v5958, %v5958
  %v6023 = vpack.c.b16 %v5959, %v5959
  %6088 = vst [vmem:[%s12] sm:$0xf] %v5960
  %6089 = vst [vmem:[%s12 + $0x4] sm:$0xf] %v5961
  %6090 = vst [vmem:[%s12 + $0x8] sm:$0xf] %v5962
  %6091 = vst [vmem:[%s12 + $0xc] sm:$0xf] %v5963
  %6092 = vst [vmem:[%s12 + $0x10] sm:$0xf] %v5964
  %6093 = vst [vmem:[%s12 + $0x14] sm:$0xf] %v5965
  %6094 = vst [vmem:[%s12 + $0x18] sm:$0xf] %v5966
  %6095 = vst [vmem:[%s12 + $0x1c] sm:$0xf] %v5967
  %6096 = vst [vmem:[%s12 + $0x20] sm:$0xf] %v5968
  %6097 = vst [vmem:[%s12 + $0x24] sm:$0xf] %v5969
  %6098 = vst [vmem:[%s12 + $0x28] sm:$0xf] %v5970
  %6099 = vst [vmem:[%s12 + $0x2c] sm:$0xf] %v5971
  %6100 = vst [vmem:[%s12 + $0x30] sm:$0xf] %v5972
  %6101 = vst [vmem:[%s12 + $0x34] sm:$0xf] %v5973
  %6102 = vst [vmem:[%s12 + $0x38] sm:$0xf] %v5974
  %6103 = vst [vmem:[%s12 + $0x3c] sm:$0xf] %v5975
  %6104 = vst [vmem:[%s12 + $0x40] sm:$0xf] %v5976
  %6105 = vst [vmem:[%s12 + $0x44] sm:$0xf] %v5977
  %6106 = vst [vmem:[%s12 + $0x48] sm:$0xf] %v5978
  %6107 = vst [vmem:[%s12 + $0x4c] sm:$0xf] %v5979
  %6108 = vst [vmem:[%s12 + $0x50] sm:$0xf] %v5980
  %6109 = vst [vmem:[%s12 + $0x54] sm:$0xf] %v5981
  %6110 = vst [vmem:[%s12 + $0x58] sm:$0xf] %v5982
  %6111 = vst [vmem:[%s12 + $0x5c] sm:$0xf] %v5983
  %6112 = vst [vmem:[%s12 + $0x60] sm:$0xf] %v5984
  %6113 = vst [vmem:[%s12 + $0x64] sm:$0xf] %v5985
  %6114 = vst [vmem:[%s12 + $0x68] sm:$0xf] %v5986
  %6115 = vst [vmem:[%s12 + $0x6c] sm:$0xf] %v5987
  %6116 = vst [vmem:[%s12 + $0x70] sm:$0xf] %v5988
  %6117 = vst [vmem:[%s12 + $0x74] sm:$0xf] %v5989
  %6118 = vst [vmem:[%s12 + $0x78] sm:$0xf] %v5990
  %6119 = vst [vmem:[%s12 + $0x7c] sm:$0xf] %v5991
  %6120 = vst [vmem:[%s12 + $0x80] sm:$0xf] %v5992
  %6121 = vst [vmem:[%s12 + $0x84] sm:$0xf] %v5993
  %6122 = vst [vmem:[%s12 + $0x88] sm:$0xf] %v5994
  %6123 = vst [vmem:[%s12 + $0x8c] sm:$0xf] %v5995
  %6124 = vst [vmem:[%s12 + $0x90] sm:$0xf] %v5996
  %6125 = vst [vmem:[%s12 + $0x94] sm:$0xf] %v5997
  %6126 = vst [vmem:[%s12 + $0x98] sm:$0xf] %v5998
  %6127 = vst [vmem:[%s12 + $0x9c] sm:$0xf] %v5999
  %6128 = vst [vmem:[%s12 + $0xa0] sm:$0xf] %v6000
  %6129 = vst [vmem:[%s12 + $0xa4] sm:$0xf] %v6001
  %6130 = vst [vmem:[%s12 + $0xa8] sm:$0xf] %v6002
  %6131 = vst [vmem:[%s12 + $0xac] sm:$0xf] %v6003
  %6132 = vst [vmem:[%s12 + $0xb0] sm:$0xf] %v6004
  %6133 = vst [vmem:[%s12 + $0xb4] sm:$0xf] %v6005
  %6134 = vst [vmem:[%s12 + $0xb8] sm:$0xf] %v6006
  %6135 = vst [vmem:[%s12 + $0xbc] sm:$0xf] %v6007
  %6136 = vst [vmem:[%s12 + $0xc0] sm:$0xf] %v6008
  %6137 = vst [vmem:[%s12 + $0xc4] sm:$0xf] %v6009
  %6138 = vst [vmem:[%s12 + $0xc8] sm:$0xf] %v6010
  %6139 = vst [vmem:[%s12 + $0xcc] sm:$0xf] %v6011
  %6140 = vst [vmem:[%s12 + $0xd0] sm:$0xf] %v6012
  %6141 = vst [vmem:[%s12 + $0xd4] sm:$0xf] %v6013
  %6142 = vst [vmem:[%s12 + $0xd8] sm:$0xf] %v6014
  %6143 = vst [vmem:[%s12 + $0xdc] sm:$0xf] %v6015
  %6144 = vst [vmem:[%s12 + $0xe0] sm:$0xf] %v6016
  %6145 = vst [vmem:[%s12 + $0xe4] sm:$0xf] %v6017
  %6146 = vst [vmem:[%s12 + $0xe8] sm:$0xf] %v6018
  %6147 = vst [vmem:[%s12 + $0xec] sm:$0xf] %v6019
  %6148 = vst [vmem:[%s12 + $0xf0] sm:$0xf] %v6020
  %6149 = vst [vmem:[%s12 + $0xf4] sm:$0xf] %v6021
  %6150 = vst [vmem:[%s12 + $0xf8] sm:$0xf] %v6022
  %6151 = vst [vmem:[%s12 + $0xfc] sm:$0xf] %v6023
  // Predicated region
  $region50: #{bottleneck_forward.1} parent=0 // pred_check
    _
  $region51: #{bottleneck_forward.1} parent=0 // pred_check_branch
    %6153 = sbr.rel (0) target = $region53
  $region52: #{bottleneck_forward.1} parent=0 // pred_region
    _
  $region53: #{bottleneck_forward.1} parent=0 // pred_fallthru
    _
  // Predicated region
  $region54: #{bottleneck_forward.1} parent=0 // pred_check
    _
  $region55: #{bottleneck_forward.1} parent=0 // pred_check_branch
    %6155 = sbr.rel (0) target = $region57
  $region56: #{bottleneck_forward.1} parent=0 // pred_region
    _
  $region57: #{bottleneck_forward.1} parent=0 // pred_fallthru
    _

</llo_original>
